<compile_context>
chip_gen: v5e
topology: v5e:2x2
jax: 0.10.0
libtpu: 0.0.40
codegen_flags: <defaults>
</compile_context>

<pallas_src>
import math
import jax
import jax.numpy as jnp
from jax.experimental import pallas as pl
from jax.experimental.pallas import tpu as pltpu

# ---- scaled-down umt5-xxl encoder config (synthetic weights) ----
VOCAB = 256
DIM = 128           # model dim       (4096 in umt5-xxl)
DIM_ATTN = 128      # attention dim   (4096)
NUM_HEADS = 4       # (64)
HEAD_DIM = DIM_ATTN // NUM_HEADS
DIM_FFN = 256       # (10240)
NUM_LAYERS = 2      # (24)
NUM_BUCKETS = 32
MAX_DIST = 128
SEQ_LEN = 128       # (512)
BATCH = 2
EPS = 1e-6
MASK_NEG = -1e9     # large-but-finite additive mask value


def _bf16_softmax_interior():
    # bf16 exp / scaling only where VPU/EUP are bf16-native (v6e / v7x);
    # keep f32 on v5e and earlier (no bf16 VPU/EUP -> casts would cost more).
    try:
        kind = jax.devices()[0].device_kind.lower()
    except Exception:
        return False
    return ("v6" in kind) or ("v7" in kind) or ("7x" in kind)


# ----------------------------- kernel helpers -----------------------------
def _rmsnorm(x, w):
    # T5LayerNorm: x * rsqrt(mean(x^2) + eps) * weight  (no mean-sub, no bias)
    var = jnp.mean(x * x, axis=-1, keepdims=True)
    return x * jax.lax.rsqrt(var + EPS) * w[None, :]


def _gelu_tanh(x):
    # Wan t5.py GELU (tanh approximation), computed in f32 on the VPU/EUP
    return 0.5 * x * (1.0 + jnp.tanh(math.sqrt(2.0 / math.pi)
                                     * (x + 0.044715 * x * x * x)))


def _softmax_rows(s, bf16_interior):
    # row softmax; max / denominator stats always f32, interior optionally bf16
    m = jnp.max(s, axis=-1, keepdims=True)
    if bf16_interior:
        p = jnp.exp((s - m).astype(jnp.bfloat16))
        denom = jnp.sum(p.astype(jnp.float32), axis=-1, keepdims=True)
        return p * pl.reciprocal(denom, approx=True).astype(jnp.bfloat16)
    p = jnp.exp(s - m)
    denom = jnp.sum(p, axis=-1, keepdims=True)
    return (p * pl.reciprocal(denom, approx=True)).astype(jnp.bfloat16)


# ----------------------------- fused Pallas kernel -----------------------------
def _make_kernel(B, L, D, bf16_softmax):
    def kernel(seq_ref,                      # scalar-prefetch: [B] int32 valid lengths (SMEM)
               x_ref, pb_ref,
               n1_ref, wqkv_ref, wo_ref,
               n2_ref, wg1_ref, wfc2_ref,
               fnorm_ref, o_ref, x_scr):
        layer = pl.program_id(0)
        n_layers = pl.num_programs(0)

        # Load the embedding into the residual-stream scratch at the first layer.
        @pl.when(layer == 0)
        def _():
            for b in range(B):
                x_scr[b * L:(b + 1) * L, :] = x_ref[b].astype(jnp.float32)

        x = x_scr[...]                                        # [B*L, D] f32 residual stream

        # per-batch additive key mask (0 valid / -1e9 pad) from prefetched lengths
        key_pos = jax.lax.broadcasted_iota(jnp.int32, (1, L), 1)
        mask_add = [jnp.where(key_pos < seq_ref[b], 0.0, MASK_NEG) for b in range(B)]

        # ---- self attention (T5: no 1/sqrt(d) scaling, rel-pos bias) ----
        h = _rmsnorm(x, n1_ref[0, 0, :]).astype(jnp.bfloat16)
        qkv = jnp.dot(h, wqkv_ref[0],
                      preferred_element_type=jnp.float32)     # [B*L, 3*Da], one fused matmul
        qkv = qkv.astype(jnp.bfloat16)

        batch_outs = []
        for b in range(B):
            rows = slice(b * L, (b + 1) * L)
            q_b = qkv[rows, 0:DIM_ATTN]
            k_b = qkv[rows, DIM_ATTN:2 * DIM_ATTN]
            v_b = qkv[rows, 2 * DIM_ATTN:3 * DIM_ATTN]
            head_outs = []
            for hh in range(NUM_HEADS):                       # static, lane-sliced head loop
                lanes = slice(hh * HEAD_DIM, (hh + 1) * HEAD_DIM)
                s = jax.lax.dot_general(
                    q_b[:, lanes], k_b[:, lanes],
                    (((1,), (1,)), ((), ())),
                    preferred_element_type=jnp.float32)       # [L, L]
                s = s + pb_ref[0, hh].astype(jnp.float32) + mask_add[b]
                attn = _softmax_rows(s, bf16_softmax)         # bf16 [L, L]
                head_outs.append(jnp.dot(attn, v_b[:, lanes],
                                         preferred_element_type=jnp.float32))
            batch_outs.append(jnp.concatenate(head_outs, axis=-1))   # lane-dense [L, Da]
        attn_out = jnp.concatenate(batch_outs, axis=0).astype(jnp.bfloat16)  # [B*L, Da]
        x = x + jnp.dot(attn_out, wo_ref[0], preferred_element_type=jnp.float32)

        # ---- gated tanh-GELU feed-forward (fused gate|fc1 matmul) ----
        h2 = _rmsnorm(x, n2_ref[0, 0, :]).astype(jnp.bfloat16)
        g1 = jnp.dot(h2, wg1_ref[0],
                     preferred_element_type=jnp.float32)      # [B*L, 2*FFN]
        gate = _gelu_tanh(g1[:, 0:DIM_FFN])
        ff = (g1[:, DIM_FFN:2 * DIM_FFN] * gate).astype(jnp.bfloat16)
        x = x + jnp.dot(ff, wfc2_ref[0], preferred_element_type=jnp.float32)

        x_scr[...] = x

        # Fused final RMSNorm + `u[v:] = 0.0` on the last layer iteration.
        @pl.when(layer == n_layers - 1)
        def _():
            y = _rmsnorm(x, fnorm_ref[0])
            row = jax.lax.broadcasted_iota(jnp.int32, (L, D), 0)
            for b in range(B):
                y_b = y[b * L:(b + 1) * L]
                o_ref[b] = jnp.where(row < seq_ref[b], y_b, 0.0).astype(o_ref.dtype)

    return kernel


# ----------------------------- wrapper -----------------------------
def run_encoder(x, seq_lens, pos_bias, p):
    B, L, D = x.shape
    n_layers = p['wqkv'].shape[0]
    kernel = _make_kernel(B, L, D, _bf16_softmax_interior())

    grid_spec = pltpu.PrefetchScalarGridSpec(
        num_scalar_prefetch=1,                 # seq_lens -> SMEM
        grid=(n_layers,),
        in_specs=[
            pl.BlockSpec((B, L, D), lambda l, sl: (0, 0, 0)),               # token embeds
            pl.BlockSpec((1, NUM_HEADS, L, L), lambda l, sl: (l, 0, 0, 0)), # pos bias (bf16)
            pl.BlockSpec((1, 1, D), lambda l, sl: (l, 0, 0)),               # norm1
            pl.BlockSpec((1, D, 3 * DIM_ATTN), lambda l, sl: (l, 0, 0)),    # wq|wk|wv fused
            pl.BlockSpec((1, DIM_ATTN, D), lambda l, sl: (l, 0, 0)),        # wo
            pl.BlockSpec((1, 1, D), lambda l, sl: (l, 0, 0)),               # norm2
            pl.BlockSpec((1, D, 2 * DIM_FFN), lambda l, sl: (l, 0, 0)),     # wgate|wfc1 fused
            pl.BlockSpec((1, DIM_FFN, D), lambda l, sl: (l, 0, 0)),         # wfc2
            pl.BlockSpec((1, D), lambda l, sl: (0, 0)),                     # final norm
        ],
        out_specs=pl.BlockSpec((B, L, D), lambda l, sl: (0, 0, 0)),
        scratch_shapes=[pltpu.VMEM((B * L, D), jnp.float32)],               # residual stream
    )
    return pl.pallas_call(
        kernel,
        out_shape=jax.ShapeDtypeStruct((B, L, D), jnp.float32),
        grid_spec=grid_spec,
        compiler_params=pltpu.CompilerParams(
            dimension_semantics=("arbitrary",)),    # layer axis carries the residual
    )(seq_lens, x, pos_bias,
      p['norm1'], p['wqkv'], p['wo'],
      p['norm2'], p['wg1'], p['wfc2'], p['final_norm'])


def relative_position_bucket(rel_pos):
    # UMT5 bidirectional relative position bucketing (matches Wan t5.py)
    nb = NUM_BUCKETS // 2
    rel_buckets = (rel_pos > 0).astype(jnp.int32) * nb
    rel_pos = jnp.abs(rel_pos)
    max_exact = nb // 2
    safe = jnp.maximum(rel_pos, 1).astype(jnp.float32)   # avoid log(0)
    rel_pos_large = max_exact + (
        jnp.log(safe / max_exact)
        / math.log(MAX_DIST / max_exact) * (nb - max_exact)
    ).astype(jnp.int32)
    rel_pos_large = jnp.minimum(rel_pos_large, nb - 1)
    rel_buckets = rel_buckets + jnp.where(rel_pos < max_exact, rel_pos, rel_pos_large)
    return rel_buckets


def wan_text_encoder_forward(params, ids, mask):
    """ids: int32 [B, L]; mask: int32 [B, L] (1 valid / 0 pad, trailing padding).
    Returns {'prompt_embeds': float32 [B, L, D]}."""
    x = jnp.take(params['token_embedding'], ids, axis=0).astype(jnp.float32)  # [B, L, D]
    B, L, _ = x.shape

    # per-prompt valid lengths (seq_lens = mask.gt(0).sum(dim=1) in the reference)
    seq_lens = jnp.sum((mask > 0).astype(jnp.int32), axis=1).astype(jnp.int32)  # [B]

    # relative positions: rel[q, k] = k - q  (same buckets for every layer)
    rel = jnp.arange(L, dtype=jnp.int32)[None, :] - jnp.arange(L, dtype=jnp.int32)[:, None]
    buckets = relative_position_bucket(rel)                                   # [L, L]
    pos_bias = jnp.take(params['rel_emb'], buckets, axis=1)                   # [NL, L, L, H]
    pos_bias = jnp.transpose(pos_bias, (0, 3, 1, 2)).astype(jnp.bfloat16)     # [NL, H, L, L]

    out = run_encoder(x, seq_lens, pos_bias, params)
    return {'prompt_embeds': out}


# ----------------------------- deterministic init -----------------------------
def init_params(key):
    keys = iter(jax.random.split(key, 16))

    def nrm(shape, scale=0.02, dtype=jnp.bfloat16):
        return (scale * jax.random.normal(next(keys), shape, dtype=jnp.float32)).astype(dtype)

    return {
        'token_embedding': nrm((VOCAB, DIM), 1.0, jnp.float32),
        'final_norm': jnp.ones((1, DIM), jnp.float32),
        'norm1': jnp.ones((NUM_LAYERS, 1, DIM), jnp.float32),
        'norm2': jnp.ones((NUM_LAYERS, 1, DIM), jnp.float32),
        'wqkv': nrm((NUM_LAYERS, DIM, 3 * DIM_ATTN)),    # [wq | wk | wv] fused
        'wo': nrm((NUM_LAYERS, DIM_ATTN, DIM)),
        'wg1': nrm((NUM_LAYERS, DIM, 2 * DIM_FFN)),      # [wgate | wfc1] fused
        'wfc2': nrm((NUM_LAYERS, DIM_FFN, DIM)),
        'rel_emb': nrm((NUM_LAYERS, NUM_BUCKETS, NUM_HEADS), 1.0, jnp.float32),
    }


if __name__ == "__main__":
    key = jax.random.PRNGKey(0)
    kp, kid = jax.random.split(key)
    params = init_params(kp)

    # synthetic "tokenized" prompts: ids + attention mask (see tokenizer TODO above)
    ids = jax.random.randint(kid, (BATCH, SEQ_LEN), 0, VOCAB, dtype=jnp.int32)
    seq_lens = jnp.array([96, 64], dtype=jnp.int32)
    mask = (jnp.arange(SEQ_LEN, dtype=jnp.int32)[None, :] < seq_lens[:, None]).astype(jnp.int32)

    out = wan_text_encoder_forward(params, ids, mask)
    jax.block_until_ready(out['prompt_embeds'])
    assert out['prompt_embeds'].shape == (BATCH, SEQ_LEN, DIM)
    assert bool(jnp.all(jnp.isfinite(out['prompt_embeds'])))
    print("KERNEL_OK")
</pallas_src>

<mosaic_0001>
module attributes {stable_mosaic.version = 11 : i64} {
  func.func @kernel(%arg0: i32, %arg1: memref<2xi32, #tpu.memory_space<smem>>, %arg2: memref<2x128x128xf32, #tpu.memory_space<vmem>>, %arg3: memref<1x4x128x128xbf16, #tpu.memory_space<vmem>>, %arg4: memref<1x1x128xf32, #tpu.memory_space<vmem>>, %arg5: memref<1x128x384xbf16, #tpu.memory_space<vmem>>, %arg6: memref<1x128x128xbf16, #tpu.memory_space<vmem>>, %arg7: memref<1x1x128xf32, #tpu.memory_space<vmem>>, %arg8: memref<1x128x512xbf16, #tpu.memory_space<vmem>>, %arg9: memref<1x256x128xbf16, #tpu.memory_space<vmem>>, %arg10: memref<1x128xf32, #tpu.memory_space<vmem>>, %arg11: memref<2x128x128xf32, #tpu.memory_space<vmem>>, %arg12: memref<256x128xf32, #tpu.memory_space<vmem>>) attributes {dimension_semantics = [#tpu.dimension_semantics<arbitrary>], iteration_bounds = array<i64: 2>, scalar_prefetch = 1 : i64, scratch_operands = 1 : i64, tpu.core_type = #tpu.core_type<tc>, window_params = [{pipeline_mode = #tpu.pipeline_mode<synchronous>, transform_indices = @transform_0, window_bounds = array<i64: 2, 128, 128>}, {transform_indices = @transform_1, window_bounds = array<i64: 1, 4, 128, 128>}, {transform_indices = @transform_2, window_bounds = array<i64: 1, 1, 128>}, {transform_indices = @transform_3, window_bounds = array<i64: 1, 128, 384>}, {transform_indices = @transform_4, window_bounds = array<i64: 1, 128, 128>}, {transform_indices = @transform_5, window_bounds = array<i64: 1, 1, 128>}, {transform_indices = @transform_6, window_bounds = array<i64: 1, 128, 512>}, {transform_indices = @transform_7, window_bounds = array<i64: 1, 256, 128>}, {pipeline_mode = #tpu.pipeline_mode<synchronous>, transform_indices = @transform_8, window_bounds = array<i64: 1, 128>}, {pipeline_mode = #tpu.pipeline_mode<synchronous>, transform_indices = @transform_9, window_bounds = array<i64: 2, 128, 128>}]} {
    %c0_i32 = arith.constant 0 : i32
    %0 = arith.cmpi eq, %arg0, %c0_i32 : i32
    %1 = arith.extui %0 : i1 to i32
    %c0_i32_0 = arith.constant 0 : i32
    %2 = arith.cmpi ne, %1, %c0_i32_0 : i32
    scf.if %2 {
      %c0_103 = arith.constant 0 : index
      %c0_104 = arith.constant 0 : index
      %c0_105 = arith.constant 0 : index
      %271 = vector.load %arg2[%c0_103, %c0_104, %c0_105] : memref<2x128x128xf32, #tpu.memory_space<vmem>>, vector<1x128x128xf32>
      %272 = vector.shape_cast %271 : vector<1x128x128xf32> to vector<128x128xf32>
      %c0_106 = arith.constant 0 : index
      %c0_107 = arith.constant 0 : index
      %273 = vector.load %arg12[%c0_106, %c0_107] : memref<256x128xf32, #tpu.memory_space<vmem>>, vector<128x128xf32>
      tpu.vector_store %arg12[%c0_106, %c0_107], %272 {strides = array<i32>} : memref<256x128xf32, #tpu.memory_space<vmem>>, vector<128x128xf32>,
      %c1_108 = arith.constant 1 : index
      %c0_109 = arith.constant 0 : index
      %c0_110 = arith.constant 0 : index
      %274 = vector.load %arg2[%c1_108, %c0_109, %c0_110] : memref<2x128x128xf32, #tpu.memory_space<vmem>>, vector<1x128x128xf32>
      %275 = vector.shape_cast %274 : vector<1x128x128xf32> to vector<128x128xf32>
      %c128 = arith.constant 128 : index
      %c0_111 = arith.constant 0 : index
      %276 = vector.load %arg12[%c128, %c0_111] : memref<256x128xf32, #tpu.memory_space<vmem>>, vector<128x128xf32>
      tpu.vector_store %arg12[%c128, %c0_111], %275 {strides = array<i32>} : memref<256x128xf32, #tpu.memory_space<vmem>>, vector<128x128xf32>,
    } else {
    }
    %c0 = arith.constant 0 : index
    %c0_1 = arith.constant 0 : index
    %3 = vector.load %arg12[%c0, %c0_1] : memref<256x128xf32, #tpu.memory_space<vmem>>, vector<256x128xf32>
    %4 = tpu.iota {dimensions = array<i32: 1>} : vector<1x128xi32>
    %c0_2 = arith.constant 0 : index
    %5 = memref.load %arg1[%c0_2] : memref<2xi32, #tpu.memory_space<smem>>
    %6 = vector.broadcast %5 : i32 to vector<1x128xi32>
    %7 = arith.cmpi slt, %4, %6 : vector<1x128xi32>
    %cst = arith.constant 0.000000e+00 : f32
    %cst_3 = arith.constant -1.000000e+09 : f32
    %8 = vector.broadcast %cst : f32 to vector<1x128xf32>
    %9 = vector.broadcast %cst_3 : f32 to vector<1x128xf32>
    %10 = arith.select %7, %8, %9 : vector<1x128xi1>, vector<1x128xf32>
    %c1 = arith.constant 1 : index
    %11 = memref.load %arg1[%c1] : memref<2xi32, #tpu.memory_space<smem>>
    %12 = vector.broadcast %11 : i32 to vector<1x128xi32>
    %13 = arith.cmpi slt, %4, %12 : vector<1x128xi32>
    %cst_4 = arith.constant 0.000000e+00 : f32
    %cst_5 = arith.constant -1.000000e+09 : f32
    %14 = vector.broadcast %cst_4 : f32 to vector<1x128xf32>
    %15 = vector.broadcast %cst_5 : f32 to vector<1x128xf32>
    %16 = arith.select %13, %14, %15 : vector<1x128xi1>, vector<1x128xf32>
    %c0_6 = arith.constant 0 : index
    %c0_7 = arith.constant 0 : index
    %c0_8 = arith.constant 0 : index
    %17 = vector.load %arg4[%c0_6, %c0_7, %c0_8] : memref<1x1x128xf32, #tpu.memory_space<vmem>>, vector<1x1x128xf32>
    %18 = vector.shape_cast %17 : vector<1x1x128xf32> to vector<128xf32>
    %19 = arith.mulf %3, %3 : vector<256x128xf32>
    %cst_9 = arith.constant dense<0.000000e+00> : vector<256xf32>
    %20 = vector.multi_reduction <add>, %19, %cst_9 [1] : vector<256x128xf32> to vector<256xf32>
    %21 = vector.shape_cast %20 : vector<256xf32> to vector<256x1xf32>
    %cst_10 = arith.constant 1.280000e+02 : f32
    %22 = vector.broadcast %cst_10 : f32 to vector<256x1xf32>
    %23 = arith.divf %21, %22 : vector<256x1xf32>
    %cst_11 = arith.constant 9.99999997E-7 : f32
    %24 = vector.broadcast %cst_11 : f32 to vector<256x1xf32>
    %25 = arith.addf %23, %24 : vector<256x1xf32>
    %26 = math.rsqrt %25 : vector<256x1xf32>
    %27 = vector.broadcast %26 : vector<256x1xf32> to vector<256x128xf32>
    %28 = arith.mulf %3, %27 : vector<256x128xf32>
    %29 = vector.shape_cast %18 : vector<128xf32> to vector<1x128xf32>
    %30 = vector.broadcast %29 : vector<1x128xf32> to vector<256x128xf32>
    %31 = arith.mulf %28, %30 : vector<256x128xf32>
    %32 = arith.truncf %31 : vector<256x128xf32> to vector<256x128xbf16>
    %c0_12 = arith.constant 0 : index
    %c0_13 = arith.constant 0 : index
    %c0_14 = arith.constant 0 : index
    %33 = vector.load %arg5[%c0_12, %c0_13, %c0_14] : memref<1x128x384xbf16, #tpu.memory_space<vmem>>, vector<1x128x384xbf16>
    %34 = vector.shape_cast %33 : vector<1x128x384xbf16> to vector<128x384xbf16>
    %cst_15 = arith.constant dense<0.000000e+00> : vector<256x384xf32>
    %35 = tpu.matmul %32, %34, %cst_15 {dimension_numbers = #tpu.dot_dimension_numbers<[1], [0], [0], [1], [0, 0, 1, 1], [], []>} : vector<256x128xbf16>, vector<128x384xbf16>, vector<256x384xf32> -> vector<256x384xf32>
    %36 = arith.truncf %35 : vector<256x384xf32> to vector<256x384xbf16>
    %37 = vector.extract_strided_slice %36 {offsets = [0, 0], sizes = [128, 128], strides = [1, 1]} : vector<256x384xbf16> to vector<128x128xbf16>
    %38 = vector.extract_strided_slice %36 {offsets = [0, 128], sizes = [128, 128], strides = [1, 1]} : vector<256x384xbf16> to vector<128x128xbf16>
    %39 = vector.extract_strided_slice %36 {offsets = [0, 256], sizes = [128, 128], strides = [1, 1]} : vector<256x384xbf16> to vector<128x128xbf16>
    %40 = vector.extract_strided_slice %37 {offsets = [0, 0], sizes = [128, 32], strides = [1, 1]} : vector<128x128xbf16> to vector<128x32xbf16>
    %41 = vector.extract_strided_slice %38 {offsets = [0, 0], sizes = [128, 32], strides = [1, 1]} : vector<128x128xbf16> to vector<128x32xbf16>
    %cst_16 = arith.constant dense<0.000000e+00> : vector<128x128xf32>
    %42 = tpu.matmul %40, %41, %cst_16 {dimension_numbers = #tpu.dot_dimension_numbers<[1], [1], [0], [0], [0, 0, 1, 0], [], []>} : vector<128x32xbf16>, vector<128x32xbf16>, vector<128x128xf32> -> vector<128x128xf32>
    %c0_17 = arith.constant 0 : index
    %c0_18 = arith.constant 0 : index
    %c0_19 = arith.constant 0 : index
    %c0_20 = arith.constant 0 : index
    %43 = vector.load %arg3[%c0_17, %c0_18, %c0_19, %c0_20] : memref<1x4x128x128xbf16, #tpu.memory_space<vmem>>, vector<1x1x128x128xbf16>
    %44 = vector.shape_cast %43 : vector<1x1x128x128xbf16> to vector<128x128xbf16>
    %45 = arith.extf %44 : vector<128x128xbf16> to vector<128x128xf32>
    %46 = arith.addf %42, %45 : vector<128x128xf32>
    %47 = vector.broadcast %10 : vector<1x128xf32> to vector<128x128xf32>
    %48 = arith.addf %46, %47 : vector<128x128xf32>
    %cst_21 = arith.constant dense<0xFF800000> : vector<128xf32>
    %49 = vector.multi_reduction <maximumf>, %48, %cst_21 [1] : vector<128x128xf32> to vector<128xf32>
    %50 = vector.shape_cast %49 : vector<128xf32> to vector<128x1xf32>
    %51 = vector.broadcast %50 : vector<128x1xf32> to vector<128x128xf32>
    %52 = arith.subf %48, %51 : vector<128x128xf32>
    %53 = math.exp %52 : vector<128x128xf32>
    %cst_22 = arith.constant dense<0.000000e+00> : vector<128xf32>
    %54 = vector.multi_reduction <add>, %53, %cst_22 [1] : vector<128x128xf32> to vector<128xf32>
    %55 = vector.shape_cast %54 : vector<128xf32> to vector<128x1xf32>
    %56 = tpu.reciprocal %55 {approx = true} : vector<128x1xf32> -> vector<128x1xf32>
    %57 = vector.broadcast %56 : vector<128x1xf32> to vector<128x128xf32>
    %58 = arith.mulf %53, %57 : vector<128x128xf32>
    %59 = arith.truncf %58 : vector<128x128xf32> to vector<128x128xbf16>
    %60 = vector.extract_strided_slice %39 {offsets = [0, 0], sizes = [128, 32], strides = [1, 1]} : vector<128x128xbf16> to vector<128x32xbf16>
    %cst_23 = arith.constant dense<0.000000e+00> : vector<128x32xf32>
    %61 = tpu.matmul %59, %60, %cst_23 {dimension_numbers = #tpu.dot_dimension_numbers<[1], [0], [0], [1], [0, 0, 1, 1], [], []>} : vector<128x128xbf16>, vector<128x32xbf16>, vector<128x32xf32> -> vector<128x32xf32>
    %62 = vector.extract_strided_slice %37 {offsets = [0, 32], sizes = [128, 32], strides = [1, 1]} : vector<128x128xbf16> to vector<128x32xbf16>
    %63 = vector.extract_strided_slice %38 {offsets = [0, 32], sizes = [128, 32], strides = [1, 1]} : vector<128x128xbf16> to vector<128x32xbf16>
    %cst_24 = arith.constant dense<0.000000e+00> : vector<128x128xf32>
    %64 = tpu.matmul %62, %63, %cst_24 {dimension_numbers = #tpu.dot_dimension_numbers<[1], [1], [0], [0], [0, 0, 1, 0], [], []>} : vector<128x32xbf16>, vector<128x32xbf16>, vector<128x128xf32> -> vector<128x128xf32>
    %c0_25 = arith.constant 0 : index
    %c1_26 = arith.constant 1 : index
    %c0_27 = arith.constant 0 : index
    %c0_28 = arith.constant 0 : index
    %65 = vector.load %arg3[%c0_25, %c1_26, %c0_27, %c0_28] : memref<1x4x128x128xbf16, #tpu.memory_space<vmem>>, vector<1x1x128x128xbf16>
    %66 = vector.shape_cast %65 : vector<1x1x128x128xbf16> to vector<128x128xbf16>
    %67 = arith.extf %66 : vector<128x128xbf16> to vector<128x128xf32>
    %68 = arith.addf %64, %67 : vector<128x128xf32>
    %69 = vector.broadcast %10 : vector<1x128xf32> to vector<128x128xf32>
    %70 = arith.addf %68, %69 : vector<128x128xf32>
    %cst_29 = arith.constant dense<0xFF800000> : vector<128xf32>
    %71 = vector.multi_reduction <maximumf>, %70, %cst_29 [1] : vector<128x128xf32> to vector<128xf32>
    %72 = vector.shape_cast %71 : vector<128xf32> to vector<128x1xf32>
    %73 = vector.broadcast %72 : vector<128x1xf32> to vector<128x128xf32>
    %74 = arith.subf %70, %73 : vector<128x128xf32>
    %75 = math.exp %74 : vector<128x128xf32>
    %cst_30 = arith.constant dense<0.000000e+00> : vector<128xf32>
    %76 = vector.multi_reduction <add>, %75, %cst_30 [1] : vector<128x128xf32> to vector<128xf32>
    %77 = vector.shape_cast %76 : vector<128xf32> to vector<128x1xf32>
    %78 = tpu.reciprocal %77 {approx = true} : vector<128x1xf32> -> vector<128x1xf32>
    %79 = vector.broadcast %78 : vector<128x1xf32> to vector<128x128xf32>
    %80 = arith.mulf %75, %79 : vector<128x128xf32>
    %81 = arith.truncf %80 : vector<128x128xf32> to vector<128x128xbf16>
    %82 = vector.extract_strided_slice %39 {offsets = [0, 32], sizes = [128, 32], strides = [1, 1]} : vector<128x128xbf16> to vector<128x32xbf16>
    %cst_31 = arith.constant dense<0.000000e+00> : vector<128x32xf32>
    %83 = tpu.matmul %81, %82, %cst_31 {dimension_numbers = #tpu.dot_dimension_numbers<[1], [0], [0], [1], [0, 0, 1, 1], [], []>} : vector<128x128xbf16>, vector<128x32xbf16>, vector<128x32xf32> -> vector<128x32xf32>
    %84 = vector.extract_strided_slice %37 {offsets = [0, 64], sizes = [128, 32], strides = [1, 1]} : vector<128x128xbf16> to vector<128x32xbf16>
    %85 = vector.extract_strided_slice %38 {offsets = [0, 64], sizes = [128, 32], strides = [1, 1]} : vector<128x128xbf16> to vector<128x32xbf16>
    %cst_32 = arith.constant dense<0.000000e+00> : vector<128x128xf32>
    %86 = tpu.matmul %84, %85, %cst_32 {dimension_numbers = #tpu.dot_dimension_numbers<[1], [1], [0], [0], [0, 0, 1, 0], [], []>} : vector<128x32xbf16>, vector<128x32xbf16>, vector<128x128xf32> -> vector<128x128xf32>
    %c0_33 = arith.constant 0 : index
    %c2 = arith.constant 2 : index
    %c0_34 = arith.constant 0 : index
    %c0_35 = arith.constant 0 : index
    %87 = vector.load %arg3[%c0_33, %c2, %c0_34, %c0_35] : memref<1x4x128x128xbf16, #tpu.memory_space<vmem>>, vector<1x1x128x128xbf16>
    %88 = vector.shape_cast %87 : vector<1x1x128x128xbf16> to vector<128x128xbf16>
    %89 = arith.extf %88 : vector<128x128xbf16> to vector<128x128xf32>
    %90 = arith.addf %86, %89 : vector<128x128xf32>
    %91 = vector.broadcast %10 : vector<1x128xf32> to vector<128x128xf32>
    %92 = arith.addf %90, %91 : vector<128x128xf32>
    %cst_36 = arith.constant dense<0xFF800000> : vector<128xf32>
    %93 = vector.multi_reduction <maximumf>, %92, %cst_36 [1] : vector<128x128xf32> to vector<128xf32>
    %94 = vector.shape_cast %93 : vector<128xf32> to vector<128x1xf32>
    %95 = vector.broadcast %94 : vector<128x1xf32> to vector<128x128xf32>
    %96 = arith.subf %92, %95 : vector<128x128xf32>
    %97 = math.exp %96 : vector<128x128xf32>
    %cst_37 = arith.constant dense<0.000000e+00> : vector<128xf32>
    %98 = vector.multi_reduction <add>, %97, %cst_37 [1] : vector<128x128xf32> to vector<128xf32>
    %99 = vector.shape_cast %98 : vector<128xf32> to vector<128x1xf32>
    %100 = tpu.reciprocal %99 {approx = true} : vector<128x1xf32> -> vector<128x1xf32>
    %101 = vector.broadcast %100 : vector<128x1xf32> to vector<128x128xf32>
    %102 = arith.mulf %97, %101 : vector<128x128xf32>
    %103 = arith.truncf %102 : vector<128x128xf32> to vector<128x128xbf16>
    %104 = vector.extract_strided_slice %39 {offsets = [0, 64], sizes = [128, 32], strides = [1, 1]} : vector<128x128xbf16> to vector<128x32xbf16>
    %cst_38 = arith.constant dense<0.000000e+00> : vector<128x32xf32>
    %105 = tpu.matmul %103, %104, %cst_38 {dimension_numbers = #tpu.dot_dimension_numbers<[1], [0], [0], [1], [0, 0, 1, 1], [], []>} : vector<128x128xbf16>, vector<128x32xbf16>, vector<128x32xf32> -> vector<128x32xf32>
    %106 = vector.extract_strided_slice %37 {offsets = [0, 96], sizes = [128, 32], strides = [1, 1]} : vector<128x128xbf16> to vector<128x32xbf16>
    %107 = vector.extract_strided_slice %38 {offsets = [0, 96], sizes = [128, 32], strides = [1, 1]} : vector<128x128xbf16> to vector<128x32xbf16>
    %cst_39 = arith.constant dense<0.000000e+00> : vector<128x128xf32>
    %108 = tpu.matmul %106, %107, %cst_39 {dimension_numbers = #tpu.dot_dimension_numbers<[1], [1], [0], [0], [0, 0, 1, 0], [], []>} : vector<128x32xbf16>, vector<128x32xbf16>, vector<128x128xf32> -> vector<128x128xf32>
    %c0_40 = arith.constant 0 : index
    %c3 = arith.constant 3 : index
    %c0_41 = arith.constant 0 : index
    %c0_42 = arith.constant 0 : index
    %109 = vector.load %arg3[%c0_40, %c3, %c0_41, %c0_42] : memref<1x4x128x128xbf16, #tpu.memory_space<vmem>>, vector<1x1x128x128xbf16>
    %110 = vector.shape_cast %109 : vector<1x1x128x128xbf16> to vector<128x128xbf16>
    %111 = arith.extf %110 : vector<128x128xbf16> to vector<128x128xf32>
    %112 = arith.addf %108, %111 : vector<128x128xf32>
    %113 = vector.broadcast %10 : vector<1x128xf32> to vector<128x128xf32>
    %114 = arith.addf %112, %113 : vector<128x128xf32>
    %cst_43 = arith.constant dense<0xFF800000> : vector<128xf32>
    %115 = vector.multi_reduction <maximumf>, %114, %cst_43 [1] : vector<128x128xf32> to vector<128xf32>
    %116 = vector.shape_cast %115 : vector<128xf32> to vector<128x1xf32>
    %117 = vector.broadcast %116 : vector<128x1xf32> to vector<128x128xf32>
    %118 = arith.subf %114, %117 : vector<128x128xf32>
    %119 = math.exp %118 : vector<128x128xf32>
    %cst_44 = arith.constant dense<0.000000e+00> : vector<128xf32>
    %120 = vector.multi_reduction <add>, %119, %cst_44 [1] : vector<128x128xf32> to vector<128xf32>
    %121 = vector.shape_cast %120 : vector<128xf32> to vector<128x1xf32>
    %122 = tpu.reciprocal %121 {approx = true} : vector<128x1xf32> -> vector<128x1xf32>
    %123 = vector.broadcast %122 : vector<128x1xf32> to vector<128x128xf32>
    %124 = arith.mulf %119, %123 : vector<128x128xf32>
    %125 = arith.truncf %124 : vector<128x128xf32> to vector<128x128xbf16>
    %126 = vector.extract_strided_slice %39 {offsets = [0, 96], sizes = [128, 32], strides = [1, 1]} : vector<128x128xbf16> to vector<128x32xbf16>
    %cst_45 = arith.constant dense<0.000000e+00> : vector<128x32xf32>
    %127 = tpu.matmul %125, %126, %cst_45 {dimension_numbers = #tpu.dot_dimension_numbers<[1], [0], [0], [1], [0, 0, 1, 1], [], []>} : vector<128x128xbf16>, vector<128x32xbf16>, vector<128x32xf32> -> vector<128x32xf32>
    %128 = tpu.concatenate %61, %83, %105, %127 in 1 : vector<128x32xf32>, vector<128x32xf32>, vector<128x32xf32>, vector<128x32xf32> -> vector<128x128xf32>
    %129 = vector.extract_strided_slice %36 {offsets = [128, 0], sizes = [128, 128], strides = [1, 1]} : vector<256x384xbf16> to vector<128x128xbf16>
    %130 = vector.extract_strided_slice %36 {offsets = [128, 128], sizes = [128, 128], strides = [1, 1]} : vector<256x384xbf16> to vector<128x128xbf16>
    %131 = vector.extract_strided_slice %36 {offsets = [128, 256], sizes = [128, 128], strides = [1, 1]} : vector<256x384xbf16> to vector<128x128xbf16>
    %132 = vector.extract_strided_slice %129 {offsets = [0, 0], sizes = [128, 32], strides = [1, 1]} : vector<128x128xbf16> to vector<128x32xbf16>
    %133 = vector.extract_strided_slice %130 {offsets = [0, 0], sizes = [128, 32], strides = [1, 1]} : vector<128x128xbf16> to vector<128x32xbf16>
    %cst_46 = arith.constant dense<0.000000e+00> : vector<128x128xf32>
    %134 = tpu.matmul %132, %133, %cst_46 {dimension_numbers = #tpu.dot_dimension_numbers<[1], [1], [0], [0], [0, 0, 1, 0], [], []>} : vector<128x32xbf16>, vector<128x32xbf16>, vector<128x128xf32> -> vector<128x128xf32>
    %c0_47 = arith.constant 0 : index
    %c0_48 = arith.constant 0 : index
    %c0_49 = arith.constant 0 : index
    %c0_50 = arith.constant 0 : index
    %135 = vector.load %arg3[%c0_47, %c0_48, %c0_49, %c0_50] : memref<1x4x128x128xbf16, #tpu.memory_space<vmem>>, vector<1x1x128x128xbf16>
    %136 = vector.shape_cast %135 : vector<1x1x128x128xbf16> to vector<128x128xbf16>
    %137 = arith.extf %136 : vector<128x128xbf16> to vector<128x128xf32>
    %138 = arith.addf %134, %137 : vector<128x128xf32>
    %139 = vector.broadcast %16 : vector<1x128xf32> to vector<128x128xf32>
    %140 = arith.addf %138, %139 : vector<128x128xf32>
    %cst_51 = arith.constant dense<0xFF800000> : vector<128xf32>
    %141 = vector.multi_reduction <maximumf>, %140, %cst_51 [1] : vector<128x128xf32> to vector<128xf32>
    %142 = vector.shape_cast %141 : vector<128xf32> to vector<128x1xf32>
    %143 = vector.broadcast %142 : vector<128x1xf32> to vector<128x128xf32>
    %144 = arith.subf %140, %143 : vector<128x128xf32>
    %145 = math.exp %144 : vector<128x128xf32>
    %cst_52 = arith.constant dense<0.000000e+00> : vector<128xf32>
    %146 = vector.multi_reduction <add>, %145, %cst_52 [1] : vector<128x128xf32> to vector<128xf32>
    %147 = vector.shape_cast %146 : vector<128xf32> to vector<128x1xf32>
    %148 = tpu.reciprocal %147 {approx = true} : vector<128x1xf32> -> vector<128x1xf32>
    %149 = vector.broadcast %148 : vector<128x1xf32> to vector<128x128xf32>
    %150 = arith.mulf %145, %149 : vector<128x128xf32>
    %151 = arith.truncf %150 : vector<128x128xf32> to vector<128x128xbf16>
    %152 = vector.extract_strided_slice %131 {offsets = [0, 0], sizes = [128, 32], strides = [1, 1]} : vector<128x128xbf16> to vector<128x32xbf16>
    %cst_53 = arith.constant dense<0.000000e+00> : vector<128x32xf32>
    %153 = tpu.matmul %151, %152, %cst_53 {dimension_numbers = #tpu.dot_dimension_numbers<[1], [0], [0], [1], [0, 0, 1, 1], [], []>} : vector<128x128xbf16>, vector<128x32xbf16>, vector<128x32xf32> -> vector<128x32xf32>
    %154 = vector.extract_strided_slice %129 {offsets = [0, 32], sizes = [128, 32], strides = [1, 1]} : vector<128x128xbf16> to vector<128x32xbf16>
    %155 = vector.extract_strided_slice %130 {offsets = [0, 32], sizes = [128, 32], strides = [1, 1]} : vector<128x128xbf16> to vector<128x32xbf16>
    %cst_54 = arith.constant dense<0.000000e+00> : vector<128x128xf32>
    %156 = tpu.matmul %154, %155, %cst_54 {dimension_numbers = #tpu.dot_dimension_numbers<[1], [1], [0], [0], [0, 0, 1, 0], [], []>} : vector<128x32xbf16>, vector<128x32xbf16>, vector<128x128xf32> -> vector<128x128xf32>
    %c0_55 = arith.constant 0 : index
    %c1_56 = arith.constant 1 : index
    %c0_57 = arith.constant 0 : index
    %c0_58 = arith.constant 0 : index
    %157 = vector.load %arg3[%c0_55, %c1_56, %c0_57, %c0_58] : memref<1x4x128x128xbf16, #tpu.memory_space<vmem>>, vector<1x1x128x128xbf16>
    %158 = vector.shape_cast %157 : vector<1x1x128x128xbf16> to vector<128x128xbf16>
    %159 = arith.extf %158 : vector<128x128xbf16> to vector<128x128xf32>
    %160 = arith.addf %156, %159 : vector<128x128xf32>
    %161 = vector.broadcast %16 : vector<1x128xf32> to vector<128x128xf32>
    %162 = arith.addf %160, %161 : vector<128x128xf32>
    %cst_59 = arith.constant dense<0xFF800000> : vector<128xf32>
    %163 = vector.multi_reduction <maximumf>, %162, %cst_59 [1] : vector<128x128xf32> to vector<128xf32>
    %164 = vector.shape_cast %163 : vector<128xf32> to vector<128x1xf32>
    %165 = vector.broadcast %164 : vector<128x1xf32> to vector<128x128xf32>
    %166 = arith.subf %162, %165 : vector<128x128xf32>
    %167 = math.exp %166 : vector<128x128xf32>
    %cst_60 = arith.constant dense<0.000000e+00> : vector<128xf32>
    %168 = vector.multi_reduction <add>, %167, %cst_60 [1] : vector<128x128xf32> to vector<128xf32>
    %169 = vector.shape_cast %168 : vector<128xf32> to vector<128x1xf32>
    %170 = tpu.reciprocal %169 {approx = true} : vector<128x1xf32> -> vector<128x1xf32>
    %171 = vector.broadcast %170 : vector<128x1xf32> to vector<128x128xf32>
    %172 = arith.mulf %167, %171 : vector<128x128xf32>
    %173 = arith.truncf %172 : vector<128x128xf32> to vector<128x128xbf16>
    %174 = vector.extract_strided_slice %131 {offsets = [0, 32], sizes = [128, 32], strides = [1, 1]} : vector<128x128xbf16> to vector<128x32xbf16>
    %cst_61 = arith.constant dense<0.000000e+00> : vector<128x32xf32>
    %175 = tpu.matmul %173, %174, %cst_61 {dimension_numbers = #tpu.dot_dimension_numbers<[1], [0], [0], [1], [0, 0, 1, 1], [], []>} : vector<128x128xbf16>, vector<128x32xbf16>, vector<128x32xf32> -> vector<128x32xf32>
    %176 = vector.extract_strided_slice %129 {offsets = [0, 64], sizes = [128, 32], strides = [1, 1]} : vector<128x128xbf16> to vector<128x32xbf16>
    %177 = vector.extract_strided_slice %130 {offsets = [0, 64], sizes = [128, 32], strides = [1, 1]} : vector<128x128xbf16> to vector<128x32xbf16>
    %cst_62 = arith.constant dense<0.000000e+00> : vector<128x128xf32>
    %178 = tpu.matmul %176, %177, %cst_62 {dimension_numbers = #tpu.dot_dimension_numbers<[1], [1], [0], [0], [0, 0, 1, 0], [], []>} : vector<128x32xbf16>, vector<128x32xbf16>, vector<128x128xf32> -> vector<128x128xf32>
    %c0_63 = arith.constant 0 : index
    %c2_64 = arith.constant 2 : index
    %c0_65 = arith.constant 0 : index
    %c0_66 = arith.constant 0 : index
    %179 = vector.load %arg3[%c0_63, %c2_64, %c0_65, %c0_66] : memref<1x4x128x128xbf16, #tpu.memory_space<vmem>>, vector<1x1x128x128xbf16>
    %180 = vector.shape_cast %179 : vector<1x1x128x128xbf16> to vector<128x128xbf16>
    %181 = arith.extf %180 : vector<128x128xbf16> to vector<128x128xf32>
    %182 = arith.addf %178, %181 : vector<128x128xf32>
    %183 = vector.broadcast %16 : vector<1x128xf32> to vector<128x128xf32>
    %184 = arith.addf %182, %183 : vector<128x128xf32>
    %cst_67 = arith.constant dense<0xFF800000> : vector<128xf32>
    %185 = vector.multi_reduction <maximumf>, %184, %cst_67 [1] : vector<128x128xf32> to vector<128xf32>
    %186 = vector.shape_cast %185 : vector<128xf32> to vector<128x1xf32>
    %187 = vector.broadcast %186 : vector<128x1xf32> to vector<128x128xf32>
    %188 = arith.subf %184, %187 : vector<128x128xf32>
    %189 = math.exp %188 : vector<128x128xf32>
    %cst_68 = arith.constant dense<0.000000e+00> : vector<128xf32>
    %190 = vector.multi_reduction <add>, %189, %cst_68 [1] : vector<128x128xf32> to vector<128xf32>
    %191 = vector.shape_cast %190 : vector<128xf32> to vector<128x1xf32>
    %192 = tpu.reciprocal %191 {approx = true} : vector<128x1xf32> -> vector<128x1xf32>
    %193 = vector.broadcast %192 : vector<128x1xf32> to vector<128x128xf32>
    %194 = arith.mulf %189, %193 : vector<128x128xf32>
    %195 = arith.truncf %194 : vector<128x128xf32> to vector<128x128xbf16>
    %196 = vector.extract_strided_slice %131 {offsets = [0, 64], sizes = [128, 32], strides = [1, 1]} : vector<128x128xbf16> to vector<128x32xbf16>
    %cst_69 = arith.constant dense<0.000000e+00> : vector<128x32xf32>
    %197 = tpu.matmul %195, %196, %cst_69 {dimension_numbers = #tpu.dot_dimension_numbers<[1], [0], [0], [1], [0, 0, 1, 1], [], []>} : vector<128x128xbf16>, vector<128x32xbf16>, vector<128x32xf32> -> vector<128x32xf32>
    %198 = vector.extract_strided_slice %129 {offsets = [0, 96], sizes = [128, 32], strides = [1, 1]} : vector<128x128xbf16> to vector<128x32xbf16>
    %199 = vector.extract_strided_slice %130 {offsets = [0, 96], sizes = [128, 32], strides = [1, 1]} : vector<128x128xbf16> to vector<128x32xbf16>
    %cst_70 = arith.constant dense<0.000000e+00> : vector<128x128xf32>
    %200 = tpu.matmul %198, %199, %cst_70 {dimension_numbers = #tpu.dot_dimension_numbers<[1], [1], [0], [0], [0, 0, 1, 0], [], []>} : vector<128x32xbf16>, vector<128x32xbf16>, vector<128x128xf32> -> vector<128x128xf32>
    %c0_71 = arith.constant 0 : index
    %c3_72 = arith.constant 3 : index
    %c0_73 = arith.constant 0 : index
    %c0_74 = arith.constant 0 : index
    %201 = vector.load %arg3[%c0_71, %c3_72, %c0_73, %c0_74] : memref<1x4x128x128xbf16, #tpu.memory_space<vmem>>, vector<1x1x128x128xbf16>
    %202 = vector.shape_cast %201 : vector<1x1x128x128xbf16> to vector<128x128xbf16>
    %203 = arith.extf %202 : vector<128x128xbf16> to vector<128x128xf32>
    %204 = arith.addf %200, %203 : vector<128x128xf32>
    %205 = vector.broadcast %16 : vector<1x128xf32> to vector<128x128xf32>
    %206 = arith.addf %204, %205 : vector<128x128xf32>
    %cst_75 = arith.constant dense<0xFF800000> : vector<128xf32>
    %207 = vector.multi_reduction <maximumf>, %206, %cst_75 [1] : vector<128x128xf32> to vector<128xf32>
    %208 = vector.shape_cast %207 : vector<128xf32> to vector<128x1xf32>
    %209 = vector.broadcast %208 : vector<128x1xf32> to vector<128x128xf32>
    %210 = arith.subf %206, %209 : vector<128x128xf32>
    %211 = math.exp %210 : vector<128x128xf32>
    %cst_76 = arith.constant dense<0.000000e+00> : vector<128xf32>
    %212 = vector.multi_reduction <add>, %211, %cst_76 [1] : vector<128x128xf32> to vector<128xf32>
    %213 = vector.shape_cast %212 : vector<128xf32> to vector<128x1xf32>
    %214 = tpu.reciprocal %213 {approx = true} : vector<128x1xf32> -> vector<128x1xf32>
    %215 = vector.broadcast %214 : vector<128x1xf32> to vector<128x128xf32>
    %216 = arith.mulf %211, %215 : vector<128x128xf32>
    %217 = arith.truncf %216 : vector<128x128xf32> to vector<128x128xbf16>
    %218 = vector.extract_strided_slice %131 {offsets = [0, 96], sizes = [128, 32], strides = [1, 1]} : vector<128x128xbf16> to vector<128x32xbf16>
    %cst_77 = arith.constant dense<0.000000e+00> : vector<128x32xf32>
    %219 = tpu.matmul %217, %218, %cst_77 {dimension_numbers = #tpu.dot_dimension_numbers<[1], [0], [0], [1], [0, 0, 1, 1], [], []>} : vector<128x128xbf16>, vector<128x32xbf16>, vector<128x32xf32> -> vector<128x32xf32>
    %220 = tpu.concatenate %153, %175, %197, %219 in 1 : vector<128x32xf32>, vector<128x32xf32>, vector<128x32xf32>, vector<128x32xf32> -> vector<128x128xf32>
    %221 = tpu.concatenate %128, %220 in 0 : vector<128x128xf32>, vector<128x128xf32> -> vector<256x128xf32>
    %222 = arith.truncf %221 : vector<256x128xf32> to vector<256x128xbf16>
    %c0_78 = arith.constant 0 : index
    %c0_79 = arith.constant 0 : index
    %c0_80 = arith.constant 0 : index
    %223 = vector.load %arg6[%c0_78, %c0_79, %c0_80] : memref<1x128x128xbf16, #tpu.memory_space<vmem>>, vector<1x128x128xbf16>
    %224 = vector.shape_cast %223 : vector<1x128x128xbf16> to vector<128x128xbf16>
    %cst_81 = arith.constant dense<0.000000e+00> : vector<256x128xf32>
    %225 = tpu.matmul %222, %224, %cst_81 {dimension_numbers = #tpu.dot_dimension_numbers<[1], [0], [0], [1], [0, 0, 1, 1], [], []>} : vector<256x128xbf16>, vector<128x128xbf16>, vector<256x128xf32> -> vector<256x128xf32>
    %226 = arith.addf %3, %225 : vector<256x128xf32>
    %c0_82 = arith.constant 0 : index
    %c0_83 = arith.constant 0 : index
    %c0_84 = arith.constant 0 : index
    %227 = vector.load %arg7[%c0_82, %c0_83, %c0_84] : memref<1x1x128xf32, #tpu.memory_space<vmem>>, vector<1x1x128xf32>
    %228 = vector.shape_cast %227 : vector<1x1x128xf32> to vector<128xf32>
    %229 = arith.mulf %226, %226 : vector<256x128xf32>
    %cst_85 = arith.constant dense<0.000000e+00> : vector<256xf32>
    %230 = vector.multi_reduction <add>, %229, %cst_85 [1] : vector<256x128xf32> to vector<256xf32>
    %231 = vector.shape_cast %230 : vector<256xf32> to vector<256x1xf32>
    %cst_86 = arith.constant 1.280000e+02 : f32
    %232 = vector.broadcast %cst_86 : f32 to vector<256x1xf32>
    %233 = arith.divf %231, %232 : vector<256x1xf32>
    %cst_87 = arith.constant 9.99999997E-7 : f32
    %234 = vector.broadcast %cst_87 : f32 to vector<256x1xf32>
    %235 = arith.addf %233, %234 : vector<256x1xf32>
    %236 = math.rsqrt %235 : vector<256x1xf32>
    %237 = vector.broadcast %236 : vector<256x1xf32> to vector<256x128xf32>
    %238 = arith.mulf %226, %237 : vector<256x128xf32>
    %239 = vector.shape_cast %228 : vector<128xf32> to vector<1x128xf32>
    %240 = vector.broadcast %239 : vector<1x128xf32> to vector<256x128xf32>
    %241 = arith.mulf %238, %240 : vector<256x128xf32>
    %242 = arith.truncf %241 : vector<256x128xf32> to vector<256x128xbf16>
    %c0_88 = arith.constant 0 : index
    %c0_89 = arith.constant 0 : index
    %c0_90 = arith.constant 0 : index
    %243 = vector.load %arg8[%c0_88, %c0_89, %c0_90] : memref<1x128x512xbf16, #tpu.memory_space<vmem>>, vector<1x128x512xbf16>
    %244 = vector.shape_cast %243 : vector<1x128x512xbf16> to vector<128x512xbf16>
    %cst_91 = arith.constant dense<0.000000e+00> : vector<256x512xf32>
    %245 = tpu.matmul %242, %244, %cst_91 {dimension_numbers = #tpu.dot_dimension_numbers<[1], [0], [0], [1], [0, 0, 1, 1], [], []>} : vector<256x128xbf16>, vector<128x512xbf16>, vector<256x512xf32> -> vector<256x512xf32>
    %246 = vector.extract_strided_slice %245 {offsets = [0, 0], sizes = [256, 256], strides = [1, 1]} : vector<256x512xf32> to vector<256x256xf32>
    %cst_92 = arith.constant 5.000000e-01 : f32
    %247 = vector.broadcast %cst_92 : f32 to vector<256x256xf32>
    %248 = arith.mulf %247, %246 : vector<256x256xf32>
    %cst_93 = arith.constant 4.471500e-02 : f32
    %249 = vector.broadcast %cst_93 : f32 to vector<256x256xf32>
    %250 = arith.mulf %249, %246 : vector<256x256xf32>
    %251 = arith.mulf %250, %246 : vector<256x256xf32>
    %252 = arith.mulf %251, %246 : vector<256x256xf32>
    %253 = arith.addf %246, %252 : vector<256x256xf32>
    %cst_94 = arith.constant 0.797884583 : f32
    %254 = vector.broadcast %cst_94 : f32 to vector<256x256xf32>
    %255 = arith.mulf %254, %253 : vector<256x256xf32>
    %256 = math.tanh %255 : vector<256x256xf32>
    %cst_95 = arith.constant 1.000000e+00 : f32
    %257 = vector.broadcast %cst_95 : f32 to vector<256x256xf32>
    %258 = arith.addf %257, %256 : vector<256x256xf32>
    %259 = arith.mulf %248, %258 : vector<256x256xf32>
    %260 = vector.extract_strided_slice %245 {offsets = [0, 256], sizes = [256, 256], strides = [1, 1]} : vector<256x512xf32> to vector<256x256xf32>
    %261 = arith.mulf %260, %259 : vector<256x256xf32>
    %262 = arith.truncf %261 : vector<256x256xf32> to vector<256x256xbf16>
    %c0_96 = arith.constant 0 : index
    %c0_97 = arith.constant 0 : index
    %c0_98 = arith.constant 0 : index
    %263 = vector.load %arg9[%c0_96, %c0_97, %c0_98] : memref<1x256x128xbf16, #tpu.memory_space<vmem>>, vector<1x256x128xbf16>
    %264 = vector.shape_cast %263 : vector<1x256x128xbf16> to vector<256x128xbf16>
    %cst_99 = arith.constant dense<0.000000e+00> : vector<256x128xf32>
    %265 = tpu.matmul %262, %264, %cst_99 {dimension_numbers = #tpu.dot_dimension_numbers<[1], [0], [0], [1], [0, 0, 1, 1], [], []>} : vector<256x256xbf16>, vector<256x128xbf16>, vector<256x128xf32> -> vector<256x128xf32>
    %266 = arith.addf %226, %265 : vector<256x128xf32>
    %c0_100 = arith.constant 0 : index
    %c0_101 = arith.constant 0 : index
    %267 = vector.load %arg12[%c0_100, %c0_101] : memref<256x128xf32, #tpu.memory_space<vmem>>, vector<256x128xf32>
    tpu.vector_store %arg12[%c0_100, %c0_101], %266 {strides = array<i32>} : memref<256x128xf32, #tpu.memory_space<vmem>>, vector<256x128xf32>,
    %c1_i32 = arith.constant 1 : i32
    %268 = arith.cmpi eq, %arg0, %c1_i32 : i32
    %269 = arith.extui %268 : i1 to i32
    %c0_i32_102 = arith.constant 0 : i32
    %270 = arith.cmpi ne, %269, %c0_i32_102 : i32
    scf.if %270 {
      %c0_103 = arith.constant 0 : index
      %c0_104 = arith.constant 0 : index
      %271 = vector.load %arg10[%c0_103, %c0_104] : memref<1x128xf32, #tpu.memory_space<vmem>>, vector<1x128xf32>
      %272 = vector.shape_cast %271 : vector<1x128xf32> to vector<128xf32>
      %273 = arith.mulf %266, %266 : vector<256x128xf32>
      %cst_105 = arith.constant dense<0.000000e+00> : vector<256xf32>
      %274 = vector.multi_reduction <add>, %273, %cst_105 [1] : vector<256x128xf32> to vector<256xf32>
      %275 = vector.shape_cast %274 : vector<256xf32> to vector<256x1xf32>
      %cst_106 = arith.constant 1.280000e+02 : f32
      %276 = vector.broadcast %cst_106 : f32 to vector<256x1xf32>
      %277 = arith.divf %275, %276 : vector<256x1xf32>
      %cst_107 = arith.constant 9.99999997E-7 : f32
      %278 = vector.broadcast %cst_107 : f32 to vector<256x1xf32>
      %279 = arith.addf %277, %278 : vector<256x1xf32>
      %280 = math.rsqrt %279 : vector<256x1xf32>
      %281 = vector.broadcast %280 : vector<256x1xf32> to vector<256x128xf32>
      %282 = arith.mulf %266, %281 : vector<256x128xf32>
      %283 = vector.shape_cast %272 : vector<128xf32> to vector<1x128xf32>
      %284 = vector.broadcast %283 : vector<1x128xf32> to vector<256x128xf32>
      %285 = arith.mulf %282, %284 : vector<256x128xf32>
      %286 = tpu.iota {dimensions = array<i32: 0>} : vector<128x128xi32>
      %287 = vector.extract_strided_slice %285 {offsets = [0, 0], sizes = [128, 128], strides = [1, 1]} : vector<256x128xf32> to vector<128x128xf32>
      %c0_108 = arith.constant 0 : index
      %288 = memref.load %arg1[%c0_108] : memref<2xi32, #tpu.memory_space<smem>>
      %289 = vector.broadcast %288 : i32 to vector<128x128xi32>
      %290 = arith.cmpi slt, %286, %289 : vector<128x128xi32>
      %cst_109 = arith.constant 0.000000e+00 : f32
      %291 = vector.broadcast %cst_109 : f32 to vector<128x128xf32>
      %292 = arith.select %290, %287, %291 : vector<128x128xi1>, vector<128x128xf32>
      %c0_110 = arith.constant 0 : index
      %c0_111 = arith.constant 0 : index
      %c0_112 = arith.constant 0 : index
      %293 = vector.load %arg11[%c0_110, %c0_111, %c0_112] : memref<2x128x128xf32, #tpu.memory_space<vmem>>, vector<1x128x128xf32>
      %294 = vector.shape_cast %293 : vector<1x128x128xf32> to vector<128x128xf32>
      %295 = vector.shape_cast %292 : vector<128x128xf32> to vector<1x128x128xf32>
      tpu.vector_store %arg11[%c0_110, %c0_111, %c0_112], %295 {strides = array<i32>} : memref<2x128x128xf32, #tpu.memory_space<vmem>>, vector<1x128x128xf32>,
      %296 = vector.extract_strided_slice %285 {offsets = [128, 0], sizes = [128, 128], strides = [1, 1]} : vector<256x128xf32> to vector<128x128xf32>
      %c1_113 = arith.constant 1 : index
      %297 = memref.load %arg1[%c1_113] : memref<2xi32, #tpu.memory_space<smem>>
      %298 = vector.broadcast %297 : i32 to vector<128x128xi32>
      %299 = arith.cmpi slt, %286, %298 : vector<128x128xi32>
      %cst_114 = arith.constant 0.000000e+00 : f32
      %300 = vector.broadcast %cst_114 : f32 to vector<128x128xf32>
      %301 = arith.select %299, %296, %300 : vector<128x128xi1>, vector<128x128xf32>
      %c1_115 = arith.constant 1 : index
      %c0_116 = arith.constant 0 : index
      %c0_117 = arith.constant 0 : index
      %302 = vector.load %arg11[%c1_115, %c0_116, %c0_117] : memref<2x128x128xf32, #tpu.memory_space<vmem>>, vector<1x128x128xf32>
      %303 = vector.shape_cast %302 : vector<1x128x128xf32> to vector<128x128xf32>
      %304 = vector.shape_cast %301 : vector<128x128xf32> to vector<1x128x128xf32>
      tpu.vector_store %arg11[%c1_115, %c0_116, %c0_117], %304 {strides = array<i32>} : memref<2x128x128xf32, #tpu.memory_space<vmem>>, vector<1x128x128xf32>,
    } else {
    }
    return
  }
  func.func @transform_0(%arg0: i32, %arg1: memref<2xi32, #tpu.memory_space<smem>>) -> (i32, i32, i32) {
    %c0_i32 = arith.constant 0 : i32
    %c0_i32_0 = arith.constant 0 : i32
    %c0_i32_1 = arith.constant 0 : i32
    %c0_i32_2 = arith.constant 0 : i32
    return %c0_i32, %c0_i32_0, %c0_i32_1 : i32, i32, i32
  }
  func.func @transform_1(%arg0: i32, %arg1: memref<2xi32, #tpu.memory_space<smem>>) -> (i32, i32, i32, i32) {
    %c0_i32 = arith.constant 0 : i32
    %c0_i32_0 = arith.constant 0 : i32
    %c0_i32_1 = arith.constant 0 : i32
    %c0_i32_2 = arith.constant 0 : i32
    return %arg0, %c0_i32, %c0_i32_0, %c0_i32_1 : i32, i32, i32, i32
  }
  func.func @transform_2(%arg0: i32, %arg1: memref<2xi32, #tpu.memory_space<smem>>) -> (i32, i32, i32) {
    %c0_i32 = arith.constant 0 : i32
    %c0_i32_0 = arith.constant 0 : i32
    %c0_i32_1 = arith.constant 0 : i32
    return %arg0, %c0_i32, %c0_i32_0 : i32, i32, i32
  }
  func.func @transform_3(%arg0: i32, %arg1: memref<2xi32, #tpu.memory_space<smem>>) -> (i32, i32, i32) {
    %c0_i32 = arith.constant 0 : i32
    %c0_i32_0 = arith.constant 0 : i32
    %c0_i32_1 = arith.constant 0 : i32
    return %arg0, %c0_i32, %c0_i32_0 : i32, i32, i32
  }
  func.func @transform_4(%arg0: i32, %arg1: memref<2xi32, #tpu.memory_space<smem>>) -> (i32, i32, i32) {
    %c0_i32 = arith.constant 0 : i32
    %c0_i32_0 = arith.constant 0 : i32
    %c0_i32_1 = arith.constant 0 : i32
    return %arg0, %c0_i32, %c0_i32_0 : i32, i32, i32
  }
  func.func @transform_5(%arg0: i32, %arg1: memref<2xi32, #tpu.memory_space<smem>>) -> (i32, i32, i32) {
    %c0_i32 = arith.constant 0 : i32
    %c0_i32_0 = arith.constant 0 : i32
    %c0_i32_1 = arith.constant 0 : i32
    return %arg0, %c0_i32, %c0_i32_0 : i32, i32, i32
  }
  func.func @transform_6(%arg0: i32, %arg1: memref<2xi32, #tpu.memory_space<smem>>) -> (i32, i32, i32) {
    %c0_i32 = arith.constant 0 : i32
    %c0_i32_0 = arith.constant 0 : i32
    %c0_i32_1 = arith.constant 0 : i32
    return %arg0, %c0_i32, %c0_i32_0 : i32, i32, i32
  }
  func.func @transform_7(%arg0: i32, %arg1: memref<2xi32, #tpu.memory_space<smem>>) -> (i32, i32, i32) {
    %c0_i32 = arith.constant 0 : i32
    %c0_i32_0 = arith.constant 0 : i32
    %c0_i32_1 = arith.constant 0 : i32
    return %arg0, %c0_i32, %c0_i32_0 : i32, i32, i32
  }
  func.func @transform_8(%arg0: i32, %arg1: memref<2xi32, #tpu.memory_space<smem>>) -> (i32, i32) {
    %c0_i32 = arith.constant 0 : i32
    %c0_i32_0 = arith.constant 0 : i32
    %c0_i32_1 = arith.constant 0 : i32
    return %c0_i32, %c0_i32_0 : i32, i32
  }
  func.func @transform_9(%arg0: i32, %arg1: memref<2xi32, #tpu.memory_space<smem>>) -> (i32, i32, i32) {
    %c0_i32 = arith.constant 0 : i32
    %c0_i32_0 = arith.constant 0 : i32
    %c0_i32_1 = arith.constant 0 : i32
    %c0_i32_2 = arith.constant 0 : i32
    return %c0_i32, %c0_i32_0, %c0_i32_1 : i32, i32, i32
  }
}

</mosaic_0001>

<llo_original>
// kernel: tpu_custom_call.1
$region0: #{tpu_custom_call.1}
  #allocation0 [shape = 'u32[]', space=smem, size = 0x4, offset = 0x4, fixed_abs, tag = 'smem constant byte address 0x4 - core index']
  #allocation1 [shape = 'u32[72,128]{1,0:T(1,128)}', space=vmem, size = 0x9000, scoped, tag = 'internal scratch']
  #allocation2 [shape = 'f32[256,128]{1,0:T(8,128)}', space=vmem, size = 0x20000, scoped, tag = 'scratch operand']
  #allocation3 [shape = 's32[1]{0}', space=sflag, size = 0x4, scoped, tag = 'scoped memory for tpu_custom_call.1']
  #allocation4 [shape = 'u8[512]{0}', space=smem, size = 0x200, scoped, tag = 'prefetched SMEM operand 0']
  %s0 = inlined_call_operand.hbm [shape: s32[2], index: 0, kind: input, shape index: {}]
  %s1 = inlined_call_operand.hbm [shape: f32[2,128,128], index: 1, kind: input, shape index: {}]
  %s2 = inlined_call_operand.hbm [shape: bf16[2,4,128,128], index: 2, kind: input, shape index: {}]
  %s3 = inlined_call_operand.vmem [shape: f32[2,1,128], index: 3, kind: input, shape index: {}]
  %s4 = inlined_call_operand.hbm [shape: bf16[2,128,384], index: 4, kind: input, shape index: {}]
  %s5 = inlined_call_operand.hbm [shape: bf16[2,128,128], index: 5, kind: input, shape index: {}]
  %s6 = inlined_call_operand.vmem [shape: f32[2,1,128], index: 6, kind: input, shape index: {}]
  %s7 = inlined_call_operand.hbm [shape: bf16[2,128,512], index: 7, kind: input, shape index: {}]
  %s8 = inlined_call_operand.hbm [shape: bf16[2,256,128], index: 8, kind: input, shape index: {}]
  %s9 = inlined_call_operand.vmem [shape: f32[1,128], index: 9, kind: input, shape index: {}]
  %s10 = inlined_call_operand.hbm [shape: f32[2,128,128], index: 10, kind: output, shape index: {}]
  %s11 = sld [smem:[#allocation0]]
  $region101: #{tpu_custom_call.1} parent=0
    _
  %s13 = ssub.s32 1, %s11
  %s14 = scalar_select 0, %s13, %s11
  %s16 = sshll.u32 %s0, 4
  %s17 = int_to_ptr.hbm [resolvable:$true] %s16
  %19 = dma.hbm_to_smem %s17, 16, [#allocation4], [#allocation3]
  %21 = dma.done [#allocation3], 16
  %22 = sfence
  $region1: #{tpu_custom_call.1} parent=0
    #allocation5 [shape = 'u8[131072]{0}', space=vmem, size = 0x20000, scoped, tag = 'input window, operand 1, single buffered']
    #allocation6 [shape = 's32[2]{0}', space=sflag, size = 0x8, scoped, tag = 'scoped memory for tpu_custom_call.1']
    #allocation7 [shape = 's32[2]{0}', space=sflag, size = 0x8, scoped, tag = 'scoped memory for tpu_custom_call.1']
    #allocation8 [shape = 'u8[262144]{0}', space=vmem, size = 0x40000, scoped, tag = 'input window, operand 2']
    #allocation9 [shape = 's32[2]{0}', space=sflag, size = 0x8, scoped, tag = 'scoped memory for tpu_custom_call.1']
    #allocation10 [shape = 'u8[196608]{0}', space=vmem, size = 0x30000, scoped, tag = 'input window, operand 4']
    #allocation11 [shape = 'u8[65536]{0}', space=vmem, size = 0x10000, scoped, tag = 'input window, operand 5']
    #allocation12 [shape = 's32[2]{0}', space=sflag, size = 0x8, scoped, tag = 'scoped memory for tpu_custom_call.1']
    #allocation13 [shape = 'u8[262144]{0}', space=vmem, size = 0x40000, scoped, tag = 'input window, operand 7']
    #allocation14 [shape = 'u8[131072]{0}', space=vmem, size = 0x20000, scoped, tag = 'input window, operand 8']
    #allocation15 [shape = 's32[2]{0}', space=sflag, size = 0x8, scoped, tag = 'scoped memory for tpu_custom_call.1']
    #allocation16 [shape = 'u8[131072]{0}', space=vmem, size = 0x20000, scoped, tag = 'output window, operand 0, single buffered']
    %23 = vsyncpa [#allocation6], 0
    %24 = vsyncpa [#allocation9], 0
    %s25 = scalar_lea.sflag [#allocation9], 1
    %26 = vsyncpa %s25, 0
    %27 = vsyncpa [#allocation12], 0
    %s28 = scalar_lea.sflag [#allocation12], 1
    %29 = vsyncpa %s28, 0
    %30 = vsyncpa [#allocation15], 0
    %s31 = scalar_lea.sflag [#allocation15], 1
    %32 = vsyncpa %s31, 0
    %33 = vsyncpa [#allocation7], 0
    loop: start=0, step=1, limit=4
    $region2: #{tpu_custom_call.1} parent=1 // loop_pre_header
      _
    $region3: #{tpu_custom_call.1} parent=1 // loop_header
      %s35 = sphi 0, %s39
      %p36 = scmp.ge.s32.totalorder %s35, 4
      %s43 = sphi 0, %s43
      %s45 = sphi 0, %s43
      %s46 = sphi 0, %s45
      %s60 = sphi 0, %s46
      %s66 = sphi 0, %s68
      %s69 = sphi 0, %s66
      %s70 = sphi 0, %s69
      %s86 = sphi 0, %s70
      %s92 = sphi 0, %s94
      %s95 = sphi 0, %s92
      %s96 = sphi 0, %s95
      %s112 = sphi 0, %s96
      %s118 = sphi 0, %s120
      %s121 = sphi 0, %s118
      %s122 = sphi 0, %s121
      %s138 = sphi 0, %s122
      %s144 = sphi 0, %s146
      %s147 = sphi 0, %s144
      %s148 = sphi 0, %s147
      %s164 = sphi 0, %s148
      %s170 = sphi 0, %s172
      %s173 = sphi 0, %s170
      %s174 = sphi 0, %s173
      %s190 = sphi 0, %s174
      %s196 = sphi 0, %s198
      %s199 = sphi 0, %s196
      %s200 = sphi 0, %s199
      %s216 = sphi 0, %s200
      %s222 = sphi 0, %s224
      %s225 = sphi 0, %s222
      %s226 = sphi 0, %s225
      %s242 = sphi 0, %s226
      %s246 = sphi 0, %s246
      %s248 = sphi 0, %s246
      %s249 = sphi 0, %s248
      %s263 = sphi 0, %s249
      %s267 = sphi 0, %s267
      %s269 = sphi 0, %s267
      %s270 = sphi 0, %s269
      %s284 = sphi 0, %s270
    $region4: #{tpu_custom_call.1} parent=1 // loop_header_branch
      %38 = sbr.rel (%p36) target = $region8
    $region5: #{tpu_custom_call.1} parent=1 // loop_body
      %s40 = ssub.s32 %s35, 1
      %s41 = ssub.s32 %s35, 2
      %s42 = sadd.s32 %s35, 1
      %s44 = sadd.s32 %s43, 1
      %p47 = scmp.eq.s32.totalorder %s35, 1
      %p48 = scmp.ne.s32.totalorder %s43, %s45
      %p49 = scmp.eq.s32.totalorder %s35, 0
      %p50 = por %p48, %p49
      %p51 = scmp.ne.s32.totalorder %s43, %s45
      %p52 = scmp.eq.s32.totalorder %s40, 1
      %p53 = por %p51, %p52
      %p54 = scmp.ne.s32.totalorder %s45, %s46
      %p55 = scmp.eq.s32.totalorder %s40, 0
      %p56 = por %p54, %p55
      %p57 = scmp.ne.s32.totalorder %s45, %s46
      %p58 = scmp.eq.s32.totalorder %s41, 1
      %p59 = por %p57, %p58
      %p61 = scmp.ne.s32.totalorder %s46, %s60
      %p62 = scmp.eq.s32.totalorder %s41, 0
      %p63 = por %p61, %p62
      %s64 = ssub.s32 %s35, %s42
      %p65 = scmp.eq.s32.totalorder %s64, 0
      %s67 = sadd.s32 %s66, 1
      %s68 = scalar_select %p65, %s66, %s67
      %p71 = pneg %p65
      %p72 = scmp.eq.s32.totalorder %s35, 1
      %p73 = por %p71, %p72
      %p74 = scmp.ne.s32.totalorder %s66, %s69
      %p75 = scmp.eq.s32.totalorder %s35, 0
      %p76 = por %p74, %p75
      %p77 = scmp.ne.s32.totalorder %s66, %s69
      %p78 = scmp.eq.s32.totalorder %s40, 1
      %p79 = por %p77, %p78
      %p80 = scmp.ne.s32.totalorder %s69, %s70
      %p81 = scmp.eq.s32.totalorder %s40, 0
      %p82 = por %p80, %p81
      %p83 = scmp.ne.s32.totalorder %s69, %s70
      %p84 = scmp.eq.s32.totalorder %s41, 1
      %p85 = por %p83, %p84
      %p87 = scmp.ne.s32.totalorder %s70, %s86
      %p88 = scmp.eq.s32.totalorder %s41, 0
      %p89 = por %p87, %p88
      %s90 = ssub.s32 %s35, %s42
      %p91 = scmp.eq.s32.totalorder %s90, 0
      %s93 = sadd.s32 %s92, 1
      %s94 = scalar_select %p91, %s92, %s93
      %p97 = pneg %p91
      %p98 = scmp.eq.s32.totalorder %s35, 1
      %p99 = por %p97, %p98
      %p100 = scmp.ne.s32.totalorder %s92, %s95
      %p101 = scmp.eq.s32.totalorder %s35, 0
      %p102 = por %p100, %p101
      %p103 = scmp.ne.s32.totalorder %s92, %s95
      %p104 = scmp.eq.s32.totalorder %s40, 1
      %p105 = por %p103, %p104
      %p106 = scmp.ne.s32.totalorder %s95, %s96
      %p107 = scmp.eq.s32.totalorder %s40, 0
      %p108 = por %p106, %p107
      %p109 = scmp.ne.s32.totalorder %s95, %s96
      %p110 = scmp.eq.s32.totalorder %s41, 1
      %p111 = por %p109, %p110
      %p113 = scmp.ne.s32.totalorder %s96, %s112
      %p114 = scmp.eq.s32.totalorder %s41, 0
      %p115 = por %p113, %p114
      %s116 = ssub.s32 %s35, %s42
      %p117 = scmp.eq.s32.totalorder %s116, 0
      %s119 = sadd.s32 %s118, 1
      %s120 = scalar_select %p117, %s118, %s119
      %p123 = pneg %p117
      %p124 = scmp.eq.s32.totalorder %s35, 1
      %p125 = por %p123, %p124
      %p126 = scmp.ne.s32.totalorder %s118, %s121
      %p127 = scmp.eq.s32.totalorder %s35, 0
      %p128 = por %p126, %p127
      %p129 = scmp.ne.s32.totalorder %s118, %s121
      %p130 = scmp.eq.s32.totalorder %s40, 1
      %p131 = por %p129, %p130
      %p132 = scmp.ne.s32.totalorder %s121, %s122
      %p133 = scmp.eq.s32.totalorder %s40, 0
      %p134 = por %p132, %p133
      %p135 = scmp.ne.s32.totalorder %s121, %s122
      %p136 = scmp.eq.s32.totalorder %s41, 1
      %p137 = por %p135, %p136
      %p139 = scmp.ne.s32.totalorder %s122, %s138
      %p140 = scmp.eq.s32.totalorder %s41, 0
      %p141 = por %p139, %p140
      %s142 = ssub.s32 %s35, %s42
      %p143 = scmp.eq.s32.totalorder %s142, 0
      %s145 = sadd.s32 %s144, 1
      %s146 = scalar_select %p143, %s144, %s145
      %p149 = pneg %p143
      %p150 = scmp.eq.s32.totalorder %s35, 1
      %p151 = por %p149, %p150
      %p152 = scmp.ne.s32.totalorder %s144, %s147
      %p153 = scmp.eq.s32.totalorder %s35, 0
      %p154 = por %p152, %p153
      %p155 = scmp.ne.s32.totalorder %s144, %s147
      %p156 = scmp.eq.s32.totalorder %s40, 1
      %p157 = por %p155, %p156
      %p158 = scmp.ne.s32.totalorder %s147, %s148
      %p159 = scmp.eq.s32.totalorder %s40, 0
      %p160 = por %p158, %p159
      %p161 = scmp.ne.s32.totalorder %s147, %s148
      %p162 = scmp.eq.s32.totalorder %s41, 1
      %p163 = por %p161, %p162
      %p165 = scmp.ne.s32.totalorder %s148, %s164
      %p166 = scmp.eq.s32.totalorder %s41, 0
      %p167 = por %p165, %p166
      %s168 = ssub.s32 %s35, %s42
      %p169 = scmp.eq.s32.totalorder %s168, 0
      %s171 = sadd.s32 %s170, 1
      %s172 = scalar_select %p169, %s170, %s171
      %p175 = pneg %p169
      %p176 = scmp.eq.s32.totalorder %s35, 1
      %p177 = por %p175, %p176
      %p178 = scmp.ne.s32.totalorder %s170, %s173
      %p179 = scmp.eq.s32.totalorder %s35, 0
      %p180 = por %p178, %p179
      %p181 = scmp.ne.s32.totalorder %s170, %s173
      %p182 = scmp.eq.s32.totalorder %s40, 1
      %p183 = por %p181, %p182
      %p184 = scmp.ne.s32.totalorder %s173, %s174
      %p185 = scmp.eq.s32.totalorder %s40, 0
      %p186 = por %p184, %p185
      %p187 = scmp.ne.s32.totalorder %s173, %s174
      %p188 = scmp.eq.s32.totalorder %s41, 1
      %p189 = por %p187, %p188
      %p191 = scmp.ne.s32.totalorder %s174, %s190
      %p192 = scmp.eq.s32.totalorder %s41, 0
      %p193 = por %p191, %p192
      %s194 = ssub.s32 %s35, %s42
      %p195 = scmp.eq.s32.totalorder %s194, 0
      %s197 = sadd.s32 %s196, 1
      %s198 = scalar_select %p195, %s196, %s197
      %p201 = pneg %p195
      %p202 = scmp.eq.s32.totalorder %s35, 1
      %p203 = por %p201, %p202
      %p204 = scmp.ne.s32.totalorder %s196, %s199
      %p205 = scmp.eq.s32.totalorder %s35, 0
      %p206 = por %p204, %p205
      %p207 = scmp.ne.s32.totalorder %s196, %s199
      %p208 = scmp.eq.s32.totalorder %s40, 1
      %p209 = por %p207, %p208
      %p210 = scmp.ne.s32.totalorder %s199, %s200
      %p211 = scmp.eq.s32.totalorder %s40, 0
      %p212 = por %p210, %p211
      %p213 = scmp.ne.s32.totalorder %s199, %s200
      %p214 = scmp.eq.s32.totalorder %s41, 1
      %p215 = por %p213, %p214
      %p217 = scmp.ne.s32.totalorder %s200, %s216
      %p218 = scmp.eq.s32.totalorder %s41, 0
      %p219 = por %p217, %p218
      %s220 = ssub.s32 %s35, %s42
      %p221 = scmp.eq.s32.totalorder %s220, 0
      %s223 = sadd.s32 %s222, 1
      %s224 = scalar_select %p221, %s222, %s223
      %p227 = pneg %p221
      %p228 = scmp.eq.s32.totalorder %s35, 1
      %p229 = por %p227, %p228
      %p230 = scmp.ne.s32.totalorder %s222, %s225
      %p231 = scmp.eq.s32.totalorder %s35, 0
      %p232 = por %p230, %p231
      %p233 = scmp.ne.s32.totalorder %s222, %s225
      %p234 = scmp.eq.s32.totalorder %s40, 1
      %p235 = por %p233, %p234
      %p236 = scmp.ne.s32.totalorder %s225, %s226
      %p237 = scmp.eq.s32.totalorder %s40, 0
      %p238 = por %p236, %p237
      %p239 = scmp.ne.s32.totalorder %s225, %s226
      %p240 = scmp.eq.s32.totalorder %s41, 1
      %p241 = por %p239, %p240
      %p243 = scmp.ne.s32.totalorder %s226, %s242
      %p244 = scmp.eq.s32.totalorder %s41, 0
      %p245 = por %p243, %p244
      %s247 = sadd.s32 %s246, 1
      %p250 = scmp.eq.s32.totalorder %s35, 1
      %p251 = scmp.ne.s32.totalorder %s246, %s248
      %p252 = scmp.eq.s32.totalorder %s35, 0
      %p253 = por %p251, %p252
      %p254 = scmp.ne.s32.totalorder %s246, %s248
      %p255 = scmp.eq.s32.totalorder %s40, 1
      %p256 = por %p254, %p255
      %p257 = scmp.ne.s32.totalorder %s248, %s249
      %p258 = scmp.eq.s32.totalorder %s40, 0
      %p259 = por %p257, %p258
      %p260 = scmp.ne.s32.totalorder %s248, %s249
      %p261 = scmp.eq.s32.totalorder %s41, 1
      %p262 = por %p260, %p261
      %p264 = scmp.ne.s32.totalorder %s249, %s263
      %p265 = scmp.eq.s32.totalorder %s41, 0
      %p266 = por %p264, %p265
      %s268 = sadd.s32 %s267, 1
      %p271 = scmp.eq.s32.totalorder %s35, 1
      %p272 = scmp.ne.s32.totalorder %s267, %s269
      %p273 = scmp.eq.s32.totalorder %s35, 0
      %p274 = por %p272, %p273
      %p275 = scmp.ne.s32.totalorder %s267, %s269
      %p276 = scmp.eq.s32.totalorder %s40, 1
      %p277 = por %p275, %p276
      %p278 = scmp.ne.s32.totalorder %s269, %s270
      %p279 = scmp.eq.s32.totalorder %s40, 0
      %p280 = por %p278, %p279
      %p281 = scmp.ne.s32.totalorder %s269, %s270
      %p282 = scmp.eq.s32.totalorder %s41, 1
      %p283 = por %p281, %p282
      %p285 = scmp.ne.s32.totalorder %s270, %s284
      %p286 = scmp.eq.s32.totalorder %s41, 0
      %p287 = por %p285, %p286
      %p288 = scmp.le.s32.totalorder 1, %s35
      %p289 = scmp.lt.s32.totalorder %s35, 3
      %p290 = pnand %p288, %p289
      %p291 = pneg %p290
      // Predicated region
      $region9: #{tpu_custom_call.1} parent=5 // pred_check
        _
      $region10: #{tpu_custom_call.1} parent=5 // pred_check_branch
        %293 = sbr.rel (%p290) target = $region12
      $region11: #{tpu_custom_call.1} parent=5 // pred_region
        %s294 = ssub.s32 %s35, 1
        // Predicated region
        $region13: #{tpu_custom_call.1} parent=11 // pred_check
          %p295 = pneg %p56
        $region14: #{tpu_custom_call.1} parent=11 // pred_check_branch
          %297 = sbr.rel (%p295) target = $region16
        $region15: #{tpu_custom_call.1} parent=11 // pred_region
          %299 = vsyncadd [#allocation6], 0
          %s300 = sshll.u32 %s1, 4
          %s301 = int_to_ptr.hbm [resolvable:$true] %s300
          %s302 = sshll.u32 [#allocation5], 4
          %s303 = int_to_ptr.vmem [resolvable:$true] %s302
          %308 = dma.hbm_to_vmem [thread:$0]  %s301, 4096, %s303, [#allocation6], 128, 128, 8
        $region16: #{tpu_custom_call.1} parent=11 // pred_fallthru
          _
        // Predicated region
        $region17: #{tpu_custom_call.1} parent=11 // pred_check
          %p309 = pneg %p259
        $region18: #{tpu_custom_call.1} parent=11 // pred_check_branch
          %311 = sbr.rel (%p309) target = $region20
        $region19: #{tpu_custom_call.1} parent=11 // pred_region
          _
        $region20: #{tpu_custom_call.1} parent=11 // pred_fallthru
          _
      $region12: #{tpu_custom_call.1} parent=5 // pred_fallthru
        _
      %p312 = scmp.lt.s32.totalorder %s35, 2
      // Predicated region
      $region21: #{tpu_custom_call.1} parent=5 // pred_check
        %p313 = pneg %p312
      $region22: #{tpu_custom_call.1} parent=5 // pred_check_branch
        %315 = sbr.rel (%p313) target = $region24
      $region23: #{tpu_custom_call.1} parent=5 // pred_region
        // Predicated region
        $region25: #{tpu_custom_call.1} parent=23 // pred_check
          %p316 = pneg %p76
        $region26: #{tpu_custom_call.1} parent=23 // pred_check_branch
          %318 = sbr.rel (%p316) target = $region28
        $region27: #{tpu_custom_call.1} parent=23 // pred_region
          %s319 = sand.u32 %s35, 1
          %s320 = scalar_lea.sflag [#allocation9], %s319
          %s321 = sand.u32 %s66, 1
          %s322 = smul.addr %s321, 256
          %s323 = scalar_lea.vmem [#allocation8], %s322
          %325 = vsyncadd %s320, 0
          %s326 = smul.addr %s35, 64
          %s327 = smul.addr %s326, 4
          %s328 = scalar_lea.hbm %s2, %s327
          %s329 = sshll.u32 %s328, 4
          %s330 = int_to_ptr.hbm [resolvable:$true] %s329
          %s331 = sshll.u32 %s323, 4
          %s332 = int_to_ptr.vmem [resolvable:$true] %s331
          %337 = dma.hbm_to_vmem [thread:$0]  %s330, 4096, %s332, %s320, 64, 64, 4
        $region28: #{tpu_custom_call.1} parent=23 // pred_fallthru
          _
        // Predicated region
        $region29: #{tpu_custom_call.1} parent=23 // pred_check
          %p338 = pneg %p102
        $region30: #{tpu_custom_call.1} parent=23 // pred_check_branch
          %340 = sbr.rel (%p338) target = $region32
        $region31: #{tpu_custom_call.1} parent=23 // pred_region
          %p341 = scmp.lt.s32.totalorder %s35, 1
          %s342 = scalar_select %p341, %s35, 1
          %s343 = scalar_lea.vmem %s3, %s342
        $region32: #{tpu_custom_call.1} parent=23 // pred_fallthru
          _
        // Predicated region
        $region33: #{tpu_custom_call.1} parent=23 // pred_check
          %p344 = pneg %p128
        $region34: #{tpu_custom_call.1} parent=23 // pred_check_branch
          %346 = sbr.rel (%p344) target = $region36
        $region35: #{tpu_custom_call.1} parent=23 // pred_region
          %s347 = sand.u32 %s35, 1
          %s348 = scalar_lea.sflag [#allocation9], %s347
          %s349 = sand.u32 %s118, 1
          %s350 = smul.addr %s349, 192
          %s351 = scalar_lea.vmem [#allocation10], %s350
          %353 = vsyncadd %s348, 0
          %s354 = smul.addr %s35, 48
          %s355 = smul.addr %s354, 4
          %s356 = scalar_lea.hbm %s4, %s355
          %s357 = sshll.u32 %s356, 4
          %s358 = int_to_ptr.hbm [resolvable:$true] %s357
          %s359 = sshll.u32 %s351, 4
          %s360 = int_to_ptr.vmem [resolvable:$true] %s359
          %365 = dma.hbm_to_vmem [thread:$0]  %s358, 3072, %s360, %s348, 192, 192, 12
        $region36: #{tpu_custom_call.1} parent=23 // pred_fallthru
          _
        // Predicated region
        $region37: #{tpu_custom_call.1} parent=23 // pred_check
          %p366 = pneg %p154
        $region38: #{tpu_custom_call.1} parent=23 // pred_check_branch
          %368 = sbr.rel (%p366) target = $region40
        $region39: #{tpu_custom_call.1} parent=23 // pred_region
          %s369 = sand.u32 %s35, 1
          %s370 = scalar_lea.sflag [#allocation12], %s369
          %s371 = sand.u32 %s144, 1
          %s372 = smul.addr %s371, 64
          %s373 = scalar_lea.vmem [#allocation11], %s372
          %375 = vsyncadd %s370, 0
          %s376 = smul.addr %s35, 16
          %s377 = smul.addr %s376, 4
          %s378 = scalar_lea.hbm %s5, %s377
          %s379 = sshll.u32 %s378, 4
          %s380 = int_to_ptr.hbm [resolvable:$true] %s379
          %s381 = sshll.u32 %s373, 4
          %s382 = int_to_ptr.vmem [resolvable:$true] %s381
          %387 = dma.hbm_to_vmem [thread:$0]  %s380, 1024, %s382, %s370, 64, 64, 4
        $region40: #{tpu_custom_call.1} parent=23 // pred_fallthru
          _
        // Predicated region
        $region41: #{tpu_custom_call.1} parent=23 // pred_check
          %p388 = pneg %p180
        $region42: #{tpu_custom_call.1} parent=23 // pred_check_branch
          %390 = sbr.rel (%p388) target = $region44
        $region43: #{tpu_custom_call.1} parent=23 // pred_region
          %p391 = scmp.lt.s32.totalorder %s35, 1
          %s392 = scalar_select %p391, %s35, 1
          %s393 = scalar_lea.vmem %s6, %s392
        $region44: #{tpu_custom_call.1} parent=23 // pred_fallthru
          _
        // Predicated region
        $region45: #{tpu_custom_call.1} parent=23 // pred_check
          %p394 = pneg %p206
        $region46: #{tpu_custom_call.1} parent=23 // pred_check_branch
          %396 = sbr.rel (%p394) target = $region48
        $region47: #{tpu_custom_call.1} parent=23 // pred_region
          %s397 = sand.u32 %s35, 1
          %s398 = scalar_lea.sflag [#allocation12], %s397
          %s399 = sand.u32 %s196, 1
          %s400 = smul.addr %s399, 256
          %s401 = scalar_lea.vmem [#allocation13], %s400
          %403 = vsyncadd %s398, 0
          %s404 = smul.addr %s35, 64
          %s405 = smul.addr %s404, 4
          %s406 = scalar_lea.hbm %s7, %s405
          %s407 = sshll.u32 %s406, 4
          %s408 = int_to_ptr.hbm [resolvable:$true] %s407
          %s409 = sshll.u32 %s401, 4
          %s410 = int_to_ptr.vmem [resolvable:$true] %s409
          %415 = dma.hbm_to_vmem [thread:$0]  %s408, 4096, %s410, %s398, 256, 256, 16
        $region48: #{tpu_custom_call.1} parent=23 // pred_fallthru
          _
        // Predicated region
        $region49: #{tpu_custom_call.1} parent=23 // pred_check
          %p416 = pneg %p232
        $region50: #{tpu_custom_call.1} parent=23 // pred_check_branch
          %418 = sbr.rel (%p416) target = $region52
        $region51: #{tpu_custom_call.1} parent=23 // pred_region
          %s419 = sand.u32 %s222, 1
          %s420 = scalar_lea.sflag [#allocation15], %s419
          %s421 = sand.u32 %s222, 1
          %s422 = smul.addr %s421, 128
          %s423 = scalar_lea.vmem [#allocation14], %s422
          %425 = vsyncadd %s420, 0
          %s426 = smul.addr %s35, 32
          %s427 = smul.addr %s426, 4
          %s428 = scalar_lea.hbm %s8, %s427
          %s429 = sshll.u32 %s428, 4
          %s430 = int_to_ptr.hbm [resolvable:$true] %s429
          %s431 = sshll.u32 %s423, 4
          %s432 = int_to_ptr.vmem [resolvable:$true] %s431
          %437 = dma.hbm_to_vmem [thread:$0]  %s430, 2048, %s432, %s420, 64, 64, 4
        $region52: #{tpu_custom_call.1} parent=23 // pred_fallthru
          _
      $region24: #{tpu_custom_call.1} parent=5 // pred_fallthru
        _
      %p438 = scmp.le.s32.totalorder 1, %s35
      %p439 = scmp.lt.s32.totalorder %s35, 3
      %p440 = pnand %p438, %p439
      %p441 = pneg %p440
      // Predicated region
      $region53: #{tpu_custom_call.1} parent=5 // pred_check
        _
      $region54: #{tpu_custom_call.1} parent=5 // pred_check_branch
        %443 = sbr.rel (%p440) target = $region56
      $region55: #{tpu_custom_call.1} parent=5 // pred_region
        %s444 = ssub.s32 %s35, 1
        // Predicated region
        $region57: #{tpu_custom_call.1} parent=55 // pred_check
          %p445 = pneg %p56
        $region58: #{tpu_custom_call.1} parent=55 // pred_check_branch
          %447 = sbr.rel (%p445) target = $region60
        $region59: #{tpu_custom_call.1} parent=55 // pred_region
          %449 = dma.done [#allocation6], 4096
        $region60: #{tpu_custom_call.1} parent=55 // pred_fallthru
          _
        %s450 = sand.u32 %s40, 1
        %s451 = scalar_lea.sflag [#allocation9], %s450
        %s452 = sand.u32 %s69, 1
        %s453 = smul.addr %s452, 256
        %s454 = scalar_lea.vmem [#allocation8], %s453
        // Predicated region
        $region61: #{tpu_custom_call.1} parent=55 // pred_check
          %p455 = pneg %p82
        $region62: #{tpu_custom_call.1} parent=55 // pred_check_branch
          %457 = sbr.rel (%p455) target = $region64
        $region63: #{tpu_custom_call.1} parent=55 // pred_region
          %459 = dma.done %s451, 4096
        $region64: #{tpu_custom_call.1} parent=55 // pred_fallthru
          _
        %s460 = sand.u32 %s40, 1
        %s461 = scalar_lea.sflag [#allocation9], %s460
        %s462 = sand.u32 %s121, 1
        %s463 = smul.addr %s462, 192
        %s464 = scalar_lea.vmem [#allocation10], %s463
        // Predicated region
        $region65: #{tpu_custom_call.1} parent=55 // pred_check
          %p465 = pneg %p134
        $region66: #{tpu_custom_call.1} parent=55 // pred_check_branch
          %467 = sbr.rel (%p465) target = $region68
        $region67: #{tpu_custom_call.1} parent=55 // pred_region
          %469 = dma.done %s461, 3072
        $region68: #{tpu_custom_call.1} parent=55 // pred_fallthru
          _
        %s470 = sand.u32 %s40, 1
        %s471 = scalar_lea.sflag [#allocation12], %s470
        %s472 = sand.u32 %s147, 1
        %s473 = smul.addr %s472, 64
        %s474 = scalar_lea.vmem [#allocation11], %s473
        // Predicated region
        $region69: #{tpu_custom_call.1} parent=55 // pred_check
          %p475 = pneg %p160
        $region70: #{tpu_custom_call.1} parent=55 // pred_check_branch
          %477 = sbr.rel (%p475) target = $region72
        $region71: #{tpu_custom_call.1} parent=55 // pred_region
          %479 = dma.done %s471, 1024
        $region72: #{tpu_custom_call.1} parent=55 // pred_fallthru
          _
        %s480 = sand.u32 %s40, 1
        %s481 = scalar_lea.sflag [#allocation12], %s480
        %s482 = sand.u32 %s199, 1
        %s483 = smul.addr %s482, 256
        %s484 = scalar_lea.vmem [#allocation13], %s483
        // Predicated region
        $region73: #{tpu_custom_call.1} parent=55 // pred_check
          %p485 = pneg %p212
        $region74: #{tpu_custom_call.1} parent=55 // pred_check_branch
          %487 = sbr.rel (%p485) target = $region76
        $region75: #{tpu_custom_call.1} parent=55 // pred_region
          %489 = dma.done %s481, 4096
        $region76: #{tpu_custom_call.1} parent=55 // pred_fallthru
          _
        %s490 = sand.u32 %s225, 1
        %s491 = scalar_lea.sflag [#allocation15], %s490
        %s492 = sand.u32 %s225, 1
        %s493 = smul.addr %s492, 128
        %s494 = scalar_lea.vmem [#allocation14], %s493
        // Predicated region
        $region77: #{tpu_custom_call.1} parent=55 // pred_check
          %p495 = pneg %p238
        $region78: #{tpu_custom_call.1} parent=55 // pred_check_branch
          %497 = sbr.rel (%p495) target = $region80
        $region79: #{tpu_custom_call.1} parent=55 // pred_region
          %499 = dma.done %s491, 2048
        $region80: #{tpu_custom_call.1} parent=55 // pred_fallthru
          _
        %p500 = pneg %p56
        %p501 = pneg %p53
        %s502 = sand.u32 %s40, 1
        %s503 = scalar_lea.sflag [#allocation9], %s502
        %s504 = sand.u32 %s69, 1
        %s505 = smul.addr %s504, 256
        %s506 = scalar_lea.vmem [#allocation8], %s505
        %p507 = pneg %p82
        %p508 = pneg %p79
        %p509 = scmp.lt.s32.totalorder %s40, 1
        %s510 = scalar_select %p509, %s40, 1
        %s511 = scalar_lea.vmem %s3, %s510
        %p512 = pneg %p108
        %p513 = pneg %p105
        %s514 = sand.u32 %s40, 1
        %s515 = scalar_lea.sflag [#allocation9], %s514
        %s516 = sand.u32 %s121, 1
        %s517 = smul.addr %s516, 192
        %s518 = scalar_lea.vmem [#allocation10], %s517
        %p519 = pneg %p134
        %p520 = pneg %p131
        %s521 = sand.u32 %s40, 1
        %s522 = scalar_lea.sflag [#allocation12], %s521
        %s523 = sand.u32 %s147, 1
        %s524 = smul.addr %s523, 64
        %s525 = scalar_lea.vmem [#allocation11], %s524
        %p526 = pneg %p160
        %p527 = pneg %p157
        %p528 = scmp.lt.s32.totalorder %s40, 1
        %s529 = scalar_select %p528, %s40, 1
        %s530 = scalar_lea.vmem %s6, %s529
        %p531 = pneg %p186
        %p532 = pneg %p183
        %s533 = sand.u32 %s40, 1
        %s534 = scalar_lea.sflag [#allocation12], %s533
        %s535 = sand.u32 %s199, 1
        %s536 = smul.addr %s535, 256
        %s537 = scalar_lea.vmem [#allocation13], %s536
        %p538 = pneg %p212
        %p539 = pneg %p209
        %s540 = sand.u32 %s225, 1
        %s541 = scalar_lea.sflag [#allocation15], %s540
        %s542 = sand.u32 %s225, 1
        %s543 = smul.addr %s542, 128
        %s544 = scalar_lea.vmem [#allocation14], %s543
        %p545 = pneg %p238
        %p546 = pneg %p235
        %p547 = pneg %p259
        %p548 = pneg %p256
        %p549 = pneg %p280
        %p550 = pneg %p277
        %p551 = scmp.lt.s32.totalorder %s40, 1
        %s552 = scalar_select %p551, %s40, 1
        %s553 = scalar_lea.vmem %s3, %s552
        %p554 = scmp.lt.s32.totalorder %s40, 1
        %s555 = scalar_select %p554, %s40, 1
        %s556 = scalar_lea.vmem %s6, %s555
        %p557 = scmp.eq.s32.totalorder %s40, 0
        // Predicated region
        $region81: #{tpu_custom_call.1} parent=55 // pred_check
          %p558 = pneg %p557
        $region82: #{tpu_custom_call.1} parent=55 // pred_check_branch
          %560 = sbr.rel (%p558) target = $region84
        $region83: #{tpu_custom_call.1} parent=55 // pred_region
          %v561 = vld [vmem:[#allocation5] sm:$0xff]
          %v562 = vld [vmem:[#allocation5 + $0x8] sm:$0xff]
          %v563 = vld [vmem:[#allocation5 + $0x10] sm:$0xff]
          %v564 = vld [vmem:[#allocation5 + $0x18] sm:$0xff]
          %v565 = vld [vmem:[#allocation5 + $0x20] sm:$0xff]
          %v566 = vld [vmem:[#allocation5 + $0x28] sm:$0xff]
          %v567 = vld [vmem:[#allocation5 + $0x30] sm:$0xff]
          %v568 = vld [vmem:[#allocation5 + $0x38] sm:$0xff]
          %v569 = vld [vmem:[#allocation5 + $0x40] sm:$0xff]
          %v570 = vld [vmem:[#allocation5 + $0x48] sm:$0xff]
          %v571 = vld [vmem:[#allocation5 + $0x50] sm:$0xff]
          %v572 = vld [vmem:[#allocation5 + $0x58] sm:$0xff]
          %v573 = vld [vmem:[#allocation5 + $0x60] sm:$0xff]
          %v574 = vld [vmem:[#allocation5 + $0x68] sm:$0xff]
          %v575 = vld [vmem:[#allocation5 + $0x70] sm:$0xff]
          %v576 = vld [vmem:[#allocation5 + $0x78] sm:$0xff]
          %577 = vst [vmem:[#allocation2] sm:$0xff] %v561
          %578 = vst [vmem:[#allocation2 + $0x8] sm:$0xff] %v562
          %579 = vst [vmem:[#allocation2 + $0x10] sm:$0xff] %v563
          %580 = vst [vmem:[#allocation2 + $0x18] sm:$0xff] %v564
          %581 = vst [vmem:[#allocation2 + $0x20] sm:$0xff] %v565
          %582 = vst [vmem:[#allocation2 + $0x28] sm:$0xff] %v566
          %583 = vst [vmem:[#allocation2 + $0x30] sm:$0xff] %v567
          %584 = vst [vmem:[#allocation2 + $0x38] sm:$0xff] %v568
          %585 = vst [vmem:[#allocation2 + $0x40] sm:$0xff] %v569
          %586 = vst [vmem:[#allocation2 + $0x48] sm:$0xff] %v570
          %587 = vst [vmem:[#allocation2 + $0x50] sm:$0xff] %v571
          %588 = vst [vmem:[#allocation2 + $0x58] sm:$0xff] %v572
          %589 = vst [vmem:[#allocation2 + $0x60] sm:$0xff] %v573
          %590 = vst [vmem:[#allocation2 + $0x68] sm:$0xff] %v574
          %591 = vst [vmem:[#allocation2 + $0x70] sm:$0xff] %v575
          %592 = vst [vmem:[#allocation2 + $0x78] sm:$0xff] %v576
          %s593 = scalar_lea.vmem [#allocation5], 128
          %v594 = vld [vmem:[%s593] sm:$0xff]
          %v595 = vld [vmem:[%s593 + $0x8] sm:$0xff]
          %v596 = vld [vmem:[%s593 + $0x10] sm:$0xff]
          %v597 = vld [vmem:[%s593 + $0x18] sm:$0xff]
          %v598 = vld [vmem:[%s593 + $0x20] sm:$0xff]
          %v599 = vld [vmem:[%s593 + $0x28] sm:$0xff]
          %v600 = vld [vmem:[%s593 + $0x30] sm:$0xff]
          %v601 = vld [vmem:[%s593 + $0x38] sm:$0xff]
          %v602 = vld [vmem:[%s593 + $0x40] sm:$0xff]
          %v603 = vld [vmem:[%s593 + $0x48] sm:$0xff]
          %v604 = vld [vmem:[%s593 + $0x50] sm:$0xff]
          %v605 = vld [vmem:[%s593 + $0x58] sm:$0xff]
          %v606 = vld [vmem:[%s593 + $0x60] sm:$0xff]
          %v607 = vld [vmem:[%s593 + $0x68] sm:$0xff]
          %v608 = vld [vmem:[%s593 + $0x70] sm:$0xff]
          %v609 = vld [vmem:[%s593 + $0x78] sm:$0xff]
          %610 = vst [vmem:[#allocation2 + $0x80] sm:$0xff] %v594
          %611 = vst [vmem:[#allocation2 + $0x88] sm:$0xff] %v595
          %612 = vst [vmem:[#allocation2 + $0x90] sm:$0xff] %v596
          %613 = vst [vmem:[#allocation2 + $0x98] sm:$0xff] %v597
          %614 = vst [vmem:[#allocation2 + $0xa0] sm:$0xff] %v598
          %615 = vst [vmem:[#allocation2 + $0xa8] sm:$0xff] %v599
          %616 = vst [vmem:[#allocation2 + $0xb0] sm:$0xff] %v600
          %617 = vst [vmem:[#allocation2 + $0xb8] sm:$0xff] %v601
          %618 = vst [vmem:[#allocation2 + $0xc0] sm:$0xff] %v602
          %619 = vst [vmem:[#allocation2 + $0xc8] sm:$0xff] %v603
          %620 = vst [vmem:[#allocation2 + $0xd0] sm:$0xff] %v604
          %621 = vst [vmem:[#allocation2 + $0xd8] sm:$0xff] %v605
          %622 = vst [vmem:[#allocation2 + $0xe0] sm:$0xff] %v606
          %623 = vst [vmem:[#allocation2 + $0xe8] sm:$0xff] %v607
          %624 = vst [vmem:[#allocation2 + $0xf0] sm:$0xff] %v608
          %625 = vst [vmem:[#allocation2 + $0xf8] sm:$0xff] %v609
        $region84: #{tpu_custom_call.1} parent=55 // pred_fallthru
          _
        %v626 = vld [vmem:[#allocation2] sm:$0xff]
        %v627 = vld [vmem:[#allocation2 + $0x8] sm:$0xff]
        %v628 = vld [vmem:[#allocation2 + $0x10] sm:$0xff]
        %v629 = vld [vmem:[#allocation2 + $0x18] sm:$0xff]
        %v630 = vld [vmem:[#allocation2 + $0x20] sm:$0xff]
        %v631 = vld [vmem:[#allocation2 + $0x28] sm:$0xff]
        %v632 = vld [vmem:[#allocation2 + $0x30] sm:$0xff]
        %v633 = vld [vmem:[#allocation2 + $0x38] sm:$0xff]
        %v634 = vld [vmem:[#allocation2 + $0x40] sm:$0xff]
        %v635 = vld [vmem:[#allocation2 + $0x48] sm:$0xff]
        %v636 = vld [vmem:[#allocation2 + $0x50] sm:$0xff]
        %v637 = vld [vmem:[#allocation2 + $0x58] sm:$0xff]
        %v638 = vld [vmem:[#allocation2 + $0x60] sm:$0xff]
        %v639 = vld [vmem:[#allocation2 + $0x68] sm:$0xff]
        %v640 = vld [vmem:[#allocation2 + $0x70] sm:$0xff]
        %v641 = vld [vmem:[#allocation2 + $0x78] sm:$0xff]
        %v642 = vld [vmem:[#allocation2 + $0x80] sm:$0xff]
        %v643 = vld [vmem:[#allocation2 + $0x88] sm:$0xff]
        %v644 = vld [vmem:[#allocation2 + $0x90] sm:$0xff]
        %v645 = vld [vmem:[#allocation2 + $0x98] sm:$0xff]
        %v646 = vld [vmem:[#allocation2 + $0xa0] sm:$0xff]
        %v647 = vld [vmem:[#allocation2 + $0xa8] sm:$0xff]
        %v648 = vld [vmem:[#allocation2 + $0xb0] sm:$0xff]
        %v649 = vld [vmem:[#allocation2 + $0xb8] sm:$0xff]
        %v650 = vld [vmem:[#allocation2 + $0xc0] sm:$0xff]
        %v651 = vld [vmem:[#allocation2 + $0xc8] sm:$0xff]
        %v652 = vld [vmem:[#allocation2 + $0xd0] sm:$0xff]
        %v653 = vld [vmem:[#allocation2 + $0xd8] sm:$0xff]
        %v654 = vld [vmem:[#allocation2 + $0xe0] sm:$0xff]
        %v655 = vld [vmem:[#allocation2 + $0xe8] sm:$0xff]
        %v656 = vld [vmem:[#allocation2 + $0xf0] sm:$0xff]
        %v657 = vld [vmem:[#allocation2 + $0xf8] sm:$0xff]
        %v658 = vlaneseq
        %v659 = vand.u32 %v658, 127
        %s660 = sld [smem:[#allocation4]]
        %v661 = vstv %s660
        %vm662 = vcmp.lt.s32.totalorder %v659, %v661
        %v663 = vsel %vm662, 0.0, -1e+09
        %s664 = sld [smem:[#allocation4 + $0x1]]
        %v665 = vstv %s664
        %vm666 = vcmp.lt.s32.totalorder %v659, %v665
        %v667 = vsel %vm666, 0.0, -1e+09
        %v668 = vld [vmem:[%s553] sm:$0x1]
        %v669 = vmul.f32 %v626, %v626
        %v670 = vmul.f32 %v627, %v627
        %v671 = vmul.f32 %v628, %v628
        %v672 = vmul.f32 %v629, %v629
        %v673 = vmul.f32 %v630, %v630
        %v674 = vmul.f32 %v631, %v631
        %v675 = vmul.f32 %v632, %v632
        %v676 = vmul.f32 %v633, %v633
        %v677 = vmul.f32 %v634, %v634
        %v678 = vmul.f32 %v635, %v635
        %v679 = vmul.f32 %v636, %v636
        %v680 = vmul.f32 %v637, %v637
        %v681 = vmul.f32 %v638, %v638
        %v682 = vmul.f32 %v639, %v639
        %v683 = vmul.f32 %v640, %v640
        %v684 = vmul.f32 %v641, %v641
        %v685 = vmul.f32 %v642, %v642
        %v686 = vmul.f32 %v643, %v643
        %v687 = vmul.f32 %v644, %v644
        %v688 = vmul.f32 %v645, %v645
        %v689 = vmul.f32 %v646, %v646
        %v690 = vmul.f32 %v647, %v647
        %v691 = vmul.f32 %v648, %v648
        %v692 = vmul.f32 %v649, %v649
        %v693 = vmul.f32 %v650, %v650
        %v694 = vmul.f32 %v651, %v651
        %v695 = vmul.f32 %v652, %v652
        %v696 = vmul.f32 %v653, %v653
        %v697 = vmul.f32 %v654, %v654
        %v698 = vmul.f32 %v655, %v655
        %v699 = vmul.f32 %v656, %v656
        %v700 = vmul.f32 %v657, %v657
        %701 = vadd.xlane.f32.xlu0 %v669
        %v702 = vpop.xlane.xlu0 %701
        %703 = vadd.xlane.f32.xlu0 %v670
        %v704 = vpop.xlane.xlu0 %703
        %705 = vadd.xlane.f32.xlu0 %v671
        %v706 = vpop.xlane.xlu0 %705
        %707 = vadd.xlane.f32.xlu0 %v672
        %v708 = vpop.xlane.xlu0 %707
        %709 = vadd.xlane.f32.xlu0 %v673
        %v710 = vpop.xlane.xlu0 %709
        %711 = vadd.xlane.f32.xlu0 %v674
        %v712 = vpop.xlane.xlu0 %711
        %713 = vadd.xlane.f32.xlu0 %v675
        %v714 = vpop.xlane.xlu0 %713
        %715 = vadd.xlane.f32.xlu0 %v676
        %v716 = vpop.xlane.xlu0 %715
        %717 = vadd.xlane.f32.xlu0 %v677
        %v718 = vpop.xlane.xlu0 %717
        %719 = vadd.xlane.f32.xlu0 %v678
        %v720 = vpop.xlane.xlu0 %719
        %721 = vadd.xlane.f32.xlu0 %v679
        %v722 = vpop.xlane.xlu0 %721
        %723 = vadd.xlane.f32.xlu0 %v680
        %v724 = vpop.xlane.xlu0 %723
        %725 = vadd.xlane.f32.xlu0 %v681
        %v726 = vpop.xlane.xlu0 %725
        %727 = vadd.xlane.f32.xlu0 %v682
        %v728 = vpop.xlane.xlu0 %727
        %729 = vadd.xlane.f32.xlu0 %v683
        %v730 = vpop.xlane.xlu0 %729
        %731 = vadd.xlane.f32.xlu0 %v684
        %v732 = vpop.xlane.xlu0 %731
        %733 = vadd.xlane.f32.xlu0 %v685
        %v734 = vpop.xlane.xlu0 %733
        %735 = vadd.xlane.f32.xlu0 %v686
        %v736 = vpop.xlane.xlu0 %735
        %737 = vadd.xlane.f32.xlu0 %v687
        %v738 = vpop.xlane.xlu0 %737
        %739 = vadd.xlane.f32.xlu0 %v688
        %v740 = vpop.xlane.xlu0 %739
        %741 = vadd.xlane.f32.xlu0 %v689
        %v742 = vpop.xlane.xlu0 %741
        %743 = vadd.xlane.f32.xlu0 %v690
        %v744 = vpop.xlane.xlu0 %743
        %745 = vadd.xlane.f32.xlu0 %v691
        %v746 = vpop.xlane.xlu0 %745
        %747 = vadd.xlane.f32.xlu0 %v692
        %v748 = vpop.xlane.xlu0 %747
        %749 = vadd.xlane.f32.xlu0 %v693
        %v750 = vpop.xlane.xlu0 %749
        %751 = vadd.xlane.f32.xlu0 %v694
        %v752 = vpop.xlane.xlu0 %751
        %753 = vadd.xlane.f32.xlu0 %v695
        %v754 = vpop.xlane.xlu0 %753
        %755 = vadd.xlane.f32.xlu0 %v696
        %v756 = vpop.xlane.xlu0 %755
        %757 = vadd.xlane.f32.xlu0 %v697
        %v758 = vpop.xlane.xlu0 %757
        %759 = vadd.xlane.f32.xlu0 %v698
        %v760 = vpop.xlane.xlu0 %759
        %761 = vadd.xlane.f32.xlu0 %v699
        %v762 = vpop.xlane.xlu0 %761
        %763 = vadd.xlane.f32.xlu0 %v700
        %v764 = vpop.xlane.xlu0 %763
        %v765 = vrcp.pop 128.0
        %v766 = vmul.f32 128.0, %v765
        %v767 = vsub.f32 1.0, %v766
        %v768 = vmul.f32 %v765, %v767
        %v769 = vadd.f32 %v765, %v768
        %vm770 = vweird.f32 %v765
        %v771 = vsel %vm770, %v765, %v769
        %v772 = vmul.f32 %v702, %v771
        %v773 = vmul.f32 %v704, %v771
        %v774 = vmul.f32 %v706, %v771
        %v775 = vmul.f32 %v708, %v771
        %v776 = vmul.f32 %v710, %v771
        %v777 = vmul.f32 %v712, %v771
        %v778 = vmul.f32 %v714, %v771
        %v779 = vmul.f32 %v716, %v771
        %v780 = vmul.f32 %v718, %v771
        %v781 = vmul.f32 %v720, %v771
        %v782 = vmul.f32 %v722, %v771
        %v783 = vmul.f32 %v724, %v771
        %v784 = vmul.f32 %v726, %v771
        %v785 = vmul.f32 %v728, %v771
        %v786 = vmul.f32 %v730, %v771
        %v787 = vmul.f32 %v732, %v771
        %v788 = vmul.f32 %v734, %v771
        %v789 = vmul.f32 %v736, %v771
        %v790 = vmul.f32 %v738, %v771
        %v791 = vmul.f32 %v740, %v771
        %v792 = vmul.f32 %v742, %v771
        %v793 = vmul.f32 %v744, %v771
        %v794 = vmul.f32 %v746, %v771
        %v795 = vmul.f32 %v748, %v771
        %v796 = vmul.f32 %v750, %v771
        %v797 = vmul.f32 %v752, %v771
        %v798 = vmul.f32 %v754, %v771
        %v799 = vmul.f32 %v756, %v771
        %v800 = vmul.f32 %v758, %v771
        %v801 = vmul.f32 %v760, %v771
        %v802 = vmul.f32 %v762, %v771
        %v803 = vmul.f32 %v764, %v771
        %v804 = vadd.f32 %v772, 1e-06
        %v805 = vadd.f32 %v773, 1e-06
        %v806 = vadd.f32 %v774, 1e-06
        %v807 = vadd.f32 %v775, 1e-06
        %v808 = vadd.f32 %v776, 1e-06
        %v809 = vadd.f32 %v777, 1e-06
        %v810 = vadd.f32 %v778, 1e-06
        %v811 = vadd.f32 %v779, 1e-06
        %v812 = vadd.f32 %v780, 1e-06
        %v813 = vadd.f32 %v781, 1e-06
        %v814 = vadd.f32 %v782, 1e-06
        %v815 = vadd.f32 %v783, 1e-06
        %v816 = vadd.f32 %v784, 1e-06
        %v817 = vadd.f32 %v785, 1e-06
        %v818 = vadd.f32 %v786, 1e-06
        %v819 = vadd.f32 %v787, 1e-06
        %v820 = vadd.f32 %v788, 1e-06
        %v821 = vadd.f32 %v789, 1e-06
        %v822 = vadd.f32 %v790, 1e-06
        %v823 = vadd.f32 %v791, 1e-06
        %v824 = vadd.f32 %v792, 1e-06
        %v825 = vadd.f32 %v793, 1e-06
        %v826 = vadd.f32 %v794, 1e-06
        %v827 = vadd.f32 %v795, 1e-06
        %v828 = vadd.f32 %v796, 1e-06
        %v829 = vadd.f32 %v797, 1e-06
        %v830 = vadd.f32 %v798, 1e-06
        %v831 = vadd.f32 %v799, 1e-06
        %v832 = vadd.f32 %v800, 1e-06
        %v833 = vadd.f32 %v801, 1e-06
        %v834 = vadd.f32 %v802, 1e-06
        %v835 = vadd.f32 %v803, 1e-06
        %v836 = vrsqrt.pop %v804
        %v837 = vmul.f32 %v836, %v804
        %v838 = vmul.f32 %v837, %v836
        %v839 = vmul.f32 0.5, %v838
        %v840 = vsub.f32 1.5, %v839
        %v841 = vmul.f32 %v836, %v840
        %vm842 = vweird.f32 %v804
        %vm843 = vweird.f32 %v836
        %vm844 = vmor %vm842, %vm843
        %v845 = vsel %vm844, %v836, %v841
        %v846 = vrsqrt.pop %v805
        %v847 = vmul.f32 %v846, %v805
        %v848 = vmul.f32 %v847, %v846
        %v849 = vmul.f32 0.5, %v848
        %v850 = vsub.f32 1.5, %v849
        %v851 = vmul.f32 %v846, %v850
        %vm852 = vweird.f32 %v805
        %vm853 = vweird.f32 %v846
        %vm854 = vmor %vm852, %vm853
        %v855 = vsel %vm854, %v846, %v851
        %v856 = vrsqrt.pop %v806
        %v857 = vmul.f32 %v856, %v806
        %v858 = vmul.f32 %v857, %v856
        %v859 = vmul.f32 0.5, %v858
        %v860 = vsub.f32 1.5, %v859
        %v861 = vmul.f32 %v856, %v860
        %vm862 = vweird.f32 %v806
        %vm863 = vweird.f32 %v856
        %vm864 = vmor %vm862, %vm863
        %v865 = vsel %vm864, %v856, %v861
        %v866 = vrsqrt.pop %v807
        %v867 = vmul.f32 %v866, %v807
        %v868 = vmul.f32 %v867, %v866
        %v869 = vmul.f32 0.5, %v868
        %v870 = vsub.f32 1.5, %v869
        %v871 = vmul.f32 %v866, %v870
        %vm872 = vweird.f32 %v807
        %vm873 = vweird.f32 %v866
        %vm874 = vmor %vm872, %vm873
        %v875 = vsel %vm874, %v866, %v871
        %v876 = vrsqrt.pop %v808
        %v877 = vmul.f32 %v876, %v808
        %v878 = vmul.f32 %v877, %v876
        %v879 = vmul.f32 0.5, %v878
        %v880 = vsub.f32 1.5, %v879
        %v881 = vmul.f32 %v876, %v880
        %vm882 = vweird.f32 %v808
        %vm883 = vweird.f32 %v876
        %vm884 = vmor %vm882, %vm883
        %v885 = vsel %vm884, %v876, %v881
        %v886 = vrsqrt.pop %v809
        %v887 = vmul.f32 %v886, %v809
        %v888 = vmul.f32 %v887, %v886
        %v889 = vmul.f32 0.5, %v888
        %v890 = vsub.f32 1.5, %v889
        %v891 = vmul.f32 %v886, %v890
        %vm892 = vweird.f32 %v809
        %vm893 = vweird.f32 %v886
        %vm894 = vmor %vm892, %vm893
        %v895 = vsel %vm894, %v886, %v891
        %v896 = vrsqrt.pop %v810
        %v897 = vmul.f32 %v896, %v810
        %v898 = vmul.f32 %v897, %v896
        %v899 = vmul.f32 0.5, %v898
        %v900 = vsub.f32 1.5, %v899
        %v901 = vmul.f32 %v896, %v900
        %vm902 = vweird.f32 %v810
        %vm903 = vweird.f32 %v896
        %vm904 = vmor %vm902, %vm903
        %v905 = vsel %vm904, %v896, %v901
        %v906 = vrsqrt.pop %v811
        %v907 = vmul.f32 %v906, %v811
        %v908 = vmul.f32 %v907, %v906
        %v909 = vmul.f32 0.5, %v908
        %v910 = vsub.f32 1.5, %v909
        %v911 = vmul.f32 %v906, %v910
        %vm912 = vweird.f32 %v811
        %vm913 = vweird.f32 %v906
        %vm914 = vmor %vm912, %vm913
        %v915 = vsel %vm914, %v906, %v911
        %v916 = vrsqrt.pop %v812
        %v917 = vmul.f32 %v916, %v812
        %v918 = vmul.f32 %v917, %v916
        %v919 = vmul.f32 0.5, %v918
        %v920 = vsub.f32 1.5, %v919
        %v921 = vmul.f32 %v916, %v920
        %vm922 = vweird.f32 %v812
        %vm923 = vweird.f32 %v916
        %vm924 = vmor %vm922, %vm923
        %v925 = vsel %vm924, %v916, %v921
        %v926 = vrsqrt.pop %v813
        %v927 = vmul.f32 %v926, %v813
        %v928 = vmul.f32 %v927, %v926
        %v929 = vmul.f32 0.5, %v928
        %v930 = vsub.f32 1.5, %v929
        %v931 = vmul.f32 %v926, %v930
        %vm932 = vweird.f32 %v813
        %vm933 = vweird.f32 %v926
        %vm934 = vmor %vm932, %vm933
        %v935 = vsel %vm934, %v926, %v931
        %v936 = vrsqrt.pop %v814
        %v937 = vmul.f32 %v936, %v814
        %v938 = vmul.f32 %v937, %v936
        %v939 = vmul.f32 0.5, %v938
        %v940 = vsub.f32 1.5, %v939
        %v941 = vmul.f32 %v936, %v940
        %vm942 = vweird.f32 %v814
        %vm943 = vweird.f32 %v936
        %vm944 = vmor %vm942, %vm943
        %v945 = vsel %vm944, %v936, %v941
        %v946 = vrsqrt.pop %v815
        %v947 = vmul.f32 %v946, %v815
        %v948 = vmul.f32 %v947, %v946
        %v949 = vmul.f32 0.5, %v948
        %v950 = vsub.f32 1.5, %v949
        %v951 = vmul.f32 %v946, %v950
        %vm952 = vweird.f32 %v815
        %vm953 = vweird.f32 %v946
        %vm954 = vmor %vm952, %vm953
        %v955 = vsel %vm954, %v946, %v951
        %v956 = vrsqrt.pop %v816
        %v957 = vmul.f32 %v956, %v816
        %v958 = vmul.f32 %v957, %v956
        %v959 = vmul.f32 0.5, %v958
        %v960 = vsub.f32 1.5, %v959
        %v961 = vmul.f32 %v956, %v960
        %vm962 = vweird.f32 %v816
        %vm963 = vweird.f32 %v956
        %vm964 = vmor %vm962, %vm963
        %v965 = vsel %vm964, %v956, %v961
        %v966 = vrsqrt.pop %v817
        %v967 = vmul.f32 %v966, %v817
        %v968 = vmul.f32 %v967, %v966
        %v969 = vmul.f32 0.5, %v968
        %v970 = vsub.f32 1.5, %v969
        %v971 = vmul.f32 %v966, %v970
        %vm972 = vweird.f32 %v817
        %vm973 = vweird.f32 %v966
        %vm974 = vmor %vm972, %vm973
        %v975 = vsel %vm974, %v966, %v971
        %v976 = vrsqrt.pop %v818
        %v977 = vmul.f32 %v976, %v818
        %v978 = vmul.f32 %v977, %v976
        %v979 = vmul.f32 0.5, %v978
        %v980 = vsub.f32 1.5, %v979
        %v981 = vmul.f32 %v976, %v980
        %vm982 = vweird.f32 %v818
        %vm983 = vweird.f32 %v976
        %vm984 = vmor %vm982, %vm983
        %v985 = vsel %vm984, %v976, %v981
        %v986 = vrsqrt.pop %v819
        %v987 = vmul.f32 %v986, %v819
        %v988 = vmul.f32 %v987, %v986
        %v989 = vmul.f32 0.5, %v988
        %v990 = vsub.f32 1.5, %v989
        %v991 = vmul.f32 %v986, %v990
        %vm992 = vweird.f32 %v819
        %vm993 = vweird.f32 %v986
        %vm994 = vmor %vm992, %vm993
        %v995 = vsel %vm994, %v986, %v991
        %v996 = vrsqrt.pop %v820
        %v997 = vmul.f32 %v996, %v820
        %v998 = vmul.f32 %v997, %v996
        %v999 = vmul.f32 0.5, %v998
        %v1000 = vsub.f32 1.5, %v999
        %v1001 = vmul.f32 %v996, %v1000
        %vm1002 = vweird.f32 %v820
        %vm1003 = vweird.f32 %v996
        %vm1004 = vmor %vm1002, %vm1003
        %v1005 = vsel %vm1004, %v996, %v1001
        %v1006 = vrsqrt.pop %v821
        %v1007 = vmul.f32 %v1006, %v821
        %v1008 = vmul.f32 %v1007, %v1006
        %v1009 = vmul.f32 0.5, %v1008
        %v1010 = vsub.f32 1.5, %v1009
        %v1011 = vmul.f32 %v1006, %v1010
        %vm1012 = vweird.f32 %v821
        %vm1013 = vweird.f32 %v1006
        %vm1014 = vmor %vm1012, %vm1013
        %v1015 = vsel %vm1014, %v1006, %v1011
        %v1016 = vrsqrt.pop %v822
        %v1017 = vmul.f32 %v1016, %v822
        %v1018 = vmul.f32 %v1017, %v1016
        %v1019 = vmul.f32 0.5, %v1018
        %v1020 = vsub.f32 1.5, %v1019
        %v1021 = vmul.f32 %v1016, %v1020
        %vm1022 = vweird.f32 %v822
        %vm1023 = vweird.f32 %v1016
        %vm1024 = vmor %vm1022, %vm1023
        %v1025 = vsel %vm1024, %v1016, %v1021
        %v1026 = vrsqrt.pop %v823
        %v1027 = vmul.f32 %v1026, %v823
        %v1028 = vmul.f32 %v1027, %v1026
        %v1029 = vmul.f32 0.5, %v1028
        %v1030 = vsub.f32 1.5, %v1029
        %v1031 = vmul.f32 %v1026, %v1030
        %vm1032 = vweird.f32 %v823
        %vm1033 = vweird.f32 %v1026
        %vm1034 = vmor %vm1032, %vm1033
        %v1035 = vsel %vm1034, %v1026, %v1031
        %v1036 = vrsqrt.pop %v824
        %v1037 = vmul.f32 %v1036, %v824
        %v1038 = vmul.f32 %v1037, %v1036
        %v1039 = vmul.f32 0.5, %v1038
        %v1040 = vsub.f32 1.5, %v1039
        %v1041 = vmul.f32 %v1036, %v1040
        %vm1042 = vweird.f32 %v824
        %vm1043 = vweird.f32 %v1036
        %vm1044 = vmor %vm1042, %vm1043
        %v1045 = vsel %vm1044, %v1036, %v1041
        %v1046 = vrsqrt.pop %v825
        %v1047 = vmul.f32 %v1046, %v825
        %v1048 = vmul.f32 %v1047, %v1046
        %v1049 = vmul.f32 0.5, %v1048
        %v1050 = vsub.f32 1.5, %v1049
        %v1051 = vmul.f32 %v1046, %v1050
        %vm1052 = vweird.f32 %v825
        %vm1053 = vweird.f32 %v1046
        %vm1054 = vmor %vm1052, %vm1053
        %v1055 = vsel %vm1054, %v1046, %v1051
        %v1056 = vrsqrt.pop %v826
        %v1057 = vmul.f32 %v1056, %v826
        %v1058 = vmul.f32 %v1057, %v1056
        %v1059 = vmul.f32 0.5, %v1058
        %v1060 = vsub.f32 1.5, %v1059
        %v1061 = vmul.f32 %v1056, %v1060
        %vm1062 = vweird.f32 %v826
        %vm1063 = vweird.f32 %v1056
        %vm1064 = vmor %vm1062, %vm1063
        %v1065 = vsel %vm1064, %v1056, %v1061
        %v1066 = vrsqrt.pop %v827
        %v1067 = vmul.f32 %v1066, %v827
        %v1068 = vmul.f32 %v1067, %v1066
        %v1069 = vmul.f32 0.5, %v1068
        %v1070 = vsub.f32 1.5, %v1069
        %v1071 = vmul.f32 %v1066, %v1070
        %vm1072 = vweird.f32 %v827
        %vm1073 = vweird.f32 %v1066
        %vm1074 = vmor %vm1072, %vm1073
        %v1075 = vsel %vm1074, %v1066, %v1071
        %v1076 = vrsqrt.pop %v828
        %v1077 = vmul.f32 %v1076, %v828
        %v1078 = vmul.f32 %v1077, %v1076
        %v1079 = vmul.f32 0.5, %v1078
        %v1080 = vsub.f32 1.5, %v1079
        %v1081 = vmul.f32 %v1076, %v1080
        %vm1082 = vweird.f32 %v828
        %vm1083 = vweird.f32 %v1076
        %vm1084 = vmor %vm1082, %vm1083
        %v1085 = vsel %vm1084, %v1076, %v1081
        %v1086 = vrsqrt.pop %v829
        %v1087 = vmul.f32 %v1086, %v829
        %v1088 = vmul.f32 %v1087, %v1086
        %v1089 = vmul.f32 0.5, %v1088
        %v1090 = vsub.f32 1.5, %v1089
        %v1091 = vmul.f32 %v1086, %v1090
        %vm1092 = vweird.f32 %v829
        %vm1093 = vweird.f32 %v1086
        %vm1094 = vmor %vm1092, %vm1093
        %v1095 = vsel %vm1094, %v1086, %v1091
        %v1096 = vrsqrt.pop %v830
        %v1097 = vmul.f32 %v1096, %v830
        %v1098 = vmul.f32 %v1097, %v1096
        %v1099 = vmul.f32 0.5, %v1098
        %v1100 = vsub.f32 1.5, %v1099
        %v1101 = vmul.f32 %v1096, %v1100
        %vm1102 = vweird.f32 %v830
        %vm1103 = vweird.f32 %v1096
        %vm1104 = vmor %vm1102, %vm1103
        %v1105 = vsel %vm1104, %v1096, %v1101
        %v1106 = vrsqrt.pop %v831
        %v1107 = vmul.f32 %v1106, %v831
        %v1108 = vmul.f32 %v1107, %v1106
        %v1109 = vmul.f32 0.5, %v1108
        %v1110 = vsub.f32 1.5, %v1109
        %v1111 = vmul.f32 %v1106, %v1110
        %vm1112 = vweird.f32 %v831
        %vm1113 = vweird.f32 %v1106
        %vm1114 = vmor %vm1112, %vm1113
        %v1115 = vsel %vm1114, %v1106, %v1111
        %v1116 = vrsqrt.pop %v832
        %v1117 = vmul.f32 %v1116, %v832
        %v1118 = vmul.f32 %v1117, %v1116
        %v1119 = vmul.f32 0.5, %v1118
        %v1120 = vsub.f32 1.5, %v1119
        %v1121 = vmul.f32 %v1116, %v1120
        %vm1122 = vweird.f32 %v832
        %vm1123 = vweird.f32 %v1116
        %vm1124 = vmor %vm1122, %vm1123
        %v1125 = vsel %vm1124, %v1116, %v1121
        %v1126 = vrsqrt.pop %v833
        %v1127 = vmul.f32 %v1126, %v833
        %v1128 = vmul.f32 %v1127, %v1126
        %v1129 = vmul.f32 0.5, %v1128
        %v1130 = vsub.f32 1.5, %v1129
        %v1131 = vmul.f32 %v1126, %v1130
        %vm1132 = vweird.f32 %v833
        %vm1133 = vweird.f32 %v1126
        %vm1134 = vmor %vm1132, %vm1133
        %v1135 = vsel %vm1134, %v1126, %v1131
        %v1136 = vrsqrt.pop %v834
        %v1137 = vmul.f32 %v1136, %v834
        %v1138 = vmul.f32 %v1137, %v1136
        %v1139 = vmul.f32 0.5, %v1138
        %v1140 = vsub.f32 1.5, %v1139
        %v1141 = vmul.f32 %v1136, %v1140
        %vm1142 = vweird.f32 %v834
        %vm1143 = vweird.f32 %v1136
        %vm1144 = vmor %vm1142, %vm1143
        %v1145 = vsel %vm1144, %v1136, %v1141
        %v1146 = vrsqrt.pop %v835
        %v1147 = vmul.f32 %v1146, %v835
        %v1148 = vmul.f32 %v1147, %v1146
        %v1149 = vmul.f32 0.5, %v1148
        %v1150 = vsub.f32 1.5, %v1149
        %v1151 = vmul.f32 %v1146, %v1150
        %vm1152 = vweird.f32 %v835
        %vm1153 = vweird.f32 %v1146
        %vm1154 = vmor %vm1152, %vm1153
        %v1155 = vsel %vm1154, %v1146, %v1151
        %v1156 = vmul.f32 %v626, %v845
        %v1157 = vmul.f32 %v627, %v855
        %v1158 = vmul.f32 %v628, %v865
        %v1159 = vmul.f32 %v629, %v875
        %v1160 = vmul.f32 %v630, %v885
        %v1161 = vmul.f32 %v631, %v895
        %v1162 = vmul.f32 %v632, %v905
        %v1163 = vmul.f32 %v633, %v915
        %v1164 = vmul.f32 %v634, %v925
        %v1165 = vmul.f32 %v635, %v935
        %v1166 = vmul.f32 %v636, %v945
        %v1167 = vmul.f32 %v637, %v955
        %v1168 = vmul.f32 %v638, %v965
        %v1169 = vmul.f32 %v639, %v975
        %v1170 = vmul.f32 %v640, %v985
        %v1171 = vmul.f32 %v641, %v995
        %v1172 = vmul.f32 %v642, %v1005
        %v1173 = vmul.f32 %v643, %v1015
        %v1174 = vmul.f32 %v644, %v1025
        %v1175 = vmul.f32 %v645, %v1035
        %v1176 = vmul.f32 %v646, %v1045
        %v1177 = vmul.f32 %v647, %v1055
        %v1178 = vmul.f32 %v648, %v1065
        %v1179 = vmul.f32 %v649, %v1075
        %v1180 = vmul.f32 %v650, %v1085
        %v1181 = vmul.f32 %v651, %v1095
        %v1182 = vmul.f32 %v652, %v1105
        %v1183 = vmul.f32 %v653, %v1115
        %v1184 = vmul.f32 %v654, %v1125
        %v1185 = vmul.f32 %v655, %v1135
        %v1186 = vmul.f32 %v656, %v1145
        %v1187 = vmul.f32 %v657, %v1155
        %v1189 = vperm.slane %v668, 0
        %v1191 = vmul.f32 %v1156, %v1189
        %v1192 = vmul.f32 %v1157, %v1189
        %v1193 = vmul.f32 %v1158, %v1189
        %v1194 = vmul.f32 %v1159, %v1189
        %v1195 = vmul.f32 %v1160, %v1189
        %v1196 = vmul.f32 %v1161, %v1189
        %v1197 = vmul.f32 %v1162, %v1189
        %v1198 = vmul.f32 %v1163, %v1189
        %v1199 = vmul.f32 %v1164, %v1189
        %v1200 = vmul.f32 %v1165, %v1189
        %v1201 = vmul.f32 %v1166, %v1189
        %v1202 = vmul.f32 %v1167, %v1189
        %v1203 = vmul.f32 %v1168, %v1189
        %v1204 = vmul.f32 %v1169, %v1189
        %v1205 = vmul.f32 %v1170, %v1189
        %v1206 = vmul.f32 %v1171, %v1189
        %v1207 = vmul.f32 %v1172, %v1189
        %v1208 = vmul.f32 %v1173, %v1189
        %v1209 = vmul.f32 %v1174, %v1189
        %v1210 = vmul.f32 %v1175, %v1189
        %v1211 = vmul.f32 %v1176, %v1189
        %v1212 = vmul.f32 %v1177, %v1189
        %v1213 = vmul.f32 %v1178, %v1189
        %v1214 = vmul.f32 %v1179, %v1189
        %v1215 = vmul.f32 %v1180, %v1189
        %v1216 = vmul.f32 %v1181, %v1189
        %v1217 = vmul.f32 %v1182, %v1189
        %v1218 = vmul.f32 %v1183, %v1189
        %v1219 = vmul.f32 %v1184, %v1189
        %v1220 = vmul.f32 %v1185, %v1189
        %v1221 = vmul.f32 %v1186, %v1189
        %v1222 = vmul.f32 %v1187, %v1189
        %v1223 = vpack.c.bf16 %v1192, %v1191
        %v1224 = vpack.c.bf16 %v1194, %v1193
        %v1225 = vpack.c.bf16 %v1196, %v1195
        %v1226 = vpack.c.bf16 %v1198, %v1197
        %v1227 = vpack.c.bf16 %v1200, %v1199
        %v1228 = vpack.c.bf16 %v1202, %v1201
        %v1229 = vpack.c.bf16 %v1204, %v1203
        %v1230 = vpack.c.bf16 %v1206, %v1205
        %v1231 = vpack.c.bf16 %v1208, %v1207
        %v1232 = vpack.c.bf16 %v1210, %v1209
        %v1233 = vpack.c.bf16 %v1212, %v1211
        %v1234 = vpack.c.bf16 %v1214, %v1213
        %v1235 = vpack.c.bf16 %v1216, %v1215
        %v1236 = vpack.c.bf16 %v1218, %v1217
        %v1237 = vpack.c.bf16 %v1220, %v1219
        %v1238 = vpack.c.bf16 %v1222, %v1221
        %v1239 = vld [vmem:[%s464] sm:$0xff]
        %v1240 = vld [vmem:[%s464 + $0x8] sm:$0xf]
        %v1241 = vld [vmem:[%s464 + $0xc] sm:$0xff]
        %v1242 = vld [vmem:[%s464 + $0x14] sm:$0xf]
        %v1243 = vld [vmem:[%s464 + $0x18] sm:$0xff]
        %v1244 = vld [vmem:[%s464 + $0x20] sm:$0xf]
        %v1245 = vld [vmem:[%s464 + $0x24] sm:$0xff]
        %v1246 = vld [vmem:[%s464 + $0x2c] sm:$0xf]
        %v1247 = vld [vmem:[%s464 + $0x30] sm:$0xff]
        %v1248 = vld [vmem:[%s464 + $0x38] sm:$0xf]
        %v1249 = vld [vmem:[%s464 + $0x3c] sm:$0xff]
        %v1250 = vld [vmem:[%s464 + $0x44] sm:$0xf]
        %v1251 = vld [vmem:[%s464 + $0x48] sm:$0xff]
        %v1252 = vld [vmem:[%s464 + $0x50] sm:$0xf]
        %v1253 = vld [vmem:[%s464 + $0x54] sm:$0xff]
        %v1254 = vld [vmem:[%s464 + $0x5c] sm:$0xf]
        %v1255 = vld [vmem:[%s464 + $0x60] sm:$0xff]
        %v1256 = vld [vmem:[%s464 + $0x68] sm:$0xf]
        %v1257 = vld [vmem:[%s464 + $0x6c] sm:$0xff]
        %v1258 = vld [vmem:[%s464 + $0x74] sm:$0xf]
        %v1259 = vld [vmem:[%s464 + $0x78] sm:$0xff]
        %v1260 = vld [vmem:[%s464 + $0x80] sm:$0xf]
        %v1261 = vld [vmem:[%s464 + $0x84] sm:$0xff]
        %v1262 = vld [vmem:[%s464 + $0x8c] sm:$0xf]
        %v1263 = vld [vmem:[%s464 + $0x90] sm:$0xff]
        %v1264 = vld [vmem:[%s464 + $0x98] sm:$0xf]
        %v1265 = vld [vmem:[%s464 + $0x9c] sm:$0xff]
        %v1266 = vld [vmem:[%s464 + $0xa4] sm:$0xf]
        %v1267 = vld [vmem:[%s464 + $0xa8] sm:$0xff]
        %v1268 = vld [vmem:[%s464 + $0xb0] sm:$0xf]
        %v1269 = vld [vmem:[%s464 + $0xb4] sm:$0xff]
        %v1270 = vld [vmem:[%s464 + $0xbc] sm:$0xf]
        %v1303 = vunpack.c.l.b16 %v1239
        %v1304 = vunpack.c.h.b16 %v1239
        %v1305 = vunpack.c.l.b16 %v1240
        %v1306 = vunpack.c.l.b16 %v1241
        %v1307 = vunpack.c.h.b16 %v1241
        %v1308 = vunpack.c.l.b16 %v1242
        %v1309 = vunpack.c.l.b16 %v1243
        %v1310 = vunpack.c.h.b16 %v1243
        %v1311 = vunpack.c.l.b16 %v1244
        %v1312 = vunpack.c.l.b16 %v1245
        %v1313 = vunpack.c.h.b16 %v1245
        %v1314 = vunpack.c.l.b16 %v1246
        %v1315 = vunpack.c.l.b16 %v1247
        %v1316 = vunpack.c.h.b16 %v1247
        %v1317 = vunpack.c.l.b16 %v1248
        %v1318 = vunpack.c.l.b16 %v1249
        %v1319 = vunpack.c.h.b16 %v1249
        %v1320 = vunpack.c.l.b16 %v1250
        %v1321 = vunpack.c.l.b16 %v1251
        %v1322 = vunpack.c.h.b16 %v1251
        %v1323 = vunpack.c.l.b16 %v1252
        %v1324 = vunpack.c.l.b16 %v1253
        %v1325 = vunpack.c.h.b16 %v1253
        %v1326 = vunpack.c.l.b16 %v1254
        %v1327 = vunpack.c.l.b16 %v1255
        %v1328 = vunpack.c.h.b16 %v1255
        %v1329 = vunpack.c.l.b16 %v1256
        %v1330 = vunpack.c.l.b16 %v1257
        %v1331 = vunpack.c.h.b16 %v1257
        %v1332 = vunpack.c.l.b16 %v1258
        %v1333 = vunpack.c.l.b16 %v1259
        %v1334 = vunpack.c.h.b16 %v1259
        %v1335 = vunpack.c.l.b16 %v1260
        %v1336 = vunpack.c.l.b16 %v1261
        %v1337 = vunpack.c.h.b16 %v1261
        %v1338 = vunpack.c.l.b16 %v1262
        %v1339 = vunpack.c.l.b16 %v1263
        %v1340 = vunpack.c.h.b16 %v1263
        %v1341 = vunpack.c.l.b16 %v1264
        %v1342 = vunpack.c.l.b16 %v1265
        %v1343 = vunpack.c.h.b16 %v1265
        %v1344 = vunpack.c.l.b16 %v1266
        %v1345 = vunpack.c.l.b16 %v1267
        %v1346 = vunpack.c.h.b16 %v1267
        %v1347 = vunpack.c.l.b16 %v1268
        %v1348 = vunpack.c.l.b16 %v1269
        %v1349 = vunpack.c.h.b16 %v1269
        %v1350 = vunpack.c.l.b16 %v1270
        %v1351 = vpack.c.b16 %v1306, %v1303
        %v1352 = vpack.c.b16 %v1307, %v1304
        %v1353 = vpack.c.b16 %v1308, %v1305
        %v1354 = vpack.c.b16 %v1312, %v1309
        %v1355 = vpack.c.b16 %v1313, %v1310
        %v1356 = vpack.c.b16 %v1314, %v1311
        %v1357 = vpack.c.b16 %v1318, %v1315
        %v1358 = vpack.c.b16 %v1319, %v1316
        %v1359 = vpack.c.b16 %v1320, %v1317
        %v1360 = vpack.c.b16 %v1324, %v1321
        %v1361 = vpack.c.b16 %v1325, %v1322
        %v1362 = vpack.c.b16 %v1326, %v1323
        %v1363 = vpack.c.b16 %v1330, %v1327
        %v1364 = vpack.c.b16 %v1331, %v1328
        %v1365 = vpack.c.b16 %v1332, %v1329
        %v1366 = vpack.c.b16 %v1336, %v1333
        %v1367 = vpack.c.b16 %v1337, %v1334
        %v1368 = vpack.c.b16 %v1338, %v1335
        %v1369 = vpack.c.b16 %v1342, %v1339
        %v1370 = vpack.c.b16 %v1343, %v1340
        %v1371 = vpack.c.b16 %v1344, %v1341
        %v1372 = vpack.c.b16 %v1348, %v1345
        %v1373 = vpack.c.b16 %v1349, %v1346
        %v1374 = vpack.c.b16 %v1350, %v1347
        %1399 = vmatpush.bf16.msra.mxu0 %v1372
        %1400 = vmatpush.bf16.msra.mxu0 %v1369
        %1401 = vmatpush.bf16.msra.mxu0 %v1366
        %1402 = vmatpush.bf16.msra.mxu0 %v1363
        %1403 = vmatpush.bf16.msra.mxu0 %v1360
        %1404 = vmatpush.bf16.msra.mxu0 %v1357
        %1405 = vmatpush.bf16.msra.mxu0 %v1354
        %1406 = vmatpush.bf16.msra.mxu0 %v1351
        %1407 = vmatmul.bf16.gmra.mxu0 %v1223
        %v1408 = vpop.f32.mrf.mxu0
        %v1409 = vadd.f32 0.0, %v1408
        %v1410 = vpop.f32.mrf.mxu0
        %v1411 = vadd.f32 0.0, %v1410
        %1412 = vmatmul.bf16.gmra.mxu0 %v1224
        %v1413 = vpop.f32.mrf.mxu0
        %v1414 = vadd.f32 0.0, %v1413
        %v1415 = vpop.f32.mrf.mxu0
        %v1416 = vadd.f32 0.0, %v1415
        %1417 = vmatmul.bf16.gmra.mxu0 %v1225
        %v1418 = vpop.f32.mrf.mxu0
        %v1419 = vadd.f32 0.0, %v1418
        %v1420 = vpop.f32.mrf.mxu0
        %v1421 = vadd.f32 0.0, %v1420
        %1422 = vmatmul.bf16.gmra.mxu0 %v1226
        %v1423 = vpop.f32.mrf.mxu0
        %v1424 = vadd.f32 0.0, %v1423
        %v1425 = vpop.f32.mrf.mxu0
        %v1426 = vadd.f32 0.0, %v1425
        %1427 = vmatmul.bf16.gmra.mxu0 %v1227
        %v1428 = vpop.f32.mrf.mxu0
        %v1429 = vadd.f32 0.0, %v1428
        %v1430 = vpop.f32.mrf.mxu0
        %v1431 = vadd.f32 0.0, %v1430
        %1432 = vmatmul.bf16.gmra.mxu0 %v1228
        %v1433 = vpop.f32.mrf.mxu0
        %v1434 = vadd.f32 0.0, %v1433
        %v1435 = vpop.f32.mrf.mxu0
        %v1436 = vadd.f32 0.0, %v1435
        %1437 = vmatmul.bf16.gmra.mxu0 %v1229
        %v1438 = vpop.f32.mrf.mxu0
        %v1439 = vadd.f32 0.0, %v1438
        %v1440 = vpop.f32.mrf.mxu0
        %v1441 = vadd.f32 0.0, %v1440
        %1442 = vmatmul.bf16.gmra.mxu0 %v1230
        %v1443 = vpop.f32.mrf.mxu0
        %v1444 = vadd.f32 0.0, %v1443
        %v1445 = vpop.f32.mrf.mxu0
        %v1446 = vadd.f32 0.0, %v1445
        %1447 = vmatmul.bf16.gmra.mxu0 %v1231
        %v1448 = vpop.f32.mrf.mxu0
        %v1449 = vadd.f32 0.0, %v1448
        %v1450 = vpop.f32.mrf.mxu0
        %v1451 = vadd.f32 0.0, %v1450
        %1452 = vmatmul.bf16.gmra.mxu0 %v1232
        %v1453 = vpop.f32.mrf.mxu0
        %v1454 = vadd.f32 0.0, %v1453
        %v1455 = vpop.f32.mrf.mxu0
        %v1456 = vadd.f32 0.0, %v1455
        %1457 = vmatmul.bf16.gmra.mxu0 %v1233
        %v1458 = vpop.f32.mrf.mxu0
        %v1459 = vadd.f32 0.0, %v1458
        %v1460 = vpop.f32.mrf.mxu0
        %v1461 = vadd.f32 0.0, %v1460
        %1462 = vmatmul.bf16.gmra.mxu0 %v1234
        %v1463 = vpop.f32.mrf.mxu0
        %v1464 = vadd.f32 0.0, %v1463
        %v1465 = vpop.f32.mrf.mxu0
        %v1466 = vadd.f32 0.0, %v1465
        %1467 = vmatmul.bf16.gmra.mxu0 %v1235
        %v1468 = vpop.f32.mrf.mxu0
        %v1469 = vadd.f32 0.0, %v1468
        %v1470 = vpop.f32.mrf.mxu0
        %v1471 = vadd.f32 0.0, %v1470
        %1472 = vmatmul.bf16.gmra.mxu0 %v1236
        %v1473 = vpop.f32.mrf.mxu0
        %v1474 = vadd.f32 0.0, %v1473
        %v1475 = vpop.f32.mrf.mxu0
        %v1476 = vadd.f32 0.0, %v1475
        %1477 = vmatmul.bf16.gmra.mxu0 %v1237
        %v1478 = vpop.f32.mrf.mxu0
        %v1479 = vadd.f32 0.0, %v1478
        %v1480 = vpop.f32.mrf.mxu0
        %v1481 = vadd.f32 0.0, %v1480
        %1482 = vmatmul.bf16.gmra.mxu0 %v1238
        %v1483 = vpop.f32.mrf.mxu0
        %v1484 = vadd.f32 0.0, %v1483
        %v1485 = vpop.f32.mrf.mxu0
        %v1486 = vadd.f32 0.0, %v1485
        %1487 = vdwg.mxu0
        %1488 = vmatpush.bf16.msra.mxu0 %v1373
        %1489 = vmatpush.bf16.msra.mxu0 %v1370
        %1490 = vmatpush.bf16.msra.mxu0 %v1367
        %1491 = vmatpush.bf16.msra.mxu0 %v1364
        %1492 = vmatpush.bf16.msra.mxu0 %v1361
        %1493 = vmatpush.bf16.msra.mxu0 %v1358
        %1494 = vmatpush.bf16.msra.mxu0 %v1355
        %1495 = vmatpush.bf16.msra.mxu0 %v1352
        %1496 = vmatmul.bf16.gmra.mxu0 %v1223
        %v1497 = vpop.f32.mrf.mxu0
        %v1498 = vadd.f32 0.0, %v1497
        %v1499 = vpop.f32.mrf.mxu0
        %v1500 = vadd.f32 0.0, %v1499
        %1501 = vmatmul.bf16.gmra.mxu0 %v1224
        %v1502 = vpop.f32.mrf.mxu0
        %v1503 = vadd.f32 0.0, %v1502
        %v1504 = vpop.f32.mrf.mxu0
        %v1505 = vadd.f32 0.0, %v1504
        %1506 = vmatmul.bf16.gmra.mxu0 %v1225
        %v1507 = vpop.f32.mrf.mxu0
        %v1508 = vadd.f32 0.0, %v1507
        %v1509 = vpop.f32.mrf.mxu0
        %v1510 = vadd.f32 0.0, %v1509
        %1511 = vmatmul.bf16.gmra.mxu0 %v1226
        %v1512 = vpop.f32.mrf.mxu0
        %v1513 = vadd.f32 0.0, %v1512
        %v1514 = vpop.f32.mrf.mxu0
        %v1515 = vadd.f32 0.0, %v1514
        %1516 = vmatmul.bf16.gmra.mxu0 %v1227
        %v1517 = vpop.f32.mrf.mxu0
        %v1518 = vadd.f32 0.0, %v1517
        %v1519 = vpop.f32.mrf.mxu0
        %v1520 = vadd.f32 0.0, %v1519
        %1521 = vmatmul.bf16.gmra.mxu0 %v1228
        %v1522 = vpop.f32.mrf.mxu0
        %v1523 = vadd.f32 0.0, %v1522
        %v1524 = vpop.f32.mrf.mxu0
        %v1525 = vadd.f32 0.0, %v1524
        %1526 = vmatmul.bf16.gmra.mxu0 %v1229
        %v1527 = vpop.f32.mrf.mxu0
        %v1528 = vadd.f32 0.0, %v1527
        %v1529 = vpop.f32.mrf.mxu0
        %v1530 = vadd.f32 0.0, %v1529
        %1531 = vmatmul.bf16.gmra.mxu0 %v1230
        %v1532 = vpop.f32.mrf.mxu0
        %v1533 = vadd.f32 0.0, %v1532
        %v1534 = vpop.f32.mrf.mxu0
        %v1535 = vadd.f32 0.0, %v1534
        %1536 = vmatmul.bf16.gmra.mxu0 %v1231
        %v1537 = vpop.f32.mrf.mxu0
        %v1538 = vadd.f32 0.0, %v1537
        %v1539 = vpop.f32.mrf.mxu0
        %v1540 = vadd.f32 0.0, %v1539
        %1541 = vmatmul.bf16.gmra.mxu0 %v1232
        %v1542 = vpop.f32.mrf.mxu0
        %v1543 = vadd.f32 0.0, %v1542
        %v1544 = vpop.f32.mrf.mxu0
        %v1545 = vadd.f32 0.0, %v1544
        %1546 = vmatmul.bf16.gmra.mxu0 %v1233
        %v1547 = vpop.f32.mrf.mxu0
        %v1548 = vadd.f32 0.0, %v1547
        %v1549 = vpop.f32.mrf.mxu0
        %v1550 = vadd.f32 0.0, %v1549
        %1551 = vmatmul.bf16.gmra.mxu0 %v1234
        %v1552 = vpop.f32.mrf.mxu0
        %v1553 = vadd.f32 0.0, %v1552
        %v1554 = vpop.f32.mrf.mxu0
        %v1555 = vadd.f32 0.0, %v1554
        %1556 = vmatmul.bf16.gmra.mxu0 %v1235
        %v1557 = vpop.f32.mrf.mxu0
        %v1558 = vadd.f32 0.0, %v1557
        %v1559 = vpop.f32.mrf.mxu0
        %v1560 = vadd.f32 0.0, %v1559
        %1561 = vmatmul.bf16.gmra.mxu0 %v1236
        %v1562 = vpop.f32.mrf.mxu0
        %v1563 = vadd.f32 0.0, %v1562
        %v1564 = vpop.f32.mrf.mxu0
        %v1565 = vadd.f32 0.0, %v1564
        %1566 = vmatmul.bf16.gmra.mxu0 %v1237
        %v1567 = vpop.f32.mrf.mxu0
        %v1568 = vadd.f32 0.0, %v1567
        %v1569 = vpop.f32.mrf.mxu0
        %v1570 = vadd.f32 0.0, %v1569
        %1571 = vmatmul.bf16.gmra.mxu0 %v1238
        %v1572 = vpop.f32.mrf.mxu0
        %v1573 = vadd.f32 0.0, %v1572
        %v1574 = vpop.f32.mrf.mxu0
        %v1575 = vadd.f32 0.0, %v1574
        %1576 = vdwg.mxu0
        %1577 = vmatpush.bf16.msra.mxu0 %v1374
        %1578 = vmatpush.bf16.msra.mxu0 %v1371
        %1579 = vmatpush.bf16.msra.mxu0 %v1368
        %1580 = vmatpush.bf16.msra.mxu0 %v1365
        %1581 = vmatpush.bf16.msra.mxu0 %v1362
        %1582 = vmatpush.bf16.msra.mxu0 %v1359
        %1583 = vmatpush.bf16.msra.mxu0 %v1356
        %1584 = vmatpush.bf16.msra.mxu0 %v1353
        %1585 = vmatmul.bf16.gmra.mxu0 %v1223
        %v1586 = vpop.f32.mrf.mxu0
        %v1587 = vadd.f32 0.0, %v1586
        %v1588 = vpop.f32.mrf.mxu0
        %v1589 = vadd.f32 0.0, %v1588
        %1590 = vmatmul.bf16.gmra.mxu0 %v1224
        %v1591 = vpop.f32.mrf.mxu0
        %v1592 = vadd.f32 0.0, %v1591
        %v1593 = vpop.f32.mrf.mxu0
        %v1594 = vadd.f32 0.0, %v1593
        %1595 = vmatmul.bf16.gmra.mxu0 %v1225
        %v1596 = vpop.f32.mrf.mxu0
        %v1597 = vadd.f32 0.0, %v1596
        %v1598 = vpop.f32.mrf.mxu0
        %v1599 = vadd.f32 0.0, %v1598
        %1600 = vmatmul.bf16.gmra.mxu0 %v1226
        %v1601 = vpop.f32.mrf.mxu0
        %v1602 = vadd.f32 0.0, %v1601
        %v1603 = vpop.f32.mrf.mxu0
        %v1604 = vadd.f32 0.0, %v1603
        %1605 = vmatmul.bf16.gmra.mxu0 %v1227
        %v1606 = vpop.f32.mrf.mxu0
        %v1607 = vadd.f32 0.0, %v1606
        %v1608 = vpop.f32.mrf.mxu0
        %v1609 = vadd.f32 0.0, %v1608
        %1610 = vmatmul.bf16.gmra.mxu0 %v1228
        %v1611 = vpop.f32.mrf.mxu0
        %v1612 = vadd.f32 0.0, %v1611
        %v1613 = vpop.f32.mrf.mxu0
        %v1614 = vadd.f32 0.0, %v1613
        %1615 = vmatmul.bf16.gmra.mxu0 %v1229
        %v1616 = vpop.f32.mrf.mxu0
        %v1617 = vadd.f32 0.0, %v1616
        %v1618 = vpop.f32.mrf.mxu0
        %v1619 = vadd.f32 0.0, %v1618
        %1620 = vmatmul.bf16.gmra.mxu0 %v1230
        %v1621 = vpop.f32.mrf.mxu0
        %v1622 = vadd.f32 0.0, %v1621
        %v1623 = vpop.f32.mrf.mxu0
        %v1624 = vadd.f32 0.0, %v1623
        %1625 = vmatmul.bf16.gmra.mxu0 %v1231
        %v1626 = vpop.f32.mrf.mxu0
        %v1627 = vadd.f32 0.0, %v1626
        %v1628 = vpop.f32.mrf.mxu0
        %v1629 = vadd.f32 0.0, %v1628
        %1630 = vmatmul.bf16.gmra.mxu0 %v1232
        %v1631 = vpop.f32.mrf.mxu0
        %v1632 = vadd.f32 0.0, %v1631
        %v1633 = vpop.f32.mrf.mxu0
        %v1634 = vadd.f32 0.0, %v1633
        %1635 = vmatmul.bf16.gmra.mxu0 %v1233
        %v1636 = vpop.f32.mrf.mxu0
        %v1637 = vadd.f32 0.0, %v1636
        %v1638 = vpop.f32.mrf.mxu0
        %v1639 = vadd.f32 0.0, %v1638
        %1640 = vmatmul.bf16.gmra.mxu0 %v1234
        %v1641 = vpop.f32.mrf.mxu0
        %v1642 = vadd.f32 0.0, %v1641
        %v1643 = vpop.f32.mrf.mxu0
        %v1644 = vadd.f32 0.0, %v1643
        %1645 = vmatmul.bf16.gmra.mxu0 %v1235
        %v1646 = vpop.f32.mrf.mxu0
        %v1647 = vadd.f32 0.0, %v1646
        %v1648 = vpop.f32.mrf.mxu0
        %v1649 = vadd.f32 0.0, %v1648
        %1650 = vmatmul.bf16.gmra.mxu0 %v1236
        %v1651 = vpop.f32.mrf.mxu0
        %v1652 = vadd.f32 0.0, %v1651
        %v1653 = vpop.f32.mrf.mxu0
        %v1654 = vadd.f32 0.0, %v1653
        %1655 = vmatmul.bf16.gmra.mxu0 %v1237
        %v1656 = vpop.f32.mrf.mxu0
        %v1657 = vadd.f32 0.0, %v1656
        %v1658 = vpop.f32.mrf.mxu0
        %v1659 = vadd.f32 0.0, %v1658
        %1660 = vmatmul.bf16.gmra.mxu0 %v1238
        %v1661 = vpop.f32.mrf.mxu0
        %v1662 = vadd.f32 0.0, %v1661
        %v1663 = vpop.f32.mrf.mxu0
        %v1664 = vadd.f32 0.0, %v1663
        %1665 = vdwg.mxu0
        %v1666 = vpack.c.bf16 %v1498, %v1409
        %v1667 = vpack.c.bf16 %v1587, %v1587
        %v1668 = vpack.c.bf16 %v1500, %v1411
        %v1669 = vpack.c.bf16 %v1589, %v1589
        %v1670 = vpack.c.bf16 %v1503, %v1414
        %v1671 = vpack.c.bf16 %v1592, %v1592
        %v1672 = vpack.c.bf16 %v1505, %v1416
        %v1673 = vpack.c.bf16 %v1594, %v1594
        %v1674 = vpack.c.bf16 %v1508, %v1419
        %v1675 = vpack.c.bf16 %v1597, %v1597
        %v1676 = vpack.c.bf16 %v1510, %v1421
        %v1677 = vpack.c.bf16 %v1599, %v1599
        %v1678 = vpack.c.bf16 %v1513, %v1424
        %v1679 = vpack.c.bf16 %v1602, %v1602
        %v1680 = vpack.c.bf16 %v1515, %v1426
        %v1681 = vpack.c.bf16 %v1604, %v1604
        %v1682 = vpack.c.bf16 %v1518, %v1429
        %v1683 = vpack.c.bf16 %v1607, %v1607
        %v1684 = vpack.c.bf16 %v1520, %v1431
        %v1685 = vpack.c.bf16 %v1609, %v1609
        %v1686 = vpack.c.bf16 %v1523, %v1434
        %v1687 = vpack.c.bf16 %v1612, %v1612
        %v1688 = vpack.c.bf16 %v1525, %v1436
        %v1689 = vpack.c.bf16 %v1614, %v1614
        %v1690 = vpack.c.bf16 %v1528, %v1439
        %v1691 = vpack.c.bf16 %v1617, %v1617
        %v1692 = vpack.c.bf16 %v1530, %v1441
        %v1693 = vpack.c.bf16 %v1619, %v1619
        %v1694 = vpack.c.bf16 %v1533, %v1444
        %v1695 = vpack.c.bf16 %v1622, %v1622
        %v1696 = vpack.c.bf16 %v1535, %v1446
        %v1697 = vpack.c.bf16 %v1624, %v1624
        %v1698 = vpack.c.bf16 %v1538, %v1449
        %v1699 = vpack.c.bf16 %v1627, %v1627
        %v1700 = vpack.c.bf16 %v1540, %v1451
        %v1701 = vpack.c.bf16 %v1629, %v1629
        %v1702 = vpack.c.bf16 %v1543, %v1454
        %v1703 = vpack.c.bf16 %v1632, %v1632
        %v1704 = vpack.c.bf16 %v1545, %v1456
        %v1705 = vpack.c.bf16 %v1634, %v1634
        %v1706 = vpack.c.bf16 %v1548, %v1459
        %v1707 = vpack.c.bf16 %v1637, %v1637
        %v1708 = vpack.c.bf16 %v1550, %v1461
        %v1709 = vpack.c.bf16 %v1639, %v1639
        %v1710 = vpack.c.bf16 %v1553, %v1464
        %v1711 = vpack.c.bf16 %v1642, %v1642
        %v1712 = vpack.c.bf16 %v1555, %v1466
        %v1713 = vpack.c.bf16 %v1644, %v1644
        %v1714 = vpack.c.bf16 %v1558, %v1469
        %v1715 = vpack.c.bf16 %v1647, %v1647
        %v1716 = vpack.c.bf16 %v1560, %v1471
        %v1717 = vpack.c.bf16 %v1649, %v1649
        %v1718 = vpack.c.bf16 %v1563, %v1474
        %v1719 = vpack.c.bf16 %v1652, %v1652
        %v1720 = vpack.c.bf16 %v1565, %v1476
        %v1721 = vpack.c.bf16 %v1654, %v1654
        %v1722 = vpack.c.bf16 %v1568, %v1479
        %v1723 = vpack.c.bf16 %v1657, %v1657
        %v1724 = vpack.c.bf16 %v1570, %v1481
        %v1725 = vpack.c.bf16 %v1659, %v1659
        %v1726 = vpack.c.bf16 %v1573, %v1484
        %v1727 = vpack.c.bf16 %v1662, %v1662
        %v1728 = vpack.c.bf16 %v1575, %v1486
        %v1729 = vpack.c.bf16 %v1664, %v1664
        %v1730 = vld [vmem:[%s454] sm:$0xf]
        %v1731 = vld [vmem:[%s454 + $0x4] sm:$0xf]
        %v1732 = vld [vmem:[%s454 + $0x8] sm:$0xf]
        %v1733 = vld [vmem:[%s454 + $0xc] sm:$0xf]
        %v1734 = vld [vmem:[%s454 + $0x10] sm:$0xf]
        %v1735 = vld [vmem:[%s454 + $0x14] sm:$0xf]
        %v1736 = vld [vmem:[%s454 + $0x18] sm:$0xf]
        %v1737 = vld [vmem:[%s454 + $0x1c] sm:$0xf]
        %v1738 = vld [vmem:[%s454 + $0x20] sm:$0xf]
        %v1739 = vld [vmem:[%s454 + $0x24] sm:$0xf]
        %v1740 = vld [vmem:[%s454 + $0x28] sm:$0xf]
        %v1741 = vld [vmem:[%s454 + $0x2c] sm:$0xf]
        %v1742 = vld [vmem:[%s454 + $0x30] sm:$0xf]
        %v1743 = vld [vmem:[%s454 + $0x34] sm:$0xf]
        %v1744 = vld [vmem:[%s454 + $0x38] sm:$0xf]
        %v1745 = vld [vmem:[%s454 + $0x3c] sm:$0xf]
        %v1746 = vunpack.c.l.bf16 %v1730
        %v1747 = vunpack.c.l.bf16 %v1731
        %v1748 = vunpack.c.l.bf16 %v1732
        %v1749 = vunpack.c.l.bf16 %v1733
        %v1750 = vunpack.c.l.bf16 %v1734
        %v1751 = vunpack.c.l.bf16 %v1735
        %v1752 = vunpack.c.l.bf16 %v1736
        %v1753 = vunpack.c.l.bf16 %v1737
        %v1754 = vunpack.c.l.bf16 %v1738
        %v1755 = vunpack.c.l.bf16 %v1739
        %v1756 = vunpack.c.l.bf16 %v1740
        %v1757 = vunpack.c.l.bf16 %v1741
        %v1758 = vunpack.c.l.bf16 %v1742
        %v1759 = vunpack.c.l.bf16 %v1743
        %v1760 = vunpack.c.l.bf16 %v1744
        %v1761 = vunpack.c.l.bf16 %v1745
        %v1778 = vunpack.c.l.b16 %v1666
        %v1779 = vunpack.c.l.b16 %v1668
        %v1780 = vunpack.c.l.b16 %v1670
        %v1781 = vunpack.c.l.b16 %v1672
        %v1782 = vunpack.c.l.b16 %v1674
        %v1783 = vunpack.c.l.b16 %v1676
        %v1784 = vunpack.c.l.b16 %v1678
        %v1785 = vunpack.c.l.b16 %v1680
        %v1786 = vunpack.c.l.b16 %v1682
        %v1787 = vunpack.c.l.b16 %v1684
        %v1788 = vunpack.c.l.b16 %v1686
        %v1789 = vunpack.c.l.b16 %v1688
        %v1790 = vunpack.c.l.b16 %v1690
        %v1791 = vunpack.c.l.b16 %v1692
        %v1792 = vunpack.c.l.b16 %v1694
        %v1793 = vunpack.c.l.b16 %v1696
        %v1794 = vpack.c.b16 %v1779, %v1778
        %v1795 = vpack.c.b16 %v1781, %v1780
        %v1796 = vpack.c.b16 %v1783, %v1782
        %v1797 = vpack.c.b16 %v1785, %v1784
        %v1798 = vpack.c.b16 %v1787, %v1786
        %v1799 = vpack.c.b16 %v1789, %v1788
        %v1800 = vpack.c.b16 %v1791, %v1790
        %v1801 = vpack.c.b16 %v1793, %v1792
        %v1802 = vunpack.c.h.b16 %v1666
        %v1803 = vunpack.c.h.b16 %v1668
        %v1804 = vunpack.c.h.b16 %v1670
        %v1805 = vunpack.c.h.b16 %v1672
        %v1806 = vunpack.c.h.b16 %v1674
        %v1807 = vunpack.c.h.b16 %v1676
        %v1808 = vunpack.c.h.b16 %v1678
        %v1809 = vunpack.c.h.b16 %v1680
        %v1810 = vunpack.c.h.b16 %v1682
        %v1811 = vunpack.c.h.b16 %v1684
        %v1812 = vunpack.c.h.b16 %v1686
        %v1813 = vunpack.c.h.b16 %v1688
        %v1814 = vunpack.c.h.b16 %v1690
        %v1815 = vunpack.c.h.b16 %v1692
        %v1816 = vunpack.c.h.b16 %v1694
        %v1817 = vunpack.c.h.b16 %v1696
        %v1818 = vpack.c.b16 %v1803, %v1802
        %v1819 = vpack.c.b16 %v1805, %v1804
        %v1820 = vpack.c.b16 %v1807, %v1806
        %v1821 = vpack.c.b16 %v1809, %v1808
        %v1822 = vpack.c.b16 %v1811, %v1810
        %v1823 = vpack.c.b16 %v1813, %v1812
        %v1824 = vpack.c.b16 %v1815, %v1814
        %v1825 = vpack.c.b16 %v1817, %v1816
        %vm1826 = vcmask 261120
        %v1828 = vsel %vm1826, %v1794, 0
        %v1831 = vsel %vm1826, %v1795, 0
        %v1834 = vsel %vm1826, %v1796, 0
        %v1837 = vsel %vm1826, %v1797, 0
        %v1840 = vsel %vm1826, %v1798, 0
        %v1843 = vsel %vm1826, %v1799, 0
        %v1846 = vsel %vm1826, %v1800, 0
        %v1849 = vsel %vm1826, %v1801, 0
        %v1852 = vsel %vm1826, %v1818, 0
        %v1855 = vsel %vm1826, %v1819, 0
        %v1858 = vsel %vm1826, %v1820, 0
        %v1861 = vsel %vm1826, %v1821, 0
        %v1864 = vsel %vm1826, %v1822, 0
        %v1867 = vsel %vm1826, %v1823, 0
        %v1870 = vsel %vm1826, %v1824, 0
        %v1873 = vsel %vm1826, %v1825, 0
        %1875 = vmatpush.bf16.xpose.msra.mxu0 %v1873
        %1876 = vmatpush.bf16.xpose.msra.mxu0 %v1870
        %1877 = vmatpush.bf16.xpose.msra.mxu0 %v1867
        %1878 = vmatpush.bf16.xpose.msra.mxu0 %v1864
        %1879 = vmatpush.bf16.xpose.msra.mxu0 %v1861
        %1880 = vmatpush.bf16.xpose.msra.mxu0 %v1858
        %1881 = vmatpush.bf16.xpose.msra.mxu0 %v1855
        %1882 = vmatpush.bf16.xpose.msra.mxu0 %v1852
        %1883 = vmatmul.bf16.gmra.mxu0 %v1828
        %v1884 = vpop.f32.mrf.mxu0
        %v1885 = vadd.f32 %v1746, %v1884
        %v1886 = vpop.f32.mrf.mxu0
        %v1887 = vadd.f32 %v1747, %v1886
        %1888 = vmatmul.bf16.gmra.mxu0 %v1831
        %v1889 = vpop.f32.mrf.mxu0
        %v1890 = vadd.f32 %v1748, %v1889
        %v1891 = vpop.f32.mrf.mxu0
        %v1892 = vadd.f32 %v1749, %v1891
        %1893 = vmatmul.bf16.gmra.mxu0 %v1834
        %v1894 = vpop.f32.mrf.mxu0
        %v1895 = vadd.f32 %v1750, %v1894
        %v1896 = vpop.f32.mrf.mxu0
        %v1897 = vadd.f32 %v1751, %v1896
        %1898 = vmatmul.bf16.gmra.mxu0 %v1837
        %v1899 = vpop.f32.mrf.mxu0
        %v1900 = vadd.f32 %v1752, %v1899
        %v1901 = vpop.f32.mrf.mxu0
        %v1902 = vadd.f32 %v1753, %v1901
        %1903 = vmatmul.bf16.gmra.mxu0 %v1840
        %v1904 = vpop.f32.mrf.mxu0
        %v1905 = vadd.f32 %v1754, %v1904
        %v1906 = vpop.f32.mrf.mxu0
        %v1907 = vadd.f32 %v1755, %v1906
        %1908 = vmatmul.bf16.gmra.mxu0 %v1843
        %v1909 = vpop.f32.mrf.mxu0
        %v1910 = vadd.f32 %v1756, %v1909
        %v1911 = vpop.f32.mrf.mxu0
        %v1912 = vadd.f32 %v1757, %v1911
        %1913 = vmatmul.bf16.gmra.mxu0 %v1846
        %v1914 = vpop.f32.mrf.mxu0
        %v1915 = vadd.f32 %v1758, %v1914
        %v1916 = vpop.f32.mrf.mxu0
        %v1917 = vadd.f32 %v1759, %v1916
        %1918 = vmatmul.bf16.gmra.mxu0 %v1849
        %v1919 = vpop.f32.mrf.mxu0
        %v1920 = vadd.f32 %v1760, %v1919
        %v1921 = vpop.f32.mrf.mxu0
        %v1922 = vadd.f32 %v1761, %v1921
        %1923 = vdwg.mxu0
        %v1924 = vadd.f32 %v1885, %v663
        %v1925 = vadd.f32 %v1887, %v663
        %v1926 = vadd.f32 %v1890, %v663
        %v1927 = vadd.f32 %v1892, %v663
        %v1928 = vadd.f32 %v1895, %v663
        %v1929 = vadd.f32 %v1897, %v663
        %v1930 = vadd.f32 %v1900, %v663
        %v1931 = vadd.f32 %v1902, %v663
        %v1932 = vadd.f32 %v1905, %v663
        %v1933 = vadd.f32 %v1907, %v663
        %v1934 = vadd.f32 %v1910, %v663
        %v1935 = vadd.f32 %v1912, %v663
        %v1936 = vadd.f32 %v1915, %v663
        %v1937 = vadd.f32 %v1917, %v663
        %v1938 = vadd.f32 %v1920, %v663
        %v1939 = vadd.f32 %v1922, %v663
        %1940 = vmax.xlane.f32.xlu0 %v1924
        %v1941 = vpop.xlane.xlu0 %1940
        %1942 = vmax.xlane.f32.xlu0 %v1925
        %v1943 = vpop.xlane.xlu0 %1942
        %1944 = vmax.xlane.f32.xlu0 %v1926
        %v1945 = vpop.xlane.xlu0 %1944
        %1946 = vmax.xlane.f32.xlu0 %v1927
        %v1947 = vpop.xlane.xlu0 %1946
        %1948 = vmax.xlane.f32.xlu0 %v1928
        %v1949 = vpop.xlane.xlu0 %1948
        %1950 = vmax.xlane.f32.xlu0 %v1929
        %v1951 = vpop.xlane.xlu0 %1950
        %1952 = vmax.xlane.f32.xlu0 %v1930
        %v1953 = vpop.xlane.xlu0 %1952
        %1954 = vmax.xlane.f32.xlu0 %v1931
        %v1955 = vpop.xlane.xlu0 %1954
        %1956 = vmax.xlane.f32.xlu0 %v1932
        %v1957 = vpop.xlane.xlu0 %1956
        %1958 = vmax.xlane.f32.xlu0 %v1933
        %v1959 = vpop.xlane.xlu0 %1958
        %1960 = vmax.xlane.f32.xlu0 %v1934
        %v1961 = vpop.xlane.xlu0 %1960
        %1962 = vmax.xlane.f32.xlu0 %v1935
        %v1963 = vpop.xlane.xlu0 %1962
        %1964 = vmax.xlane.f32.xlu0 %v1936
        %v1965 = vpop.xlane.xlu0 %1964
        %1966 = vmax.xlane.f32.xlu0 %v1937
        %v1967 = vpop.xlane.xlu0 %1966
        %1968 = vmax.xlane.f32.xlu0 %v1938
        %v1969 = vpop.xlane.xlu0 %1968
        %1970 = vmax.xlane.f32.xlu0 %v1939
        %v1971 = vpop.xlane.xlu0 %1970
        %v1972 = vsub.f32 %v1924, %v1941
        %v1973 = vsub.f32 %v1925, %v1943
        %v1974 = vsub.f32 %v1926, %v1945
        %v1975 = vsub.f32 %v1927, %v1947
        %v1976 = vsub.f32 %v1928, %v1949
        %v1977 = vsub.f32 %v1929, %v1951
        %v1978 = vsub.f32 %v1930, %v1953
        %v1979 = vsub.f32 %v1931, %v1955
        %v1980 = vsub.f32 %v1932, %v1957
        %v1981 = vsub.f32 %v1933, %v1959
        %v1982 = vsub.f32 %v1934, %v1961
        %v1983 = vsub.f32 %v1935, %v1963
        %v1984 = vsub.f32 %v1936, %v1965
        %v1985 = vsub.f32 %v1937, %v1967
        %v1986 = vsub.f32 %v1938, %v1969
        %v1987 = vsub.f32 %v1939, %v1971
        %v1988 = vmul.f32 %v1972, 1.442695
        %v1989 = vpow.pop %v1988
        %v1990 = vmul.f32 %v1973, 1.442695
        %v1991 = vpow.pop %v1990
        %v1992 = vmul.f32 %v1974, 1.442695
        %v1993 = vpow.pop %v1992
        %v1994 = vmul.f32 %v1975, 1.442695
        %v1995 = vpow.pop %v1994
        %v1996 = vmul.f32 %v1976, 1.442695
        %v1997 = vpow.pop %v1996
        %v1998 = vmul.f32 %v1977, 1.442695
        %v1999 = vpow.pop %v1998
        %v2000 = vmul.f32 %v1978, 1.442695
        %v2001 = vpow.pop %v2000
        %v2002 = vmul.f32 %v1979, 1.442695
        %v2003 = vpow.pop %v2002
        %v2004 = vmul.f32 %v1980, 1.442695
        %v2005 = vpow.pop %v2004
        %v2006 = vmul.f32 %v1981, 1.442695
        %v2007 = vpow.pop %v2006
        %v2008 = vmul.f32 %v1982, 1.442695
        %v2009 = vpow.pop %v2008
        %v2010 = vmul.f32 %v1983, 1.442695
        %v2011 = vpow.pop %v2010
        %v2012 = vmul.f32 %v1984, 1.442695
        %v2013 = vpow.pop %v2012
        %v2014 = vmul.f32 %v1985, 1.442695
        %v2015 = vpow.pop %v2014
        %v2016 = vmul.f32 %v1986, 1.442695
        %v2017 = vpow.pop %v2016
        %v2018 = vmul.f32 %v1987, 1.442695
        %v2019 = vpow.pop %v2018
        %2020 = vadd.xlane.f32.xlu0 %v1989
        %v2021 = vpop.xlane.xlu0 %2020
        %2022 = vadd.xlane.f32.xlu0 %v1991
        %v2023 = vpop.xlane.xlu0 %2022
        %2024 = vadd.xlane.f32.xlu0 %v1993
        %v2025 = vpop.xlane.xlu0 %2024
        %2026 = vadd.xlane.f32.xlu0 %v1995
        %v2027 = vpop.xlane.xlu0 %2026
        %2028 = vadd.xlane.f32.xlu0 %v1997
        %v2029 = vpop.xlane.xlu0 %2028
        %2030 = vadd.xlane.f32.xlu0 %v1999
        %v2031 = vpop.xlane.xlu0 %2030
        %2032 = vadd.xlane.f32.xlu0 %v2001
        %v2033 = vpop.xlane.xlu0 %2032
        %2034 = vadd.xlane.f32.xlu0 %v2003
        %v2035 = vpop.xlane.xlu0 %2034
        %2036 = vadd.xlane.f32.xlu0 %v2005
        %v2037 = vpop.xlane.xlu0 %2036
        %2038 = vadd.xlane.f32.xlu0 %v2007
        %v2039 = vpop.xlane.xlu0 %2038
        %2040 = vadd.xlane.f32.xlu0 %v2009
        %v2041 = vpop.xlane.xlu0 %2040
        %2042 = vadd.xlane.f32.xlu0 %v2011
        %v2043 = vpop.xlane.xlu0 %2042
        %2044 = vadd.xlane.f32.xlu0 %v2013
        %v2045 = vpop.xlane.xlu0 %2044
        %2046 = vadd.xlane.f32.xlu0 %v2015
        %v2047 = vpop.xlane.xlu0 %2046
        %2048 = vadd.xlane.f32.xlu0 %v2017
        %v2049 = vpop.xlane.xlu0 %2048
        %2050 = vadd.xlane.f32.xlu0 %v2019
        %v2051 = vpop.xlane.xlu0 %2050
        %v2052 = vrcp.pop %v2021
        %v2053 = vrcp.pop %v2023
        %v2054 = vrcp.pop %v2025
        %v2055 = vrcp.pop %v2027
        %v2056 = vrcp.pop %v2029
        %v2057 = vrcp.pop %v2031
        %v2058 = vrcp.pop %v2033
        %v2059 = vrcp.pop %v2035
        %v2060 = vrcp.pop %v2037
        %v2061 = vrcp.pop %v2039
        %v2062 = vrcp.pop %v2041
        %v2063 = vrcp.pop %v2043
        %v2064 = vrcp.pop %v2045
        %v2065 = vrcp.pop %v2047
        %v2066 = vrcp.pop %v2049
        %v2067 = vrcp.pop %v2051
        %v2068 = vmul.f32 %v1989, %v2052
        %v2069 = vmul.f32 %v1991, %v2053
        %v2070 = vmul.f32 %v1993, %v2054
        %v2071 = vmul.f32 %v1995, %v2055
        %v2072 = vmul.f32 %v1997, %v2056
        %v2073 = vmul.f32 %v1999, %v2057
        %v2074 = vmul.f32 %v2001, %v2058
        %v2075 = vmul.f32 %v2003, %v2059
        %v2076 = vmul.f32 %v2005, %v2060
        %v2077 = vmul.f32 %v2007, %v2061
        %v2078 = vmul.f32 %v2009, %v2062
        %v2079 = vmul.f32 %v2011, %v2063
        %v2080 = vmul.f32 %v2013, %v2064
        %v2081 = vmul.f32 %v2015, %v2065
        %v2082 = vmul.f32 %v2017, %v2066
        %v2083 = vmul.f32 %v2019, %v2067
        %v2084 = vpack.c.bf16 %v2069, %v2068
        %v2085 = vpack.c.bf16 %v2071, %v2070
        %v2086 = vpack.c.bf16 %v2073, %v2072
        %v2087 = vpack.c.bf16 %v2075, %v2074
        %v2088 = vpack.c.bf16 %v2077, %v2076
        %v2089 = vpack.c.bf16 %v2079, %v2078
        %v2090 = vpack.c.bf16 %v2081, %v2080
        %v2091 = vpack.c.bf16 %v2083, %v2082
        %v2108 = vunpack.c.l.b16 %v1667
        %v2109 = vunpack.c.l.b16 %v1669
        %v2110 = vunpack.c.l.b16 %v1671
        %v2111 = vunpack.c.l.b16 %v1673
        %v2112 = vunpack.c.l.b16 %v1675
        %v2113 = vunpack.c.l.b16 %v1677
        %v2114 = vunpack.c.l.b16 %v1679
        %v2115 = vunpack.c.l.b16 %v1681
        %v2116 = vunpack.c.l.b16 %v1683
        %v2117 = vunpack.c.l.b16 %v1685
        %v2118 = vunpack.c.l.b16 %v1687
        %v2119 = vunpack.c.l.b16 %v1689
        %v2120 = vunpack.c.l.b16 %v1691
        %v2121 = vunpack.c.l.b16 %v1693
        %v2122 = vunpack.c.l.b16 %v1695
        %v2123 = vunpack.c.l.b16 %v1697
        %v2124 = vpack.c.b16 %v2109, %v2108
        %v2125 = vpack.c.b16 %v2111, %v2110
        %v2126 = vpack.c.b16 %v2113, %v2112
        %v2127 = vpack.c.b16 %v2115, %v2114
        %v2128 = vpack.c.b16 %v2117, %v2116
        %v2129 = vpack.c.b16 %v2119, %v2118
        %v2130 = vpack.c.b16 %v2121, %v2120
        %v2131 = vpack.c.b16 %v2123, %v2122
        %2140 = vmatpush.bf16.msra.mxu0 %v2131
        %2141 = vmatpush.bf16.msra.mxu0 %v2130
        %2142 = vmatpush.bf16.msra.mxu0 %v2129
        %2143 = vmatpush.bf16.msra.mxu0 %v2128
        %2144 = vmatpush.bf16.msra.mxu0 %v2127
        %2145 = vmatpush.bf16.msra.mxu0 %v2126
        %2146 = vmatpush.bf16.msra.mxu0 %v2125
        %2147 = vmatpush.bf16.msra.mxu0 %v2124
        %2148 = vmatmul.bf16.gmra.mxu0 %v2084
        %v2149 = vpop.f32.mrf.mxu0
        %v2150 = vadd.f32 0.0, %v2149
        %v2151 = vpop.f32.mrf.mxu0
        %v2152 = vadd.f32 0.0, %v2151
        %2153 = vmatmul.bf16.gmra.mxu0 %v2085
        %v2154 = vpop.f32.mrf.mxu0
        %v2155 = vadd.f32 0.0, %v2154
        %v2156 = vpop.f32.mrf.mxu0
        %v2157 = vadd.f32 0.0, %v2156
        %2158 = vmatmul.bf16.gmra.mxu0 %v2086
        %v2159 = vpop.f32.mrf.mxu0
        %v2160 = vadd.f32 0.0, %v2159
        %v2161 = vpop.f32.mrf.mxu0
        %v2162 = vadd.f32 0.0, %v2161
        %2163 = vmatmul.bf16.gmra.mxu0 %v2087
        %v2164 = vpop.f32.mrf.mxu0
        %v2165 = vadd.f32 0.0, %v2164
        %v2166 = vpop.f32.mrf.mxu0
        %v2167 = vadd.f32 0.0, %v2166
        %2168 = vmatmul.bf16.gmra.mxu0 %v2088
        %v2169 = vpop.f32.mrf.mxu0
        %v2170 = vadd.f32 0.0, %v2169
        %v2171 = vpop.f32.mrf.mxu0
        %v2172 = vadd.f32 0.0, %v2171
        %2173 = vmatmul.bf16.gmra.mxu0 %v2089
        %v2174 = vpop.f32.mrf.mxu0
        %v2175 = vadd.f32 0.0, %v2174
        %v2176 = vpop.f32.mrf.mxu0
        %v2177 = vadd.f32 0.0, %v2176
        %2178 = vmatmul.bf16.gmra.mxu0 %v2090
        %v2179 = vpop.f32.mrf.mxu0
        %v2180 = vadd.f32 0.0, %v2179
        %v2181 = vpop.f32.mrf.mxu0
        %v2182 = vadd.f32 0.0, %v2181
        %2183 = vmatmul.bf16.gmra.mxu0 %v2091
        %v2184 = vpop.f32.mrf.mxu0
        %v2185 = vadd.f32 0.0, %v2184
        %v2186 = vpop.f32.mrf.mxu0
        %v2187 = vadd.f32 0.0, %v2186
        %2188 = vdwg.mxu0
        %s2189 = scalar_lea.vmem %s454, 64 [#allocation8]
        %v2190 = vld [vmem:[%s2189] sm:$0xf]
        %v2191 = vld [vmem:[%s2189 + $0x4] sm:$0xf]
        %v2192 = vld [vmem:[%s2189 + $0x8] sm:$0xf]
        %v2193 = vld [vmem:[%s2189 + $0xc] sm:$0xf]
        %v2194 = vld [vmem:[%s2189 + $0x10] sm:$0xf]
        %v2195 = vld [vmem:[%s2189 + $0x14] sm:$0xf]
        %v2196 = vld [vmem:[%s2189 + $0x18] sm:$0xf]
        %v2197 = vld [vmem:[%s2189 + $0x1c] sm:$0xf]
        %v2198 = vld [vmem:[%s2189 + $0x20] sm:$0xf]
        %v2199 = vld [vmem:[%s2189 + $0x24] sm:$0xf]
        %v2200 = vld [vmem:[%s2189 + $0x28] sm:$0xf]
        %v2201 = vld [vmem:[%s2189 + $0x2c] sm:$0xf]
        %v2202 = vld [vmem:[%s2189 + $0x30] sm:$0xf]
        %v2203 = vld [vmem:[%s2189 + $0x34] sm:$0xf]
        %v2204 = vld [vmem:[%s2189 + $0x38] sm:$0xf]
        %v2205 = vld [vmem:[%s2189 + $0x3c] sm:$0xf]
        %v2206 = vunpack.c.l.bf16 %v2190
        %v2207 = vunpack.c.l.bf16 %v2191
        %v2208 = vunpack.c.l.bf16 %v2192
        %v2209 = vunpack.c.l.bf16 %v2193
        %v2210 = vunpack.c.l.bf16 %v2194
        %v2211 = vunpack.c.l.bf16 %v2195
        %v2212 = vunpack.c.l.bf16 %v2196
        %v2213 = vunpack.c.l.bf16 %v2197
        %v2214 = vunpack.c.l.bf16 %v2198
        %v2215 = vunpack.c.l.bf16 %v2199
        %v2216 = vunpack.c.l.bf16 %v2200
        %v2217 = vunpack.c.l.bf16 %v2201
        %v2218 = vunpack.c.l.bf16 %v2202
        %v2219 = vunpack.c.l.bf16 %v2203
        %v2220 = vunpack.c.l.bf16 %v2204
        %v2221 = vunpack.c.l.bf16 %v2205
        %2222 = vrot.lane.b32.xlu0 %v1794, 96
        %v2223 = vpop.permute.xlu0 %2222
        %2224 = vrot.lane.b32.xlu0 %v1795, 96
        %v2225 = vpop.permute.xlu0 %2224
        %2226 = vrot.lane.b32.xlu0 %v1796, 96
        %v2227 = vpop.permute.xlu0 %2226
        %2228 = vrot.lane.b32.xlu0 %v1797, 96
        %v2229 = vpop.permute.xlu0 %2228
        %2230 = vrot.lane.b32.xlu0 %v1798, 96
        %v2231 = vpop.permute.xlu0 %2230
        %2232 = vrot.lane.b32.xlu0 %v1799, 96
        %v2233 = vpop.permute.xlu0 %2232
        %2234 = vrot.lane.b32.xlu0 %v1800, 96
        %v2235 = vpop.permute.xlu0 %2234
        %2236 = vrot.lane.b32.xlu0 %v1801, 96
        %v2237 = vpop.permute.xlu0 %2236
        %2238 = vrot.lane.b32.xlu0 %v1818, 96
        %v2239 = vpop.permute.xlu0 %2238
        %2240 = vrot.lane.b32.xlu0 %v1819, 96
        %v2241 = vpop.permute.xlu0 %2240
        %2242 = vrot.lane.b32.xlu0 %v1820, 96
        %v2243 = vpop.permute.xlu0 %2242
        %2244 = vrot.lane.b32.xlu0 %v1821, 96
        %v2245 = vpop.permute.xlu0 %2244
        %2246 = vrot.lane.b32.xlu0 %v1822, 96
        %v2247 = vpop.permute.xlu0 %2246
        %2248 = vrot.lane.b32.xlu0 %v1823, 96
        %v2249 = vpop.permute.xlu0 %2248
        %2250 = vrot.lane.b32.xlu0 %v1824, 96
        %v2251 = vpop.permute.xlu0 %2250
        %2252 = vrot.lane.b32.xlu0 %v1825, 96
        %v2253 = vpop.permute.xlu0 %2252
        %v2255 = vsel %vm1826, %v2223, 0
        %v2258 = vsel %vm1826, %v2225, 0
        %v2261 = vsel %vm1826, %v2227, 0
        %v2264 = vsel %vm1826, %v2229, 0
        %v2267 = vsel %vm1826, %v2231, 0
        %v2270 = vsel %vm1826, %v2233, 0
        %v2273 = vsel %vm1826, %v2235, 0
        %v2276 = vsel %vm1826, %v2237, 0
        %v2279 = vsel %vm1826, %v2239, 0
        %v2282 = vsel %vm1826, %v2241, 0
        %v2285 = vsel %vm1826, %v2243, 0
        %v2288 = vsel %vm1826, %v2245, 0
        %v2291 = vsel %vm1826, %v2247, 0
        %v2294 = vsel %vm1826, %v2249, 0
        %v2297 = vsel %vm1826, %v2251, 0
        %v2300 = vsel %vm1826, %v2253, 0
        %2302 = vmatpush.bf16.xpose.msra.mxu0 %v2300
        %2303 = vmatpush.bf16.xpose.msra.mxu0 %v2297
        %2304 = vmatpush.bf16.xpose.msra.mxu0 %v2294
        %2305 = vmatpush.bf16.xpose.msra.mxu0 %v2291
        %2306 = vmatpush.bf16.xpose.msra.mxu0 %v2288
        %2307 = vmatpush.bf16.xpose.msra.mxu0 %v2285
        %2308 = vmatpush.bf16.xpose.msra.mxu0 %v2282
        %2309 = vmatpush.bf16.xpose.msra.mxu0 %v2279
        %2310 = vmatmul.bf16.gmra.mxu0 %v2255
        %v2311 = vpop.f32.mrf.mxu0
        %v2312 = vadd.f32 %v2206, %v2311
        %v2313 = vpop.f32.mrf.mxu0
        %v2314 = vadd.f32 %v2207, %v2313
        %2315 = vmatmul.bf16.gmra.mxu0 %v2258
        %v2316 = vpop.f32.mrf.mxu0
        %v2317 = vadd.f32 %v2208, %v2316
        %v2318 = vpop.f32.mrf.mxu0
        %v2319 = vadd.f32 %v2209, %v2318
        %2320 = vmatmul.bf16.gmra.mxu0 %v2261
        %v2321 = vpop.f32.mrf.mxu0
        %v2322 = vadd.f32 %v2210, %v2321
        %v2323 = vpop.f32.mrf.mxu0
        %v2324 = vadd.f32 %v2211, %v2323
        %2325 = vmatmul.bf16.gmra.mxu0 %v2264
        %v2326 = vpop.f32.mrf.mxu0
        %v2327 = vadd.f32 %v2212, %v2326
        %v2328 = vpop.f32.mrf.mxu0
        %v2329 = vadd.f32 %v2213, %v2328
        %2330 = vmatmul.bf16.gmra.mxu0 %v2267
        %v2331 = vpop.f32.mrf.mxu0
        %v2332 = vadd.f32 %v2214, %v2331
        %v2333 = vpop.f32.mrf.mxu0
        %v2334 = vadd.f32 %v2215, %v2333
        %2335 = vmatmul.bf16.gmra.mxu0 %v2270
        %v2336 = vpop.f32.mrf.mxu0
        %v2337 = vadd.f32 %v2216, %v2336
        %v2338 = vpop.f32.mrf.mxu0
        %v2339 = vadd.f32 %v2217, %v2338
        %2340 = vmatmul.bf16.gmra.mxu0 %v2273
        %v2341 = vpop.f32.mrf.mxu0
        %v2342 = vadd.f32 %v2218, %v2341
        %v2343 = vpop.f32.mrf.mxu0
        %v2344 = vadd.f32 %v2219, %v2343
        %2345 = vmatmul.bf16.gmra.mxu0 %v2276
        %v2346 = vpop.f32.mrf.mxu0
        %v2347 = vadd.f32 %v2220, %v2346
        %v2348 = vpop.f32.mrf.mxu0
        %v2349 = vadd.f32 %v2221, %v2348
        %2350 = vdwg.mxu0
        %v2351 = vadd.f32 %v2312, %v663
        %v2352 = vadd.f32 %v2314, %v663
        %v2353 = vadd.f32 %v2317, %v663
        %v2354 = vadd.f32 %v2319, %v663
        %v2355 = vadd.f32 %v2322, %v663
        %v2356 = vadd.f32 %v2324, %v663
        %v2357 = vadd.f32 %v2327, %v663
        %v2358 = vadd.f32 %v2329, %v663
        %v2359 = vadd.f32 %v2332, %v663
        %v2360 = vadd.f32 %v2334, %v663
        %v2361 = vadd.f32 %v2337, %v663
        %v2362 = vadd.f32 %v2339, %v663
        %v2363 = vadd.f32 %v2342, %v663
        %v2364 = vadd.f32 %v2344, %v663
        %v2365 = vadd.f32 %v2347, %v663
        %v2366 = vadd.f32 %v2349, %v663
        %2367 = vmax.xlane.f32.xlu0 %v2351
        %v2368 = vpop.xlane.xlu0 %2367
        %2369 = vmax.xlane.f32.xlu0 %v2352
        %v2370 = vpop.xlane.xlu0 %2369
        %2371 = vmax.xlane.f32.xlu0 %v2353
        %v2372 = vpop.xlane.xlu0 %2371
        %2373 = vmax.xlane.f32.xlu0 %v2354
        %v2374 = vpop.xlane.xlu0 %2373
        %2375 = vmax.xlane.f32.xlu0 %v2355
        %v2376 = vpop.xlane.xlu0 %2375
        %2377 = vmax.xlane.f32.xlu0 %v2356
        %v2378 = vpop.xlane.xlu0 %2377
        %2379 = vmax.xlane.f32.xlu0 %v2357
        %v2380 = vpop.xlane.xlu0 %2379
        %2381 = vmax.xlane.f32.xlu0 %v2358
        %v2382 = vpop.xlane.xlu0 %2381
        %2383 = vmax.xlane.f32.xlu0 %v2359
        %v2384 = vpop.xlane.xlu0 %2383
        %2385 = vmax.xlane.f32.xlu0 %v2360
        %v2386 = vpop.xlane.xlu0 %2385
        %2387 = vmax.xlane.f32.xlu0 %v2361
        %v2388 = vpop.xlane.xlu0 %2387
        %2389 = vmax.xlane.f32.xlu0 %v2362
        %v2390 = vpop.xlane.xlu0 %2389
        %2391 = vmax.xlane.f32.xlu0 %v2363
        %v2392 = vpop.xlane.xlu0 %2391
        %2393 = vmax.xlane.f32.xlu0 %v2364
        %v2394 = vpop.xlane.xlu0 %2393
        %2395 = vmax.xlane.f32.xlu0 %v2365
        %v2396 = vpop.xlane.xlu0 %2395
        %2397 = vmax.xlane.f32.xlu0 %v2366
        %v2398 = vpop.xlane.xlu0 %2397
        %v2399 = vsub.f32 %v2351, %v2368
        %v2400 = vsub.f32 %v2352, %v2370
        %v2401 = vsub.f32 %v2353, %v2372
        %v2402 = vsub.f32 %v2354, %v2374
        %v2403 = vsub.f32 %v2355, %v2376
        %v2404 = vsub.f32 %v2356, %v2378
        %v2405 = vsub.f32 %v2357, %v2380
        %v2406 = vsub.f32 %v2358, %v2382
        %v2407 = vsub.f32 %v2359, %v2384
        %v2408 = vsub.f32 %v2360, %v2386
        %v2409 = vsub.f32 %v2361, %v2388
        %v2410 = vsub.f32 %v2362, %v2390
        %v2411 = vsub.f32 %v2363, %v2392
        %v2412 = vsub.f32 %v2364, %v2394
        %v2413 = vsub.f32 %v2365, %v2396
        %v2414 = vsub.f32 %v2366, %v2398
        %v2415 = vmul.f32 %v2399, 1.442695
        %v2416 = vpow.pop %v2415
        %v2417 = vmul.f32 %v2400, 1.442695
        %v2418 = vpow.pop %v2417
        %v2419 = vmul.f32 %v2401, 1.442695
        %v2420 = vpow.pop %v2419
        %v2421 = vmul.f32 %v2402, 1.442695
        %v2422 = vpow.pop %v2421
        %v2423 = vmul.f32 %v2403, 1.442695
        %v2424 = vpow.pop %v2423
        %v2425 = vmul.f32 %v2404, 1.442695
        %v2426 = vpow.pop %v2425
        %v2427 = vmul.f32 %v2405, 1.442695
        %v2428 = vpow.pop %v2427
        %v2429 = vmul.f32 %v2406, 1.442695
        %v2430 = vpow.pop %v2429
        %v2431 = vmul.f32 %v2407, 1.442695
        %v2432 = vpow.pop %v2431
        %v2433 = vmul.f32 %v2408, 1.442695
        %v2434 = vpow.pop %v2433
        %v2435 = vmul.f32 %v2409, 1.442695
        %v2436 = vpow.pop %v2435
        %v2437 = vmul.f32 %v2410, 1.442695
        %v2438 = vpow.pop %v2437
        %v2439 = vmul.f32 %v2411, 1.442695
        %v2440 = vpow.pop %v2439
        %v2441 = vmul.f32 %v2412, 1.442695
        %v2442 = vpow.pop %v2441
        %v2443 = vmul.f32 %v2413, 1.442695
        %v2444 = vpow.pop %v2443
        %v2445 = vmul.f32 %v2414, 1.442695
        %v2446 = vpow.pop %v2445
        %2447 = vadd.xlane.f32.xlu0 %v2416
        %v2448 = vpop.xlane.xlu0 %2447
        %2449 = vadd.xlane.f32.xlu0 %v2418
        %v2450 = vpop.xlane.xlu0 %2449
        %2451 = vadd.xlane.f32.xlu0 %v2420
        %v2452 = vpop.xlane.xlu0 %2451
        %2453 = vadd.xlane.f32.xlu0 %v2422
        %v2454 = vpop.xlane.xlu0 %2453
        %2455 = vadd.xlane.f32.xlu0 %v2424
        %v2456 = vpop.xlane.xlu0 %2455
        %2457 = vadd.xlane.f32.xlu0 %v2426
        %v2458 = vpop.xlane.xlu0 %2457
        %2459 = vadd.xlane.f32.xlu0 %v2428
        %v2460 = vpop.xlane.xlu0 %2459
        %2461 = vadd.xlane.f32.xlu0 %v2430
        %v2462 = vpop.xlane.xlu0 %2461
        %2463 = vadd.xlane.f32.xlu0 %v2432
        %v2464 = vpop.xlane.xlu0 %2463
        %2465 = vadd.xlane.f32.xlu0 %v2434
        %v2466 = vpop.xlane.xlu0 %2465
        %2467 = vadd.xlane.f32.xlu0 %v2436
        %v2468 = vpop.xlane.xlu0 %2467
        %2469 = vadd.xlane.f32.xlu0 %v2438
        %v2470 = vpop.xlane.xlu0 %2469
        %2471 = vadd.xlane.f32.xlu0 %v2440
        %v2472 = vpop.xlane.xlu0 %2471
        %2473 = vadd.xlane.f32.xlu0 %v2442
        %v2474 = vpop.xlane.xlu0 %2473
        %2475 = vadd.xlane.f32.xlu0 %v2444
        %v2476 = vpop.xlane.xlu0 %2475
        %2477 = vadd.xlane.f32.xlu0 %v2446
        %v2478 = vpop.xlane.xlu0 %2477
        %v2479 = vrcp.pop %v2448
        %v2480 = vrcp.pop %v2450
        %v2481 = vrcp.pop %v2452
        %v2482 = vrcp.pop %v2454
        %v2483 = vrcp.pop %v2456
        %v2484 = vrcp.pop %v2458
        %v2485 = vrcp.pop %v2460
        %v2486 = vrcp.pop %v2462
        %v2487 = vrcp.pop %v2464
        %v2488 = vrcp.pop %v2466
        %v2489 = vrcp.pop %v2468
        %v2490 = vrcp.pop %v2470
        %v2491 = vrcp.pop %v2472
        %v2492 = vrcp.pop %v2474
        %v2493 = vrcp.pop %v2476
        %v2494 = vrcp.pop %v2478
        %v2495 = vmul.f32 %v2416, %v2479
        %v2496 = vmul.f32 %v2418, %v2480
        %v2497 = vmul.f32 %v2420, %v2481
        %v2498 = vmul.f32 %v2422, %v2482
        %v2499 = vmul.f32 %v2424, %v2483
        %v2500 = vmul.f32 %v2426, %v2484
        %v2501 = vmul.f32 %v2428, %v2485
        %v2502 = vmul.f32 %v2430, %v2486
        %v2503 = vmul.f32 %v2432, %v2487
        %v2504 = vmul.f32 %v2434, %v2488
        %v2505 = vmul.f32 %v2436, %v2489
        %v2506 = vmul.f32 %v2438, %v2490
        %v2507 = vmul.f32 %v2440, %v2491
        %v2508 = vmul.f32 %v2442, %v2492
        %v2509 = vmul.f32 %v2444, %v2493
        %v2510 = vmul.f32 %v2446, %v2494
        %v2511 = vpack.c.bf16 %v2496, %v2495
        %v2512 = vpack.c.bf16 %v2498, %v2497
        %v2513 = vpack.c.bf16 %v2500, %v2499
        %v2514 = vpack.c.bf16 %v2502, %v2501
        %v2515 = vpack.c.bf16 %v2504, %v2503
        %v2516 = vpack.c.bf16 %v2506, %v2505
        %v2517 = vpack.c.bf16 %v2508, %v2507
        %v2518 = vpack.c.bf16 %v2510, %v2509
        %2519 = vrot.lane.b32.xlu0 %v2124, 96
        %v2520 = vpop.permute.xlu0 %2519
        %2521 = vrot.lane.b32.xlu0 %v2125, 96
        %v2522 = vpop.permute.xlu0 %2521
        %2523 = vrot.lane.b32.xlu0 %v2126, 96
        %v2524 = vpop.permute.xlu0 %2523
        %2525 = vrot.lane.b32.xlu0 %v2127, 96
        %v2526 = vpop.permute.xlu0 %2525
        %2527 = vrot.lane.b32.xlu0 %v2128, 96
        %v2528 = vpop.permute.xlu0 %2527
        %2529 = vrot.lane.b32.xlu0 %v2129, 96
        %v2530 = vpop.permute.xlu0 %2529
        %2531 = vrot.lane.b32.xlu0 %v2130, 96
        %v2532 = vpop.permute.xlu0 %2531
        %2533 = vrot.lane.b32.xlu0 %v2131, 96
        %v2534 = vpop.permute.xlu0 %2533
        %2543 = vmatpush.bf16.msra.mxu0 %v2534
        %2544 = vmatpush.bf16.msra.mxu0 %v2532
        %2545 = vmatpush.bf16.msra.mxu0 %v2530
        %2546 = vmatpush.bf16.msra.mxu0 %v2528
        %2547 = vmatpush.bf16.msra.mxu0 %v2526
        %2548 = vmatpush.bf16.msra.mxu0 %v2524
        %2549 = vmatpush.bf16.msra.mxu0 %v2522
        %2550 = vmatpush.bf16.msra.mxu0 %v2520
        %2551 = vmatmul.bf16.gmra.mxu0 %v2511
        %v2552 = vpop.f32.mrf.mxu0
        %v2553 = vadd.f32 0.0, %v2552
        %v2554 = vpop.f32.mrf.mxu0
        %v2555 = vadd.f32 0.0, %v2554
        %2556 = vmatmul.bf16.gmra.mxu0 %v2512
        %v2557 = vpop.f32.mrf.mxu0
        %v2558 = vadd.f32 0.0, %v2557
        %v2559 = vpop.f32.mrf.mxu0
        %v2560 = vadd.f32 0.0, %v2559
        %2561 = vmatmul.bf16.gmra.mxu0 %v2513
        %v2562 = vpop.f32.mrf.mxu0
        %v2563 = vadd.f32 0.0, %v2562
        %v2564 = vpop.f32.mrf.mxu0
        %v2565 = vadd.f32 0.0, %v2564
        %2566 = vmatmul.bf16.gmra.mxu0 %v2514
        %v2567 = vpop.f32.mrf.mxu0
        %v2568 = vadd.f32 0.0, %v2567
        %v2569 = vpop.f32.mrf.mxu0
        %v2570 = vadd.f32 0.0, %v2569
        %2571 = vmatmul.bf16.gmra.mxu0 %v2515
        %v2572 = vpop.f32.mrf.mxu0
        %v2573 = vadd.f32 0.0, %v2572
        %v2574 = vpop.f32.mrf.mxu0
        %v2575 = vadd.f32 0.0, %v2574
        %2576 = vmatmul.bf16.gmra.mxu0 %v2516
        %v2577 = vpop.f32.mrf.mxu0
        %v2578 = vadd.f32 0.0, %v2577
        %v2579 = vpop.f32.mrf.mxu0
        %v2580 = vadd.f32 0.0, %v2579
        %2581 = vmatmul.bf16.gmra.mxu0 %v2517
        %v2582 = vpop.f32.mrf.mxu0
        %v2583 = vadd.f32 0.0, %v2582
        %v2584 = vpop.f32.mrf.mxu0
        %v2585 = vadd.f32 0.0, %v2584
        %2586 = vmatmul.bf16.gmra.mxu0 %v2518
        %v2587 = vpop.f32.mrf.mxu0
        %v2588 = vadd.f32 0.0, %v2587
        %v2589 = vpop.f32.mrf.mxu0
        %v2590 = vadd.f32 0.0, %v2589
        %2591 = vdwg.mxu0
        %s2592 = scalar_lea.vmem %s454, 128 [#allocation8]
        %v2593 = vld [vmem:[%s2592] sm:$0xf]
        %v2594 = vld [vmem:[%s2592 + $0x4] sm:$0xf]
        %v2595 = vld [vmem:[%s2592 + $0x8] sm:$0xf]
        %v2596 = vld [vmem:[%s2592 + $0xc] sm:$0xf]
        %v2597 = vld [vmem:[%s2592 + $0x10] sm:$0xf]
        %v2598 = vld [vmem:[%s2592 + $0x14] sm:$0xf]
        %v2599 = vld [vmem:[%s2592 + $0x18] sm:$0xf]
        %v2600 = vld [vmem:[%s2592 + $0x1c] sm:$0xf]
        %v2601 = vld [vmem:[%s2592 + $0x20] sm:$0xf]
        %v2602 = vld [vmem:[%s2592 + $0x24] sm:$0xf]
        %v2603 = vld [vmem:[%s2592 + $0x28] sm:$0xf]
        %v2604 = vld [vmem:[%s2592 + $0x2c] sm:$0xf]
        %v2605 = vld [vmem:[%s2592 + $0x30] sm:$0xf]
        %v2606 = vld [vmem:[%s2592 + $0x34] sm:$0xf]
        %v2607 = vld [vmem:[%s2592 + $0x38] sm:$0xf]
        %v2608 = vld [vmem:[%s2592 + $0x3c] sm:$0xf]
        %v2609 = vunpack.c.l.bf16 %v2593
        %v2610 = vunpack.c.l.bf16 %v2594
        %v2611 = vunpack.c.l.bf16 %v2595
        %v2612 = vunpack.c.l.bf16 %v2596
        %v2613 = vunpack.c.l.bf16 %v2597
        %v2614 = vunpack.c.l.bf16 %v2598
        %v2615 = vunpack.c.l.bf16 %v2599
        %v2616 = vunpack.c.l.bf16 %v2600
        %v2617 = vunpack.c.l.bf16 %v2601
        %v2618 = vunpack.c.l.bf16 %v2602
        %v2619 = vunpack.c.l.bf16 %v2603
        %v2620 = vunpack.c.l.bf16 %v2604
        %v2621 = vunpack.c.l.bf16 %v2605
        %v2622 = vunpack.c.l.bf16 %v2606
        %v2623 = vunpack.c.l.bf16 %v2607
        %v2624 = vunpack.c.l.bf16 %v2608
        %2625 = vrot.lane.b32.xlu0 %v1794, 64
        %v2626 = vpop.permute.xlu0 %2625
        %2627 = vrot.lane.b32.xlu0 %v1795, 64
        %v2628 = vpop.permute.xlu0 %2627
        %2629 = vrot.lane.b32.xlu0 %v1796, 64
        %v2630 = vpop.permute.xlu0 %2629
        %2631 = vrot.lane.b32.xlu0 %v1797, 64
        %v2632 = vpop.permute.xlu0 %2631
        %2633 = vrot.lane.b32.xlu0 %v1798, 64
        %v2634 = vpop.permute.xlu0 %2633
        %2635 = vrot.lane.b32.xlu0 %v1799, 64
        %v2636 = vpop.permute.xlu0 %2635
        %2637 = vrot.lane.b32.xlu0 %v1800, 64
        %v2638 = vpop.permute.xlu0 %2637
        %2639 = vrot.lane.b32.xlu0 %v1801, 64
        %v2640 = vpop.permute.xlu0 %2639
        %2641 = vrot.lane.b32.xlu0 %v1818, 64
        %v2642 = vpop.permute.xlu0 %2641
        %2643 = vrot.lane.b32.xlu0 %v1819, 64
        %v2644 = vpop.permute.xlu0 %2643
        %2645 = vrot.lane.b32.xlu0 %v1820, 64
        %v2646 = vpop.permute.xlu0 %2645
        %2647 = vrot.lane.b32.xlu0 %v1821, 64
        %v2648 = vpop.permute.xlu0 %2647
        %2649 = vrot.lane.b32.xlu0 %v1822, 64
        %v2650 = vpop.permute.xlu0 %2649
        %2651 = vrot.lane.b32.xlu0 %v1823, 64
        %v2652 = vpop.permute.xlu0 %2651
        %2653 = vrot.lane.b32.xlu0 %v1824, 64
        %v2654 = vpop.permute.xlu0 %2653
        %2655 = vrot.lane.b32.xlu0 %v1825, 64
        %v2656 = vpop.permute.xlu0 %2655
        %v2658 = vsel %vm1826, %v2626, 0
        %v2661 = vsel %vm1826, %v2628, 0
        %v2664 = vsel %vm1826, %v2630, 0
        %v2667 = vsel %vm1826, %v2632, 0
        %v2670 = vsel %vm1826, %v2634, 0
        %v2673 = vsel %vm1826, %v2636, 0
        %v2676 = vsel %vm1826, %v2638, 0
        %v2679 = vsel %vm1826, %v2640, 0
        %v2682 = vsel %vm1826, %v2642, 0
        %v2685 = vsel %vm1826, %v2644, 0
        %v2688 = vsel %vm1826, %v2646, 0
        %v2691 = vsel %vm1826, %v2648, 0
        %v2694 = vsel %vm1826, %v2650, 0
        %v2697 = vsel %vm1826, %v2652, 0
        %v2700 = vsel %vm1826, %v2654, 0
        %v2703 = vsel %vm1826, %v2656, 0
        %2705 = vmatpush.bf16.xpose.msra.mxu0 %v2703
        %2706 = vmatpush.bf16.xpose.msra.mxu0 %v2700
        %2707 = vmatpush.bf16.xpose.msra.mxu0 %v2697
        %2708 = vmatpush.bf16.xpose.msra.mxu0 %v2694
        %2709 = vmatpush.bf16.xpose.msra.mxu0 %v2691
        %2710 = vmatpush.bf16.xpose.msra.mxu0 %v2688
        %2711 = vmatpush.bf16.xpose.msra.mxu0 %v2685
        %2712 = vmatpush.bf16.xpose.msra.mxu0 %v2682
        %2713 = vmatmul.bf16.gmra.mxu0 %v2658
        %v2714 = vpop.f32.mrf.mxu0
        %v2715 = vadd.f32 %v2609, %v2714
        %v2716 = vpop.f32.mrf.mxu0
        %v2717 = vadd.f32 %v2610, %v2716
        %2718 = vmatmul.bf16.gmra.mxu0 %v2661
        %v2719 = vpop.f32.mrf.mxu0
        %v2720 = vadd.f32 %v2611, %v2719
        %v2721 = vpop.f32.mrf.mxu0
        %v2722 = vadd.f32 %v2612, %v2721
        %2723 = vmatmul.bf16.gmra.mxu0 %v2664
        %v2724 = vpop.f32.mrf.mxu0
        %v2725 = vadd.f32 %v2613, %v2724
        %v2726 = vpop.f32.mrf.mxu0
        %v2727 = vadd.f32 %v2614, %v2726
        %2728 = vmatmul.bf16.gmra.mxu0 %v2667
        %v2729 = vpop.f32.mrf.mxu0
        %v2730 = vadd.f32 %v2615, %v2729
        %v2731 = vpop.f32.mrf.mxu0
        %v2732 = vadd.f32 %v2616, %v2731
        %2733 = vmatmul.bf16.gmra.mxu0 %v2670
        %v2734 = vpop.f32.mrf.mxu0
        %v2735 = vadd.f32 %v2617, %v2734
        %v2736 = vpop.f32.mrf.mxu0
        %v2737 = vadd.f32 %v2618, %v2736
        %2738 = vmatmul.bf16.gmra.mxu0 %v2673
        %v2739 = vpop.f32.mrf.mxu0
        %v2740 = vadd.f32 %v2619, %v2739
        %v2741 = vpop.f32.mrf.mxu0
        %v2742 = vadd.f32 %v2620, %v2741
        %2743 = vmatmul.bf16.gmra.mxu0 %v2676
        %v2744 = vpop.f32.mrf.mxu0
        %v2745 = vadd.f32 %v2621, %v2744
        %v2746 = vpop.f32.mrf.mxu0
        %v2747 = vadd.f32 %v2622, %v2746
        %2748 = vmatmul.bf16.gmra.mxu0 %v2679
        %v2749 = vpop.f32.mrf.mxu0
        %v2750 = vadd.f32 %v2623, %v2749
        %v2751 = vpop.f32.mrf.mxu0
        %v2752 = vadd.f32 %v2624, %v2751
        %2753 = vdwg.mxu0
        %v2754 = vadd.f32 %v2715, %v663
        %v2755 = vadd.f32 %v2717, %v663
        %v2756 = vadd.f32 %v2720, %v663
        %v2757 = vadd.f32 %v2722, %v663
        %v2758 = vadd.f32 %v2725, %v663
        %v2759 = vadd.f32 %v2727, %v663
        %v2760 = vadd.f32 %v2730, %v663
        %v2761 = vadd.f32 %v2732, %v663
        %v2762 = vadd.f32 %v2735, %v663
        %v2763 = vadd.f32 %v2737, %v663
        %v2764 = vadd.f32 %v2740, %v663
        %v2765 = vadd.f32 %v2742, %v663
        %v2766 = vadd.f32 %v2745, %v663
        %v2767 = vadd.f32 %v2747, %v663
        %v2768 = vadd.f32 %v2750, %v663
        %v2769 = vadd.f32 %v2752, %v663
        %2770 = vmax.xlane.f32.xlu0 %v2754
        %v2771 = vpop.xlane.xlu0 %2770
        %2772 = vmax.xlane.f32.xlu0 %v2755
        %v2773 = vpop.xlane.xlu0 %2772
        %2774 = vmax.xlane.f32.xlu0 %v2756
        %v2775 = vpop.xlane.xlu0 %2774
        %2776 = vmax.xlane.f32.xlu0 %v2757
        %v2777 = vpop.xlane.xlu0 %2776
        %2778 = vmax.xlane.f32.xlu0 %v2758
        %v2779 = vpop.xlane.xlu0 %2778
        %2780 = vmax.xlane.f32.xlu0 %v2759
        %v2781 = vpop.xlane.xlu0 %2780
        %2782 = vmax.xlane.f32.xlu0 %v2760
        %v2783 = vpop.xlane.xlu0 %2782
        %2784 = vmax.xlane.f32.xlu0 %v2761
        %v2785 = vpop.xlane.xlu0 %2784
        %2786 = vmax.xlane.f32.xlu0 %v2762
        %v2787 = vpop.xlane.xlu0 %2786
        %2788 = vmax.xlane.f32.xlu0 %v2763
        %v2789 = vpop.xlane.xlu0 %2788
        %2790 = vmax.xlane.f32.xlu0 %v2764
        %v2791 = vpop.xlane.xlu0 %2790
        %2792 = vmax.xlane.f32.xlu0 %v2765
        %v2793 = vpop.xlane.xlu0 %2792
        %2794 = vmax.xlane.f32.xlu0 %v2766
        %v2795 = vpop.xlane.xlu0 %2794
        %2796 = vmax.xlane.f32.xlu0 %v2767
        %v2797 = vpop.xlane.xlu0 %2796
        %2798 = vmax.xlane.f32.xlu0 %v2768
        %v2799 = vpop.xlane.xlu0 %2798
        %2800 = vmax.xlane.f32.xlu0 %v2769
        %v2801 = vpop.xlane.xlu0 %2800
        %v2802 = vsub.f32 %v2754, %v2771
        %v2803 = vsub.f32 %v2755, %v2773
        %v2804 = vsub.f32 %v2756, %v2775
        %v2805 = vsub.f32 %v2757, %v2777
        %v2806 = vsub.f32 %v2758, %v2779
        %v2807 = vsub.f32 %v2759, %v2781
        %v2808 = vsub.f32 %v2760, %v2783
        %v2809 = vsub.f32 %v2761, %v2785
        %v2810 = vsub.f32 %v2762, %v2787
        %v2811 = vsub.f32 %v2763, %v2789
        %v2812 = vsub.f32 %v2764, %v2791
        %v2813 = vsub.f32 %v2765, %v2793
        %v2814 = vsub.f32 %v2766, %v2795
        %v2815 = vsub.f32 %v2767, %v2797
        %v2816 = vsub.f32 %v2768, %v2799
        %v2817 = vsub.f32 %v2769, %v2801
        %v2818 = vmul.f32 %v2802, 1.442695
        %v2819 = vpow.pop %v2818
        %v2820 = vmul.f32 %v2803, 1.442695
        %v2821 = vpow.pop %v2820
        %v2822 = vmul.f32 %v2804, 1.442695
        %v2823 = vpow.pop %v2822
        %v2824 = vmul.f32 %v2805, 1.442695
        %v2825 = vpow.pop %v2824
        %v2826 = vmul.f32 %v2806, 1.442695
        %v2827 = vpow.pop %v2826
        %v2828 = vmul.f32 %v2807, 1.442695
        %v2829 = vpow.pop %v2828
        %v2830 = vmul.f32 %v2808, 1.442695
        %v2831 = vpow.pop %v2830
        %v2832 = vmul.f32 %v2809, 1.442695
        %v2833 = vpow.pop %v2832
        %v2834 = vmul.f32 %v2810, 1.442695
        %v2835 = vpow.pop %v2834
        %v2836 = vmul.f32 %v2811, 1.442695
        %v2837 = vpow.pop %v2836
        %v2838 = vmul.f32 %v2812, 1.442695
        %v2839 = vpow.pop %v2838
        %v2840 = vmul.f32 %v2813, 1.442695
        %v2841 = vpow.pop %v2840
        %v2842 = vmul.f32 %v2814, 1.442695
        %v2843 = vpow.pop %v2842
        %v2844 = vmul.f32 %v2815, 1.442695
        %v2845 = vpow.pop %v2844
        %v2846 = vmul.f32 %v2816, 1.442695
        %v2847 = vpow.pop %v2846
        %v2848 = vmul.f32 %v2817, 1.442695
        %v2849 = vpow.pop %v2848
        %2850 = vadd.xlane.f32.xlu0 %v2819
        %v2851 = vpop.xlane.xlu0 %2850
        %2852 = vadd.xlane.f32.xlu0 %v2821
        %v2853 = vpop.xlane.xlu0 %2852
        %2854 = vadd.xlane.f32.xlu0 %v2823
        %v2855 = vpop.xlane.xlu0 %2854
        %2856 = vadd.xlane.f32.xlu0 %v2825
        %v2857 = vpop.xlane.xlu0 %2856
        %2858 = vadd.xlane.f32.xlu0 %v2827
        %v2859 = vpop.xlane.xlu0 %2858
        %2860 = vadd.xlane.f32.xlu0 %v2829
        %v2861 = vpop.xlane.xlu0 %2860
        %2862 = vadd.xlane.f32.xlu0 %v2831
        %v2863 = vpop.xlane.xlu0 %2862
        %2864 = vadd.xlane.f32.xlu0 %v2833
        %v2865 = vpop.xlane.xlu0 %2864
        %2866 = vadd.xlane.f32.xlu0 %v2835
        %v2867 = vpop.xlane.xlu0 %2866
        %2868 = vadd.xlane.f32.xlu0 %v2837
        %v2869 = vpop.xlane.xlu0 %2868
        %2870 = vadd.xlane.f32.xlu0 %v2839
        %v2871 = vpop.xlane.xlu0 %2870
        %2872 = vadd.xlane.f32.xlu0 %v2841
        %v2873 = vpop.xlane.xlu0 %2872
        %2874 = vadd.xlane.f32.xlu0 %v2843
        %v2875 = vpop.xlane.xlu0 %2874
        %2876 = vadd.xlane.f32.xlu0 %v2845
        %v2877 = vpop.xlane.xlu0 %2876
        %2878 = vadd.xlane.f32.xlu0 %v2847
        %v2879 = vpop.xlane.xlu0 %2878
        %2880 = vadd.xlane.f32.xlu0 %v2849
        %v2881 = vpop.xlane.xlu0 %2880
        %v2882 = vrcp.pop %v2851
        %v2883 = vrcp.pop %v2853
        %v2884 = vrcp.pop %v2855
        %v2885 = vrcp.pop %v2857
        %v2886 = vrcp.pop %v2859
        %v2887 = vrcp.pop %v2861
        %v2888 = vrcp.pop %v2863
        %v2889 = vrcp.pop %v2865
        %v2890 = vrcp.pop %v2867
        %v2891 = vrcp.pop %v2869
        %v2892 = vrcp.pop %v2871
        %v2893 = vrcp.pop %v2873
        %v2894 = vrcp.pop %v2875
        %v2895 = vrcp.pop %v2877
        %v2896 = vrcp.pop %v2879
        %v2897 = vrcp.pop %v2881
        %v2898 = vmul.f32 %v2819, %v2882
        %v2899 = vmul.f32 %v2821, %v2883
        %v2900 = vmul.f32 %v2823, %v2884
        %v2901 = vmul.f32 %v2825, %v2885
        %v2902 = vmul.f32 %v2827, %v2886
        %v2903 = vmul.f32 %v2829, %v2887
        %v2904 = vmul.f32 %v2831, %v2888
        %v2905 = vmul.f32 %v2833, %v2889
        %v2906 = vmul.f32 %v2835, %v2890
        %v2907 = vmul.f32 %v2837, %v2891
        %v2908 = vmul.f32 %v2839, %v2892
        %v2909 = vmul.f32 %v2841, %v2893
        %v2910 = vmul.f32 %v2843, %v2894
        %v2911 = vmul.f32 %v2845, %v2895
        %v2912 = vmul.f32 %v2847, %v2896
        %v2913 = vmul.f32 %v2849, %v2897
        %v2914 = vpack.c.bf16 %v2899, %v2898
        %v2915 = vpack.c.bf16 %v2901, %v2900
        %v2916 = vpack.c.bf16 %v2903, %v2902
        %v2917 = vpack.c.bf16 %v2905, %v2904
        %v2918 = vpack.c.bf16 %v2907, %v2906
        %v2919 = vpack.c.bf16 %v2909, %v2908
        %v2920 = vpack.c.bf16 %v2911, %v2910
        %v2921 = vpack.c.bf16 %v2913, %v2912
        %2922 = vrot.lane.b32.xlu0 %v2124, 64
        %v2923 = vpop.permute.xlu0 %2922
        %2924 = vrot.lane.b32.xlu0 %v2125, 64
        %v2925 = vpop.permute.xlu0 %2924
        %2926 = vrot.lane.b32.xlu0 %v2126, 64
        %v2927 = vpop.permute.xlu0 %2926
        %2928 = vrot.lane.b32.xlu0 %v2127, 64
        %v2929 = vpop.permute.xlu0 %2928
        %2930 = vrot.lane.b32.xlu0 %v2128, 64
        %v2931 = vpop.permute.xlu0 %2930
        %2932 = vrot.lane.b32.xlu0 %v2129, 64
        %v2933 = vpop.permute.xlu0 %2932
        %2934 = vrot.lane.b32.xlu0 %v2130, 64
        %v2935 = vpop.permute.xlu0 %2934
        %2936 = vrot.lane.b32.xlu0 %v2131, 64
        %v2937 = vpop.permute.xlu0 %2936
        %2946 = vmatpush.bf16.msra.mxu0 %v2937
        %2947 = vmatpush.bf16.msra.mxu0 %v2935
        %2948 = vmatpush.bf16.msra.mxu0 %v2933
        %2949 = vmatpush.bf16.msra.mxu0 %v2931
        %2950 = vmatpush.bf16.msra.mxu0 %v2929
        %2951 = vmatpush.bf16.msra.mxu0 %v2927
        %2952 = vmatpush.bf16.msra.mxu0 %v2925
        %2953 = vmatpush.bf16.msra.mxu0 %v2923
        %2954 = vmatmul.bf16.gmra.mxu0 %v2914
        %v2955 = vpop.f32.mrf.mxu0
        %v2956 = vadd.f32 0.0, %v2955
        %v2957 = vpop.f32.mrf.mxu0
        %v2958 = vadd.f32 0.0, %v2957
        %2959 = vmatmul.bf16.gmra.mxu0 %v2915
        %v2960 = vpop.f32.mrf.mxu0
        %v2961 = vadd.f32 0.0, %v2960
        %v2962 = vpop.f32.mrf.mxu0
        %v2963 = vadd.f32 0.0, %v2962
        %2964 = vmatmul.bf16.gmra.mxu0 %v2916
        %v2965 = vpop.f32.mrf.mxu0
        %v2966 = vadd.f32 0.0, %v2965
        %v2967 = vpop.f32.mrf.mxu0
        %v2968 = vadd.f32 0.0, %v2967
        %2969 = vmatmul.bf16.gmra.mxu0 %v2917
        %v2970 = vpop.f32.mrf.mxu0
        %v2971 = vadd.f32 0.0, %v2970
        %v2972 = vpop.f32.mrf.mxu0
        %v2973 = vadd.f32 0.0, %v2972
        %2974 = vmatmul.bf16.gmra.mxu0 %v2918
        %v2975 = vpop.f32.mrf.mxu0
        %v2976 = vadd.f32 0.0, %v2975
        %v2977 = vpop.f32.mrf.mxu0
        %v2978 = vadd.f32 0.0, %v2977
        %2979 = vmatmul.bf16.gmra.mxu0 %v2919
        %v2980 = vpop.f32.mrf.mxu0
        %v2981 = vadd.f32 0.0, %v2980
        %v2982 = vpop.f32.mrf.mxu0
        %v2983 = vadd.f32 0.0, %v2982
        %2984 = vmatmul.bf16.gmra.mxu0 %v2920
        %v2985 = vpop.f32.mrf.mxu0
        %v2986 = vadd.f32 0.0, %v2985
        %v2987 = vpop.f32.mrf.mxu0
        %v2988 = vadd.f32 0.0, %v2987
        %2989 = vmatmul.bf16.gmra.mxu0 %v2921
        %v2990 = vpop.f32.mrf.mxu0
        %v2991 = vadd.f32 0.0, %v2990
        %v2992 = vpop.f32.mrf.mxu0
        %v2993 = vadd.f32 0.0, %v2992
        %2994 = vdwg.mxu0
        %s2995 = scalar_lea.vmem %s454, 192 [#allocation8]
        %v2996 = vld [vmem:[%s2995] sm:$0xf]
        %v2997 = vld [vmem:[%s2995 + $0x4] sm:$0xf]
        %v2998 = vld [vmem:[%s2995 + $0x8] sm:$0xf]
        %v2999 = vld [vmem:[%s2995 + $0xc] sm:$0xf]
        %v3000 = vld [vmem:[%s2995 + $0x10] sm:$0xf]
        %v3001 = vld [vmem:[%s2995 + $0x14] sm:$0xf]
        %v3002 = vld [vmem:[%s2995 + $0x18] sm:$0xf]
        %v3003 = vld [vmem:[%s2995 + $0x1c] sm:$0xf]
        %v3004 = vld [vmem:[%s2995 + $0x20] sm:$0xf]
        %v3005 = vld [vmem:[%s2995 + $0x24] sm:$0xf]
        %v3006 = vld [vmem:[%s2995 + $0x28] sm:$0xf]
        %v3007 = vld [vmem:[%s2995 + $0x2c] sm:$0xf]
        %v3008 = vld [vmem:[%s2995 + $0x30] sm:$0xf]
        %v3009 = vld [vmem:[%s2995 + $0x34] sm:$0xf]
        %v3010 = vld [vmem:[%s2995 + $0x38] sm:$0xf]
        %v3011 = vld [vmem:[%s2995 + $0x3c] sm:$0xf]
        %v3012 = vunpack.c.l.bf16 %v2996
        %v3013 = vunpack.c.l.bf16 %v2997
        %v3014 = vunpack.c.l.bf16 %v2998
        %v3015 = vunpack.c.l.bf16 %v2999
        %v3016 = vunpack.c.l.bf16 %v3000
        %v3017 = vunpack.c.l.bf16 %v3001
        %v3018 = vunpack.c.l.bf16 %v3002
        %v3019 = vunpack.c.l.bf16 %v3003
        %v3020 = vunpack.c.l.bf16 %v3004
        %v3021 = vunpack.c.l.bf16 %v3005
        %v3022 = vunpack.c.l.bf16 %v3006
        %v3023 = vunpack.c.l.bf16 %v3007
        %v3024 = vunpack.c.l.bf16 %v3008
        %v3025 = vunpack.c.l.bf16 %v3009
        %v3026 = vunpack.c.l.bf16 %v3010
        %v3027 = vunpack.c.l.bf16 %v3011
        %3028 = vrot.lane.b32.xlu0 %v1794, 32
        %v3029 = vpop.permute.xlu0 %3028
        %3030 = vrot.lane.b32.xlu0 %v1795, 32
        %v3031 = vpop.permute.xlu0 %3030
        %3032 = vrot.lane.b32.xlu0 %v1796, 32
        %v3033 = vpop.permute.xlu0 %3032
        %3034 = vrot.lane.b32.xlu0 %v1797, 32
        %v3035 = vpop.permute.xlu0 %3034
        %3036 = vrot.lane.b32.xlu0 %v1798, 32
        %v3037 = vpop.permute.xlu0 %3036
        %3038 = vrot.lane.b32.xlu0 %v1799, 32
        %v3039 = vpop.permute.xlu0 %3038
        %3040 = vrot.lane.b32.xlu0 %v1800, 32
        %v3041 = vpop.permute.xlu0 %3040
        %3042 = vrot.lane.b32.xlu0 %v1801, 32
        %v3043 = vpop.permute.xlu0 %3042
        %3044 = vrot.lane.b32.xlu0 %v1818, 32
        %v3045 = vpop.permute.xlu0 %3044
        %3046 = vrot.lane.b32.xlu0 %v1819, 32
        %v3047 = vpop.permute.xlu0 %3046
        %3048 = vrot.lane.b32.xlu0 %v1820, 32
        %v3049 = vpop.permute.xlu0 %3048
        %3050 = vrot.lane.b32.xlu0 %v1821, 32
        %v3051 = vpop.permute.xlu0 %3050
        %3052 = vrot.lane.b32.xlu0 %v1822, 32
        %v3053 = vpop.permute.xlu0 %3052
        %3054 = vrot.lane.b32.xlu0 %v1823, 32
        %v3055 = vpop.permute.xlu0 %3054
        %3056 = vrot.lane.b32.xlu0 %v1824, 32
        %v3057 = vpop.permute.xlu0 %3056
        %3058 = vrot.lane.b32.xlu0 %v1825, 32
        %v3059 = vpop.permute.xlu0 %3058
        %v3061 = vsel %vm1826, %v3029, 0
        %v3064 = vsel %vm1826, %v3031, 0
        %v3067 = vsel %vm1826, %v3033, 0
        %v3070 = vsel %vm1826, %v3035, 0
        %v3073 = vsel %vm1826, %v3037, 0
        %v3076 = vsel %vm1826, %v3039, 0
        %v3079 = vsel %vm1826, %v3041, 0
        %v3082 = vsel %vm1826, %v3043, 0
        %v3085 = vsel %vm1826, %v3045, 0
        %v3088 = vsel %vm1826, %v3047, 0
        %v3091 = vsel %vm1826, %v3049, 0
        %v3094 = vsel %vm1826, %v3051, 0
        %v3097 = vsel %vm1826, %v3053, 0
        %v3100 = vsel %vm1826, %v3055, 0
        %v3103 = vsel %vm1826, %v3057, 0
        %v3106 = vsel %vm1826, %v3059, 0
        %3108 = vmatpush.bf16.xpose.msra.mxu0 %v3106
        %3109 = vmatpush.bf16.xpose.msra.mxu0 %v3103
        %3110 = vmatpush.bf16.xpose.msra.mxu0 %v3100
        %3111 = vmatpush.bf16.xpose.msra.mxu0 %v3097
        %3112 = vmatpush.bf16.xpose.msra.mxu0 %v3094
        %3113 = vmatpush.bf16.xpose.msra.mxu0 %v3091
        %3114 = vmatpush.bf16.xpose.msra.mxu0 %v3088
        %3115 = vmatpush.bf16.xpose.msra.mxu0 %v3085
        %3116 = vmatmul.bf16.gmra.mxu0 %v3061
        %v3117 = vpop.f32.mrf.mxu0
        %v3118 = vadd.f32 %v3012, %v3117
        %v3119 = vpop.f32.mrf.mxu0
        %v3120 = vadd.f32 %v3013, %v3119
        %3121 = vmatmul.bf16.gmra.mxu0 %v3064
        %v3122 = vpop.f32.mrf.mxu0
        %v3123 = vadd.f32 %v3014, %v3122
        %v3124 = vpop.f32.mrf.mxu0
        %v3125 = vadd.f32 %v3015, %v3124
        %3126 = vmatmul.bf16.gmra.mxu0 %v3067
        %v3127 = vpop.f32.mrf.mxu0
        %v3128 = vadd.f32 %v3016, %v3127
        %v3129 = vpop.f32.mrf.mxu0
        %v3130 = vadd.f32 %v3017, %v3129
        %3131 = vmatmul.bf16.gmra.mxu0 %v3070
        %v3132 = vpop.f32.mrf.mxu0
        %v3133 = vadd.f32 %v3018, %v3132
        %v3134 = vpop.f32.mrf.mxu0
        %v3135 = vadd.f32 %v3019, %v3134
        %3136 = vmatmul.bf16.gmra.mxu0 %v3073
        %v3137 = vpop.f32.mrf.mxu0
        %v3138 = vadd.f32 %v3020, %v3137
        %v3139 = vpop.f32.mrf.mxu0
        %v3140 = vadd.f32 %v3021, %v3139
        %3141 = vmatmul.bf16.gmra.mxu0 %v3076
        %v3142 = vpop.f32.mrf.mxu0
        %v3143 = vadd.f32 %v3022, %v3142
        %v3144 = vpop.f32.mrf.mxu0
        %v3145 = vadd.f32 %v3023, %v3144
        %3146 = vmatmul.bf16.gmra.mxu0 %v3079
        %v3147 = vpop.f32.mrf.mxu0
        %v3148 = vadd.f32 %v3024, %v3147
        %v3149 = vpop.f32.mrf.mxu0
        %v3150 = vadd.f32 %v3025, %v3149
        %3151 = vmatmul.bf16.gmra.mxu0 %v3082
        %v3152 = vpop.f32.mrf.mxu0
        %v3153 = vadd.f32 %v3026, %v3152
        %v3154 = vpop.f32.mrf.mxu0
        %v3155 = vadd.f32 %v3027, %v3154
        %3156 = vdwg.mxu0
        %v3157 = vadd.f32 %v3118, %v663
        %v3158 = vadd.f32 %v3120, %v663
        %v3159 = vadd.f32 %v3123, %v663
        %v3160 = vadd.f32 %v3125, %v663
        %v3161 = vadd.f32 %v3128, %v663
        %v3162 = vadd.f32 %v3130, %v663
        %v3163 = vadd.f32 %v3133, %v663
        %v3164 = vadd.f32 %v3135, %v663
        %v3165 = vadd.f32 %v3138, %v663
        %v3166 = vadd.f32 %v3140, %v663
        %v3167 = vadd.f32 %v3143, %v663
        %v3168 = vadd.f32 %v3145, %v663
        %v3169 = vadd.f32 %v3148, %v663
        %v3170 = vadd.f32 %v3150, %v663
        %v3171 = vadd.f32 %v3153, %v663
        %v3172 = vadd.f32 %v3155, %v663
        %3173 = vmax.xlane.f32.xlu0 %v3157
        %v3174 = vpop.xlane.xlu0 %3173
        %3175 = vmax.xlane.f32.xlu0 %v3158
        %v3176 = vpop.xlane.xlu0 %3175
        %3177 = vmax.xlane.f32.xlu0 %v3159
        %v3178 = vpop.xlane.xlu0 %3177
        %3179 = vmax.xlane.f32.xlu0 %v3160
        %v3180 = vpop.xlane.xlu0 %3179
        %3181 = vmax.xlane.f32.xlu0 %v3161
        %v3182 = vpop.xlane.xlu0 %3181
        %3183 = vmax.xlane.f32.xlu0 %v3162
        %v3184 = vpop.xlane.xlu0 %3183
        %3185 = vmax.xlane.f32.xlu0 %v3163
        %v3186 = vpop.xlane.xlu0 %3185
        %3187 = vmax.xlane.f32.xlu0 %v3164
        %v3188 = vpop.xlane.xlu0 %3187
        %3189 = vmax.xlane.f32.xlu0 %v3165
        %v3190 = vpop.xlane.xlu0 %3189
        %3191 = vmax.xlane.f32.xlu0 %v3166
        %v3192 = vpop.xlane.xlu0 %3191
        %3193 = vmax.xlane.f32.xlu0 %v3167
        %v3194 = vpop.xlane.xlu0 %3193
        %3195 = vmax.xlane.f32.xlu0 %v3168
        %v3196 = vpop.xlane.xlu0 %3195
        %3197 = vmax.xlane.f32.xlu0 %v3169
        %v3198 = vpop.xlane.xlu0 %3197
        %3199 = vmax.xlane.f32.xlu0 %v3170
        %v3200 = vpop.xlane.xlu0 %3199
        %3201 = vmax.xlane.f32.xlu0 %v3171
        %v3202 = vpop.xlane.xlu0 %3201
        %3203 = vmax.xlane.f32.xlu0 %v3172
        %v3204 = vpop.xlane.xlu0 %3203
        %v3205 = vsub.f32 %v3157, %v3174
        %v3206 = vsub.f32 %v3158, %v3176
        %v3207 = vsub.f32 %v3159, %v3178
        %v3208 = vsub.f32 %v3160, %v3180
        %v3209 = vsub.f32 %v3161, %v3182
        %v3210 = vsub.f32 %v3162, %v3184
        %v3211 = vsub.f32 %v3163, %v3186
        %v3212 = vsub.f32 %v3164, %v3188
        %v3213 = vsub.f32 %v3165, %v3190
        %v3214 = vsub.f32 %v3166, %v3192
        %v3215 = vsub.f32 %v3167, %v3194
        %v3216 = vsub.f32 %v3168, %v3196
        %v3217 = vsub.f32 %v3169, %v3198
        %v3218 = vsub.f32 %v3170, %v3200
        %v3219 = vsub.f32 %v3171, %v3202
        %v3220 = vsub.f32 %v3172, %v3204
        %v3221 = vmul.f32 %v3205, 1.442695
        %v3222 = vpow.pop %v3221
        %v3223 = vmul.f32 %v3206, 1.442695
        %v3224 = vpow.pop %v3223
        %v3225 = vmul.f32 %v3207, 1.442695
        %v3226 = vpow.pop %v3225
        %v3227 = vmul.f32 %v3208, 1.442695
        %v3228 = vpow.pop %v3227
        %v3229 = vmul.f32 %v3209, 1.442695
        %v3230 = vpow.pop %v3229
        %v3231 = vmul.f32 %v3210, 1.442695
        %v3232 = vpow.pop %v3231
        %v3233 = vmul.f32 %v3211, 1.442695
        %v3234 = vpow.pop %v3233
        %v3235 = vmul.f32 %v3212, 1.442695
        %v3236 = vpow.pop %v3235
        %v3237 = vmul.f32 %v3213, 1.442695
        %v3238 = vpow.pop %v3237
        %v3239 = vmul.f32 %v3214, 1.442695
        %v3240 = vpow.pop %v3239
        %v3241 = vmul.f32 %v3215, 1.442695
        %v3242 = vpow.pop %v3241
        %v3243 = vmul.f32 %v3216, 1.442695
        %v3244 = vpow.pop %v3243
        %v3245 = vmul.f32 %v3217, 1.442695
        %v3246 = vpow.pop %v3245
        %v3247 = vmul.f32 %v3218, 1.442695
        %v3248 = vpow.pop %v3247
        %v3249 = vmul.f32 %v3219, 1.442695
        %v3250 = vpow.pop %v3249
        %v3251 = vmul.f32 %v3220, 1.442695
        %v3252 = vpow.pop %v3251
        %3253 = vadd.xlane.f32.xlu0 %v3222
        %v3254 = vpop.xlane.xlu0 %3253
        %3255 = vadd.xlane.f32.xlu0 %v3224
        %v3256 = vpop.xlane.xlu0 %3255
        %3257 = vadd.xlane.f32.xlu0 %v3226
        %v3258 = vpop.xlane.xlu0 %3257
        %3259 = vadd.xlane.f32.xlu0 %v3228
        %v3260 = vpop.xlane.xlu0 %3259
        %3261 = vadd.xlane.f32.xlu0 %v3230
        %v3262 = vpop.xlane.xlu0 %3261
        %3263 = vadd.xlane.f32.xlu0 %v3232
        %v3264 = vpop.xlane.xlu0 %3263
        %3265 = vadd.xlane.f32.xlu0 %v3234
        %v3266 = vpop.xlane.xlu0 %3265
        %3267 = vadd.xlane.f32.xlu0 %v3236
        %v3268 = vpop.xlane.xlu0 %3267
        %3269 = vadd.xlane.f32.xlu0 %v3238
        %v3270 = vpop.xlane.xlu0 %3269
        %3271 = vadd.xlane.f32.xlu0 %v3240
        %v3272 = vpop.xlane.xlu0 %3271
        %3273 = vadd.xlane.f32.xlu0 %v3242
        %v3274 = vpop.xlane.xlu0 %3273
        %3275 = vadd.xlane.f32.xlu0 %v3244
        %v3276 = vpop.xlane.xlu0 %3275
        %3277 = vadd.xlane.f32.xlu0 %v3246
        %v3278 = vpop.xlane.xlu0 %3277
        %3279 = vadd.xlane.f32.xlu0 %v3248
        %v3280 = vpop.xlane.xlu0 %3279
        %3281 = vadd.xlane.f32.xlu0 %v3250
        %v3282 = vpop.xlane.xlu0 %3281
        %3283 = vadd.xlane.f32.xlu0 %v3252
        %v3284 = vpop.xlane.xlu0 %3283
        %v3285 = vrcp.pop %v3254
        %v3286 = vrcp.pop %v3256
        %v3287 = vrcp.pop %v3258
        %v3288 = vrcp.pop %v3260
        %v3289 = vrcp.pop %v3262
        %v3290 = vrcp.pop %v3264
        %v3291 = vrcp.pop %v3266
        %v3292 = vrcp.pop %v3268
        %v3293 = vrcp.pop %v3270
        %v3294 = vrcp.pop %v3272
        %v3295 = vrcp.pop %v3274
        %v3296 = vrcp.pop %v3276
        %v3297 = vrcp.pop %v3278
        %v3298 = vrcp.pop %v3280
        %v3299 = vrcp.pop %v3282
        %v3300 = vrcp.pop %v3284
        %v3301 = vmul.f32 %v3222, %v3285
        %v3302 = vmul.f32 %v3224, %v3286
        %v3303 = vmul.f32 %v3226, %v3287
        %v3304 = vmul.f32 %v3228, %v3288
        %v3305 = vmul.f32 %v3230, %v3289
        %v3306 = vmul.f32 %v3232, %v3290
        %v3307 = vmul.f32 %v3234, %v3291
        %v3308 = vmul.f32 %v3236, %v3292
        %v3309 = vmul.f32 %v3238, %v3293
        %v3310 = vmul.f32 %v3240, %v3294
        %v3311 = vmul.f32 %v3242, %v3295
        %v3312 = vmul.f32 %v3244, %v3296
        %v3313 = vmul.f32 %v3246, %v3297
        %v3314 = vmul.f32 %v3248, %v3298
        %v3315 = vmul.f32 %v3250, %v3299
        %v3316 = vmul.f32 %v3252, %v3300
        %v3317 = vpack.c.bf16 %v3302, %v3301
        %v3318 = vpack.c.bf16 %v3304, %v3303
        %v3319 = vpack.c.bf16 %v3306, %v3305
        %v3320 = vpack.c.bf16 %v3308, %v3307
        %v3321 = vpack.c.bf16 %v3310, %v3309
        %v3322 = vpack.c.bf16 %v3312, %v3311
        %v3323 = vpack.c.bf16 %v3314, %v3313
        %v3324 = vpack.c.bf16 %v3316, %v3315
        %3325 = vrot.lane.b32.xlu0 %v2124, 32
        %v3326 = vpop.permute.xlu0 %3325
        %3327 = vrot.lane.b32.xlu0 %v2125, 32
        %v3328 = vpop.permute.xlu0 %3327
        %3329 = vrot.lane.b32.xlu0 %v2126, 32
        %v3330 = vpop.permute.xlu0 %3329
        %3331 = vrot.lane.b32.xlu0 %v2127, 32
        %v3332 = vpop.permute.xlu0 %3331
        %3333 = vrot.lane.b32.xlu0 %v2128, 32
        %v3334 = vpop.permute.xlu0 %3333
        %3335 = vrot.lane.b32.xlu0 %v2129, 32
        %v3336 = vpop.permute.xlu0 %3335
        %3337 = vrot.lane.b32.xlu0 %v2130, 32
        %v3338 = vpop.permute.xlu0 %3337
        %3339 = vrot.lane.b32.xlu0 %v2131, 32
        %v3340 = vpop.permute.xlu0 %3339
        %3349 = vmatpush.bf16.msra.mxu0 %v3340
        %3350 = vmatpush.bf16.msra.mxu0 %v3338
        %3351 = vmatpush.bf16.msra.mxu0 %v3336
        %3352 = vmatpush.bf16.msra.mxu0 %v3334
        %3353 = vmatpush.bf16.msra.mxu0 %v3332
        %3354 = vmatpush.bf16.msra.mxu0 %v3330
        %3355 = vmatpush.bf16.msra.mxu0 %v3328
        %3356 = vmatpush.bf16.msra.mxu0 %v3326
        %3357 = vmatmul.bf16.gmra.mxu0 %v3317
        %v3358 = vpop.f32.mrf.mxu0
        %v3359 = vadd.f32 0.0, %v3358
        %v3360 = vpop.f32.mrf.mxu0
        %v3361 = vadd.f32 0.0, %v3360
        %3362 = vmatmul.bf16.gmra.mxu0 %v3318
        %v3363 = vpop.f32.mrf.mxu0
        %v3364 = vadd.f32 0.0, %v3363
        %v3365 = vpop.f32.mrf.mxu0
        %v3366 = vadd.f32 0.0, %v3365
        %3367 = vmatmul.bf16.gmra.mxu0 %v3319
        %v3368 = vpop.f32.mrf.mxu0
        %v3369 = vadd.f32 0.0, %v3368
        %v3370 = vpop.f32.mrf.mxu0
        %v3371 = vadd.f32 0.0, %v3370
        %3372 = vmatmul.bf16.gmra.mxu0 %v3320
        %v3373 = vpop.f32.mrf.mxu0
        %v3374 = vadd.f32 0.0, %v3373
        %v3375 = vpop.f32.mrf.mxu0
        %v3376 = vadd.f32 0.0, %v3375
        %3377 = vmatmul.bf16.gmra.mxu0 %v3321
        %v3378 = vpop.f32.mrf.mxu0
        %v3379 = vadd.f32 0.0, %v3378
        %v3380 = vpop.f32.mrf.mxu0
        %v3381 = vadd.f32 0.0, %v3380
        %3382 = vmatmul.bf16.gmra.mxu0 %v3322
        %v3383 = vpop.f32.mrf.mxu0
        %v3384 = vadd.f32 0.0, %v3383
        %v3385 = vpop.f32.mrf.mxu0
        %v3386 = vadd.f32 0.0, %v3385
        %3387 = vmatmul.bf16.gmra.mxu0 %v3323
        %v3388 = vpop.f32.mrf.mxu0
        %v3389 = vadd.f32 0.0, %v3388
        %v3390 = vpop.f32.mrf.mxu0
        %v3391 = vadd.f32 0.0, %v3390
        %3392 = vmatmul.bf16.gmra.mxu0 %v3324
        %v3393 = vpop.f32.mrf.mxu0
        %v3394 = vadd.f32 0.0, %v3393
        %v3395 = vpop.f32.mrf.mxu0
        %v3396 = vadd.f32 0.0, %v3395
        %3397 = vdwg.mxu0
        %3414 = vrot.lane.b32.xlu0 %v2553, 32
        %v3415 = vpop.permute.xlu0 %3414
        %3416 = vrot.lane.b32.xlu0 %v2555, 32
        %v3417 = vpop.permute.xlu0 %3416
        %3418 = vrot.lane.b32.xlu0 %v2558, 32
        %v3419 = vpop.permute.xlu0 %3418
        %3420 = vrot.lane.b32.xlu0 %v2560, 32
        %v3421 = vpop.permute.xlu0 %3420
        %3422 = vrot.lane.b32.xlu0 %v2563, 32
        %v3423 = vpop.permute.xlu0 %3422
        %3424 = vrot.lane.b32.xlu0 %v2565, 32
        %v3425 = vpop.permute.xlu0 %3424
        %3426 = vrot.lane.b32.xlu0 %v2568, 32
        %v3427 = vpop.permute.xlu0 %3426
        %3428 = vrot.lane.b32.xlu0 %v2570, 32
        %v3429 = vpop.permute.xlu0 %3428
        %3430 = vrot.lane.b32.xlu0 %v2573, 32
        %v3431 = vpop.permute.xlu0 %3430
        %3432 = vrot.lane.b32.xlu0 %v2575, 32
        %v3433 = vpop.permute.xlu0 %3432
        %3434 = vrot.lane.b32.xlu0 %v2578, 32
        %v3435 = vpop.permute.xlu0 %3434
        %3436 = vrot.lane.b32.xlu0 %v2580, 32
        %v3437 = vpop.permute.xlu0 %3436
        %3438 = vrot.lane.b32.xlu0 %v2583, 32
        %v3439 = vpop.permute.xlu0 %3438
        %3440 = vrot.lane.b32.xlu0 %v2585, 32
        %v3441 = vpop.permute.xlu0 %3440
        %3442 = vrot.lane.b32.xlu0 %v2588, 32
        %v3443 = vpop.permute.xlu0 %3442
        %3444 = vrot.lane.b32.xlu0 %v2590, 32
        %v3445 = vpop.permute.xlu0 %3444
        %3478 = vrot.lane.b32.xlu0 %v2956, 64
        %v3479 = vpop.permute.xlu0 %3478
        %3480 = vrot.lane.b32.xlu0 %v2958, 64
        %v3481 = vpop.permute.xlu0 %3480
        %3482 = vrot.lane.b32.xlu0 %v2961, 64
        %v3483 = vpop.permute.xlu0 %3482
        %3484 = vrot.lane.b32.xlu0 %v2963, 64
        %v3485 = vpop.permute.xlu0 %3484
        %3486 = vrot.lane.b32.xlu0 %v2966, 64
        %v3487 = vpop.permute.xlu0 %3486
        %3488 = vrot.lane.b32.xlu0 %v2968, 64
        %v3489 = vpop.permute.xlu0 %3488
        %3490 = vrot.lane.b32.xlu0 %v2971, 64
        %v3491 = vpop.permute.xlu0 %3490
        %3492 = vrot.lane.b32.xlu0 %v2973, 64
        %v3493 = vpop.permute.xlu0 %3492
        %3494 = vrot.lane.b32.xlu0 %v2976, 64
        %v3495 = vpop.permute.xlu0 %3494
        %3496 = vrot.lane.b32.xlu0 %v2978, 64
        %v3497 = vpop.permute.xlu0 %3496
        %3498 = vrot.lane.b32.xlu0 %v2981, 64
        %v3499 = vpop.permute.xlu0 %3498
        %3500 = vrot.lane.b32.xlu0 %v2983, 64
        %v3501 = vpop.permute.xlu0 %3500
        %3502 = vrot.lane.b32.xlu0 %v2986, 64
        %v3503 = vpop.permute.xlu0 %3502
        %3504 = vrot.lane.b32.xlu0 %v2988, 64
        %v3505 = vpop.permute.xlu0 %3504
        %3506 = vrot.lane.b32.xlu0 %v2991, 64
        %v3507 = vpop.permute.xlu0 %3506
        %3508 = vrot.lane.b32.xlu0 %v2993, 64
        %v3509 = vpop.permute.xlu0 %3508
        %3542 = vrot.lane.b32.xlu0 %v3359, 96
        %v3543 = vpop.permute.xlu0 %3542
        %3544 = vrot.lane.b32.xlu0 %v3361, 96
        %v3545 = vpop.permute.xlu0 %3544
        %3546 = vrot.lane.b32.xlu0 %v3364, 96
        %v3547 = vpop.permute.xlu0 %3546
        %3548 = vrot.lane.b32.xlu0 %v3366, 96
        %v3549 = vpop.permute.xlu0 %3548
        %3550 = vrot.lane.b32.xlu0 %v3369, 96
        %v3551 = vpop.permute.xlu0 %3550
        %3552 = vrot.lane.b32.xlu0 %v3371, 96
        %v3553 = vpop.permute.xlu0 %3552
        %3554 = vrot.lane.b32.xlu0 %v3374, 96
        %v3555 = vpop.permute.xlu0 %3554
        %3556 = vrot.lane.b32.xlu0 %v3376, 96
        %v3557 = vpop.permute.xlu0 %3556
        %3558 = vrot.lane.b32.xlu0 %v3379, 96
        %v3559 = vpop.permute.xlu0 %3558
        %3560 = vrot.lane.b32.xlu0 %v3381, 96
        %v3561 = vpop.permute.xlu0 %3560
        %3562 = vrot.lane.b32.xlu0 %v3384, 96
        %v3563 = vpop.permute.xlu0 %3562
        %3564 = vrot.lane.b32.xlu0 %v3386, 96
        %v3565 = vpop.permute.xlu0 %3564
        %3566 = vrot.lane.b32.xlu0 %v3389, 96
        %v3567 = vpop.permute.xlu0 %3566
        %3568 = vrot.lane.b32.xlu0 %v3391, 96
        %v3569 = vpop.permute.xlu0 %3568
        %3570 = vrot.lane.b32.xlu0 %v3394, 96
        %v3571 = vpop.permute.xlu0 %3570
        %3572 = vrot.lane.b32.xlu0 %v3396, 96
        %v3573 = vpop.permute.xlu0 %3572
        %v3590 = vsel %vm1826, %v2150, %v3415
        %v3591 = vsel %vm1826, %v2152, %v3417
        %v3592 = vsel %vm1826, %v2155, %v3419
        %v3593 = vsel %vm1826, %v2157, %v3421
        %v3594 = vsel %vm1826, %v2160, %v3423
        %v3595 = vsel %vm1826, %v2162, %v3425
        %v3596 = vsel %vm1826, %v2165, %v3427
        %v3597 = vsel %vm1826, %v2167, %v3429
        %v3598 = vsel %vm1826, %v2170, %v3431
        %v3599 = vsel %vm1826, %v2172, %v3433
        %v3600 = vsel %vm1826, %v2175, %v3435
        %v3601 = vsel %vm1826, %v2177, %v3437
        %v3602 = vsel %vm1826, %v2180, %v3439
        %v3603 = vsel %vm1826, %v2182, %v3441
        %v3604 = vsel %vm1826, %v2185, %v3443
        %v3605 = vsel %vm1826, %v2187, %v3445
        %vm3606 = vcmask 523264
        %v3607 = vsel %vm3606, %v3590, %v3479
        %v3608 = vsel %vm3606, %v3591, %v3481
        %v3609 = vsel %vm3606, %v3592, %v3483
        %v3610 = vsel %vm3606, %v3593, %v3485
        %v3611 = vsel %vm3606, %v3594, %v3487
        %v3612 = vsel %vm3606, %v3595, %v3489
        %v3613 = vsel %vm3606, %v3596, %v3491
        %v3614 = vsel %vm3606, %v3597, %v3493
        %v3615 = vsel %vm3606, %v3598, %v3495
        %v3616 = vsel %vm3606, %v3599, %v3497
        %v3617 = vsel %vm3606, %v3600, %v3499
        %v3618 = vsel %vm3606, %v3601, %v3501
        %v3619 = vsel %vm3606, %v3602, %v3503
        %v3620 = vsel %vm3606, %v3603, %v3505
        %v3621 = vsel %vm3606, %v3604, %v3507
        %v3622 = vsel %vm3606, %v3605, %v3509
        %vm3623 = vcmask 785408
        %v3624 = vsel %vm3623, %v3607, %v3543
        %v3625 = vsel %vm3623, %v3608, %v3545
        %v3626 = vsel %vm3623, %v3609, %v3547
        %v3627 = vsel %vm3623, %v3610, %v3549
        %v3628 = vsel %vm3623, %v3611, %v3551
        %v3629 = vsel %vm3623, %v3612, %v3553
        %v3630 = vsel %vm3623, %v3613, %v3555
        %v3631 = vsel %vm3623, %v3614, %v3557
        %v3632 = vsel %vm3623, %v3615, %v3559
        %v3633 = vsel %vm3623, %v3616, %v3561
        %v3634 = vsel %vm3623, %v3617, %v3563
        %v3635 = vsel %vm3623, %v3618, %v3565
        %v3636 = vsel %vm3623, %v3619, %v3567
        %v3637 = vsel %vm3623, %v3620, %v3569
        %v3638 = vsel %vm3623, %v3621, %v3571
        %v3639 = vsel %vm3623, %v3622, %v3573
        %v3656 = vunpack.c.l.b16 %v1698
        %v3657 = vunpack.c.l.b16 %v1700
        %v3658 = vunpack.c.l.b16 %v1702
        %v3659 = vunpack.c.l.b16 %v1704
        %v3660 = vunpack.c.l.b16 %v1706
        %v3661 = vunpack.c.l.b16 %v1708
        %v3662 = vunpack.c.l.b16 %v1710
        %v3663 = vunpack.c.l.b16 %v1712
        %v3664 = vunpack.c.l.b16 %v1714
        %v3665 = vunpack.c.l.b16 %v1716
        %v3666 = vunpack.c.l.b16 %v1718
        %v3667 = vunpack.c.l.b16 %v1720
        %v3668 = vunpack.c.l.b16 %v1722
        %v3669 = vunpack.c.l.b16 %v1724
        %v3670 = vunpack.c.l.b16 %v1726
        %v3671 = vunpack.c.l.b16 %v1728
        %v3672 = vpack.c.b16 %v3657, %v3656
        %v3673 = vpack.c.b16 %v3659, %v3658
        %v3674 = vpack.c.b16 %v3661, %v3660
        %v3675 = vpack.c.b16 %v3663, %v3662
        %v3676 = vpack.c.b16 %v3665, %v3664
        %v3677 = vpack.c.b16 %v3667, %v3666
        %v3678 = vpack.c.b16 %v3669, %v3668
        %v3679 = vpack.c.b16 %v3671, %v3670
        %v3680 = vunpack.c.h.b16 %v1698
        %v3681 = vunpack.c.h.b16 %v1700
        %v3682 = vunpack.c.h.b16 %v1702
        %v3683 = vunpack.c.h.b16 %v1704
        %v3684 = vunpack.c.h.b16 %v1706
        %v3685 = vunpack.c.h.b16 %v1708
        %v3686 = vunpack.c.h.b16 %v1710
        %v3687 = vunpack.c.h.b16 %v1712
        %v3688 = vunpack.c.h.b16 %v1714
        %v3689 = vunpack.c.h.b16 %v1716
        %v3690 = vunpack.c.h.b16 %v1718
        %v3691 = vunpack.c.h.b16 %v1720
        %v3692 = vunpack.c.h.b16 %v1722
        %v3693 = vunpack.c.h.b16 %v1724
        %v3694 = vunpack.c.h.b16 %v1726
        %v3695 = vunpack.c.h.b16 %v1728
        %v3696 = vpack.c.b16 %v3681, %v3680
        %v3697 = vpack.c.b16 %v3683, %v3682
        %v3698 = vpack.c.b16 %v3685, %v3684
        %v3699 = vpack.c.b16 %v3687, %v3686
        %v3700 = vpack.c.b16 %v3689, %v3688
        %v3701 = vpack.c.b16 %v3691, %v3690
        %v3702 = vpack.c.b16 %v3693, %v3692
        %v3703 = vpack.c.b16 %v3695, %v3694
        %v3705 = vsel %vm1826, %v3672, 0
        %v3708 = vsel %vm1826, %v3673, 0
        %v3711 = vsel %vm1826, %v3674, 0
        %v3714 = vsel %vm1826, %v3675, 0
        %v3717 = vsel %vm1826, %v3676, 0
        %v3720 = vsel %vm1826, %v3677, 0
        %v3723 = vsel %vm1826, %v3678, 0
        %v3726 = vsel %vm1826, %v3679, 0
        %v3729 = vsel %vm1826, %v3696, 0
        %v3732 = vsel %vm1826, %v3697, 0
        %v3735 = vsel %vm1826, %v3698, 0
        %v3738 = vsel %vm1826, %v3699, 0
        %v3741 = vsel %vm1826, %v3700, 0
        %v3744 = vsel %vm1826, %v3701, 0
        %v3747 = vsel %vm1826, %v3702, 0
        %v3750 = vsel %vm1826, %v3703, 0
        %3752 = vmatpush.bf16.xpose.msra.mxu0 %v3750
        %3753 = vmatpush.bf16.xpose.msra.mxu0 %v3747
        %3754 = vmatpush.bf16.xpose.msra.mxu0 %v3744
        %3755 = vmatpush.bf16.xpose.msra.mxu0 %v3741
        %3756 = vmatpush.bf16.xpose.msra.mxu0 %v3738
        %3757 = vmatpush.bf16.xpose.msra.mxu0 %v3735
        %3758 = vmatpush.bf16.xpose.msra.mxu0 %v3732
        %3759 = vmatpush.bf16.xpose.msra.mxu0 %v3729
        %3760 = vmatmul.bf16.gmra.mxu0 %v3705
        %v3761 = vpop.f32.mrf.mxu0
        %v3762 = vadd.f32 %v1746, %v3761
        %v3763 = vpop.f32.mrf.mxu0
        %v3764 = vadd.f32 %v1747, %v3763
        %3765 = vmatmul.bf16.gmra.mxu0 %v3708
        %v3766 = vpop.f32.mrf.mxu0
        %v3767 = vadd.f32 %v1748, %v3766
        %v3768 = vpop.f32.mrf.mxu0
        %v3769 = vadd.f32 %v1749, %v3768
        %3770 = vmatmul.bf16.gmra.mxu0 %v3711
        %v3771 = vpop.f32.mrf.mxu0
        %v3772 = vadd.f32 %v1750, %v3771
        %v3773 = vpop.f32.mrf.mxu0
        %v3774 = vadd.f32 %v1751, %v3773
        %3775 = vmatmul.bf16.gmra.mxu0 %v3714
        %v3776 = vpop.f32.mrf.mxu0
        %v3777 = vadd.f32 %v1752, %v3776
        %v3778 = vpop.f32.mrf.mxu0
        %v3779 = vadd.f32 %v1753, %v3778
        %3780 = vmatmul.bf16.gmra.mxu0 %v3717
        %v3781 = vpop.f32.mrf.mxu0
        %v3782 = vadd.f32 %v1754, %v3781
        %v3783 = vpop.f32.mrf.mxu0
        %v3784 = vadd.f32 %v1755, %v3783
        %3785 = vmatmul.bf16.gmra.mxu0 %v3720
        %v3786 = vpop.f32.mrf.mxu0
        %v3787 = vadd.f32 %v1756, %v3786
        %v3788 = vpop.f32.mrf.mxu0
        %v3789 = vadd.f32 %v1757, %v3788
        %3790 = vmatmul.bf16.gmra.mxu0 %v3723
        %v3791 = vpop.f32.mrf.mxu0
        %v3792 = vadd.f32 %v1758, %v3791
        %v3793 = vpop.f32.mrf.mxu0
        %v3794 = vadd.f32 %v1759, %v3793
        %3795 = vmatmul.bf16.gmra.mxu0 %v3726
        %v3796 = vpop.f32.mrf.mxu0
        %v3797 = vadd.f32 %v1760, %v3796
        %v3798 = vpop.f32.mrf.mxu0
        %v3799 = vadd.f32 %v1761, %v3798
        %3800 = vdwg.mxu0
        %v3801 = vadd.f32 %v3762, %v667
        %v3802 = vadd.f32 %v3764, %v667
        %v3803 = vadd.f32 %v3767, %v667
        %v3804 = vadd.f32 %v3769, %v667
        %v3805 = vadd.f32 %v3772, %v667
        %v3806 = vadd.f32 %v3774, %v667
        %v3807 = vadd.f32 %v3777, %v667
        %v3808 = vadd.f32 %v3779, %v667
        %v3809 = vadd.f32 %v3782, %v667
        %v3810 = vadd.f32 %v3784, %v667
        %v3811 = vadd.f32 %v3787, %v667
        %v3812 = vadd.f32 %v3789, %v667
        %v3813 = vadd.f32 %v3792, %v667
        %v3814 = vadd.f32 %v3794, %v667
        %v3815 = vadd.f32 %v3797, %v667
        %v3816 = vadd.f32 %v3799, %v667
        %3817 = vmax.xlane.f32.xlu0 %v3801
        %v3818 = vpop.xlane.xlu0 %3817
        %3819 = vmax.xlane.f32.xlu0 %v3802
        %v3820 = vpop.xlane.xlu0 %3819
        %3821 = vmax.xlane.f32.xlu0 %v3803
        %v3822 = vpop.xlane.xlu0 %3821
        %3823 = vmax.xlane.f32.xlu0 %v3804
        %v3824 = vpop.xlane.xlu0 %3823
        %3825 = vmax.xlane.f32.xlu0 %v3805
        %v3826 = vpop.xlane.xlu0 %3825
        %3827 = vmax.xlane.f32.xlu0 %v3806
        %v3828 = vpop.xlane.xlu0 %3827
        %3829 = vmax.xlane.f32.xlu0 %v3807
        %v3830 = vpop.xlane.xlu0 %3829
        %3831 = vmax.xlane.f32.xlu0 %v3808
        %v3832 = vpop.xlane.xlu0 %3831
        %3833 = vmax.xlane.f32.xlu0 %v3809
        %v3834 = vpop.xlane.xlu0 %3833
        %3835 = vmax.xlane.f32.xlu0 %v3810
        %v3836 = vpop.xlane.xlu0 %3835
        %3837 = vmax.xlane.f32.xlu0 %v3811
        %v3838 = vpop.xlane.xlu0 %3837
        %3839 = vmax.xlane.f32.xlu0 %v3812
        %v3840 = vpop.xlane.xlu0 %3839
        %3841 = vmax.xlane.f32.xlu0 %v3813
        %v3842 = vpop.xlane.xlu0 %3841
        %3843 = vmax.xlane.f32.xlu0 %v3814
        %v3844 = vpop.xlane.xlu0 %3843
        %3845 = vmax.xlane.f32.xlu0 %v3815
        %v3846 = vpop.xlane.xlu0 %3845
        %3847 = vmax.xlane.f32.xlu0 %v3816
        %v3848 = vpop.xlane.xlu0 %3847
        %v3849 = vsub.f32 %v3801, %v3818
        %v3850 = vsub.f32 %v3802, %v3820
        %v3851 = vsub.f32 %v3803, %v3822
        %v3852 = vsub.f32 %v3804, %v3824
        %v3853 = vsub.f32 %v3805, %v3826
        %v3854 = vsub.f32 %v3806, %v3828
        %v3855 = vsub.f32 %v3807, %v3830
        %v3856 = vsub.f32 %v3808, %v3832
        %v3857 = vsub.f32 %v3809, %v3834
        %v3858 = vsub.f32 %v3810, %v3836
        %v3859 = vsub.f32 %v3811, %v3838
        %v3860 = vsub.f32 %v3812, %v3840
        %v3861 = vsub.f32 %v3813, %v3842
        %v3862 = vsub.f32 %v3814, %v3844
        %v3863 = vsub.f32 %v3815, %v3846
        %v3864 = vsub.f32 %v3816, %v3848
        %v3865 = vmul.f32 %v3849, 1.442695
        %v3866 = vpow.pop %v3865
        %v3867 = vmul.f32 %v3850, 1.442695
        %v3868 = vpow.pop %v3867
        %v3869 = vmul.f32 %v3851, 1.442695
        %v3870 = vpow.pop %v3869
        %v3871 = vmul.f32 %v3852, 1.442695
        %v3872 = vpow.pop %v3871
        %v3873 = vmul.f32 %v3853, 1.442695
        %v3874 = vpow.pop %v3873
        %v3875 = vmul.f32 %v3854, 1.442695
        %v3876 = vpow.pop %v3875
        %v3877 = vmul.f32 %v3855, 1.442695
        %v3878 = vpow.pop %v3877
        %v3879 = vmul.f32 %v3856, 1.442695
        %v3880 = vpow.pop %v3879
        %v3881 = vmul.f32 %v3857, 1.442695
        %v3882 = vpow.pop %v3881
        %v3883 = vmul.f32 %v3858, 1.442695
        %v3884 = vpow.pop %v3883
        %v3885 = vmul.f32 %v3859, 1.442695
        %v3886 = vpow.pop %v3885
        %v3887 = vmul.f32 %v3860, 1.442695
        %v3888 = vpow.pop %v3887
        %v3889 = vmul.f32 %v3861, 1.442695
        %v3890 = vpow.pop %v3889
        %v3891 = vmul.f32 %v3862, 1.442695
        %v3892 = vpow.pop %v3891
        %v3893 = vmul.f32 %v3863, 1.442695
        %v3894 = vpow.pop %v3893
        %v3895 = vmul.f32 %v3864, 1.442695
        %v3896 = vpow.pop %v3895
        %3897 = vadd.xlane.f32.xlu0 %v3866
        %v3898 = vpop.xlane.xlu0 %3897
        %3899 = vadd.xlane.f32.xlu0 %v3868
        %v3900 = vpop.xlane.xlu0 %3899
        %3901 = vadd.xlane.f32.xlu0 %v3870
        %v3902 = vpop.xlane.xlu0 %3901
        %3903 = vadd.xlane.f32.xlu0 %v3872
        %v3904 = vpop.xlane.xlu0 %3903
        %3905 = vadd.xlane.f32.xlu0 %v3874
        %v3906 = vpop.xlane.xlu0 %3905
        %3907 = vadd.xlane.f32.xlu0 %v3876
        %v3908 = vpop.xlane.xlu0 %3907
        %3909 = vadd.xlane.f32.xlu0 %v3878
        %v3910 = vpop.xlane.xlu0 %3909
        %3911 = vadd.xlane.f32.xlu0 %v3880
        %v3912 = vpop.xlane.xlu0 %3911
        %3913 = vadd.xlane.f32.xlu0 %v3882
        %v3914 = vpop.xlane.xlu0 %3913
        %3915 = vadd.xlane.f32.xlu0 %v3884
        %v3916 = vpop.xlane.xlu0 %3915
        %3917 = vadd.xlane.f32.xlu0 %v3886
        %v3918 = vpop.xlane.xlu0 %3917
        %3919 = vadd.xlane.f32.xlu0 %v3888
        %v3920 = vpop.xlane.xlu0 %3919
        %3921 = vadd.xlane.f32.xlu0 %v3890
        %v3922 = vpop.xlane.xlu0 %3921
        %3923 = vadd.xlane.f32.xlu0 %v3892
        %v3924 = vpop.xlane.xlu0 %3923
        %3925 = vadd.xlane.f32.xlu0 %v3894
        %v3926 = vpop.xlane.xlu0 %3925
        %3927 = vadd.xlane.f32.xlu0 %v3896
        %v3928 = vpop.xlane.xlu0 %3927
        %v3929 = vrcp.pop %v3898
        %v3930 = vrcp.pop %v3900
        %v3931 = vrcp.pop %v3902
        %v3932 = vrcp.pop %v3904
        %v3933 = vrcp.pop %v3906
        %v3934 = vrcp.pop %v3908
        %v3935 = vrcp.pop %v3910
        %v3936 = vrcp.pop %v3912
        %v3937 = vrcp.pop %v3914
        %v3938 = vrcp.pop %v3916
        %v3939 = vrcp.pop %v3918
        %v3940 = vrcp.pop %v3920
        %v3941 = vrcp.pop %v3922
        %v3942 = vrcp.pop %v3924
        %v3943 = vrcp.pop %v3926
        %v3944 = vrcp.pop %v3928
        %v3945 = vmul.f32 %v3866, %v3929
        %v3946 = vmul.f32 %v3868, %v3930
        %v3947 = vmul.f32 %v3870, %v3931
        %v3948 = vmul.f32 %v3872, %v3932
        %v3949 = vmul.f32 %v3874, %v3933
        %v3950 = vmul.f32 %v3876, %v3934
        %v3951 = vmul.f32 %v3878, %v3935
        %v3952 = vmul.f32 %v3880, %v3936
        %v3953 = vmul.f32 %v3882, %v3937
        %v3954 = vmul.f32 %v3884, %v3938
        %v3955 = vmul.f32 %v3886, %v3939
        %v3956 = vmul.f32 %v3888, %v3940
        %v3957 = vmul.f32 %v3890, %v3941
        %v3958 = vmul.f32 %v3892, %v3942
        %v3959 = vmul.f32 %v3894, %v3943
        %v3960 = vmul.f32 %v3896, %v3944
        %v3961 = vpack.c.bf16 %v3946, %v3945
        %v3962 = vpack.c.bf16 %v3948, %v3947
        %v3963 = vpack.c.bf16 %v3950, %v3949
        %v3964 = vpack.c.bf16 %v3952, %v3951
        %v3965 = vpack.c.bf16 %v3954, %v3953
        %v3966 = vpack.c.bf16 %v3956, %v3955
        %v3967 = vpack.c.bf16 %v3958, %v3957
        %v3968 = vpack.c.bf16 %v3960, %v3959
        %v3985 = vunpack.c.l.b16 %v1699
        %v3986 = vunpack.c.l.b16 %v1701
        %v3987 = vunpack.c.l.b16 %v1703
        %v3988 = vunpack.c.l.b16 %v1705
        %v3989 = vunpack.c.l.b16 %v1707
        %v3990 = vunpack.c.l.b16 %v1709
        %v3991 = vunpack.c.l.b16 %v1711
        %v3992 = vunpack.c.l.b16 %v1713
        %v3993 = vunpack.c.l.b16 %v1715
        %v3994 = vunpack.c.l.b16 %v1717
        %v3995 = vunpack.c.l.b16 %v1719
        %v3996 = vunpack.c.l.b16 %v1721
        %v3997 = vunpack.c.l.b16 %v1723
        %v3998 = vunpack.c.l.b16 %v1725
        %v3999 = vunpack.c.l.b16 %v1727
        %v4000 = vunpack.c.l.b16 %v1729
        %v4001 = vpack.c.b16 %v3986, %v3985
        %v4002 = vpack.c.b16 %v3988, %v3987
        %v4003 = vpack.c.b16 %v3990, %v3989
        %v4004 = vpack.c.b16 %v3992, %v3991
        %v4005 = vpack.c.b16 %v3994, %v3993
        %v4006 = vpack.c.b16 %v3996, %v3995
        %v4007 = vpack.c.b16 %v3998, %v3997
        %v4008 = vpack.c.b16 %v4000, %v3999
        %4017 = vmatpush.bf16.msra.mxu0 %v4008
        %4018 = vmatpush.bf16.msra.mxu0 %v4007
        %4019 = vmatpush.bf16.msra.mxu0 %v4006
        %4020 = vmatpush.bf16.msra.mxu0 %v4005
        %4021 = vmatpush.bf16.msra.mxu0 %v4004
        %4022 = vmatpush.bf16.msra.mxu0 %v4003
        %4023 = vmatpush.bf16.msra.mxu0 %v4002
        %4024 = vmatpush.bf16.msra.mxu0 %v4001
        %4025 = vmatmul.bf16.gmra.mxu0 %v3961
        %v4026 = vpop.f32.mrf.mxu0
        %v4027 = vadd.f32 0.0, %v4026
        %v4028 = vpop.f32.mrf.mxu0
        %v4029 = vadd.f32 0.0, %v4028
        %4030 = vmatmul.bf16.gmra.mxu0 %v3962
        %v4031 = vpop.f32.mrf.mxu0
        %v4032 = vadd.f32 0.0, %v4031
        %v4033 = vpop.f32.mrf.mxu0
        %v4034 = vadd.f32 0.0, %v4033
        %4035 = vmatmul.bf16.gmra.mxu0 %v3963
        %v4036 = vpop.f32.mrf.mxu0
        %v4037 = vadd.f32 0.0, %v4036
        %v4038 = vpop.f32.mrf.mxu0
        %v4039 = vadd.f32 0.0, %v4038
        %4040 = vmatmul.bf16.gmra.mxu0 %v3964
        %v4041 = vpop.f32.mrf.mxu0
        %v4042 = vadd.f32 0.0, %v4041
        %v4043 = vpop.f32.mrf.mxu0
        %v4044 = vadd.f32 0.0, %v4043
        %4045 = vmatmul.bf16.gmra.mxu0 %v3965
        %v4046 = vpop.f32.mrf.mxu0
        %v4047 = vadd.f32 0.0, %v4046
        %v4048 = vpop.f32.mrf.mxu0
        %v4049 = vadd.f32 0.0, %v4048
        %4050 = vmatmul.bf16.gmra.mxu0 %v3966
        %v4051 = vpop.f32.mrf.mxu0
        %v4052 = vadd.f32 0.0, %v4051
        %v4053 = vpop.f32.mrf.mxu0
        %v4054 = vadd.f32 0.0, %v4053
        %4055 = vmatmul.bf16.gmra.mxu0 %v3967
        %v4056 = vpop.f32.mrf.mxu0
        %v4057 = vadd.f32 0.0, %v4056
        %v4058 = vpop.f32.mrf.mxu0
        %v4059 = vadd.f32 0.0, %v4058
        %4060 = vmatmul.bf16.gmra.mxu0 %v3968
        %v4061 = vpop.f32.mrf.mxu0
        %v4062 = vadd.f32 0.0, %v4061
        %v4063 = vpop.f32.mrf.mxu0
        %v4064 = vadd.f32 0.0, %v4063
        %4065 = vdwg.mxu0
        %4066 = vrot.lane.b32.xlu0 %v3672, 96
        %v4067 = vpop.permute.xlu0 %4066
        %4068 = vrot.lane.b32.xlu0 %v3673, 96
        %v4069 = vpop.permute.xlu0 %4068
        %4070 = vrot.lane.b32.xlu0 %v3674, 96
        %v4071 = vpop.permute.xlu0 %4070
        %4072 = vrot.lane.b32.xlu0 %v3675, 96
        %v4073 = vpop.permute.xlu0 %4072
        %4074 = vrot.lane.b32.xlu0 %v3676, 96
        %v4075 = vpop.permute.xlu0 %4074
        %4076 = vrot.lane.b32.xlu0 %v3677, 96
        %v4077 = vpop.permute.xlu0 %4076
        %4078 = vrot.lane.b32.xlu0 %v3678, 96
        %v4079 = vpop.permute.xlu0 %4078
        %4080 = vrot.lane.b32.xlu0 %v3679, 96
        %v4081 = vpop.permute.xlu0 %4080
        %4082 = vrot.lane.b32.xlu0 %v3696, 96
        %v4083 = vpop.permute.xlu0 %4082
        %4084 = vrot.lane.b32.xlu0 %v3697, 96
        %v4085 = vpop.permute.xlu0 %4084
        %4086 = vrot.lane.b32.xlu0 %v3698, 96
        %v4087 = vpop.permute.xlu0 %4086
        %4088 = vrot.lane.b32.xlu0 %v3699, 96
        %v4089 = vpop.permute.xlu0 %4088
        %4090 = vrot.lane.b32.xlu0 %v3700, 96
        %v4091 = vpop.permute.xlu0 %4090
        %4092 = vrot.lane.b32.xlu0 %v3701, 96
        %v4093 = vpop.permute.xlu0 %4092
        %4094 = vrot.lane.b32.xlu0 %v3702, 96
        %v4095 = vpop.permute.xlu0 %4094
        %4096 = vrot.lane.b32.xlu0 %v3703, 96
        %v4097 = vpop.permute.xlu0 %4096
        %v4099 = vsel %vm1826, %v4067, 0
        %v4102 = vsel %vm1826, %v4069, 0
        %v4105 = vsel %vm1826, %v4071, 0
        %v4108 = vsel %vm1826, %v4073, 0
        %v4111 = vsel %vm1826, %v4075, 0
        %v4114 = vsel %vm1826, %v4077, 0
        %v4117 = vsel %vm1826, %v4079, 0
        %v4120 = vsel %vm1826, %v4081, 0
        %v4123 = vsel %vm1826, %v4083, 0
        %v4126 = vsel %vm1826, %v4085, 0
        %v4129 = vsel %vm1826, %v4087, 0
        %v4132 = vsel %vm1826, %v4089, 0
        %v4135 = vsel %vm1826, %v4091, 0
        %v4138 = vsel %vm1826, %v4093, 0
        %v4141 = vsel %vm1826, %v4095, 0
        %v4144 = vsel %vm1826, %v4097, 0
        %4146 = vmatpush.bf16.xpose.msra.mxu0 %v4144
        %4147 = vmatpush.bf16.xpose.msra.mxu0 %v4141
        %4148 = vmatpush.bf16.xpose.msra.mxu0 %v4138
        %4149 = vmatpush.bf16.xpose.msra.mxu0 %v4135
        %4150 = vmatpush.bf16.xpose.msra.mxu0 %v4132
        %4151 = vmatpush.bf16.xpose.msra.mxu0 %v4129
        %4152 = vmatpush.bf16.xpose.msra.mxu0 %v4126
        %4153 = vmatpush.bf16.xpose.msra.mxu0 %v4123
        %4154 = vmatmul.bf16.gmra.mxu0 %v4099
        %v4155 = vpop.f32.mrf.mxu0
        %v4156 = vadd.f32 %v2206, %v4155
        %v4157 = vpop.f32.mrf.mxu0
        %v4158 = vadd.f32 %v2207, %v4157
        %4159 = vmatmul.bf16.gmra.mxu0 %v4102
        %v4160 = vpop.f32.mrf.mxu0
        %v4161 = vadd.f32 %v2208, %v4160
        %v4162 = vpop.f32.mrf.mxu0
        %v4163 = vadd.f32 %v2209, %v4162
        %4164 = vmatmul.bf16.gmra.mxu0 %v4105
        %v4165 = vpop.f32.mrf.mxu0
        %v4166 = vadd.f32 %v2210, %v4165
        %v4167 = vpop.f32.mrf.mxu0
        %v4168 = vadd.f32 %v2211, %v4167
        %4169 = vmatmul.bf16.gmra.mxu0 %v4108
        %v4170 = vpop.f32.mrf.mxu0
        %v4171 = vadd.f32 %v2212, %v4170
        %v4172 = vpop.f32.mrf.mxu0
        %v4173 = vadd.f32 %v2213, %v4172
        %4174 = vmatmul.bf16.gmra.mxu0 %v4111
        %v4175 = vpop.f32.mrf.mxu0
        %v4176 = vadd.f32 %v2214, %v4175
        %v4177 = vpop.f32.mrf.mxu0
        %v4178 = vadd.f32 %v2215, %v4177
        %4179 = vmatmul.bf16.gmra.mxu0 %v4114
        %v4180 = vpop.f32.mrf.mxu0
        %v4181 = vadd.f32 %v2216, %v4180
        %v4182 = vpop.f32.mrf.mxu0
        %v4183 = vadd.f32 %v2217, %v4182
        %4184 = vmatmul.bf16.gmra.mxu0 %v4117
        %v4185 = vpop.f32.mrf.mxu0
        %v4186 = vadd.f32 %v2218, %v4185
        %v4187 = vpop.f32.mrf.mxu0
        %v4188 = vadd.f32 %v2219, %v4187
        %4189 = vmatmul.bf16.gmra.mxu0 %v4120
        %v4190 = vpop.f32.mrf.mxu0
        %v4191 = vadd.f32 %v2220, %v4190
        %v4192 = vpop.f32.mrf.mxu0
        %v4193 = vadd.f32 %v2221, %v4192
        %4194 = vdwg.mxu0
        %v4195 = vadd.f32 %v4156, %v667
        %v4196 = vadd.f32 %v4158, %v667
        %v4197 = vadd.f32 %v4161, %v667
        %v4198 = vadd.f32 %v4163, %v667
        %v4199 = vadd.f32 %v4166, %v667
        %v4200 = vadd.f32 %v4168, %v667
        %v4201 = vadd.f32 %v4171, %v667
        %v4202 = vadd.f32 %v4173, %v667
        %v4203 = vadd.f32 %v4176, %v667
        %v4204 = vadd.f32 %v4178, %v667
        %v4205 = vadd.f32 %v4181, %v667
        %v4206 = vadd.f32 %v4183, %v667
        %v4207 = vadd.f32 %v4186, %v667
        %v4208 = vadd.f32 %v4188, %v667
        %v4209 = vadd.f32 %v4191, %v667
        %v4210 = vadd.f32 %v4193, %v667
        %4211 = vmax.xlane.f32.xlu0 %v4195
        %v4212 = vpop.xlane.xlu0 %4211
        %4213 = vmax.xlane.f32.xlu0 %v4196
        %v4214 = vpop.xlane.xlu0 %4213
        %4215 = vmax.xlane.f32.xlu0 %v4197
        %v4216 = vpop.xlane.xlu0 %4215
        %4217 = vmax.xlane.f32.xlu0 %v4198
        %v4218 = vpop.xlane.xlu0 %4217
        %4219 = vmax.xlane.f32.xlu0 %v4199
        %v4220 = vpop.xlane.xlu0 %4219
        %4221 = vmax.xlane.f32.xlu0 %v4200
        %v4222 = vpop.xlane.xlu0 %4221
        %4223 = vmax.xlane.f32.xlu0 %v4201
        %v4224 = vpop.xlane.xlu0 %4223
        %4225 = vmax.xlane.f32.xlu0 %v4202
        %v4226 = vpop.xlane.xlu0 %4225
        %4227 = vmax.xlane.f32.xlu0 %v4203
        %v4228 = vpop.xlane.xlu0 %4227
        %4229 = vmax.xlane.f32.xlu0 %v4204
        %v4230 = vpop.xlane.xlu0 %4229
        %4231 = vmax.xlane.f32.xlu0 %v4205
        %v4232 = vpop.xlane.xlu0 %4231
        %4233 = vmax.xlane.f32.xlu0 %v4206
        %v4234 = vpop.xlane.xlu0 %4233
        %4235 = vmax.xlane.f32.xlu0 %v4207
        %v4236 = vpop.xlane.xlu0 %4235
        %4237 = vmax.xlane.f32.xlu0 %v4208
        %v4238 = vpop.xlane.xlu0 %4237
        %4239 = vmax.xlane.f32.xlu0 %v4209
        %v4240 = vpop.xlane.xlu0 %4239
        %4241 = vmax.xlane.f32.xlu0 %v4210
        %v4242 = vpop.xlane.xlu0 %4241
        %v4243 = vsub.f32 %v4195, %v4212
        %v4244 = vsub.f32 %v4196, %v4214
        %v4245 = vsub.f32 %v4197, %v4216
        %v4246 = vsub.f32 %v4198, %v4218
        %v4247 = vsub.f32 %v4199, %v4220
        %v4248 = vsub.f32 %v4200, %v4222
        %v4249 = vsub.f32 %v4201, %v4224
        %v4250 = vsub.f32 %v4202, %v4226
        %v4251 = vsub.f32 %v4203, %v4228
        %v4252 = vsub.f32 %v4204, %v4230
        %v4253 = vsub.f32 %v4205, %v4232
        %v4254 = vsub.f32 %v4206, %v4234
        %v4255 = vsub.f32 %v4207, %v4236
        %v4256 = vsub.f32 %v4208, %v4238
        %v4257 = vsub.f32 %v4209, %v4240
        %v4258 = vsub.f32 %v4210, %v4242
        %v4259 = vmul.f32 %v4243, 1.442695
        %v4260 = vpow.pop %v4259
        %v4261 = vmul.f32 %v4244, 1.442695
        %v4262 = vpow.pop %v4261
        %v4263 = vmul.f32 %v4245, 1.442695
        %v4264 = vpow.pop %v4263
        %v4265 = vmul.f32 %v4246, 1.442695
        %v4266 = vpow.pop %v4265
        %v4267 = vmul.f32 %v4247, 1.442695
        %v4268 = vpow.pop %v4267
        %v4269 = vmul.f32 %v4248, 1.442695
        %v4270 = vpow.pop %v4269
        %v4271 = vmul.f32 %v4249, 1.442695
        %v4272 = vpow.pop %v4271
        %v4273 = vmul.f32 %v4250, 1.442695
        %v4274 = vpow.pop %v4273
        %v4275 = vmul.f32 %v4251, 1.442695
        %v4276 = vpow.pop %v4275
        %v4277 = vmul.f32 %v4252, 1.442695
        %v4278 = vpow.pop %v4277
        %v4279 = vmul.f32 %v4253, 1.442695
        %v4280 = vpow.pop %v4279
        %v4281 = vmul.f32 %v4254, 1.442695
        %v4282 = vpow.pop %v4281
        %v4283 = vmul.f32 %v4255, 1.442695
        %v4284 = vpow.pop %v4283
        %v4285 = vmul.f32 %v4256, 1.442695
        %v4286 = vpow.pop %v4285
        %v4287 = vmul.f32 %v4257, 1.442695
        %v4288 = vpow.pop %v4287
        %v4289 = vmul.f32 %v4258, 1.442695
        %v4290 = vpow.pop %v4289
        %4291 = vadd.xlane.f32.xlu0 %v4260
        %v4292 = vpop.xlane.xlu0 %4291
        %4293 = vadd.xlane.f32.xlu0 %v4262
        %v4294 = vpop.xlane.xlu0 %4293
        %4295 = vadd.xlane.f32.xlu0 %v4264
        %v4296 = vpop.xlane.xlu0 %4295
        %4297 = vadd.xlane.f32.xlu0 %v4266
        %v4298 = vpop.xlane.xlu0 %4297
        %4299 = vadd.xlane.f32.xlu0 %v4268
        %v4300 = vpop.xlane.xlu0 %4299
        %4301 = vadd.xlane.f32.xlu0 %v4270
        %v4302 = vpop.xlane.xlu0 %4301
        %4303 = vadd.xlane.f32.xlu0 %v4272
        %v4304 = vpop.xlane.xlu0 %4303
        %4305 = vadd.xlane.f32.xlu0 %v4274
        %v4306 = vpop.xlane.xlu0 %4305
        %4307 = vadd.xlane.f32.xlu0 %v4276
        %v4308 = vpop.xlane.xlu0 %4307
        %4309 = vadd.xlane.f32.xlu0 %v4278
        %v4310 = vpop.xlane.xlu0 %4309
        %4311 = vadd.xlane.f32.xlu0 %v4280
        %v4312 = vpop.xlane.xlu0 %4311
        %4313 = vadd.xlane.f32.xlu0 %v4282
        %v4314 = vpop.xlane.xlu0 %4313
        %4315 = vadd.xlane.f32.xlu0 %v4284
        %v4316 = vpop.xlane.xlu0 %4315
        %4317 = vadd.xlane.f32.xlu0 %v4286
        %v4318 = vpop.xlane.xlu0 %4317
        %4319 = vadd.xlane.f32.xlu0 %v4288
        %v4320 = vpop.xlane.xlu0 %4319
        %4321 = vadd.xlane.f32.xlu0 %v4290
        %v4322 = vpop.xlane.xlu0 %4321
        %v4323 = vrcp.pop %v4292
        %v4324 = vrcp.pop %v4294
        %v4325 = vrcp.pop %v4296
        %v4326 = vrcp.pop %v4298
        %v4327 = vrcp.pop %v4300
        %v4328 = vrcp.pop %v4302
        %v4329 = vrcp.pop %v4304
        %v4330 = vrcp.pop %v4306
        %v4331 = vrcp.pop %v4308
        %v4332 = vrcp.pop %v4310
        %v4333 = vrcp.pop %v4312
        %v4334 = vrcp.pop %v4314
        %v4335 = vrcp.pop %v4316
        %v4336 = vrcp.pop %v4318
        %v4337 = vrcp.pop %v4320
        %v4338 = vrcp.pop %v4322
        %v4339 = vmul.f32 %v4260, %v4323
        %v4340 = vmul.f32 %v4262, %v4324
        %v4341 = vmul.f32 %v4264, %v4325
        %v4342 = vmul.f32 %v4266, %v4326
        %v4343 = vmul.f32 %v4268, %v4327
        %v4344 = vmul.f32 %v4270, %v4328
        %v4345 = vmul.f32 %v4272, %v4329
        %v4346 = vmul.f32 %v4274, %v4330
        %v4347 = vmul.f32 %v4276, %v4331
        %v4348 = vmul.f32 %v4278, %v4332
        %v4349 = vmul.f32 %v4280, %v4333
        %v4350 = vmul.f32 %v4282, %v4334
        %v4351 = vmul.f32 %v4284, %v4335
        %v4352 = vmul.f32 %v4286, %v4336
        %v4353 = vmul.f32 %v4288, %v4337
        %v4354 = vmul.f32 %v4290, %v4338
        %v4355 = vpack.c.bf16 %v4340, %v4339
        %v4356 = vpack.c.bf16 %v4342, %v4341
        %v4357 = vpack.c.bf16 %v4344, %v4343
        %v4358 = vpack.c.bf16 %v4346, %v4345
        %v4359 = vpack.c.bf16 %v4348, %v4347
        %v4360 = vpack.c.bf16 %v4350, %v4349
        %v4361 = vpack.c.bf16 %v4352, %v4351
        %v4362 = vpack.c.bf16 %v4354, %v4353
        %4363 = vrot.lane.b32.xlu0 %v4001, 96
        %v4364 = vpop.permute.xlu0 %4363
        %4365 = vrot.lane.b32.xlu0 %v4002, 96
        %v4366 = vpop.permute.xlu0 %4365
        %4367 = vrot.lane.b32.xlu0 %v4003, 96
        %v4368 = vpop.permute.xlu0 %4367
        %4369 = vrot.lane.b32.xlu0 %v4004, 96
        %v4370 = vpop.permute.xlu0 %4369
        %4371 = vrot.lane.b32.xlu0 %v4005, 96
        %v4372 = vpop.permute.xlu0 %4371
        %4373 = vrot.lane.b32.xlu0 %v4006, 96
        %v4374 = vpop.permute.xlu0 %4373
        %4375 = vrot.lane.b32.xlu0 %v4007, 96
        %v4376 = vpop.permute.xlu0 %4375
        %4377 = vrot.lane.b32.xlu0 %v4008, 96
        %v4378 = vpop.permute.xlu0 %4377
        %4387 = vmatpush.bf16.msra.mxu0 %v4378
        %4388 = vmatpush.bf16.msra.mxu0 %v4376
        %4389 = vmatpush.bf16.msra.mxu0 %v4374
        %4390 = vmatpush.bf16.msra.mxu0 %v4372
        %4391 = vmatpush.bf16.msra.mxu0 %v4370
        %4392 = vmatpush.bf16.msra.mxu0 %v4368
        %4393 = vmatpush.bf16.msra.mxu0 %v4366
        %4394 = vmatpush.bf16.msra.mxu0 %v4364
        %4395 = vmatmul.bf16.gmra.mxu0 %v4355
        %v4396 = vpop.f32.mrf.mxu0
        %v4397 = vadd.f32 0.0, %v4396
        %v4398 = vpop.f32.mrf.mxu0
        %v4399 = vadd.f32 0.0, %v4398
        %4400 = vmatmul.bf16.gmra.mxu0 %v4356
        %v4401 = vpop.f32.mrf.mxu0
        %v4402 = vadd.f32 0.0, %v4401
        %v4403 = vpop.f32.mrf.mxu0
        %v4404 = vadd.f32 0.0, %v4403
        %4405 = vmatmul.bf16.gmra.mxu0 %v4357
        %v4406 = vpop.f32.mrf.mxu0
        %v4407 = vadd.f32 0.0, %v4406
        %v4408 = vpop.f32.mrf.mxu0
        %v4409 = vadd.f32 0.0, %v4408
        %4410 = vmatmul.bf16.gmra.mxu0 %v4358
        %v4411 = vpop.f32.mrf.mxu0
        %v4412 = vadd.f32 0.0, %v4411
        %v4413 = vpop.f32.mrf.mxu0
        %v4414 = vadd.f32 0.0, %v4413
        %4415 = vmatmul.bf16.gmra.mxu0 %v4359
        %v4416 = vpop.f32.mrf.mxu0
        %v4417 = vadd.f32 0.0, %v4416
        %v4418 = vpop.f32.mrf.mxu0
        %v4419 = vadd.f32 0.0, %v4418
        %4420 = vmatmul.bf16.gmra.mxu0 %v4360
        %v4421 = vpop.f32.mrf.mxu0
        %v4422 = vadd.f32 0.0, %v4421
        %v4423 = vpop.f32.mrf.mxu0
        %v4424 = vadd.f32 0.0, %v4423
        %4425 = vmatmul.bf16.gmra.mxu0 %v4361
        %v4426 = vpop.f32.mrf.mxu0
        %v4427 = vadd.f32 0.0, %v4426
        %v4428 = vpop.f32.mrf.mxu0
        %v4429 = vadd.f32 0.0, %v4428
        %4430 = vmatmul.bf16.gmra.mxu0 %v4362
        %v4431 = vpop.f32.mrf.mxu0
        %v4432 = vadd.f32 0.0, %v4431
        %v4433 = vpop.f32.mrf.mxu0
        %v4434 = vadd.f32 0.0, %v4433
        %4435 = vdwg.mxu0
        %4436 = vrot.lane.b32.xlu0 %v3672, 64
        %v4437 = vpop.permute.xlu0 %4436
        %4438 = vrot.lane.b32.xlu0 %v3673, 64
        %v4439 = vpop.permute.xlu0 %4438
        %4440 = vrot.lane.b32.xlu0 %v3674, 64
        %v4441 = vpop.permute.xlu0 %4440
        %4442 = vrot.lane.b32.xlu0 %v3675, 64
        %v4443 = vpop.permute.xlu0 %4442
        %4444 = vrot.lane.b32.xlu0 %v3676, 64
        %v4445 = vpop.permute.xlu0 %4444
        %4446 = vrot.lane.b32.xlu0 %v3677, 64
        %v4447 = vpop.permute.xlu0 %4446
        %4448 = vrot.lane.b32.xlu0 %v3678, 64
        %v4449 = vpop.permute.xlu0 %4448
        %4450 = vrot.lane.b32.xlu0 %v3679, 64
        %v4451 = vpop.permute.xlu0 %4450
        %4452 = vrot.lane.b32.xlu0 %v3696, 64
        %v4453 = vpop.permute.xlu0 %4452
        %4454 = vrot.lane.b32.xlu0 %v3697, 64
        %v4455 = vpop.permute.xlu0 %4454
        %4456 = vrot.lane.b32.xlu0 %v3698, 64
        %v4457 = vpop.permute.xlu0 %4456
        %4458 = vrot.lane.b32.xlu0 %v3699, 64
        %v4459 = vpop.permute.xlu0 %4458
        %4460 = vrot.lane.b32.xlu0 %v3700, 64
        %v4461 = vpop.permute.xlu0 %4460
        %4462 = vrot.lane.b32.xlu0 %v3701, 64
        %v4463 = vpop.permute.xlu0 %4462
        %4464 = vrot.lane.b32.xlu0 %v3702, 64
        %v4465 = vpop.permute.xlu0 %4464
        %4466 = vrot.lane.b32.xlu0 %v3703, 64
        %v4467 = vpop.permute.xlu0 %4466
        %v4469 = vsel %vm1826, %v4437, 0
        %v4472 = vsel %vm1826, %v4439, 0
        %v4475 = vsel %vm1826, %v4441, 0
        %v4478 = vsel %vm1826, %v4443, 0
        %v4481 = vsel %vm1826, %v4445, 0
        %v4484 = vsel %vm1826, %v4447, 0
        %v4487 = vsel %vm1826, %v4449, 0
        %v4490 = vsel %vm1826, %v4451, 0
        %v4493 = vsel %vm1826, %v4453, 0
        %v4496 = vsel %vm1826, %v4455, 0
        %v4499 = vsel %vm1826, %v4457, 0
        %v4502 = vsel %vm1826, %v4459, 0
        %v4505 = vsel %vm1826, %v4461, 0
        %v4508 = vsel %vm1826, %v4463, 0
        %v4511 = vsel %vm1826, %v4465, 0
        %v4514 = vsel %vm1826, %v4467, 0
        %4516 = vmatpush.bf16.xpose.msra.mxu0 %v4514
        %4517 = vmatpush.bf16.xpose.msra.mxu0 %v4511
        %4518 = vmatpush.bf16.xpose.msra.mxu0 %v4508
        %4519 = vmatpush.bf16.xpose.msra.mxu0 %v4505
        %4520 = vmatpush.bf16.xpose.msra.mxu0 %v4502
        %4521 = vmatpush.bf16.xpose.msra.mxu0 %v4499
        %4522 = vmatpush.bf16.xpose.msra.mxu0 %v4496
        %4523 = vmatpush.bf16.xpose.msra.mxu0 %v4493
        %4524 = vmatmul.bf16.gmra.mxu0 %v4469
        %v4525 = vpop.f32.mrf.mxu0
        %v4526 = vadd.f32 %v2609, %v4525
        %v4527 = vpop.f32.mrf.mxu0
        %v4528 = vadd.f32 %v2610, %v4527
        %4529 = vmatmul.bf16.gmra.mxu0 %v4472
        %v4530 = vpop.f32.mrf.mxu0
        %v4531 = vadd.f32 %v2611, %v4530
        %v4532 = vpop.f32.mrf.mxu0
        %v4533 = vadd.f32 %v2612, %v4532
        %4534 = vmatmul.bf16.gmra.mxu0 %v4475
        %v4535 = vpop.f32.mrf.mxu0
        %v4536 = vadd.f32 %v2613, %v4535
        %v4537 = vpop.f32.mrf.mxu0
        %v4538 = vadd.f32 %v2614, %v4537
        %4539 = vmatmul.bf16.gmra.mxu0 %v4478
        %v4540 = vpop.f32.mrf.mxu0
        %v4541 = vadd.f32 %v2615, %v4540
        %v4542 = vpop.f32.mrf.mxu0
        %v4543 = vadd.f32 %v2616, %v4542
        %4544 = vmatmul.bf16.gmra.mxu0 %v4481
        %v4545 = vpop.f32.mrf.mxu0
        %v4546 = vadd.f32 %v2617, %v4545
        %v4547 = vpop.f32.mrf.mxu0
        %v4548 = vadd.f32 %v2618, %v4547
        %4549 = vmatmul.bf16.gmra.mxu0 %v4484
        %v4550 = vpop.f32.mrf.mxu0
        %v4551 = vadd.f32 %v2619, %v4550
        %v4552 = vpop.f32.mrf.mxu0
        %v4553 = vadd.f32 %v2620, %v4552
        %4554 = vmatmul.bf16.gmra.mxu0 %v4487
        %v4555 = vpop.f32.mrf.mxu0
        %v4556 = vadd.f32 %v2621, %v4555
        %v4557 = vpop.f32.mrf.mxu0
        %v4558 = vadd.f32 %v2622, %v4557
        %4559 = vmatmul.bf16.gmra.mxu0 %v4490
        %v4560 = vpop.f32.mrf.mxu0
        %v4561 = vadd.f32 %v2623, %v4560
        %v4562 = vpop.f32.mrf.mxu0
        %v4563 = vadd.f32 %v2624, %v4562
        %4564 = vdwg.mxu0
        %v4565 = vadd.f32 %v4526, %v667
        %v4566 = vadd.f32 %v4528, %v667
        %v4567 = vadd.f32 %v4531, %v667
        %v4568 = vadd.f32 %v4533, %v667
        %v4569 = vadd.f32 %v4536, %v667
        %v4570 = vadd.f32 %v4538, %v667
        %v4571 = vadd.f32 %v4541, %v667
        %v4572 = vadd.f32 %v4543, %v667
        %v4573 = vadd.f32 %v4546, %v667
        %v4574 = vadd.f32 %v4548, %v667
        %v4575 = vadd.f32 %v4551, %v667
        %v4576 = vadd.f32 %v4553, %v667
        %v4577 = vadd.f32 %v4556, %v667
        %v4578 = vadd.f32 %v4558, %v667
        %v4579 = vadd.f32 %v4561, %v667
        %v4580 = vadd.f32 %v4563, %v667
        %4581 = vmax.xlane.f32.xlu0 %v4565
        %v4582 = vpop.xlane.xlu0 %4581
        %4583 = vmax.xlane.f32.xlu0 %v4566
        %v4584 = vpop.xlane.xlu0 %4583
        %4585 = vmax.xlane.f32.xlu0 %v4567
        %v4586 = vpop.xlane.xlu0 %4585
        %4587 = vmax.xlane.f32.xlu0 %v4568
        %v4588 = vpop.xlane.xlu0 %4587
        %4589 = vmax.xlane.f32.xlu0 %v4569
        %v4590 = vpop.xlane.xlu0 %4589
        %4591 = vmax.xlane.f32.xlu0 %v4570
        %v4592 = vpop.xlane.xlu0 %4591
        %4593 = vmax.xlane.f32.xlu0 %v4571
        %v4594 = vpop.xlane.xlu0 %4593
        %4595 = vmax.xlane.f32.xlu0 %v4572
        %v4596 = vpop.xlane.xlu0 %4595
        %4597 = vmax.xlane.f32.xlu0 %v4573
        %v4598 = vpop.xlane.xlu0 %4597
        %4599 = vmax.xlane.f32.xlu0 %v4574
        %v4600 = vpop.xlane.xlu0 %4599
        %4601 = vmax.xlane.f32.xlu0 %v4575
        %v4602 = vpop.xlane.xlu0 %4601
        %4603 = vmax.xlane.f32.xlu0 %v4576
        %v4604 = vpop.xlane.xlu0 %4603
        %4605 = vmax.xlane.f32.xlu0 %v4577
        %v4606 = vpop.xlane.xlu0 %4605
        %4607 = vmax.xlane.f32.xlu0 %v4578
        %v4608 = vpop.xlane.xlu0 %4607
        %4609 = vmax.xlane.f32.xlu0 %v4579
        %v4610 = vpop.xlane.xlu0 %4609
        %4611 = vmax.xlane.f32.xlu0 %v4580
        %v4612 = vpop.xlane.xlu0 %4611
        %v4613 = vsub.f32 %v4565, %v4582
        %v4614 = vsub.f32 %v4566, %v4584
        %v4615 = vsub.f32 %v4567, %v4586
        %v4616 = vsub.f32 %v4568, %v4588
        %v4617 = vsub.f32 %v4569, %v4590
        %v4618 = vsub.f32 %v4570, %v4592
        %v4619 = vsub.f32 %v4571, %v4594
        %v4620 = vsub.f32 %v4572, %v4596
        %v4621 = vsub.f32 %v4573, %v4598
        %v4622 = vsub.f32 %v4574, %v4600
        %v4623 = vsub.f32 %v4575, %v4602
        %v4624 = vsub.f32 %v4576, %v4604
        %v4625 = vsub.f32 %v4577, %v4606
        %v4626 = vsub.f32 %v4578, %v4608
        %v4627 = vsub.f32 %v4579, %v4610
        %v4628 = vsub.f32 %v4580, %v4612
        %v4629 = vmul.f32 %v4613, 1.442695
        %v4630 = vpow.pop %v4629
        %v4631 = vmul.f32 %v4614, 1.442695
        %v4632 = vpow.pop %v4631
        %v4633 = vmul.f32 %v4615, 1.442695
        %v4634 = vpow.pop %v4633
        %v4635 = vmul.f32 %v4616, 1.442695
        %v4636 = vpow.pop %v4635
        %v4637 = vmul.f32 %v4617, 1.442695
        %v4638 = vpow.pop %v4637
        %v4639 = vmul.f32 %v4618, 1.442695
        %v4640 = vpow.pop %v4639
        %v4641 = vmul.f32 %v4619, 1.442695
        %v4642 = vpow.pop %v4641
        %v4643 = vmul.f32 %v4620, 1.442695
        %v4644 = vpow.pop %v4643
        %v4645 = vmul.f32 %v4621, 1.442695
        %v4646 = vpow.pop %v4645
        %v4647 = vmul.f32 %v4622, 1.442695
        %v4648 = vpow.pop %v4647
        %v4649 = vmul.f32 %v4623, 1.442695
        %v4650 = vpow.pop %v4649
        %v4651 = vmul.f32 %v4624, 1.442695
        %v4652 = vpow.pop %v4651
        %v4653 = vmul.f32 %v4625, 1.442695
        %v4654 = vpow.pop %v4653
        %v4655 = vmul.f32 %v4626, 1.442695
        %v4656 = vpow.pop %v4655
        %v4657 = vmul.f32 %v4627, 1.442695
        %v4658 = vpow.pop %v4657
        %v4659 = vmul.f32 %v4628, 1.442695
        %v4660 = vpow.pop %v4659
        %4661 = vadd.xlane.f32.xlu0 %v4630
        %v4662 = vpop.xlane.xlu0 %4661
        %4663 = vadd.xlane.f32.xlu0 %v4632
        %v4664 = vpop.xlane.xlu0 %4663
        %4665 = vadd.xlane.f32.xlu0 %v4634
        %v4666 = vpop.xlane.xlu0 %4665
        %4667 = vadd.xlane.f32.xlu0 %v4636
        %v4668 = vpop.xlane.xlu0 %4667
        %4669 = vadd.xlane.f32.xlu0 %v4638
        %v4670 = vpop.xlane.xlu0 %4669
        %4671 = vadd.xlane.f32.xlu0 %v4640
        %v4672 = vpop.xlane.xlu0 %4671
        %4673 = vadd.xlane.f32.xlu0 %v4642
        %v4674 = vpop.xlane.xlu0 %4673
        %4675 = vadd.xlane.f32.xlu0 %v4644
        %v4676 = vpop.xlane.xlu0 %4675
        %4677 = vadd.xlane.f32.xlu0 %v4646
        %v4678 = vpop.xlane.xlu0 %4677
        %4679 = vadd.xlane.f32.xlu0 %v4648
        %v4680 = vpop.xlane.xlu0 %4679
        %4681 = vadd.xlane.f32.xlu0 %v4650
        %v4682 = vpop.xlane.xlu0 %4681
        %4683 = vadd.xlane.f32.xlu0 %v4652
        %v4684 = vpop.xlane.xlu0 %4683
        %4685 = vadd.xlane.f32.xlu0 %v4654
        %v4686 = vpop.xlane.xlu0 %4685
        %4687 = vadd.xlane.f32.xlu0 %v4656
        %v4688 = vpop.xlane.xlu0 %4687
        %4689 = vadd.xlane.f32.xlu0 %v4658
        %v4690 = vpop.xlane.xlu0 %4689
        %4691 = vadd.xlane.f32.xlu0 %v4660
        %v4692 = vpop.xlane.xlu0 %4691
        %v4693 = vrcp.pop %v4662
        %v4694 = vrcp.pop %v4664
        %v4695 = vrcp.pop %v4666
        %v4696 = vrcp.pop %v4668
        %v4697 = vrcp.pop %v4670
        %v4698 = vrcp.pop %v4672
        %v4699 = vrcp.pop %v4674
        %v4700 = vrcp.pop %v4676
        %v4701 = vrcp.pop %v4678
        %v4702 = vrcp.pop %v4680
        %v4703 = vrcp.pop %v4682
        %v4704 = vrcp.pop %v4684
        %v4705 = vrcp.pop %v4686
        %v4706 = vrcp.pop %v4688
        %v4707 = vrcp.pop %v4690
        %v4708 = vrcp.pop %v4692
        %v4709 = vmul.f32 %v4630, %v4693
        %v4710 = vmul.f32 %v4632, %v4694
        %v4711 = vmul.f32 %v4634, %v4695
        %v4712 = vmul.f32 %v4636, %v4696
        %v4713 = vmul.f32 %v4638, %v4697
        %v4714 = vmul.f32 %v4640, %v4698
        %v4715 = vmul.f32 %v4642, %v4699
        %v4716 = vmul.f32 %v4644, %v4700
        %v4717 = vmul.f32 %v4646, %v4701
        %v4718 = vmul.f32 %v4648, %v4702
        %v4719 = vmul.f32 %v4650, %v4703
        %v4720 = vmul.f32 %v4652, %v4704
        %v4721 = vmul.f32 %v4654, %v4705
        %v4722 = vmul.f32 %v4656, %v4706
        %v4723 = vmul.f32 %v4658, %v4707
        %v4724 = vmul.f32 %v4660, %v4708
        %v4725 = vpack.c.bf16 %v4710, %v4709
        %v4726 = vpack.c.bf16 %v4712, %v4711
        %v4727 = vpack.c.bf16 %v4714, %v4713
        %v4728 = vpack.c.bf16 %v4716, %v4715
        %v4729 = vpack.c.bf16 %v4718, %v4717
        %v4730 = vpack.c.bf16 %v4720, %v4719
        %v4731 = vpack.c.bf16 %v4722, %v4721
        %v4732 = vpack.c.bf16 %v4724, %v4723
        %4733 = vrot.lane.b32.xlu0 %v4001, 64
        %v4734 = vpop.permute.xlu0 %4733
        %4735 = vrot.lane.b32.xlu0 %v4002, 64
        %v4736 = vpop.permute.xlu0 %4735
        %4737 = vrot.lane.b32.xlu0 %v4003, 64
        %v4738 = vpop.permute.xlu0 %4737
        %4739 = vrot.lane.b32.xlu0 %v4004, 64
        %v4740 = vpop.permute.xlu0 %4739
        %4741 = vrot.lane.b32.xlu0 %v4005, 64
        %v4742 = vpop.permute.xlu0 %4741
        %4743 = vrot.lane.b32.xlu0 %v4006, 64
        %v4744 = vpop.permute.xlu0 %4743
        %4745 = vrot.lane.b32.xlu0 %v4007, 64
        %v4746 = vpop.permute.xlu0 %4745
        %4747 = vrot.lane.b32.xlu0 %v4008, 64
        %v4748 = vpop.permute.xlu0 %4747
        %4757 = vmatpush.bf16.msra.mxu0 %v4748
        %4758 = vmatpush.bf16.msra.mxu0 %v4746
        %4759 = vmatpush.bf16.msra.mxu0 %v4744
        %4760 = vmatpush.bf16.msra.mxu0 %v4742
        %4761 = vmatpush.bf16.msra.mxu0 %v4740
        %4762 = vmatpush.bf16.msra.mxu0 %v4738
        %4763 = vmatpush.bf16.msra.mxu0 %v4736
        %4764 = vmatpush.bf16.msra.mxu0 %v4734
        %4765 = vmatmul.bf16.gmra.mxu0 %v4725
        %v4766 = vpop.f32.mrf.mxu0
        %v4767 = vadd.f32 0.0, %v4766
        %v4768 = vpop.f32.mrf.mxu0
        %v4769 = vadd.f32 0.0, %v4768
        %4770 = vmatmul.bf16.gmra.mxu0 %v4726
        %v4771 = vpop.f32.mrf.mxu0
        %v4772 = vadd.f32 0.0, %v4771
        %v4773 = vpop.f32.mrf.mxu0
        %v4774 = vadd.f32 0.0, %v4773
        %4775 = vmatmul.bf16.gmra.mxu0 %v4727
        %v4776 = vpop.f32.mrf.mxu0
        %v4777 = vadd.f32 0.0, %v4776
        %v4778 = vpop.f32.mrf.mxu0
        %v4779 = vadd.f32 0.0, %v4778
        %4780 = vmatmul.bf16.gmra.mxu0 %v4728
        %v4781 = vpop.f32.mrf.mxu0
        %v4782 = vadd.f32 0.0, %v4781
        %v4783 = vpop.f32.mrf.mxu0
        %v4784 = vadd.f32 0.0, %v4783
        %4785 = vmatmul.bf16.gmra.mxu0 %v4729
        %v4786 = vpop.f32.mrf.mxu0
        %v4787 = vadd.f32 0.0, %v4786
        %v4788 = vpop.f32.mrf.mxu0
        %v4789 = vadd.f32 0.0, %v4788
        %4790 = vmatmul.bf16.gmra.mxu0 %v4730
        %v4791 = vpop.f32.mrf.mxu0
        %v4792 = vadd.f32 0.0, %v4791
        %v4793 = vpop.f32.mrf.mxu0
        %v4794 = vadd.f32 0.0, %v4793
        %4795 = vmatmul.bf16.gmra.mxu0 %v4731
        %v4796 = vpop.f32.mrf.mxu0
        %v4797 = vadd.f32 0.0, %v4796
        %v4798 = vpop.f32.mrf.mxu0
        %v4799 = vadd.f32 0.0, %v4798
        %4800 = vmatmul.bf16.gmra.mxu0 %v4732
        %v4801 = vpop.f32.mrf.mxu0
        %v4802 = vadd.f32 0.0, %v4801
        %v4803 = vpop.f32.mrf.mxu0
        %v4804 = vadd.f32 0.0, %v4803
        %4805 = vdwg.mxu0
        %4806 = vrot.lane.b32.xlu0 %v3672, 32
        %v4807 = vpop.permute.xlu0 %4806
        %4808 = vrot.lane.b32.xlu0 %v3673, 32
        %v4809 = vpop.permute.xlu0 %4808
        %4810 = vrot.lane.b32.xlu0 %v3674, 32
        %v4811 = vpop.permute.xlu0 %4810
        %4812 = vrot.lane.b32.xlu0 %v3675, 32
        %v4813 = vpop.permute.xlu0 %4812
        %4814 = vrot.lane.b32.xlu0 %v3676, 32
        %v4815 = vpop.permute.xlu0 %4814
        %4816 = vrot.lane.b32.xlu0 %v3677, 32
        %v4817 = vpop.permute.xlu0 %4816
        %4818 = vrot.lane.b32.xlu0 %v3678, 32
        %v4819 = vpop.permute.xlu0 %4818
        %4820 = vrot.lane.b32.xlu0 %v3679, 32
        %v4821 = vpop.permute.xlu0 %4820
        %4822 = vrot.lane.b32.xlu0 %v3696, 32
        %v4823 = vpop.permute.xlu0 %4822
        %4824 = vrot.lane.b32.xlu0 %v3697, 32
        %v4825 = vpop.permute.xlu0 %4824
        %4826 = vrot.lane.b32.xlu0 %v3698, 32
        %v4827 = vpop.permute.xlu0 %4826
        %4828 = vrot.lane.b32.xlu0 %v3699, 32
        %v4829 = vpop.permute.xlu0 %4828
        %4830 = vrot.lane.b32.xlu0 %v3700, 32
        %v4831 = vpop.permute.xlu0 %4830
        %4832 = vrot.lane.b32.xlu0 %v3701, 32
        %v4833 = vpop.permute.xlu0 %4832
        %4834 = vrot.lane.b32.xlu0 %v3702, 32
        %v4835 = vpop.permute.xlu0 %4834
        %4836 = vrot.lane.b32.xlu0 %v3703, 32
        %v4837 = vpop.permute.xlu0 %4836
        %v4839 = vsel %vm1826, %v4807, 0
        %v4842 = vsel %vm1826, %v4809, 0
        %v4845 = vsel %vm1826, %v4811, 0
        %v4848 = vsel %vm1826, %v4813, 0
        %v4851 = vsel %vm1826, %v4815, 0
        %v4854 = vsel %vm1826, %v4817, 0
        %v4857 = vsel %vm1826, %v4819, 0
        %v4860 = vsel %vm1826, %v4821, 0
        %v4863 = vsel %vm1826, %v4823, 0
        %v4866 = vsel %vm1826, %v4825, 0
        %v4869 = vsel %vm1826, %v4827, 0
        %v4872 = vsel %vm1826, %v4829, 0
        %v4875 = vsel %vm1826, %v4831, 0
        %v4878 = vsel %vm1826, %v4833, 0
        %v4881 = vsel %vm1826, %v4835, 0
        %v4884 = vsel %vm1826, %v4837, 0
        %4886 = vmatpush.bf16.xpose.msra.mxu0 %v4884
        %4887 = vmatpush.bf16.xpose.msra.mxu0 %v4881
        %4888 = vmatpush.bf16.xpose.msra.mxu0 %v4878
        %4889 = vmatpush.bf16.xpose.msra.mxu0 %v4875
        %4890 = vmatpush.bf16.xpose.msra.mxu0 %v4872
        %4891 = vmatpush.bf16.xpose.msra.mxu0 %v4869
        %4892 = vmatpush.bf16.xpose.msra.mxu0 %v4866
        %4893 = vmatpush.bf16.xpose.msra.mxu0 %v4863
        %4894 = vmatmul.bf16.gmra.mxu0 %v4839
        %v4895 = vpop.f32.mrf.mxu0
        %v4896 = vadd.f32 %v3012, %v4895
        %v4897 = vpop.f32.mrf.mxu0
        %v4898 = vadd.f32 %v3013, %v4897
        %4899 = vmatmul.bf16.gmra.mxu0 %v4842
        %v4900 = vpop.f32.mrf.mxu0
        %v4901 = vadd.f32 %v3014, %v4900
        %v4902 = vpop.f32.mrf.mxu0
        %v4903 = vadd.f32 %v3015, %v4902
        %4904 = vmatmul.bf16.gmra.mxu0 %v4845
        %v4905 = vpop.f32.mrf.mxu0
        %v4906 = vadd.f32 %v3016, %v4905
        %v4907 = vpop.f32.mrf.mxu0
        %v4908 = vadd.f32 %v3017, %v4907
        %4909 = vmatmul.bf16.gmra.mxu0 %v4848
        %v4910 = vpop.f32.mrf.mxu0
        %v4911 = vadd.f32 %v3018, %v4910
        %v4912 = vpop.f32.mrf.mxu0
        %v4913 = vadd.f32 %v3019, %v4912
        %4914 = vmatmul.bf16.gmra.mxu0 %v4851
        %v4915 = vpop.f32.mrf.mxu0
        %v4916 = vadd.f32 %v3020, %v4915
        %v4917 = vpop.f32.mrf.mxu0
        %v4918 = vadd.f32 %v3021, %v4917
        %4919 = vmatmul.bf16.gmra.mxu0 %v4854
        %v4920 = vpop.f32.mrf.mxu0
        %v4921 = vadd.f32 %v3022, %v4920
        %v4922 = vpop.f32.mrf.mxu0
        %v4923 = vadd.f32 %v3023, %v4922
        %4924 = vmatmul.bf16.gmra.mxu0 %v4857
        %v4925 = vpop.f32.mrf.mxu0
        %v4926 = vadd.f32 %v3024, %v4925
        %v4927 = vpop.f32.mrf.mxu0
        %v4928 = vadd.f32 %v3025, %v4927
        %4929 = vmatmul.bf16.gmra.mxu0 %v4860
        %v4930 = vpop.f32.mrf.mxu0
        %v4931 = vadd.f32 %v3026, %v4930
        %v4932 = vpop.f32.mrf.mxu0
        %v4933 = vadd.f32 %v3027, %v4932
        %4934 = vdwg.mxu0
        %v4935 = vadd.f32 %v4896, %v667
        %v4936 = vadd.f32 %v4898, %v667
        %v4937 = vadd.f32 %v4901, %v667
        %v4938 = vadd.f32 %v4903, %v667
        %v4939 = vadd.f32 %v4906, %v667
        %v4940 = vadd.f32 %v4908, %v667
        %v4941 = vadd.f32 %v4911, %v667
        %v4942 = vadd.f32 %v4913, %v667
        %v4943 = vadd.f32 %v4916, %v667
        %v4944 = vadd.f32 %v4918, %v667
        %v4945 = vadd.f32 %v4921, %v667
        %v4946 = vadd.f32 %v4923, %v667
        %v4947 = vadd.f32 %v4926, %v667
        %v4948 = vadd.f32 %v4928, %v667
        %v4949 = vadd.f32 %v4931, %v667
        %v4950 = vadd.f32 %v4933, %v667
        %4951 = vmax.xlane.f32.xlu0 %v4935
        %v4952 = vpop.xlane.xlu0 %4951
        %4953 = vmax.xlane.f32.xlu0 %v4936
        %v4954 = vpop.xlane.xlu0 %4953
        %4955 = vmax.xlane.f32.xlu0 %v4937
        %v4956 = vpop.xlane.xlu0 %4955
        %4957 = vmax.xlane.f32.xlu0 %v4938
        %v4958 = vpop.xlane.xlu0 %4957
        %4959 = vmax.xlane.f32.xlu0 %v4939
        %v4960 = vpop.xlane.xlu0 %4959
        %4961 = vmax.xlane.f32.xlu0 %v4940
        %v4962 = vpop.xlane.xlu0 %4961
        %4963 = vmax.xlane.f32.xlu0 %v4941
        %v4964 = vpop.xlane.xlu0 %4963
        %4965 = vmax.xlane.f32.xlu0 %v4942
        %v4966 = vpop.xlane.xlu0 %4965
        %4967 = vmax.xlane.f32.xlu0 %v4943
        %v4968 = vpop.xlane.xlu0 %4967
        %4969 = vmax.xlane.f32.xlu0 %v4944
        %v4970 = vpop.xlane.xlu0 %4969
        %4971 = vmax.xlane.f32.xlu0 %v4945
        %v4972 = vpop.xlane.xlu0 %4971
        %4973 = vmax.xlane.f32.xlu0 %v4946
        %v4974 = vpop.xlane.xlu0 %4973
        %4975 = vmax.xlane.f32.xlu0 %v4947
        %v4976 = vpop.xlane.xlu0 %4975
        %4977 = vmax.xlane.f32.xlu0 %v4948
        %v4978 = vpop.xlane.xlu0 %4977
        %4979 = vmax.xlane.f32.xlu0 %v4949
        %v4980 = vpop.xlane.xlu0 %4979
        %4981 = vmax.xlane.f32.xlu0 %v4950
        %v4982 = vpop.xlane.xlu0 %4981
        %v4983 = vsub.f32 %v4935, %v4952
        %v4984 = vsub.f32 %v4936, %v4954
        %v4985 = vsub.f32 %v4937, %v4956
        %v4986 = vsub.f32 %v4938, %v4958
        %v4987 = vsub.f32 %v4939, %v4960
        %v4988 = vsub.f32 %v4940, %v4962
        %v4989 = vsub.f32 %v4941, %v4964
        %v4990 = vsub.f32 %v4942, %v4966
        %v4991 = vsub.f32 %v4943, %v4968
        %v4992 = vsub.f32 %v4944, %v4970
        %v4993 = vsub.f32 %v4945, %v4972
        %v4994 = vsub.f32 %v4946, %v4974
        %v4995 = vsub.f32 %v4947, %v4976
        %v4996 = vsub.f32 %v4948, %v4978
        %v4997 = vsub.f32 %v4949, %v4980
        %v4998 = vsub.f32 %v4950, %v4982
        %v4999 = vmul.f32 %v4983, 1.442695
        %v5000 = vpow.pop %v4999
        %v5001 = vmul.f32 %v4984, 1.442695
        %v5002 = vpow.pop %v5001
        %v5003 = vmul.f32 %v4985, 1.442695
        %v5004 = vpow.pop %v5003
        %v5005 = vmul.f32 %v4986, 1.442695
        %v5006 = vpow.pop %v5005
        %v5007 = vmul.f32 %v4987, 1.442695
        %v5008 = vpow.pop %v5007
        %v5009 = vmul.f32 %v4988, 1.442695
        %v5010 = vpow.pop %v5009
        %v5011 = vmul.f32 %v4989, 1.442695
        %v5012 = vpow.pop %v5011
        %v5013 = vmul.f32 %v4990, 1.442695
        %v5014 = vpow.pop %v5013
        %v5015 = vmul.f32 %v4991, 1.442695
        %v5016 = vpow.pop %v5015
        %v5017 = vmul.f32 %v4992, 1.442695
        %v5018 = vpow.pop %v5017
        %v5019 = vmul.f32 %v4993, 1.442695
        %v5020 = vpow.pop %v5019
        %v5021 = vmul.f32 %v4994, 1.442695
        %v5022 = vpow.pop %v5021
        %v5023 = vmul.f32 %v4995, 1.442695
        %v5024 = vpow.pop %v5023
        %v5025 = vmul.f32 %v4996, 1.442695
        %v5026 = vpow.pop %v5025
        %v5027 = vmul.f32 %v4997, 1.442695
        %v5028 = vpow.pop %v5027
        %v5029 = vmul.f32 %v4998, 1.442695
        %v5030 = vpow.pop %v5029
        %5031 = vadd.xlane.f32.xlu0 %v5000
        %v5032 = vpop.xlane.xlu0 %5031
        %5033 = vadd.xlane.f32.xlu0 %v5002
        %v5034 = vpop.xlane.xlu0 %5033
        %5035 = vadd.xlane.f32.xlu0 %v5004
        %v5036 = vpop.xlane.xlu0 %5035
        %5037 = vadd.xlane.f32.xlu0 %v5006
        %v5038 = vpop.xlane.xlu0 %5037
        %5039 = vadd.xlane.f32.xlu0 %v5008
        %v5040 = vpop.xlane.xlu0 %5039
        %5041 = vadd.xlane.f32.xlu0 %v5010
        %v5042 = vpop.xlane.xlu0 %5041
        %5043 = vadd.xlane.f32.xlu0 %v5012
        %v5044 = vpop.xlane.xlu0 %5043
        %5045 = vadd.xlane.f32.xlu0 %v5014
        %v5046 = vpop.xlane.xlu0 %5045
        %5047 = vadd.xlane.f32.xlu0 %v5016
        %v5048 = vpop.xlane.xlu0 %5047
        %5049 = vadd.xlane.f32.xlu0 %v5018
        %v5050 = vpop.xlane.xlu0 %5049
        %5051 = vadd.xlane.f32.xlu0 %v5020
        %v5052 = vpop.xlane.xlu0 %5051
        %5053 = vadd.xlane.f32.xlu0 %v5022
        %v5054 = vpop.xlane.xlu0 %5053
        %5055 = vadd.xlane.f32.xlu0 %v5024
        %v5056 = vpop.xlane.xlu0 %5055
        %5057 = vadd.xlane.f32.xlu0 %v5026
        %v5058 = vpop.xlane.xlu0 %5057
        %5059 = vadd.xlane.f32.xlu0 %v5028
        %v5060 = vpop.xlane.xlu0 %5059
        %5061 = vadd.xlane.f32.xlu0 %v5030
        %v5062 = vpop.xlane.xlu0 %5061
        %v5063 = vrcp.pop %v5032
        %v5064 = vrcp.pop %v5034
        %v5065 = vrcp.pop %v5036
        %v5066 = vrcp.pop %v5038
        %v5067 = vrcp.pop %v5040
        %v5068 = vrcp.pop %v5042
        %v5069 = vrcp.pop %v5044
        %v5070 = vrcp.pop %v5046
        %v5071 = vrcp.pop %v5048
        %v5072 = vrcp.pop %v5050
        %v5073 = vrcp.pop %v5052
        %v5074 = vrcp.pop %v5054
        %v5075 = vrcp.pop %v5056
        %v5076 = vrcp.pop %v5058
        %v5077 = vrcp.pop %v5060
        %v5078 = vrcp.pop %v5062
        %v5079 = vmul.f32 %v5000, %v5063
        %v5080 = vmul.f32 %v5002, %v5064
        %v5081 = vmul.f32 %v5004, %v5065
        %v5082 = vmul.f32 %v5006, %v5066
        %v5083 = vmul.f32 %v5008, %v5067
        %v5084 = vmul.f32 %v5010, %v5068
        %v5085 = vmul.f32 %v5012, %v5069
        %v5086 = vmul.f32 %v5014, %v5070
        %v5087 = vmul.f32 %v5016, %v5071
        %v5088 = vmul.f32 %v5018, %v5072
        %v5089 = vmul.f32 %v5020, %v5073
        %v5090 = vmul.f32 %v5022, %v5074
        %v5091 = vmul.f32 %v5024, %v5075
        %v5092 = vmul.f32 %v5026, %v5076
        %v5093 = vmul.f32 %v5028, %v5077
        %v5094 = vmul.f32 %v5030, %v5078
        %v5095 = vpack.c.bf16 %v5080, %v5079
        %v5096 = vpack.c.bf16 %v5082, %v5081
        %v5097 = vpack.c.bf16 %v5084, %v5083
        %v5098 = vpack.c.bf16 %v5086, %v5085
        %v5099 = vpack.c.bf16 %v5088, %v5087
        %v5100 = vpack.c.bf16 %v5090, %v5089
        %v5101 = vpack.c.bf16 %v5092, %v5091
        %v5102 = vpack.c.bf16 %v5094, %v5093
        %5103 = vrot.lane.b32.xlu0 %v4001, 32
        %v5104 = vpop.permute.xlu0 %5103
        %5105 = vrot.lane.b32.xlu0 %v4002, 32
        %v5106 = vpop.permute.xlu0 %5105
        %5107 = vrot.lane.b32.xlu0 %v4003, 32
        %v5108 = vpop.permute.xlu0 %5107
        %5109 = vrot.lane.b32.xlu0 %v4004, 32
        %v5110 = vpop.permute.xlu0 %5109
        %5111 = vrot.lane.b32.xlu0 %v4005, 32
        %v5112 = vpop.permute.xlu0 %5111
        %5113 = vrot.lane.b32.xlu0 %v4006, 32
        %v5114 = vpop.permute.xlu0 %5113
        %5115 = vrot.lane.b32.xlu0 %v4007, 32
        %v5116 = vpop.permute.xlu0 %5115
        %5117 = vrot.lane.b32.xlu0 %v4008, 32
        %v5118 = vpop.permute.xlu0 %5117
        %5127 = vmatpush.bf16.msra.mxu0 %v5118
        %5128 = vmatpush.bf16.msra.mxu0 %v5116
        %5129 = vmatpush.bf16.msra.mxu0 %v5114
        %5130 = vmatpush.bf16.msra.mxu0 %v5112
        %5131 = vmatpush.bf16.msra.mxu0 %v5110
        %5132 = vmatpush.bf16.msra.mxu0 %v5108
        %5133 = vmatpush.bf16.msra.mxu0 %v5106
        %5134 = vmatpush.bf16.msra.mxu0 %v5104
        %5135 = vmatmul.bf16.gmra.mxu0 %v5095
        %v5136 = vpop.f32.mrf.mxu0
        %v5137 = vadd.f32 0.0, %v5136
        %v5138 = vpop.f32.mrf.mxu0
        %v5139 = vadd.f32 0.0, %v5138
        %5140 = vmatmul.bf16.gmra.mxu0 %v5096
        %v5141 = vpop.f32.mrf.mxu0
        %v5142 = vadd.f32 0.0, %v5141
        %v5143 = vpop.f32.mrf.mxu0
        %v5144 = vadd.f32 0.0, %v5143
        %5145 = vmatmul.bf16.gmra.mxu0 %v5097
        %v5146 = vpop.f32.mrf.mxu0
        %v5147 = vadd.f32 0.0, %v5146
        %v5148 = vpop.f32.mrf.mxu0
        %v5149 = vadd.f32 0.0, %v5148
        %5150 = vmatmul.bf16.gmra.mxu0 %v5098
        %v5151 = vpop.f32.mrf.mxu0
        %v5152 = vadd.f32 0.0, %v5151
        %v5153 = vpop.f32.mrf.mxu0
        %v5154 = vadd.f32 0.0, %v5153
        %5155 = vmatmul.bf16.gmra.mxu0 %v5099
        %v5156 = vpop.f32.mrf.mxu0
        %v5157 = vadd.f32 0.0, %v5156
        %v5158 = vpop.f32.mrf.mxu0
        %v5159 = vadd.f32 0.0, %v5158
        %5160 = vmatmul.bf16.gmra.mxu0 %v5100
        %v5161 = vpop.f32.mrf.mxu0
        %v5162 = vadd.f32 0.0, %v5161
        %v5163 = vpop.f32.mrf.mxu0
        %v5164 = vadd.f32 0.0, %v5163
        %5165 = vmatmul.bf16.gmra.mxu0 %v5101
        %v5166 = vpop.f32.mrf.mxu0
        %v5167 = vadd.f32 0.0, %v5166
        %v5168 = vpop.f32.mrf.mxu0
        %v5169 = vadd.f32 0.0, %v5168
        %5170 = vmatmul.bf16.gmra.mxu0 %v5102
        %v5171 = vpop.f32.mrf.mxu0
        %v5172 = vadd.f32 0.0, %v5171
        %v5173 = vpop.f32.mrf.mxu0
        %v5174 = vadd.f32 0.0, %v5173
        %5175 = vdwg.mxu0
        %5192 = vrot.lane.b32.xlu0 %v4397, 32
        %v5193 = vpop.permute.xlu0 %5192
        %5194 = vrot.lane.b32.xlu0 %v4399, 32
        %v5195 = vpop.permute.xlu0 %5194
        %5196 = vrot.lane.b32.xlu0 %v4402, 32
        %v5197 = vpop.permute.xlu0 %5196
        %5198 = vrot.lane.b32.xlu0 %v4404, 32
        %v5199 = vpop.permute.xlu0 %5198
        %5200 = vrot.lane.b32.xlu0 %v4407, 32
        %v5201 = vpop.permute.xlu0 %5200
        %5202 = vrot.lane.b32.xlu0 %v4409, 32
        %v5203 = vpop.permute.xlu0 %5202
        %5204 = vrot.lane.b32.xlu0 %v4412, 32
        %v5205 = vpop.permute.xlu0 %5204
        %5206 = vrot.lane.b32.xlu0 %v4414, 32
        %v5207 = vpop.permute.xlu0 %5206
        %5208 = vrot.lane.b32.xlu0 %v4417, 32
        %v5209 = vpop.permute.xlu0 %5208
        %5210 = vrot.lane.b32.xlu0 %v4419, 32
        %v5211 = vpop.permute.xlu0 %5210
        %5212 = vrot.lane.b32.xlu0 %v4422, 32
        %v5213 = vpop.permute.xlu0 %5212
        %5214 = vrot.lane.b32.xlu0 %v4424, 32
        %v5215 = vpop.permute.xlu0 %5214
        %5216 = vrot.lane.b32.xlu0 %v4427, 32
        %v5217 = vpop.permute.xlu0 %5216
        %5218 = vrot.lane.b32.xlu0 %v4429, 32
        %v5219 = vpop.permute.xlu0 %5218
        %5220 = vrot.lane.b32.xlu0 %v4432, 32
        %v5221 = vpop.permute.xlu0 %5220
        %5222 = vrot.lane.b32.xlu0 %v4434, 32
        %v5223 = vpop.permute.xlu0 %5222
        %5256 = vrot.lane.b32.xlu0 %v4767, 64
        %v5257 = vpop.permute.xlu0 %5256
        %5258 = vrot.lane.b32.xlu0 %v4769, 64
        %v5259 = vpop.permute.xlu0 %5258
        %5260 = vrot.lane.b32.xlu0 %v4772, 64
        %v5261 = vpop.permute.xlu0 %5260
        %5262 = vrot.lane.b32.xlu0 %v4774, 64
        %v5263 = vpop.permute.xlu0 %5262
        %5264 = vrot.lane.b32.xlu0 %v4777, 64
        %v5265 = vpop.permute.xlu0 %5264
        %5266 = vrot.lane.b32.xlu0 %v4779, 64
        %v5267 = vpop.permute.xlu0 %5266
        %5268 = vrot.lane.b32.xlu0 %v4782, 64
        %v5269 = vpop.permute.xlu0 %5268
        %5270 = vrot.lane.b32.xlu0 %v4784, 64
        %v5271 = vpop.permute.xlu0 %5270
        %5272 = vrot.lane.b32.xlu0 %v4787, 64
        %v5273 = vpop.permute.xlu0 %5272
        %5274 = vrot.lane.b32.xlu0 %v4789, 64
        %v5275 = vpop.permute.xlu0 %5274
        %5276 = vrot.lane.b32.xlu0 %v4792, 64
        %v5277 = vpop.permute.xlu0 %5276
        %5278 = vrot.lane.b32.xlu0 %v4794, 64
        %v5279 = vpop.permute.xlu0 %5278
        %5280 = vrot.lane.b32.xlu0 %v4797, 64
        %v5281 = vpop.permute.xlu0 %5280
        %5282 = vrot.lane.b32.xlu0 %v4799, 64
        %v5283 = vpop.permute.xlu0 %5282
        %5284 = vrot.lane.b32.xlu0 %v4802, 64
        %v5285 = vpop.permute.xlu0 %5284
        %5286 = vrot.lane.b32.xlu0 %v4804, 64
        %v5287 = vpop.permute.xlu0 %5286
        %5320 = vrot.lane.b32.xlu0 %v5137, 96
        %v5321 = vpop.permute.xlu0 %5320
        %5322 = vrot.lane.b32.xlu0 %v5139, 96
        %v5323 = vpop.permute.xlu0 %5322
        %5324 = vrot.lane.b32.xlu0 %v5142, 96
        %v5325 = vpop.permute.xlu0 %5324
        %5326 = vrot.lane.b32.xlu0 %v5144, 96
        %v5327 = vpop.permute.xlu0 %5326
        %5328 = vrot.lane.b32.xlu0 %v5147, 96
        %v5329 = vpop.permute.xlu0 %5328
        %5330 = vrot.lane.b32.xlu0 %v5149, 96
        %v5331 = vpop.permute.xlu0 %5330
        %5332 = vrot.lane.b32.xlu0 %v5152, 96
        %v5333 = vpop.permute.xlu0 %5332
        %5334 = vrot.lane.b32.xlu0 %v5154, 96
        %v5335 = vpop.permute.xlu0 %5334
        %5336 = vrot.lane.b32.xlu0 %v5157, 96
        %v5337 = vpop.permute.xlu0 %5336
        %5338 = vrot.lane.b32.xlu0 %v5159, 96
        %v5339 = vpop.permute.xlu0 %5338
        %5340 = vrot.lane.b32.xlu0 %v5162, 96
        %v5341 = vpop.permute.xlu0 %5340
        %5342 = vrot.lane.b32.xlu0 %v5164, 96
        %v5343 = vpop.permute.xlu0 %5342
        %5344 = vrot.lane.b32.xlu0 %v5167, 96
        %v5345 = vpop.permute.xlu0 %5344
        %5346 = vrot.lane.b32.xlu0 %v5169, 96
        %v5347 = vpop.permute.xlu0 %5346
        %5348 = vrot.lane.b32.xlu0 %v5172, 96
        %v5349 = vpop.permute.xlu0 %5348
        %5350 = vrot.lane.b32.xlu0 %v5174, 96
        %v5351 = vpop.permute.xlu0 %5350
        %v5368 = vsel %vm1826, %v4027, %v5193
        %v5369 = vsel %vm1826, %v4029, %v5195
        %v5370 = vsel %vm1826, %v4032, %v5197
        %v5371 = vsel %vm1826, %v4034, %v5199
        %v5372 = vsel %vm1826, %v4037, %v5201
        %v5373 = vsel %vm1826, %v4039, %v5203
        %v5374 = vsel %vm1826, %v4042, %v5205
        %v5375 = vsel %vm1826, %v4044, %v5207
        %v5376 = vsel %vm1826, %v4047, %v5209
        %v5377 = vsel %vm1826, %v4049, %v5211
        %v5378 = vsel %vm1826, %v4052, %v5213
        %v5379 = vsel %vm1826, %v4054, %v5215
        %v5380 = vsel %vm1826, %v4057, %v5217
        %v5381 = vsel %vm1826, %v4059, %v5219
        %v5382 = vsel %vm1826, %v4062, %v5221
        %v5383 = vsel %vm1826, %v4064, %v5223
        %v5384 = vsel %vm3606, %v5368, %v5257
        %v5385 = vsel %vm3606, %v5369, %v5259
        %v5386 = vsel %vm3606, %v5370, %v5261
        %v5387 = vsel %vm3606, %v5371, %v5263
        %v5388 = vsel %vm3606, %v5372, %v5265
        %v5389 = vsel %vm3606, %v5373, %v5267
        %v5390 = vsel %vm3606, %v5374, %v5269
        %v5391 = vsel %vm3606, %v5375, %v5271
        %v5392 = vsel %vm3606, %v5376, %v5273
        %v5393 = vsel %vm3606, %v5377, %v5275
        %v5394 = vsel %vm3606, %v5378, %v5277
        %v5395 = vsel %vm3606, %v5379, %v5279
        %v5396 = vsel %vm3606, %v5380, %v5281
        %v5397 = vsel %vm3606, %v5381, %v5283
        %v5398 = vsel %vm3606, %v5382, %v5285
        %v5399 = vsel %vm3606, %v5383, %v5287
        %v5400 = vsel %vm3623, %v5384, %v5321
        %v5401 = vsel %vm3623, %v5385, %v5323
        %v5402 = vsel %vm3623, %v5386, %v5325
        %v5403 = vsel %vm3623, %v5387, %v5327
        %v5404 = vsel %vm3623, %v5388, %v5329
        %v5405 = vsel %vm3623, %v5389, %v5331
        %v5406 = vsel %vm3623, %v5390, %v5333
        %v5407 = vsel %vm3623, %v5391, %v5335
        %v5408 = vsel %vm3623, %v5392, %v5337
        %v5409 = vsel %vm3623, %v5393, %v5339
        %v5410 = vsel %vm3623, %v5394, %v5341
        %v5411 = vsel %vm3623, %v5395, %v5343
        %v5412 = vsel %vm3623, %v5396, %v5345
        %v5413 = vsel %vm3623, %v5397, %v5347
        %v5414 = vsel %vm3623, %v5398, %v5349
        %v5415 = vsel %vm3623, %v5399, %v5351
        %v5416 = vpack.c.bf16 %v3625, %v3624
        %v5417 = vpack.c.bf16 %v3627, %v3626
        %v5418 = vpack.c.bf16 %v3629, %v3628
        %v5419 = vpack.c.bf16 %v3631, %v3630
        %v5420 = vpack.c.bf16 %v3633, %v3632
        %v5421 = vpack.c.bf16 %v3635, %v3634
        %v5422 = vpack.c.bf16 %v3637, %v3636
        %v5423 = vpack.c.bf16 %v3639, %v3638
        %v5424 = vpack.c.bf16 %v5401, %v5400
        %v5425 = vpack.c.bf16 %v5403, %v5402
        %v5426 = vpack.c.bf16 %v5405, %v5404
        %v5427 = vpack.c.bf16 %v5407, %v5406
        %v5428 = vpack.c.bf16 %v5409, %v5408
        %v5429 = vpack.c.bf16 %v5411, %v5410
        %v5430 = vpack.c.bf16 %v5413, %v5412
        %v5431 = vpack.c.bf16 %v5415, %v5414
        %v5432 = vld [vmem:[%s474] sm:$0xf]
        %v5433 = vld [vmem:[%s474 + $0x4] sm:$0xf]
        %v5434 = vld [vmem:[%s474 + $0x8] sm:$0xf]
        %v5435 = vld [vmem:[%s474 + $0xc] sm:$0xf]
        %v5436 = vld [vmem:[%s474 + $0x10] sm:$0xf]
        %v5437 = vld [vmem:[%s474 + $0x14] sm:$0xf]
        %v5438 = vld [vmem:[%s474 + $0x18] sm:$0xf]
        %v5439 = vld [vmem:[%s474 + $0x1c] sm:$0xf]
        %v5440 = vld [vmem:[%s474 + $0x20] sm:$0xf]
        %v5441 = vld [vmem:[%s474 + $0x24] sm:$0xf]
        %v5442 = vld [vmem:[%s474 + $0x28] sm:$0xf]
        %v5443 = vld [vmem:[%s474 + $0x2c] sm:$0xf]
        %v5444 = vld [vmem:[%s474 + $0x30] sm:$0xf]
        %v5445 = vld [vmem:[%s474 + $0x34] sm:$0xf]
        %v5446 = vld [vmem:[%s474 + $0x38] sm:$0xf]
        %v5447 = vld [vmem:[%s474 + $0x3c] sm:$0xf]
        %v5464 = vunpack.c.l.b16 %v5432
        %v5465 = vunpack.c.l.b16 %v5433
        %v5466 = vunpack.c.l.b16 %v5434
        %v5467 = vunpack.c.l.b16 %v5435
        %v5468 = vunpack.c.l.b16 %v5436
        %v5469 = vunpack.c.l.b16 %v5437
        %v5470 = vunpack.c.l.b16 %v5438
        %v5471 = vunpack.c.l.b16 %v5439
        %v5472 = vunpack.c.l.b16 %v5440
        %v5473 = vunpack.c.l.b16 %v5441
        %v5474 = vunpack.c.l.b16 %v5442
        %v5475 = vunpack.c.l.b16 %v5443
        %v5476 = vunpack.c.l.b16 %v5444
        %v5477 = vunpack.c.l.b16 %v5445
        %v5478 = vunpack.c.l.b16 %v5446
        %v5479 = vunpack.c.l.b16 %v5447
        %v5480 = vpack.c.b16 %v5465, %v5464
        %v5481 = vpack.c.b16 %v5467, %v5466
        %v5482 = vpack.c.b16 %v5469, %v5468
        %v5483 = vpack.c.b16 %v5471, %v5470
        %v5484 = vpack.c.b16 %v5473, %v5472
        %v5485 = vpack.c.b16 %v5475, %v5474
        %v5486 = vpack.c.b16 %v5477, %v5476
        %v5487 = vpack.c.b16 %v5479, %v5478
        %5496 = vmatpush.bf16.msra.mxu0 %v5487
        %5497 = vmatpush.bf16.msra.mxu0 %v5486
        %5498 = vmatpush.bf16.msra.mxu0 %v5485
        %5499 = vmatpush.bf16.msra.mxu0 %v5484
        %5500 = vmatpush.bf16.msra.mxu0 %v5483
        %5501 = vmatpush.bf16.msra.mxu0 %v5482
        %5502 = vmatpush.bf16.msra.mxu0 %v5481
        %5503 = vmatpush.bf16.msra.mxu0 %v5480
        %5504 = vmatmul.bf16.gmra.mxu0 %v5416
        %v5505 = vpop.f32.mrf.mxu0
        %v5506 = vadd.f32 0.0, %v5505
        %v5507 = vpop.f32.mrf.mxu0
        %v5508 = vadd.f32 0.0, %v5507
        %5509 = vmatmul.bf16.gmra.mxu0 %v5417
        %v5510 = vpop.f32.mrf.mxu0
        %v5511 = vadd.f32 0.0, %v5510
        %v5512 = vpop.f32.mrf.mxu0
        %v5513 = vadd.f32 0.0, %v5512
        %5514 = vmatmul.bf16.gmra.mxu0 %v5418
        %v5515 = vpop.f32.mrf.mxu0
        %v5516 = vadd.f32 0.0, %v5515
        %v5517 = vpop.f32.mrf.mxu0
        %v5518 = vadd.f32 0.0, %v5517
        %5519 = vmatmul.bf16.gmra.mxu0 %v5419
        %v5520 = vpop.f32.mrf.mxu0
        %v5521 = vadd.f32 0.0, %v5520
        %v5522 = vpop.f32.mrf.mxu0
        %v5523 = vadd.f32 0.0, %v5522
        %5524 = vmatmul.bf16.gmra.mxu0 %v5420
        %v5525 = vpop.f32.mrf.mxu0
        %v5526 = vadd.f32 0.0, %v5525
        %v5527 = vpop.f32.mrf.mxu0
        %v5528 = vadd.f32 0.0, %v5527
        %5529 = vmatmul.bf16.gmra.mxu0 %v5421
        %v5530 = vpop.f32.mrf.mxu0
        %v5531 = vadd.f32 0.0, %v5530
        %v5532 = vpop.f32.mrf.mxu0
        %v5533 = vadd.f32 0.0, %v5532
        %5534 = vmatmul.bf16.gmra.mxu0 %v5422
        %v5535 = vpop.f32.mrf.mxu0
        %v5536 = vadd.f32 0.0, %v5535
        %v5537 = vpop.f32.mrf.mxu0
        %v5538 = vadd.f32 0.0, %v5537
        %5539 = vmatmul.bf16.gmra.mxu0 %v5423
        %v5540 = vpop.f32.mrf.mxu0
        %v5541 = vadd.f32 0.0, %v5540
        %v5542 = vpop.f32.mrf.mxu0
        %v5543 = vadd.f32 0.0, %v5542
        %5544 = vmatmul.bf16.gmra.mxu0 %v5424
        %v5545 = vpop.f32.mrf.mxu0
        %v5546 = vadd.f32 0.0, %v5545
        %v5547 = vpop.f32.mrf.mxu0
        %v5548 = vadd.f32 0.0, %v5547
        %5549 = vmatmul.bf16.gmra.mxu0 %v5425
        %v5550 = vpop.f32.mrf.mxu0
        %v5551 = vadd.f32 0.0, %v5550
        %v5552 = vpop.f32.mrf.mxu0
        %v5553 = vadd.f32 0.0, %v5552
        %5554 = vmatmul.bf16.gmra.mxu0 %v5426
        %v5555 = vpop.f32.mrf.mxu0
        %v5556 = vadd.f32 0.0, %v5555
        %v5557 = vpop.f32.mrf.mxu0
        %v5558 = vadd.f32 0.0, %v5557
        %5559 = vmatmul.bf16.gmra.mxu0 %v5427
        %v5560 = vpop.f32.mrf.mxu0
        %v5561 = vadd.f32 0.0, %v5560
        %v5562 = vpop.f32.mrf.mxu0
        %v5563 = vadd.f32 0.0, %v5562
        %5564 = vmatmul.bf16.gmra.mxu0 %v5428
        %v5565 = vpop.f32.mrf.mxu0
        %v5566 = vadd.f32 0.0, %v5565
        %v5567 = vpop.f32.mrf.mxu0
        %v5568 = vadd.f32 0.0, %v5567
        %5569 = vmatmul.bf16.gmra.mxu0 %v5429
        %v5570 = vpop.f32.mrf.mxu0
        %v5571 = vadd.f32 0.0, %v5570
        %v5572 = vpop.f32.mrf.mxu0
        %v5573 = vadd.f32 0.0, %v5572
        %5574 = vmatmul.bf16.gmra.mxu0 %v5430
        %v5575 = vpop.f32.mrf.mxu0
        %v5576 = vadd.f32 0.0, %v5575
        %v5577 = vpop.f32.mrf.mxu0
        %v5578 = vadd.f32 0.0, %v5577
        %5579 = vmatmul.bf16.gmra.mxu0 %v5431
        %v5580 = vpop.f32.mrf.mxu0
        %v5581 = vadd.f32 0.0, %v5580
        %v5582 = vpop.f32.mrf.mxu0
        %v5583 = vadd.f32 0.0, %v5582
        %5584 = vdwg.mxu0
        %v5585 = vadd.f32 %v626, %v5506
        %v5586 = vadd.f32 %v627, %v5508
        %v5587 = vadd.f32 %v628, %v5511
        %v5588 = vadd.f32 %v629, %v5513
        %v5589 = vadd.f32 %v630, %v5516
        %v5590 = vadd.f32 %v631, %v5518
        %v5591 = vadd.f32 %v632, %v5521
        %v5592 = vadd.f32 %v633, %v5523
        %v5593 = vadd.f32 %v634, %v5526
        %v5594 = vadd.f32 %v635, %v5528
        %v5595 = vadd.f32 %v636, %v5531
        %v5596 = vadd.f32 %v637, %v5533
        %v5597 = vadd.f32 %v638, %v5536
        %v5598 = vadd.f32 %v639, %v5538
        %v5599 = vadd.f32 %v640, %v5541
        %v5600 = vadd.f32 %v641, %v5543
        %v5601 = vadd.f32 %v642, %v5546
        %v5602 = vadd.f32 %v643, %v5548
        %v5603 = vadd.f32 %v644, %v5551
        %v5604 = vadd.f32 %v645, %v5553
        %v5605 = vadd.f32 %v646, %v5556
        %v5606 = vadd.f32 %v647, %v5558
        %v5607 = vadd.f32 %v648, %v5561
        %v5608 = vadd.f32 %v649, %v5563
        %v5609 = vadd.f32 %v650, %v5566
        %v5610 = vadd.f32 %v651, %v5568
        %v5611 = vadd.f32 %v652, %v5571
        %v5612 = vadd.f32 %v653, %v5573
        %v5613 = vadd.f32 %v654, %v5576
        %v5614 = vadd.f32 %v655, %v5578
        %v5615 = vadd.f32 %v656, %v5581
        %v5616 = vadd.f32 %v657, %v5583
        %v5617 = vld [vmem:[%s556] sm:$0x1]
        %v5618 = vmul.f32 %v5585, %v5585
        %v5619 = vmul.f32 %v5586, %v5586
        %v5620 = vmul.f32 %v5587, %v5587
        %v5621 = vmul.f32 %v5588, %v5588
        %v5622 = vmul.f32 %v5589, %v5589
        %v5623 = vmul.f32 %v5590, %v5590
        %v5624 = vmul.f32 %v5591, %v5591
        %v5625 = vmul.f32 %v5592, %v5592
        %v5626 = vmul.f32 %v5593, %v5593
        %v5627 = vmul.f32 %v5594, %v5594
        %v5628 = vmul.f32 %v5595, %v5595
        %v5629 = vmul.f32 %v5596, %v5596
        %v5630 = vmul.f32 %v5597, %v5597
        %v5631 = vmul.f32 %v5598, %v5598
        %v5632 = vmul.f32 %v5599, %v5599
        %v5633 = vmul.f32 %v5600, %v5600
        %v5634 = vmul.f32 %v5601, %v5601
        %v5635 = vmul.f32 %v5602, %v5602
        %v5636 = vmul.f32 %v5603, %v5603
        %v5637 = vmul.f32 %v5604, %v5604
        %v5638 = vmul.f32 %v5605, %v5605
        %v5639 = vmul.f32 %v5606, %v5606
        %v5640 = vmul.f32 %v5607, %v5607
        %v5641 = vmul.f32 %v5608, %v5608
        %v5642 = vmul.f32 %v5609, %v5609
        %v5643 = vmul.f32 %v5610, %v5610
        %v5644 = vmul.f32 %v5611, %v5611
        %v5645 = vmul.f32 %v5612, %v5612
        %v5646 = vmul.f32 %v5613, %v5613
        %v5647 = vmul.f32 %v5614, %v5614
        %v5648 = vmul.f32 %v5615, %v5615
        %v5649 = vmul.f32 %v5616, %v5616
        %5650 = vadd.xlane.f32.xlu0 %v5618
        %v5651 = vpop.xlane.xlu0 %5650
        %5652 = vadd.xlane.f32.xlu0 %v5619
        %v5653 = vpop.xlane.xlu0 %5652
        %5654 = vadd.xlane.f32.xlu0 %v5620
        %v5655 = vpop.xlane.xlu0 %5654
        %5656 = vadd.xlane.f32.xlu0 %v5621
        %v5657 = vpop.xlane.xlu0 %5656
        %5658 = vadd.xlane.f32.xlu0 %v5622
        %v5659 = vpop.xlane.xlu0 %5658
        %5660 = vadd.xlane.f32.xlu0 %v5623
        %v5661 = vpop.xlane.xlu0 %5660
        %5662 = vadd.xlane.f32.xlu0 %v5624
        %v5663 = vpop.xlane.xlu0 %5662
        %5664 = vadd.xlane.f32.xlu0 %v5625
        %v5665 = vpop.xlane.xlu0 %5664
        %5666 = vadd.xlane.f32.xlu0 %v5626
        %v5667 = vpop.xlane.xlu0 %5666
        %5668 = vadd.xlane.f32.xlu0 %v5627
        %v5669 = vpop.xlane.xlu0 %5668
        %5670 = vadd.xlane.f32.xlu0 %v5628
        %v5671 = vpop.xlane.xlu0 %5670
        %5672 = vadd.xlane.f32.xlu0 %v5629
        %v5673 = vpop.xlane.xlu0 %5672
        %5674 = vadd.xlane.f32.xlu0 %v5630
        %v5675 = vpop.xlane.xlu0 %5674
        %5676 = vadd.xlane.f32.xlu0 %v5631
        %v5677 = vpop.xlane.xlu0 %5676
        %5678 = vadd.xlane.f32.xlu0 %v5632
        %v5679 = vpop.xlane.xlu0 %5678
        %5680 = vadd.xlane.f32.xlu0 %v5633
        %v5681 = vpop.xlane.xlu0 %5680
        %5682 = vadd.xlane.f32.xlu0 %v5634
        %v5683 = vpop.xlane.xlu0 %5682
        %5684 = vadd.xlane.f32.xlu0 %v5635
        %v5685 = vpop.xlane.xlu0 %5684
        %5686 = vadd.xlane.f32.xlu0 %v5636
        %v5687 = vpop.xlane.xlu0 %5686
        %5688 = vadd.xlane.f32.xlu0 %v5637
        %v5689 = vpop.xlane.xlu0 %5688
        %5690 = vadd.xlane.f32.xlu0 %v5638
        %v5691 = vpop.xlane.xlu0 %5690
        %5692 = vadd.xlane.f32.xlu0 %v5639
        %v5693 = vpop.xlane.xlu0 %5692
        %5694 = vadd.xlane.f32.xlu0 %v5640
        %v5695 = vpop.xlane.xlu0 %5694
        %5696 = vadd.xlane.f32.xlu0 %v5641
        %v5697 = vpop.xlane.xlu0 %5696
        %5698 = vadd.xlane.f32.xlu0 %v5642
        %v5699 = vpop.xlane.xlu0 %5698
        %5700 = vadd.xlane.f32.xlu0 %v5643
        %v5701 = vpop.xlane.xlu0 %5700
        %5702 = vadd.xlane.f32.xlu0 %v5644
        %v5703 = vpop.xlane.xlu0 %5702
        %5704 = vadd.xlane.f32.xlu0 %v5645
        %v5705 = vpop.xlane.xlu0 %5704
        %5706 = vadd.xlane.f32.xlu0 %v5646
        %v5707 = vpop.xlane.xlu0 %5706
        %5708 = vadd.xlane.f32.xlu0 %v5647
        %v5709 = vpop.xlane.xlu0 %5708
        %5710 = vadd.xlane.f32.xlu0 %v5648
        %v5711 = vpop.xlane.xlu0 %5710
        %5712 = vadd.xlane.f32.xlu0 %v5649
        %v5713 = vpop.xlane.xlu0 %5712
        %v5714 = vmul.f32 %v5651, %v771
        %v5715 = vmul.f32 %v5653, %v771
        %v5716 = vmul.f32 %v5655, %v771
        %v5717 = vmul.f32 %v5657, %v771
        %v5718 = vmul.f32 %v5659, %v771
        %v5719 = vmul.f32 %v5661, %v771
        %v5720 = vmul.f32 %v5663, %v771
        %v5721 = vmul.f32 %v5665, %v771
        %v5722 = vmul.f32 %v5667, %v771
        %v5723 = vmul.f32 %v5669, %v771
        %v5724 = vmul.f32 %v5671, %v771
        %v5725 = vmul.f32 %v5673, %v771
        %v5726 = vmul.f32 %v5675, %v771
        %v5727 = vmul.f32 %v5677, %v771
        %v5728 = vmul.f32 %v5679, %v771
        %v5729 = vmul.f32 %v5681, %v771
        %v5730 = vmul.f32 %v5683, %v771
        %v5731 = vmul.f32 %v5685, %v771
        %v5732 = vmul.f32 %v5687, %v771
        %v5733 = vmul.f32 %v5689, %v771
        %v5734 = vmul.f32 %v5691, %v771
        %v5735 = vmul.f32 %v5693, %v771
        %v5736 = vmul.f32 %v5695, %v771
        %v5737 = vmul.f32 %v5697, %v771
        %v5738 = vmul.f32 %v5699, %v771
        %v5739 = vmul.f32 %v5701, %v771
        %v5740 = vmul.f32 %v5703, %v771
        %v5741 = vmul.f32 %v5705, %v771
        %v5742 = vmul.f32 %v5707, %v771
        %v5743 = vmul.f32 %v5709, %v771
        %v5744 = vmul.f32 %v5711, %v771
        %v5745 = vmul.f32 %v5713, %v771
        %v5746 = vadd.f32 %v5714, 1e-06
        %v5747 = vadd.f32 %v5715, 1e-06
        %v5748 = vadd.f32 %v5716, 1e-06
        %v5749 = vadd.f32 %v5717, 1e-06
        %v5750 = vadd.f32 %v5718, 1e-06
        %v5751 = vadd.f32 %v5719, 1e-06
        %v5752 = vadd.f32 %v5720, 1e-06
        %v5753 = vadd.f32 %v5721, 1e-06
        %v5754 = vadd.f32 %v5722, 1e-06
        %v5755 = vadd.f32 %v5723, 1e-06
        %v5756 = vadd.f32 %v5724, 1e-06
        %v5757 = vadd.f32 %v5725, 1e-06
        %v5758 = vadd.f32 %v5726, 1e-06
        %v5759 = vadd.f32 %v5727, 1e-06
        %v5760 = vadd.f32 %v5728, 1e-06
        %v5761 = vadd.f32 %v5729, 1e-06
        %v5762 = vadd.f32 %v5730, 1e-06
        %v5763 = vadd.f32 %v5731, 1e-06
        %v5764 = vadd.f32 %v5732, 1e-06
        %v5765 = vadd.f32 %v5733, 1e-06
        %v5766 = vadd.f32 %v5734, 1e-06
        %v5767 = vadd.f32 %v5735, 1e-06
        %v5768 = vadd.f32 %v5736, 1e-06
        %v5769 = vadd.f32 %v5737, 1e-06
        %v5770 = vadd.f32 %v5738, 1e-06
        %v5771 = vadd.f32 %v5739, 1e-06
        %v5772 = vadd.f32 %v5740, 1e-06
        %v5773 = vadd.f32 %v5741, 1e-06
        %v5774 = vadd.f32 %v5742, 1e-06
        %v5775 = vadd.f32 %v5743, 1e-06
        %v5776 = vadd.f32 %v5744, 1e-06
        %v5777 = vadd.f32 %v5745, 1e-06
        %v5778 = vrsqrt.pop %v5746
        %v5779 = vmul.f32 %v5778, %v5746
        %v5780 = vmul.f32 %v5779, %v5778
        %v5781 = vmul.f32 0.5, %v5780
        %v5782 = vsub.f32 1.5, %v5781
        %v5783 = vmul.f32 %v5778, %v5782
        %vm5784 = vweird.f32 %v5746
        %vm5785 = vweird.f32 %v5778
        %vm5786 = vmor %vm5784, %vm5785
        %v5787 = vsel %vm5786, %v5778, %v5783
        %v5788 = vrsqrt.pop %v5747
        %v5789 = vmul.f32 %v5788, %v5747
        %v5790 = vmul.f32 %v5789, %v5788
        %v5791 = vmul.f32 0.5, %v5790
        %v5792 = vsub.f32 1.5, %v5791
        %v5793 = vmul.f32 %v5788, %v5792
        %vm5794 = vweird.f32 %v5747
        %vm5795 = vweird.f32 %v5788
        %vm5796 = vmor %vm5794, %vm5795
        %v5797 = vsel %vm5796, %v5788, %v5793
        %v5798 = vrsqrt.pop %v5748
        %v5799 = vmul.f32 %v5798, %v5748
        %v5800 = vmul.f32 %v5799, %v5798
        %v5801 = vmul.f32 0.5, %v5800
        %v5802 = vsub.f32 1.5, %v5801
        %v5803 = vmul.f32 %v5798, %v5802
        %vm5804 = vweird.f32 %v5748
        %vm5805 = vweird.f32 %v5798
        %vm5806 = vmor %vm5804, %vm5805
        %v5807 = vsel %vm5806, %v5798, %v5803
        %v5808 = vrsqrt.pop %v5749
        %v5809 = vmul.f32 %v5808, %v5749
        %v5810 = vmul.f32 %v5809, %v5808
        %v5811 = vmul.f32 0.5, %v5810
        %v5812 = vsub.f32 1.5, %v5811
        %v5813 = vmul.f32 %v5808, %v5812
        %vm5814 = vweird.f32 %v5749
        %vm5815 = vweird.f32 %v5808
        %vm5816 = vmor %vm5814, %vm5815
        %v5817 = vsel %vm5816, %v5808, %v5813
        %v5818 = vrsqrt.pop %v5750
        %v5819 = vmul.f32 %v5818, %v5750
        %v5820 = vmul.f32 %v5819, %v5818
        %v5821 = vmul.f32 0.5, %v5820
        %v5822 = vsub.f32 1.5, %v5821
        %v5823 = vmul.f32 %v5818, %v5822
        %vm5824 = vweird.f32 %v5750
        %vm5825 = vweird.f32 %v5818
        %vm5826 = vmor %vm5824, %vm5825
        %v5827 = vsel %vm5826, %v5818, %v5823
        %v5828 = vrsqrt.pop %v5751
        %v5829 = vmul.f32 %v5828, %v5751
        %v5830 = vmul.f32 %v5829, %v5828
        %v5831 = vmul.f32 0.5, %v5830
        %v5832 = vsub.f32 1.5, %v5831
        %v5833 = vmul.f32 %v5828, %v5832
        %vm5834 = vweird.f32 %v5751
        %vm5835 = vweird.f32 %v5828
        %vm5836 = vmor %vm5834, %vm5835
        %v5837 = vsel %vm5836, %v5828, %v5833
        %v5838 = vrsqrt.pop %v5752
        %v5839 = vmul.f32 %v5838, %v5752
        %v5840 = vmul.f32 %v5839, %v5838
        %v5841 = vmul.f32 0.5, %v5840
        %v5842 = vsub.f32 1.5, %v5841
        %v5843 = vmul.f32 %v5838, %v5842
        %vm5844 = vweird.f32 %v5752
        %vm5845 = vweird.f32 %v5838
        %vm5846 = vmor %vm5844, %vm5845
        %v5847 = vsel %vm5846, %v5838, %v5843
        %v5848 = vrsqrt.pop %v5753
        %v5849 = vmul.f32 %v5848, %v5753
        %v5850 = vmul.f32 %v5849, %v5848
        %v5851 = vmul.f32 0.5, %v5850
        %v5852 = vsub.f32 1.5, %v5851
        %v5853 = vmul.f32 %v5848, %v5852
        %vm5854 = vweird.f32 %v5753
        %vm5855 = vweird.f32 %v5848
        %vm5856 = vmor %vm5854, %vm5855
        %v5857 = vsel %vm5856, %v5848, %v5853
        %v5858 = vrsqrt.pop %v5754
        %v5859 = vmul.f32 %v5858, %v5754
        %v5860 = vmul.f32 %v5859, %v5858
        %v5861 = vmul.f32 0.5, %v5860
        %v5862 = vsub.f32 1.5, %v5861
        %v5863 = vmul.f32 %v5858, %v5862
        %vm5864 = vweird.f32 %v5754
        %vm5865 = vweird.f32 %v5858
        %vm5866 = vmor %vm5864, %vm5865
        %v5867 = vsel %vm5866, %v5858, %v5863
        %v5868 = vrsqrt.pop %v5755
        %v5869 = vmul.f32 %v5868, %v5755
        %v5870 = vmul.f32 %v5869, %v5868
        %v5871 = vmul.f32 0.5, %v5870
        %v5872 = vsub.f32 1.5, %v5871
        %v5873 = vmul.f32 %v5868, %v5872
        %vm5874 = vweird.f32 %v5755
        %vm5875 = vweird.f32 %v5868
        %vm5876 = vmor %vm5874, %vm5875
        %v5877 = vsel %vm5876, %v5868, %v5873
        %v5878 = vrsqrt.pop %v5756
        %v5879 = vmul.f32 %v5878, %v5756
        %v5880 = vmul.f32 %v5879, %v5878
        %v5881 = vmul.f32 0.5, %v5880
        %v5882 = vsub.f32 1.5, %v5881
        %v5883 = vmul.f32 %v5878, %v5882
        %vm5884 = vweird.f32 %v5756
        %vm5885 = vweird.f32 %v5878
        %vm5886 = vmor %vm5884, %vm5885
        %v5887 = vsel %vm5886, %v5878, %v5883
        %v5888 = vrsqrt.pop %v5757
        %v5889 = vmul.f32 %v5888, %v5757
        %v5890 = vmul.f32 %v5889, %v5888
        %v5891 = vmul.f32 0.5, %v5890
        %v5892 = vsub.f32 1.5, %v5891
        %v5893 = vmul.f32 %v5888, %v5892
        %vm5894 = vweird.f32 %v5757
        %vm5895 = vweird.f32 %v5888
        %vm5896 = vmor %vm5894, %vm5895
        %v5897 = vsel %vm5896, %v5888, %v5893
        %v5898 = vrsqrt.pop %v5758
        %v5899 = vmul.f32 %v5898, %v5758
        %v5900 = vmul.f32 %v5899, %v5898
        %v5901 = vmul.f32 0.5, %v5900
        %v5902 = vsub.f32 1.5, %v5901
        %v5903 = vmul.f32 %v5898, %v5902
        %vm5904 = vweird.f32 %v5758
        %vm5905 = vweird.f32 %v5898
        %vm5906 = vmor %vm5904, %vm5905
        %v5907 = vsel %vm5906, %v5898, %v5903
        %v5908 = vrsqrt.pop %v5759
        %v5909 = vmul.f32 %v5908, %v5759
        %v5910 = vmul.f32 %v5909, %v5908
        %v5911 = vmul.f32 0.5, %v5910
        %v5912 = vsub.f32 1.5, %v5911
        %v5913 = vmul.f32 %v5908, %v5912
        %vm5914 = vweird.f32 %v5759
        %vm5915 = vweird.f32 %v5908
        %vm5916 = vmor %vm5914, %vm5915
        %v5917 = vsel %vm5916, %v5908, %v5913
        %v5918 = vrsqrt.pop %v5760
        %v5919 = vmul.f32 %v5918, %v5760
        %v5920 = vmul.f32 %v5919, %v5918
        %v5921 = vmul.f32 0.5, %v5920
        %v5922 = vsub.f32 1.5, %v5921
        %v5923 = vmul.f32 %v5918, %v5922
        %vm5924 = vweird.f32 %v5760
        %vm5925 = vweird.f32 %v5918
        %vm5926 = vmor %vm5924, %vm5925
        %v5927 = vsel %vm5926, %v5918, %v5923
        %v5928 = vrsqrt.pop %v5761
        %v5929 = vmul.f32 %v5928, %v5761
        %v5930 = vmul.f32 %v5929, %v5928
        %v5931 = vmul.f32 0.5, %v5930
        %v5932 = vsub.f32 1.5, %v5931
        %v5933 = vmul.f32 %v5928, %v5932
        %vm5934 = vweird.f32 %v5761
        %vm5935 = vweird.f32 %v5928
        %vm5936 = vmor %vm5934, %vm5935
        %v5937 = vsel %vm5936, %v5928, %v5933
        %v5938 = vrsqrt.pop %v5762
        %v5939 = vmul.f32 %v5938, %v5762
        %v5940 = vmul.f32 %v5939, %v5938
        %v5941 = vmul.f32 0.5, %v5940
        %v5942 = vsub.f32 1.5, %v5941
        %v5943 = vmul.f32 %v5938, %v5942
        %vm5944 = vweird.f32 %v5762
        %vm5945 = vweird.f32 %v5938
        %vm5946 = vmor %vm5944, %vm5945
        %v5947 = vsel %vm5946, %v5938, %v5943
        %v5948 = vrsqrt.pop %v5763
        %v5949 = vmul.f32 %v5948, %v5763
        %v5950 = vmul.f32 %v5949, %v5948
        %v5951 = vmul.f32 0.5, %v5950
        %v5952 = vsub.f32 1.5, %v5951
        %v5953 = vmul.f32 %v5948, %v5952
        %vm5954 = vweird.f32 %v5763
        %vm5955 = vweird.f32 %v5948
        %vm5956 = vmor %vm5954, %vm5955
        %v5957 = vsel %vm5956, %v5948, %v5953
        %v5958 = vrsqrt.pop %v5764
        %v5959 = vmul.f32 %v5958, %v5764
        %v5960 = vmul.f32 %v5959, %v5958
        %v5961 = vmul.f32 0.5, %v5960
        %v5962 = vsub.f32 1.5, %v5961
        %v5963 = vmul.f32 %v5958, %v5962
        %vm5964 = vweird.f32 %v5764
        %vm5965 = vweird.f32 %v5958
        %vm5966 = vmor %vm5964, %vm5965
        %v5967 = vsel %vm5966, %v5958, %v5963
        %v5968 = vrsqrt.pop %v5765
        %v5969 = vmul.f32 %v5968, %v5765
        %v5970 = vmul.f32 %v5969, %v5968
        %v5971 = vmul.f32 0.5, %v5970
        %v5972 = vsub.f32 1.5, %v5971
        %v5973 = vmul.f32 %v5968, %v5972
        %vm5974 = vweird.f32 %v5765
        %vm5975 = vweird.f32 %v5968
        %vm5976 = vmor %vm5974, %vm5975
        %v5977 = vsel %vm5976, %v5968, %v5973
        %v5978 = vrsqrt.pop %v5766
        %v5979 = vmul.f32 %v5978, %v5766
        %v5980 = vmul.f32 %v5979, %v5978
        %v5981 = vmul.f32 0.5, %v5980
        %v5982 = vsub.f32 1.5, %v5981
        %v5983 = vmul.f32 %v5978, %v5982
        %vm5984 = vweird.f32 %v5766
        %vm5985 = vweird.f32 %v5978
        %vm5986 = vmor %vm5984, %vm5985
        %v5987 = vsel %vm5986, %v5978, %v5983
        %v5988 = vrsqrt.pop %v5767
        %v5989 = vmul.f32 %v5988, %v5767
        %v5990 = vmul.f32 %v5989, %v5988
        %v5991 = vmul.f32 0.5, %v5990
        %v5992 = vsub.f32 1.5, %v5991
        %v5993 = vmul.f32 %v5988, %v5992
        %vm5994 = vweird.f32 %v5767
        %vm5995 = vweird.f32 %v5988
        %vm5996 = vmor %vm5994, %vm5995
        %v5997 = vsel %vm5996, %v5988, %v5993
        %v5998 = vrsqrt.pop %v5768
        %v5999 = vmul.f32 %v5998, %v5768
        %v6000 = vmul.f32 %v5999, %v5998
        %v6001 = vmul.f32 0.5, %v6000
        %v6002 = vsub.f32 1.5, %v6001
        %v6003 = vmul.f32 %v5998, %v6002
        %vm6004 = vweird.f32 %v5768
        %vm6005 = vweird.f32 %v5998
        %vm6006 = vmor %vm6004, %vm6005
        %v6007 = vsel %vm6006, %v5998, %v6003
        %v6008 = vrsqrt.pop %v5769
        %v6009 = vmul.f32 %v6008, %v5769
        %v6010 = vmul.f32 %v6009, %v6008
        %v6011 = vmul.f32 0.5, %v6010
        %v6012 = vsub.f32 1.5, %v6011
        %v6013 = vmul.f32 %v6008, %v6012
        %vm6014 = vweird.f32 %v5769
        %vm6015 = vweird.f32 %v6008
        %vm6016 = vmor %vm6014, %vm6015
        %v6017 = vsel %vm6016, %v6008, %v6013
        %v6018 = vrsqrt.pop %v5770
        %v6019 = vmul.f32 %v6018, %v5770
        %v6020 = vmul.f32 %v6019, %v6018
        %v6021 = vmul.f32 0.5, %v6020
        %v6022 = vsub.f32 1.5, %v6021
        %v6023 = vmul.f32 %v6018, %v6022
        %vm6024 = vweird.f32 %v5770
        %vm6025 = vweird.f32 %v6018
        %vm6026 = vmor %vm6024, %vm6025
        %v6027 = vsel %vm6026, %v6018, %v6023
        %v6028 = vrsqrt.pop %v5771
        %v6029 = vmul.f32 %v6028, %v5771
        %v6030 = vmul.f32 %v6029, %v6028
        %v6031 = vmul.f32 0.5, %v6030
        %v6032 = vsub.f32 1.5, %v6031
        %v6033 = vmul.f32 %v6028, %v6032
        %vm6034 = vweird.f32 %v5771
        %vm6035 = vweird.f32 %v6028
        %vm6036 = vmor %vm6034, %vm6035
        %v6037 = vsel %vm6036, %v6028, %v6033
        %v6038 = vrsqrt.pop %v5772
        %v6039 = vmul.f32 %v6038, %v5772
        %v6040 = vmul.f32 %v6039, %v6038
        %v6041 = vmul.f32 0.5, %v6040
        %v6042 = vsub.f32 1.5, %v6041
        %v6043 = vmul.f32 %v6038, %v6042
        %vm6044 = vweird.f32 %v5772
        %vm6045 = vweird.f32 %v6038
        %vm6046 = vmor %vm6044, %vm6045
        %v6047 = vsel %vm6046, %v6038, %v6043
        %v6048 = vrsqrt.pop %v5773
        %v6049 = vmul.f32 %v6048, %v5773
        %v6050 = vmul.f32 %v6049, %v6048
        %v6051 = vmul.f32 0.5, %v6050
        %v6052 = vsub.f32 1.5, %v6051
        %v6053 = vmul.f32 %v6048, %v6052
        %vm6054 = vweird.f32 %v5773
        %vm6055 = vweird.f32 %v6048
        %vm6056 = vmor %vm6054, %vm6055
        %v6057 = vsel %vm6056, %v6048, %v6053
        %v6058 = vrsqrt.pop %v5774
        %v6059 = vmul.f32 %v6058, %v5774
        %v6060 = vmul.f32 %v6059, %v6058
        %v6061 = vmul.f32 0.5, %v6060
        %v6062 = vsub.f32 1.5, %v6061
        %v6063 = vmul.f32 %v6058, %v6062
        %vm6064 = vweird.f32 %v5774
        %vm6065 = vweird.f32 %v6058
        %vm6066 = vmor %vm6064, %vm6065
        %v6067 = vsel %vm6066, %v6058, %v6063
        %v6068 = vrsqrt.pop %v5775
        %v6069 = vmul.f32 %v6068, %v5775
        %v6070 = vmul.f32 %v6069, %v6068
        %v6071 = vmul.f32 0.5, %v6070
        %v6072 = vsub.f32 1.5, %v6071
        %v6073 = vmul.f32 %v6068, %v6072
        %vm6074 = vweird.f32 %v5775
        %vm6075 = vweird.f32 %v6068
        %vm6076 = vmor %vm6074, %vm6075
        %v6077 = vsel %vm6076, %v6068, %v6073
        %v6078 = vrsqrt.pop %v5776
        %v6079 = vmul.f32 %v6078, %v5776
        %v6080 = vmul.f32 %v6079, %v6078
        %v6081 = vmul.f32 0.5, %v6080
        %v6082 = vsub.f32 1.5, %v6081
        %v6083 = vmul.f32 %v6078, %v6082
        %vm6084 = vweird.f32 %v5776
        %vm6085 = vweird.f32 %v6078
        %vm6086 = vmor %vm6084, %vm6085
        %v6087 = vsel %vm6086, %v6078, %v6083
        %v6088 = vrsqrt.pop %v5777
        %v6089 = vmul.f32 %v6088, %v5777
        %v6090 = vmul.f32 %v6089, %v6088
        %v6091 = vmul.f32 0.5, %v6090
        %v6092 = vsub.f32 1.5, %v6091
        %v6093 = vmul.f32 %v6088, %v6092
        %vm6094 = vweird.f32 %v5777
        %vm6095 = vweird.f32 %v6088
        %vm6096 = vmor %vm6094, %vm6095
        %v6097 = vsel %vm6096, %v6088, %v6093
        %v6098 = vmul.f32 %v5585, %v5787
        %v6099 = vmul.f32 %v5586, %v5797
        %v6100 = vmul.f32 %v5587, %v5807
        %v6101 = vmul.f32 %v5588, %v5817
        %v6102 = vmul.f32 %v5589, %v5827
        %v6103 = vmul.f32 %v5590, %v5837
        %v6104 = vmul.f32 %v5591, %v5847
        %v6105 = vmul.f32 %v5592, %v5857
        %v6106 = vmul.f32 %v5593, %v5867
        %v6107 = vmul.f32 %v5594, %v5877
        %v6108 = vmul.f32 %v5595, %v5887
        %v6109 = vmul.f32 %v5596, %v5897
        %v6110 = vmul.f32 %v5597, %v5907
        %v6111 = vmul.f32 %v5598, %v5917
        %v6112 = vmul.f32 %v5599, %v5927
        %v6113 = vmul.f32 %v5600, %v5937
        %v6114 = vmul.f32 %v5601, %v5947
        %v6115 = vmul.f32 %v5602, %v5957
        %v6116 = vmul.f32 %v5603, %v5967
        %v6117 = vmul.f32 %v5604, %v5977
        %v6118 = vmul.f32 %v5605, %v5987
        %v6119 = vmul.f32 %v5606, %v5997
        %v6120 = vmul.f32 %v5607, %v6007
        %v6121 = vmul.f32 %v5608, %v6017
        %v6122 = vmul.f32 %v5609, %v6027
        %v6123 = vmul.f32 %v5610, %v6037
        %v6124 = vmul.f32 %v5611, %v6047
        %v6125 = vmul.f32 %v5612, %v6057
        %v6126 = vmul.f32 %v5613, %v6067
        %v6127 = vmul.f32 %v5614, %v6077
        %v6128 = vmul.f32 %v5615, %v6087
        %v6129 = vmul.f32 %v5616, %v6097
        %v6131 = vperm.slane %v5617, 0
        %v6133 = vmul.f32 %v6098, %v6131
        %v6134 = vmul.f32 %v6099, %v6131
        %v6135 = vmul.f32 %v6100, %v6131
        %v6136 = vmul.f32 %v6101, %v6131
        %v6137 = vmul.f32 %v6102, %v6131
        %v6138 = vmul.f32 %v6103, %v6131
        %v6139 = vmul.f32 %v6104, %v6131
        %v6140 = vmul.f32 %v6105, %v6131
        %v6141 = vmul.f32 %v6106, %v6131
        %v6142 = vmul.f32 %v6107, %v6131
        %v6143 = vmul.f32 %v6108, %v6131
        %v6144 = vmul.f32 %v6109, %v6131
        %v6145 = vmul.f32 %v6110, %v6131
        %v6146 = vmul.f32 %v6111, %v6131
        %v6147 = vmul.f32 %v6112, %v6131
        %v6148 = vmul.f32 %v6113, %v6131
        %v6149 = vmul.f32 %v6114, %v6131
        %v6150 = vmul.f32 %v6115, %v6131
        %v6151 = vmul.f32 %v6116, %v6131
        %v6152 = vmul.f32 %v6117, %v6131
        %v6153 = vmul.f32 %v6118, %v6131
        %v6154 = vmul.f32 %v6119, %v6131
        %v6155 = vmul.f32 %v6120, %v6131
        %v6156 = vmul.f32 %v6121, %v6131
        %v6157 = vmul.f32 %v6122, %v6131
        %v6158 = vmul.f32 %v6123, %v6131
        %v6159 = vmul.f32 %v6124, %v6131
        %v6160 = vmul.f32 %v6125, %v6131
        %v6161 = vmul.f32 %v6126, %v6131
        %v6162 = vmul.f32 %v6127, %v6131
        %v6163 = vmul.f32 %v6128, %v6131
        %v6164 = vmul.f32 %v6129, %v6131
        %v6165 = vpack.c.bf16 %v6134, %v6133
        %v6166 = vpack.c.bf16 %v6136, %v6135
        %v6167 = vpack.c.bf16 %v6138, %v6137
        %v6168 = vpack.c.bf16 %v6140, %v6139
        %v6169 = vpack.c.bf16 %v6142, %v6141
        %v6170 = vpack.c.bf16 %v6144, %v6143
        %v6171 = vpack.c.bf16 %v6146, %v6145
        %v6172 = vpack.c.bf16 %v6148, %v6147
        %v6173 = vpack.c.bf16 %v6150, %v6149
        %v6174 = vpack.c.bf16 %v6152, %v6151
        %v6175 = vpack.c.bf16 %v6154, %v6153
        %v6176 = vpack.c.bf16 %v6156, %v6155
        %v6177 = vpack.c.bf16 %v6158, %v6157
        %v6178 = vpack.c.bf16 %v6160, %v6159
        %v6179 = vpack.c.bf16 %v6162, %v6161
        %v6180 = vpack.c.bf16 %v6164, %v6163
        %v6181 = vld [vmem:[%s484] sm:$0xff]
        %v6182 = vld [vmem:[%s484 + $0x8] sm:$0xff]
        %v6183 = vld [vmem:[%s484 + $0x10] sm:$0xff]
        %v6184 = vld [vmem:[%s484 + $0x18] sm:$0xff]
        %v6185 = vld [vmem:[%s484 + $0x20] sm:$0xff]
        %v6186 = vld [vmem:[%s484 + $0x28] sm:$0xff]
        %v6187 = vld [vmem:[%s484 + $0x30] sm:$0xff]
        %v6188 = vld [vmem:[%s484 + $0x38] sm:$0xff]
        %v6189 = vld [vmem:[%s484 + $0x40] sm:$0xff]
        %v6190 = vld [vmem:[%s484 + $0x48] sm:$0xff]
        %v6191 = vld [vmem:[%s484 + $0x50] sm:$0xff]
        %v6192 = vld [vmem:[%s484 + $0x58] sm:$0xff]
        %v6193 = vld [vmem:[%s484 + $0x60] sm:$0xff]
        %v6194 = vld [vmem:[%s484 + $0x68] sm:$0xff]
        %v6195 = vld [vmem:[%s484 + $0x70] sm:$0xff]
        %v6196 = vld [vmem:[%s484 + $0x78] sm:$0xff]
        %v6197 = vld [vmem:[%s484 + $0x80] sm:$0xff]
        %v6198 = vld [vmem:[%s484 + $0x88] sm:$0xff]
        %v6199 = vld [vmem:[%s484 + $0x90] sm:$0xff]
        %v6200 = vld [vmem:[%s484 + $0x98] sm:$0xff]
        %v6201 = vld [vmem:[%s484 + $0xa0] sm:$0xff]
        %v6202 = vld [vmem:[%s484 + $0xa8] sm:$0xff]
        %v6203 = vld [vmem:[%s484 + $0xb0] sm:$0xff]
        %v6204 = vld [vmem:[%s484 + $0xb8] sm:$0xff]
        %v6205 = vld [vmem:[%s484 + $0xc0] sm:$0xff]
        %v6206 = vld [vmem:[%s484 + $0xc8] sm:$0xff]
        %v6207 = vld [vmem:[%s484 + $0xd0] sm:$0xff]
        %v6208 = vld [vmem:[%s484 + $0xd8] sm:$0xff]
        %v6209 = vld [vmem:[%s484 + $0xe0] sm:$0xff]
        %v6210 = vld [vmem:[%s484 + $0xe8] sm:$0xff]
        %v6211 = vld [vmem:[%s484 + $0xf0] sm:$0xff]
        %v6212 = vld [vmem:[%s484 + $0xf8] sm:$0xff]
        %v6245 = vunpack.c.l.b16 %v6181
        %v6246 = vunpack.c.h.b16 %v6181
        %v6247 = vunpack.c.l.b16 %v6182
        %v6248 = vunpack.c.h.b16 %v6182
        %v6249 = vunpack.c.l.b16 %v6183
        %v6250 = vunpack.c.h.b16 %v6183
        %v6251 = vunpack.c.l.b16 %v6184
        %v6252 = vunpack.c.h.b16 %v6184
        %v6253 = vunpack.c.l.b16 %v6185
        %v6254 = vunpack.c.h.b16 %v6185
        %v6255 = vunpack.c.l.b16 %v6186
        %v6256 = vunpack.c.h.b16 %v6186
        %v6257 = vunpack.c.l.b16 %v6187
        %v6258 = vunpack.c.h.b16 %v6187
        %v6259 = vunpack.c.l.b16 %v6188
        %v6260 = vunpack.c.h.b16 %v6188
        %v6261 = vunpack.c.l.b16 %v6189
        %v6262 = vunpack.c.h.b16 %v6189
        %v6263 = vunpack.c.l.b16 %v6190
        %v6264 = vunpack.c.h.b16 %v6190
        %v6265 = vunpack.c.l.b16 %v6191
        %v6266 = vunpack.c.h.b16 %v6191
        %v6267 = vunpack.c.l.b16 %v6192
        %v6268 = vunpack.c.h.b16 %v6192
        %v6269 = vunpack.c.l.b16 %v6193
        %v6270 = vunpack.c.h.b16 %v6193
        %v6271 = vunpack.c.l.b16 %v6194
        %v6272 = vunpack.c.h.b16 %v6194
        %v6273 = vunpack.c.l.b16 %v6195
        %v6274 = vunpack.c.h.b16 %v6195
        %v6275 = vunpack.c.l.b16 %v6196
        %v6276 = vunpack.c.h.b16 %v6196
        %v6277 = vunpack.c.l.b16 %v6197
        %v6278 = vunpack.c.h.b16 %v6197
        %v6279 = vunpack.c.l.b16 %v6198
        %v6280 = vunpack.c.h.b16 %v6198
        %v6281 = vunpack.c.l.b16 %v6199
        %v6282 = vunpack.c.h.b16 %v6199
        %v6283 = vunpack.c.l.b16 %v6200
        %v6284 = vunpack.c.h.b16 %v6200
        %v6285 = vunpack.c.l.b16 %v6201
        %v6286 = vunpack.c.h.b16 %v6201
        %v6287 = vunpack.c.l.b16 %v6202
        %v6288 = vunpack.c.h.b16 %v6202
        %v6289 = vunpack.c.l.b16 %v6203
        %v6290 = vunpack.c.h.b16 %v6203
        %v6291 = vunpack.c.l.b16 %v6204
        %v6292 = vunpack.c.h.b16 %v6204
        %v6293 = vunpack.c.l.b16 %v6205
        %v6294 = vunpack.c.h.b16 %v6205
        %v6295 = vunpack.c.l.b16 %v6206
        %v6296 = vunpack.c.h.b16 %v6206
        %v6297 = vunpack.c.l.b16 %v6207
        %v6298 = vunpack.c.h.b16 %v6207
        %v6299 = vunpack.c.l.b16 %v6208
        %v6300 = vunpack.c.h.b16 %v6208
        %v6301 = vunpack.c.l.b16 %v6209
        %v6302 = vunpack.c.h.b16 %v6209
        %v6303 = vunpack.c.l.b16 %v6210
        %v6304 = vunpack.c.h.b16 %v6210
        %v6305 = vunpack.c.l.b16 %v6211
        %v6306 = vunpack.c.h.b16 %v6211
        %v6307 = vunpack.c.l.b16 %v6212
        %v6308 = vunpack.c.h.b16 %v6212
        %v6309 = vpack.c.b16 %v6249, %v6245
        %v6310 = vpack.c.b16 %v6250, %v6246
        %v6311 = vpack.c.b16 %v6251, %v6247
        %v6312 = vpack.c.b16 %v6252, %v6248
        %v6313 = vpack.c.b16 %v6257, %v6253
        %v6314 = vpack.c.b16 %v6258, %v6254
        %v6315 = vpack.c.b16 %v6259, %v6255
        %v6316 = vpack.c.b16 %v6260, %v6256
        %v6317 = vpack.c.b16 %v6265, %v6261
        %v6318 = vpack.c.b16 %v6266, %v6262
        %v6319 = vpack.c.b16 %v6267, %v6263
        %v6320 = vpack.c.b16 %v6268, %v6264
        %v6321 = vpack.c.b16 %v6273, %v6269
        %v6322 = vpack.c.b16 %v6274, %v6270
        %v6323 = vpack.c.b16 %v6275, %v6271
        %v6324 = vpack.c.b16 %v6276, %v6272
        %v6325 = vpack.c.b16 %v6281, %v6277
        %v6326 = vpack.c.b16 %v6282, %v6278
        %v6327 = vpack.c.b16 %v6283, %v6279
        %v6328 = vpack.c.b16 %v6284, %v6280
        %v6329 = vpack.c.b16 %v6289, %v6285
        %v6330 = vpack.c.b16 %v6290, %v6286
        %v6331 = vpack.c.b16 %v6291, %v6287
        %v6332 = vpack.c.b16 %v6292, %v6288
        %v6333 = vpack.c.b16 %v6297, %v6293
        %v6334 = vpack.c.b16 %v6298, %v6294
        %v6335 = vpack.c.b16 %v6299, %v6295
        %v6336 = vpack.c.b16 %v6300, %v6296
        %v6337 = vpack.c.b16 %v6305, %v6301
        %v6338 = vpack.c.b16 %v6306, %v6302
        %v6339 = vpack.c.b16 %v6307, %v6303
        %v6340 = vpack.c.b16 %v6308, %v6304
        %6373 = vmatpush.bf16.msra.mxu0 %v6337
        %6374 = vmatpush.bf16.msra.mxu0 %v6333
        %6375 = vmatpush.bf16.msra.mxu0 %v6329
        %6376 = vmatpush.bf16.msra.mxu0 %v6325
        %6377 = vmatpush.bf16.msra.mxu0 %v6321
        %6378 = vmatpush.bf16.msra.mxu0 %v6317
        %6379 = vmatpush.bf16.msra.mxu0 %v6313
        %6380 = vmatpush.bf16.msra.mxu0 %v6309
        %6381 = vmatmul.bf16.gmra.mxu0 %v6165
        %v6382 = vpop.f32.mrf.mxu0
        %v6383 = vadd.f32 0.0, %v6382
        %v6384 = vpop.f32.mrf.mxu0
        %v6385 = vadd.f32 0.0, %v6384
        %6386 = vmatmul.bf16.gmra.mxu0 %v6166
        %v6387 = vpop.f32.mrf.mxu0
        %v6388 = vadd.f32 0.0, %v6387
        %v6389 = vpop.f32.mrf.mxu0
        %v6390 = vadd.f32 0.0, %v6389
        %6391 = vmatmul.bf16.gmra.mxu0 %v6167
        %v6392 = vpop.f32.mrf.mxu0
        %v6393 = vadd.f32 0.0, %v6392
        %v6394 = vpop.f32.mrf.mxu0
        %v6395 = vadd.f32 0.0, %v6394
        %6396 = vmatmul.bf16.gmra.mxu0 %v6168
        %v6397 = vpop.f32.mrf.mxu0
        %v6398 = vadd.f32 0.0, %v6397
        %v6399 = vpop.f32.mrf.mxu0
        %v6400 = vadd.f32 0.0, %v6399
        %6401 = vmatmul.bf16.gmra.mxu0 %v6169
        %v6402 = vpop.f32.mrf.mxu0
        %v6403 = vadd.f32 0.0, %v6402
        %v6404 = vpop.f32.mrf.mxu0
        %v6405 = vadd.f32 0.0, %v6404
        %6406 = vmatmul.bf16.gmra.mxu0 %v6170
        %v6407 = vpop.f32.mrf.mxu0
        %v6408 = vadd.f32 0.0, %v6407
        %v6409 = vpop.f32.mrf.mxu0
        %v6410 = vadd.f32 0.0, %v6409
        %6411 = vmatmul.bf16.gmra.mxu0 %v6171
        %v6412 = vpop.f32.mrf.mxu0
        %v6413 = vadd.f32 0.0, %v6412
        %v6414 = vpop.f32.mrf.mxu0
        %v6415 = vadd.f32 0.0, %v6414
        %6416 = vmatmul.bf16.gmra.mxu0 %v6172
        %v6417 = vpop.f32.mrf.mxu0
        %v6418 = vadd.f32 0.0, %v6417
        %v6419 = vpop.f32.mrf.mxu0
        %v6420 = vadd.f32 0.0, %v6419
        %6421 = vmatmul.bf16.gmra.mxu0 %v6173
        %v6422 = vpop.f32.mrf.mxu0
        %v6423 = vadd.f32 0.0, %v6422
        %v6424 = vpop.f32.mrf.mxu0
        %v6425 = vadd.f32 0.0, %v6424
        %6426 = vmatmul.bf16.gmra.mxu0 %v6174
        %v6427 = vpop.f32.mrf.mxu0
        %v6428 = vadd.f32 0.0, %v6427
        %v6429 = vpop.f32.mrf.mxu0
        %v6430 = vadd.f32 0.0, %v6429
        %6431 = vmatmul.bf16.gmra.mxu0 %v6175
        %v6432 = vpop.f32.mrf.mxu0
        %v6433 = vadd.f32 0.0, %v6432
        %v6434 = vpop.f32.mrf.mxu0
        %v6435 = vadd.f32 0.0, %v6434
        %6436 = vmatmul.bf16.gmra.mxu0 %v6176
        %v6437 = vpop.f32.mrf.mxu0
        %v6438 = vadd.f32 0.0, %v6437
        %v6439 = vpop.f32.mrf.mxu0
        %v6440 = vadd.f32 0.0, %v6439
        %6441 = vmatmul.bf16.gmra.mxu0 %v6177
        %v6442 = vpop.f32.mrf.mxu0
        %v6443 = vadd.f32 0.0, %v6442
        %v6444 = vpop.f32.mrf.mxu0
        %v6445 = vadd.f32 0.0, %v6444
        %6446 = vmatmul.bf16.gmra.mxu0 %v6178
        %v6447 = vpop.f32.mrf.mxu0
        %v6448 = vadd.f32 0.0, %v6447
        %v6449 = vpop.f32.mrf.mxu0
        %v6450 = vadd.f32 0.0, %v6449
        %6451 = vmatmul.bf16.gmra.mxu0 %v6179
        %v6452 = vpop.f32.mrf.mxu0
        %v6453 = vadd.f32 0.0, %v6452
        %v6454 = vpop.f32.mrf.mxu0
        %v6455 = vadd.f32 0.0, %v6454
        %6456 = vmatmul.bf16.gmra.mxu0 %v6180
        %v6457 = vpop.f32.mrf.mxu0
        %v6458 = vadd.f32 0.0, %v6457
        %v6459 = vpop.f32.mrf.mxu0
        %v6460 = vadd.f32 0.0, %v6459
        %6461 = vdwg.mxu0
        %6462 = vmatpush.bf16.msra.mxu0 %v6338
        %6463 = vmatpush.bf16.msra.mxu0 %v6334
        %6464 = vmatpush.bf16.msra.mxu0 %v6330
        %6465 = vmatpush.bf16.msra.mxu0 %v6326
        %6466 = vmatpush.bf16.msra.mxu0 %v6322
        %6467 = vmatpush.bf16.msra.mxu0 %v6318
        %6468 = vmatpush.bf16.msra.mxu0 %v6314
        %6469 = vmatpush.bf16.msra.mxu0 %v6310
        %6470 = vmatmul.bf16.gmra.mxu0 %v6165
        %v6471 = vpop.f32.mrf.mxu0
        %v6472 = vadd.f32 0.0, %v6471
        %v6473 = vpop.f32.mrf.mxu0
        %v6474 = vadd.f32 0.0, %v6473
        %6475 = vmatmul.bf16.gmra.mxu0 %v6166
        %v6476 = vpop.f32.mrf.mxu0
        %v6477 = vadd.f32 0.0, %v6476
        %v6478 = vpop.f32.mrf.mxu0
        %v6479 = vadd.f32 0.0, %v6478
        %6480 = vmatmul.bf16.gmra.mxu0 %v6167
        %v6481 = vpop.f32.mrf.mxu0
        %v6482 = vadd.f32 0.0, %v6481
        %v6483 = vpop.f32.mrf.mxu0
        %v6484 = vadd.f32 0.0, %v6483
        %6485 = vmatmul.bf16.gmra.mxu0 %v6168
        %v6486 = vpop.f32.mrf.mxu0
        %v6487 = vadd.f32 0.0, %v6486
        %v6488 = vpop.f32.mrf.mxu0
        %v6489 = vadd.f32 0.0, %v6488
        %6490 = vmatmul.bf16.gmra.mxu0 %v6169
        %v6491 = vpop.f32.mrf.mxu0
        %v6492 = vadd.f32 0.0, %v6491
        %v6493 = vpop.f32.mrf.mxu0
        %v6494 = vadd.f32 0.0, %v6493
        %6495 = vmatmul.bf16.gmra.mxu0 %v6170
        %v6496 = vpop.f32.mrf.mxu0
        %v6497 = vadd.f32 0.0, %v6496
        %v6498 = vpop.f32.mrf.mxu0
        %v6499 = vadd.f32 0.0, %v6498
        %6500 = vmatmul.bf16.gmra.mxu0 %v6171
        %v6501 = vpop.f32.mrf.mxu0
        %v6502 = vadd.f32 0.0, %v6501
        %v6503 = vpop.f32.mrf.mxu0
        %v6504 = vadd.f32 0.0, %v6503
        %6505 = vmatmul.bf16.gmra.mxu0 %v6172
        %v6506 = vpop.f32.mrf.mxu0
        %v6507 = vadd.f32 0.0, %v6506
        %v6508 = vpop.f32.mrf.mxu0
        %v6509 = vadd.f32 0.0, %v6508
        %6510 = vmatmul.bf16.gmra.mxu0 %v6173
        %v6511 = vpop.f32.mrf.mxu0
        %v6512 = vadd.f32 0.0, %v6511
        %v6513 = vpop.f32.mrf.mxu0
        %v6514 = vadd.f32 0.0, %v6513
        %6515 = vmatmul.bf16.gmra.mxu0 %v6174
        %v6516 = vpop.f32.mrf.mxu0
        %v6517 = vadd.f32 0.0, %v6516
        %v6518 = vpop.f32.mrf.mxu0
        %v6519 = vadd.f32 0.0, %v6518
        %6520 = vmatmul.bf16.gmra.mxu0 %v6175
        %v6521 = vpop.f32.mrf.mxu0
        %v6522 = vadd.f32 0.0, %v6521
        %v6523 = vpop.f32.mrf.mxu0
        %v6524 = vadd.f32 0.0, %v6523
        %6525 = vmatmul.bf16.gmra.mxu0 %v6176
        %v6526 = vpop.f32.mrf.mxu0
        %v6527 = vadd.f32 0.0, %v6526
        %v6528 = vpop.f32.mrf.mxu0
        %v6529 = vadd.f32 0.0, %v6528
        %6530 = vmatmul.bf16.gmra.mxu0 %v6177
        %v6531 = vpop.f32.mrf.mxu0
        %v6532 = vadd.f32 0.0, %v6531
        %v6533 = vpop.f32.mrf.mxu0
        %v6534 = vadd.f32 0.0, %v6533
        %6535 = vmatmul.bf16.gmra.mxu0 %v6178
        %v6536 = vpop.f32.mrf.mxu0
        %v6537 = vadd.f32 0.0, %v6536
        %v6538 = vpop.f32.mrf.mxu0
        %v6539 = vadd.f32 0.0, %v6538
        %6540 = vmatmul.bf16.gmra.mxu0 %v6179
        %v6541 = vpop.f32.mrf.mxu0
        %v6542 = vadd.f32 0.0, %v6541
        %v6543 = vpop.f32.mrf.mxu0
        %v6544 = vadd.f32 0.0, %v6543
        %6545 = vmatmul.bf16.gmra.mxu0 %v6180
        %v6546 = vpop.f32.mrf.mxu0
        %v6547 = vadd.f32 0.0, %v6546
        %v6548 = vpop.f32.mrf.mxu0
        %v6549 = vadd.f32 0.0, %v6548
        %6550 = vdwg.mxu0
        %6551 = vmatpush.bf16.msra.mxu0 %v6339
        %6552 = vmatpush.bf16.msra.mxu0 %v6335
        %6553 = vmatpush.bf16.msra.mxu0 %v6331
        %6554 = vmatpush.bf16.msra.mxu0 %v6327
        %6555 = vmatpush.bf16.msra.mxu0 %v6323
        %6556 = vmatpush.bf16.msra.mxu0 %v6319
        %6557 = vmatpush.bf16.msra.mxu0 %v6315
        %6558 = vmatpush.bf16.msra.mxu0 %v6311
        %6559 = vmatmul.bf16.gmra.mxu0 %v6165
        %v6560 = vpop.f32.mrf.mxu0
        %v6561 = vadd.f32 0.0, %v6560
        %v6562 = vpop.f32.mrf.mxu0
        %v6563 = vadd.f32 0.0, %v6562
        %6564 = vmatmul.bf16.gmra.mxu0 %v6166
        %v6565 = vpop.f32.mrf.mxu0
        %v6566 = vadd.f32 0.0, %v6565
        %v6567 = vpop.f32.mrf.mxu0
        %v6568 = vadd.f32 0.0, %v6567
        %6569 = vmatmul.bf16.gmra.mxu0 %v6167
        %v6570 = vpop.f32.mrf.mxu0
        %v6571 = vadd.f32 0.0, %v6570
        %v6572 = vpop.f32.mrf.mxu0
        %v6573 = vadd.f32 0.0, %v6572
        %6574 = vmatmul.bf16.gmra.mxu0 %v6168
        %v6575 = vpop.f32.mrf.mxu0
        %v6576 = vadd.f32 0.0, %v6575
        %v6577 = vpop.f32.mrf.mxu0
        %v6578 = vadd.f32 0.0, %v6577
        %6579 = vmatmul.bf16.gmra.mxu0 %v6169
        %v6580 = vpop.f32.mrf.mxu0
        %v6581 = vadd.f32 0.0, %v6580
        %v6582 = vpop.f32.mrf.mxu0
        %v6583 = vadd.f32 0.0, %v6582
        %6584 = vmatmul.bf16.gmra.mxu0 %v6170
        %v6585 = vpop.f32.mrf.mxu0
        %v6586 = vadd.f32 0.0, %v6585
        %v6587 = vpop.f32.mrf.mxu0
        %v6588 = vadd.f32 0.0, %v6587
        %6589 = vmatmul.bf16.gmra.mxu0 %v6171
        %v6590 = vpop.f32.mrf.mxu0
        %v6591 = vadd.f32 0.0, %v6590
        %v6592 = vpop.f32.mrf.mxu0
        %v6593 = vadd.f32 0.0, %v6592
        %6594 = vmatmul.bf16.gmra.mxu0 %v6172
        %v6595 = vpop.f32.mrf.mxu0
        %v6596 = vadd.f32 0.0, %v6595
        %v6597 = vpop.f32.mrf.mxu0
        %v6598 = vadd.f32 0.0, %v6597
        %6599 = vmatmul.bf16.gmra.mxu0 %v6173
        %v6600 = vpop.f32.mrf.mxu0
        %v6601 = vadd.f32 0.0, %v6600
        %v6602 = vpop.f32.mrf.mxu0
        %v6603 = vadd.f32 0.0, %v6602
        %6604 = vmatmul.bf16.gmra.mxu0 %v6174
        %v6605 = vpop.f32.mrf.mxu0
        %v6606 = vadd.f32 0.0, %v6605
        %v6607 = vpop.f32.mrf.mxu0
        %v6608 = vadd.f32 0.0, %v6607
        %6609 = vmatmul.bf16.gmra.mxu0 %v6175
        %v6610 = vpop.f32.mrf.mxu0
        %v6611 = vadd.f32 0.0, %v6610
        %v6612 = vpop.f32.mrf.mxu0
        %v6613 = vadd.f32 0.0, %v6612
        %6614 = vmatmul.bf16.gmra.mxu0 %v6176
        %v6615 = vpop.f32.mrf.mxu0
        %v6616 = vadd.f32 0.0, %v6615
        %v6617 = vpop.f32.mrf.mxu0
        %v6618 = vadd.f32 0.0, %v6617
        %6619 = vmatmul.bf16.gmra.mxu0 %v6177
        %v6620 = vpop.f32.mrf.mxu0
        %v6621 = vadd.f32 0.0, %v6620
        %v6622 = vpop.f32.mrf.mxu0
        %v6623 = vadd.f32 0.0, %v6622
        %6624 = vmatmul.bf16.gmra.mxu0 %v6178
        %v6625 = vpop.f32.mrf.mxu0
        %v6626 = vadd.f32 0.0, %v6625
        %v6627 = vpop.f32.mrf.mxu0
        %v6628 = vadd.f32 0.0, %v6627
        %6629 = vmatmul.bf16.gmra.mxu0 %v6179
        %v6630 = vpop.f32.mrf.mxu0
        %v6631 = vadd.f32 0.0, %v6630
        %v6632 = vpop.f32.mrf.mxu0
        %v6633 = vadd.f32 0.0, %v6632
        %6634 = vmatmul.bf16.gmra.mxu0 %v6180
        %v6635 = vpop.f32.mrf.mxu0
        %v6636 = vadd.f32 0.0, %v6635
        %v6637 = vpop.f32.mrf.mxu0
        %v6638 = vadd.f32 0.0, %v6637
        %6639 = vdwg.mxu0
        %6640 = vmatpush.bf16.msra.mxu0 %v6340
        %6641 = vmatpush.bf16.msra.mxu0 %v6336
        %6642 = vmatpush.bf16.msra.mxu0 %v6332
        %6643 = vmatpush.bf16.msra.mxu0 %v6328
        %6644 = vmatpush.bf16.msra.mxu0 %v6324
        %6645 = vmatpush.bf16.msra.mxu0 %v6320
        %6646 = vmatpush.bf16.msra.mxu0 %v6316
        %6647 = vmatpush.bf16.msra.mxu0 %v6312
        %6648 = vmatmul.bf16.gmra.mxu0 %v6165
        %v6649 = vpop.f32.mrf.mxu0
        %v6650 = vadd.f32 0.0, %v6649
        %v6651 = vpop.f32.mrf.mxu0
        %v6652 = vadd.f32 0.0, %v6651
        %6653 = vmatmul.bf16.gmra.mxu0 %v6166
        %v6654 = vpop.f32.mrf.mxu0
        %v6655 = vadd.f32 0.0, %v6654
        %v6656 = vpop.f32.mrf.mxu0
        %v6657 = vadd.f32 0.0, %v6656
        %6658 = vmatmul.bf16.gmra.mxu0 %v6167
        %v6659 = vpop.f32.mrf.mxu0
        %v6660 = vadd.f32 0.0, %v6659
        %v6661 = vpop.f32.mrf.mxu0
        %v6662 = vadd.f32 0.0, %v6661
        %6663 = vmatmul.bf16.gmra.mxu0 %v6168
        %v6664 = vpop.f32.mrf.mxu0
        %v6665 = vadd.f32 0.0, %v6664
        %v6666 = vpop.f32.mrf.mxu0
        %v6667 = vadd.f32 0.0, %v6666
        %6668 = vmatmul.bf16.gmra.mxu0 %v6169
        %v6669 = vpop.f32.mrf.mxu0
        %v6670 = vadd.f32 0.0, %v6669
        %v6671 = vpop.f32.mrf.mxu0
        %v6672 = vadd.f32 0.0, %v6671
        %6673 = vmatmul.bf16.gmra.mxu0 %v6170
        %v6674 = vpop.f32.mrf.mxu0
        %v6675 = vadd.f32 0.0, %v6674
        %v6676 = vpop.f32.mrf.mxu0
        %v6677 = vadd.f32 0.0, %v6676
        %6678 = vmatmul.bf16.gmra.mxu0 %v6171
        %v6679 = vpop.f32.mrf.mxu0
        %v6680 = vadd.f32 0.0, %v6679
        %v6681 = vpop.f32.mrf.mxu0
        %v6682 = vadd.f32 0.0, %v6681
        %6683 = vmatmul.bf16.gmra.mxu0 %v6172
        %v6684 = vpop.f32.mrf.mxu0
        %v6685 = vadd.f32 0.0, %v6684
        %v6686 = vpop.f32.mrf.mxu0
        %v6687 = vadd.f32 0.0, %v6686
        %6688 = vmatmul.bf16.gmra.mxu0 %v6173
        %v6689 = vpop.f32.mrf.mxu0
        %v6690 = vadd.f32 0.0, %v6689
        %v6691 = vpop.f32.mrf.mxu0
        %v6692 = vadd.f32 0.0, %v6691
        %6693 = vmatmul.bf16.gmra.mxu0 %v6174
        %v6694 = vpop.f32.mrf.mxu0
        %v6695 = vadd.f32 0.0, %v6694
        %v6696 = vpop.f32.mrf.mxu0
        %v6697 = vadd.f32 0.0, %v6696
        %6698 = vmatmul.bf16.gmra.mxu0 %v6175
        %v6699 = vpop.f32.mrf.mxu0
        %v6700 = vadd.f32 0.0, %v6699
        %v6701 = vpop.f32.mrf.mxu0
        %v6702 = vadd.f32 0.0, %v6701
        %6703 = vmatmul.bf16.gmra.mxu0 %v6176
        %v6704 = vpop.f32.mrf.mxu0
        %v6705 = vadd.f32 0.0, %v6704
        %v6706 = vpop.f32.mrf.mxu0
        %v6707 = vadd.f32 0.0, %v6706
        %6708 = vmatmul.bf16.gmra.mxu0 %v6177
        %v6709 = vpop.f32.mrf.mxu0
        %v6710 = vadd.f32 0.0, %v6709
        %v6711 = vpop.f32.mrf.mxu0
        %v6712 = vadd.f32 0.0, %v6711
        %6713 = vmatmul.bf16.gmra.mxu0 %v6178
        %v6714 = vpop.f32.mrf.mxu0
        %v6715 = vadd.f32 0.0, %v6714
        %v6716 = vpop.f32.mrf.mxu0
        %v6717 = vadd.f32 0.0, %v6716
        %6718 = vmatmul.bf16.gmra.mxu0 %v6179
        %v6719 = vpop.f32.mrf.mxu0
        %v6720 = vadd.f32 0.0, %v6719
        %v6721 = vpop.f32.mrf.mxu0
        %v6722 = vadd.f32 0.0, %v6721
        %6723 = vmatmul.bf16.gmra.mxu0 %v6180
        %v6724 = vpop.f32.mrf.mxu0
        %v6725 = vadd.f32 0.0, %v6724
        %v6726 = vpop.f32.mrf.mxu0
        %v6727 = vadd.f32 0.0, %v6726
        %6728 = vdwg.mxu0
        %v6729 = vmul.f32 %v6383, 0.5
        %v6730 = vmul.f32 %v6472, 0.5
        %v6731 = vmul.f32 %v6385, 0.5
        %v6732 = vmul.f32 %v6474, 0.5
        %v6733 = vmul.f32 %v6388, 0.5
        %v6734 = vmul.f32 %v6477, 0.5
        %v6735 = vmul.f32 %v6390, 0.5
        %v6736 = vmul.f32 %v6479, 0.5
        %v6737 = vmul.f32 %v6393, 0.5
        %v6738 = vmul.f32 %v6482, 0.5
        %v6739 = vmul.f32 %v6395, 0.5
        %v6740 = vmul.f32 %v6484, 0.5
        %v6741 = vmul.f32 %v6398, 0.5
        %v6742 = vmul.f32 %v6487, 0.5
        %v6743 = vmul.f32 %v6400, 0.5
        %v6744 = vmul.f32 %v6489, 0.5
        %v6745 = vmul.f32 %v6403, 0.5
        %v6746 = vmul.f32 %v6492, 0.5
        %v6747 = vmul.f32 %v6405, 0.5
        %v6748 = vmul.f32 %v6494, 0.5
        %v6749 = vmul.f32 %v6408, 0.5
        %v6750 = vmul.f32 %v6497, 0.5
        %v6751 = vmul.f32 %v6410, 0.5
        %v6752 = vmul.f32 %v6499, 0.5
        %v6753 = vmul.f32 %v6413, 0.5
        %v6754 = vmul.f32 %v6502, 0.5
        %v6755 = vmul.f32 %v6415, 0.5
        %v6756 = vmul.f32 %v6504, 0.5
        %v6757 = vmul.f32 %v6418, 0.5
        %v6758 = vmul.f32 %v6507, 0.5
        %v6759 = vmul.f32 %v6420, 0.5
        %v6760 = vmul.f32 %v6509, 0.5
        %v6761 = vmul.f32 %v6423, 0.5
        %v6762 = vmul.f32 %v6512, 0.5
        %v6763 = vmul.f32 %v6425, 0.5
        %v6764 = vmul.f32 %v6514, 0.5
        %v6765 = vmul.f32 %v6428, 0.5
        %v6766 = vmul.f32 %v6517, 0.5
        %v6767 = vmul.f32 %v6430, 0.5
        %v6768 = vmul.f32 %v6519, 0.5
        %v6769 = vmul.f32 %v6433, 0.5
        %v6770 = vmul.f32 %v6522, 0.5
        %v6771 = vmul.f32 %v6435, 0.5
        %v6772 = vmul.f32 %v6524, 0.5
        %v6773 = vmul.f32 %v6438, 0.5
        %v6774 = vmul.f32 %v6527, 0.5
        %v6775 = vmul.f32 %v6440, 0.5
        %v6776 = vmul.f32 %v6529, 0.5
        %v6777 = vmul.f32 %v6443, 0.5
        %v6778 = vmul.f32 %v6532, 0.5
        %v6779 = vmul.f32 %v6445, 0.5
        %v6780 = vmul.f32 %v6534, 0.5
        %v6781 = vmul.f32 %v6448, 0.5
        %v6782 = vmul.f32 %v6537, 0.5
        %v6783 = vmul.f32 %v6450, 0.5
        %v6784 = vmul.f32 %v6539, 0.5
        %v6785 = vmul.f32 %v6453, 0.5
        %v6786 = vmul.f32 %v6542, 0.5
        %v6787 = vmul.f32 %v6455, 0.5
        %v6788 = vmul.f32 %v6544, 0.5
        %v6789 = vmul.f32 %v6458, 0.5
        %v6790 = vmul.f32 %v6547, 0.5
        %v6791 = vmul.f32 %v6460, 0.5
        %v6792 = vmul.f32 %v6549, 0.5
        %v6793 = vmul.f32 %v6383, 0.044715
        %v6794 = vmul.f32 %v6472, 0.044715
        %v6795 = vmul.f32 %v6385, 0.044715
        %v6796 = vmul.f32 %v6474, 0.044715
        %v6797 = vmul.f32 %v6388, 0.044715
        %v6798 = vmul.f32 %v6477, 0.044715
        %v6799 = vmul.f32 %v6390, 0.044715
        %v6800 = vmul.f32 %v6479, 0.044715
        %v6801 = vmul.f32 %v6393, 0.044715
        %v6802 = vmul.f32 %v6482, 0.044715
        %v6803 = vmul.f32 %v6395, 0.044715
        %v6804 = vmul.f32 %v6484, 0.044715
        %v6805 = vmul.f32 %v6398, 0.044715
        %v6806 = vmul.f32 %v6487, 0.044715
        %v6807 = vmul.f32 %v6400, 0.044715
        %v6808 = vmul.f32 %v6489, 0.044715
        %v6809 = vmul.f32 %v6403, 0.044715
        %v6810 = vmul.f32 %v6492, 0.044715
        %v6811 = vmul.f32 %v6405, 0.044715
        %v6812 = vmul.f32 %v6494, 0.044715
        %v6813 = vmul.f32 %v6408, 0.044715
        %v6814 = vmul.f32 %v6497, 0.044715
        %v6815 = vmul.f32 %v6410, 0.044715
        %v6816 = vmul.f32 %v6499, 0.044715
        %v6817 = vmul.f32 %v6413, 0.044715
        %v6818 = vmul.f32 %v6502, 0.044715
        %v6819 = vmul.f32 %v6415, 0.044715
        %v6820 = vmul.f32 %v6504, 0.044715
        %v6821 = vmul.f32 %v6418, 0.044715
        %v6822 = vmul.f32 %v6507, 0.044715
        %v6823 = vmul.f32 %v6420, 0.044715
        %v6824 = vmul.f32 %v6509, 0.044715
        %v6825 = vmul.f32 %v6423, 0.044715
        %v6826 = vmul.f32 %v6512, 0.044715
        %v6827 = vmul.f32 %v6425, 0.044715
        %v6828 = vmul.f32 %v6514, 0.044715
        %v6829 = vmul.f32 %v6428, 0.044715
        %v6830 = vmul.f32 %v6517, 0.044715
        %v6831 = vmul.f32 %v6430, 0.044715
        %v6832 = vmul.f32 %v6519, 0.044715
        %v6833 = vmul.f32 %v6433, 0.044715
        %v6834 = vmul.f32 %v6522, 0.044715
        %v6835 = vmul.f32 %v6435, 0.044715
        %v6836 = vmul.f32 %v6524, 0.044715
        %v6837 = vmul.f32 %v6438, 0.044715
        %v6838 = vmul.f32 %v6527, 0.044715
        %v6839 = vmul.f32 %v6440, 0.044715
        %v6840 = vmul.f32 %v6529, 0.044715
        %v6841 = vmul.f32 %v6443, 0.044715
        %v6842 = vmul.f32 %v6532, 0.044715
        %v6843 = vmul.f32 %v6445, 0.044715
        %v6844 = vmul.f32 %v6534, 0.044715
        %v6845 = vmul.f32 %v6448, 0.044715
        %v6846 = vmul.f32 %v6537, 0.044715
        %v6847 = vmul.f32 %v6450, 0.044715
        %v6848 = vmul.f32 %v6539, 0.044715
        %v6849 = vmul.f32 %v6453, 0.044715
        %v6850 = vmul.f32 %v6542, 0.044715
        %v6851 = vmul.f32 %v6455, 0.044715
        %v6852 = vmul.f32 %v6544, 0.044715
        %v6853 = vmul.f32 %v6458, 0.044715
        %v6854 = vmul.f32 %v6547, 0.044715
        %v6855 = vmul.f32 %v6460, 0.044715
        %v6856 = vmul.f32 %v6549, 0.044715
        %v6857 = vmul.f32 %v6793, %v6383
        %v6858 = vmul.f32 %v6794, %v6472
        %v6859 = vmul.f32 %v6795, %v6385
        %v6860 = vmul.f32 %v6796, %v6474
        %v6861 = vmul.f32 %v6797, %v6388
        %v6862 = vmul.f32 %v6798, %v6477
        %v6863 = vmul.f32 %v6799, %v6390
        %v6864 = vmul.f32 %v6800, %v6479
        %v6865 = vmul.f32 %v6801, %v6393
        %v6866 = vmul.f32 %v6802, %v6482
        %v6867 = vmul.f32 %v6803, %v6395
        %v6868 = vmul.f32 %v6804, %v6484
        %v6869 = vmul.f32 %v6805, %v6398
        %v6870 = vmul.f32 %v6806, %v6487
        %v6871 = vmul.f32 %v6807, %v6400
        %v6872 = vmul.f32 %v6808, %v6489
        %v6873 = vmul.f32 %v6809, %v6403
        %v6874 = vmul.f32 %v6810, %v6492
        %v6875 = vmul.f32 %v6811, %v6405
        %v6876 = vmul.f32 %v6812, %v6494
        %v6877 = vmul.f32 %v6813, %v6408
        %v6878 = vmul.f32 %v6814, %v6497
        %v6879 = vmul.f32 %v6815, %v6410
        %v6880 = vmul.f32 %v6816, %v6499
        %v6881 = vmul.f32 %v6817, %v6413
        %v6882 = vmul.f32 %v6818, %v6502
        %v6883 = vmul.f32 %v6819, %v6415
        %v6884 = vmul.f32 %v6820, %v6504
        %v6885 = vmul.f32 %v6821, %v6418
        %v6886 = vmul.f32 %v6822, %v6507
        %v6887 = vmul.f32 %v6823, %v6420
        %v6888 = vmul.f32 %v6824, %v6509
        %v6889 = vmul.f32 %v6825, %v6423
        %v6890 = vmul.f32 %v6826, %v6512
        %v6891 = vmul.f32 %v6827, %v6425
        %v6892 = vmul.f32 %v6828, %v6514
        %v6893 = vmul.f32 %v6829, %v6428
        %v6894 = vmul.f32 %v6830, %v6517
        %v6895 = vmul.f32 %v6831, %v6430
        %v6896 = vmul.f32 %v6832, %v6519
        %v6897 = vmul.f32 %v6833, %v6433
        %v6898 = vmul.f32 %v6834, %v6522
        %v6899 = vmul.f32 %v6835, %v6435
        %v6900 = vmul.f32 %v6836, %v6524
        %v6901 = vmul.f32 %v6837, %v6438
        %v6902 = vmul.f32 %v6838, %v6527
        %v6903 = vmul.f32 %v6839, %v6440
        %v6904 = vmul.f32 %v6840, %v6529
        %v6905 = vmul.f32 %v6841, %v6443
        %v6906 = vmul.f32 %v6842, %v6532
        %v6907 = vmul.f32 %v6843, %v6445
        %v6908 = vmul.f32 %v6844, %v6534
        %v6909 = vmul.f32 %v6845, %v6448
        %v6910 = vmul.f32 %v6846, %v6537
        %v6911 = vmul.f32 %v6847, %v6450
        %v6912 = vmul.f32 %v6848, %v6539
        %v6913 = vmul.f32 %v6849, %v6453
        %v6914 = vmul.f32 %v6850, %v6542
        %v6915 = vmul.f32 %v6851, %v6455
        %v6916 = vmul.f32 %v6852, %v6544
        %v6917 = vmul.f32 %v6853, %v6458
        %v6918 = vmul.f32 %v6854, %v6547
        %v6919 = vmul.f32 %v6855, %v6460
        %v6920 = vmul.f32 %v6856, %v6549
        %v6921 = vmul.f32 %v6857, %v6383
        %v6922 = vmul.f32 %v6858, %v6472
        %v6923 = vmul.f32 %v6859, %v6385
        %v6924 = vmul.f32 %v6860, %v6474
        %v6925 = vmul.f32 %v6861, %v6388
        %v6926 = vmul.f32 %v6862, %v6477
        %v6927 = vmul.f32 %v6863, %v6390
        %v6928 = vmul.f32 %v6864, %v6479
        %v6929 = vmul.f32 %v6865, %v6393
        %v6930 = vmul.f32 %v6866, %v6482
        %v6931 = vmul.f32 %v6867, %v6395
        %v6932 = vmul.f32 %v6868, %v6484
        %v6933 = vmul.f32 %v6869, %v6398
        %v6934 = vmul.f32 %v6870, %v6487
        %v6935 = vmul.f32 %v6871, %v6400
        %v6936 = vmul.f32 %v6872, %v6489
        %v6937 = vmul.f32 %v6873, %v6403
        %v6938 = vmul.f32 %v6874, %v6492
        %v6939 = vmul.f32 %v6875, %v6405
        %v6940 = vmul.f32 %v6876, %v6494
        %v6941 = vmul.f32 %v6877, %v6408
        %v6942 = vmul.f32 %v6878, %v6497
        %v6943 = vmul.f32 %v6879, %v6410
        %v6944 = vmul.f32 %v6880, %v6499
        %v6945 = vmul.f32 %v6881, %v6413
        %v6946 = vmul.f32 %v6882, %v6502
        %v6947 = vmul.f32 %v6883, %v6415
        %v6948 = vmul.f32 %v6884, %v6504
        %v6949 = vmul.f32 %v6885, %v6418
        %v6950 = vmul.f32 %v6886, %v6507
        %v6951 = vmul.f32 %v6887, %v6420
        %v6952 = vmul.f32 %v6888, %v6509
        %v6953 = vmul.f32 %v6889, %v6423
        %v6954 = vmul.f32 %v6890, %v6512
        %v6955 = vmul.f32 %v6891, %v6425
        %v6956 = vmul.f32 %v6892, %v6514
        %v6957 = vmul.f32 %v6893, %v6428
        %v6958 = vmul.f32 %v6894, %v6517
        %v6959 = vmul.f32 %v6895, %v6430
        %v6960 = vmul.f32 %v6896, %v6519
        %v6961 = vmul.f32 %v6897, %v6433
        %v6962 = vmul.f32 %v6898, %v6522
        %v6963 = vmul.f32 %v6899, %v6435
        %v6964 = vmul.f32 %v6900, %v6524
        %v6965 = vmul.f32 %v6901, %v6438
        %v6966 = vmul.f32 %v6902, %v6527
        %v6967 = vmul.f32 %v6903, %v6440
        %v6968 = vmul.f32 %v6904, %v6529
        %v6969 = vmul.f32 %v6905, %v6443
        %v6970 = vmul.f32 %v6906, %v6532
        %v6971 = vmul.f32 %v6907, %v6445
        %v6972 = vmul.f32 %v6908, %v6534
        %v6973 = vmul.f32 %v6909, %v6448
        %v6974 = vmul.f32 %v6910, %v6537
        %v6975 = vmul.f32 %v6911, %v6450
        %v6976 = vmul.f32 %v6912, %v6539
        %v6977 = vmul.f32 %v6913, %v6453
        %v6978 = vmul.f32 %v6914, %v6542
        %v6979 = vmul.f32 %v6915, %v6455
        %v6980 = vmul.f32 %v6916, %v6544
        %v6981 = vmul.f32 %v6917, %v6458
        %v6982 = vmul.f32 %v6918, %v6547
        %v6983 = vmul.f32 %v6919, %v6460
        %v6984 = vmul.f32 %v6920, %v6549
        %v6985 = vadd.f32 %v6383, %v6921
        %v6986 = vadd.f32 %v6472, %v6922
        %v6987 = vadd.f32 %v6385, %v6923
        %v6988 = vadd.f32 %v6474, %v6924
        %v6989 = vadd.f32 %v6388, %v6925
        %v6990 = vadd.f32 %v6477, %v6926
        %v6991 = vadd.f32 %v6390, %v6927
        %v6992 = vadd.f32 %v6479, %v6928
        %v6993 = vadd.f32 %v6393, %v6929
        %v6994 = vadd.f32 %v6482, %v6930
        %v6995 = vadd.f32 %v6395, %v6931
        %v6996 = vadd.f32 %v6484, %v6932
        %v6997 = vadd.f32 %v6398, %v6933
        %v6998 = vadd.f32 %v6487, %v6934
        %v6999 = vadd.f32 %v6400, %v6935
        %v7000 = vadd.f32 %v6489, %v6936
        %v7001 = vadd.f32 %v6403, %v6937
        %v7002 = vadd.f32 %v6492, %v6938
        %v7003 = vadd.f32 %v6405, %v6939
        %v7004 = vadd.f32 %v6494, %v6940
        %v7005 = vadd.f32 %v6408, %v6941
        %v7006 = vadd.f32 %v6497, %v6942
        %v7007 = vadd.f32 %v6410, %v6943
        %v7008 = vadd.f32 %v6499, %v6944
        %v7009 = vadd.f32 %v6413, %v6945
        %v7010 = vadd.f32 %v6502, %v6946
        %v7011 = vadd.f32 %v6415, %v6947
        %v7012 = vadd.f32 %v6504, %v6948
        %v7013 = vadd.f32 %v6418, %v6949
        %v7014 = vadd.f32 %v6507, %v6950
        %v7015 = vadd.f32 %v6420, %v6951
        %v7016 = vadd.f32 %v6509, %v6952
        %v7017 = vadd.f32 %v6423, %v6953
        %v7018 = vadd.f32 %v6512, %v6954
        %v7019 = vadd.f32 %v6425, %v6955
        %v7020 = vadd.f32 %v6514, %v6956
        %v7021 = vadd.f32 %v6428, %v6957
        %v7022 = vadd.f32 %v6517, %v6958
        %v7023 = vadd.f32 %v6430, %v6959
        %v7024 = vadd.f32 %v6519, %v6960
        %v7025 = vadd.f32 %v6433, %v6961
        %v7026 = vadd.f32 %v6522, %v6962
        %v7027 = vadd.f32 %v6435, %v6963
        %v7028 = vadd.f32 %v6524, %v6964
        %v7029 = vadd.f32 %v6438, %v6965
        %v7030 = vadd.f32 %v6527, %v6966
        %v7031 = vadd.f32 %v6440, %v6967
        %v7032 = vadd.f32 %v6529, %v6968
        %v7033 = vadd.f32 %v6443, %v6969
        %v7034 = vadd.f32 %v6532, %v6970
        %v7035 = vadd.f32 %v6445, %v6971
        %v7036 = vadd.f32 %v6534, %v6972
        %v7037 = vadd.f32 %v6448, %v6973
        %v7038 = vadd.f32 %v6537, %v6974
        %v7039 = vadd.f32 %v6450, %v6975
        %v7040 = vadd.f32 %v6539, %v6976
        %v7041 = vadd.f32 %v6453, %v6977
        %v7042 = vadd.f32 %v6542, %v6978
        %v7043 = vadd.f32 %v6455, %v6979
        %v7044 = vadd.f32 %v6544, %v6980
        %v7045 = vadd.f32 %v6458, %v6981
        %v7046 = vadd.f32 %v6547, %v6982
        %v7047 = vadd.f32 %v6460, %v6983
        %v7048 = vadd.f32 %v6549, %v6984
        %v7049 = vmul.f32 %v6985, 0.7978846
        %v7050 = vmul.f32 %v6986, 0.7978846
        %v7051 = vmul.f32 %v6987, 0.7978846
        %v7052 = vmul.f32 %v6988, 0.7978846
        %v7053 = vmul.f32 %v6989, 0.7978846
        %v7054 = vmul.f32 %v6990, 0.7978846
        %v7055 = vmul.f32 %v6991, 0.7978846
        %v7056 = vmul.f32 %v6992, 0.7978846
        %v7057 = vmul.f32 %v6993, 0.7978846
        %v7058 = vmul.f32 %v6994, 0.7978846
        %v7059 = vmul.f32 %v6995, 0.7978846
        %v7060 = vmul.f32 %v6996, 0.7978846
        %v7061 = vmul.f32 %v6997, 0.7978846
        %v7062 = vmul.f32 %v6998, 0.7978846
        %v7063 = vmul.f32 %v6999, 0.7978846
        %v7064 = vmul.f32 %v7000, 0.7978846
        %v7065 = vmul.f32 %v7001, 0.7978846
        %v7066 = vmul.f32 %v7002, 0.7978846
        %v7067 = vmul.f32 %v7003, 0.7978846
        %v7068 = vmul.f32 %v7004, 0.7978846
        %v7069 = vmul.f32 %v7005, 0.7978846
        %v7070 = vmul.f32 %v7006, 0.7978846
        %v7071 = vmul.f32 %v7007, 0.7978846
        %v7072 = vmul.f32 %v7008, 0.7978846
        %v7073 = vmul.f32 %v7009, 0.7978846
        %v7074 = vmul.f32 %v7010, 0.7978846
        %v7075 = vmul.f32 %v7011, 0.7978846
        %v7076 = vmul.f32 %v7012, 0.7978846
        %v7077 = vmul.f32 %v7013, 0.7978846
        %v7078 = vmul.f32 %v7014, 0.7978846
        %v7079 = vmul.f32 %v7015, 0.7978846
        %v7080 = vmul.f32 %v7016, 0.7978846
        %v7081 = vmul.f32 %v7017, 0.7978846
        %v7082 = vmul.f32 %v7018, 0.7978846
        %v7083 = vmul.f32 %v7019, 0.7978846
        %v7084 = vmul.f32 %v7020, 0.7978846
        %v7085 = vmul.f32 %v7021, 0.7978846
        %v7086 = vmul.f32 %v7022, 0.7978846
        %v7087 = vmul.f32 %v7023, 0.7978846
        %v7088 = vmul.f32 %v7024, 0.7978846
        %v7089 = vmul.f32 %v7025, 0.7978846
        %v7090 = vmul.f32 %v7026, 0.7978846
        %v7091 = vmul.f32 %v7027, 0.7978846
        %v7092 = vmul.f32 %v7028, 0.7978846
        %v7093 = vmul.f32 %v7029, 0.7978846
        %v7094 = vmul.f32 %v7030, 0.7978846
        %v7095 = vmul.f32 %v7031, 0.7978846
        %v7096 = vmul.f32 %v7032, 0.7978846
        %v7097 = vmul.f32 %v7033, 0.7978846
        %v7098 = vmul.f32 %v7034, 0.7978846
        %v7099 = vmul.f32 %v7035, 0.7978846
        %v7100 = vmul.f32 %v7036, 0.7978846
        %v7101 = vmul.f32 %v7037, 0.7978846
        %v7102 = vmul.f32 %v7038, 0.7978846
        %v7103 = vmul.f32 %v7039, 0.7978846
        %v7104 = vmul.f32 %v7040, 0.7978846
        %v7105 = vmul.f32 %v7041, 0.7978846
        %v7106 = vmul.f32 %v7042, 0.7978846
        %v7107 = vmul.f32 %v7043, 0.7978846
        %v7108 = vmul.f32 %v7044, 0.7978846
        %v7109 = vmul.f32 %v7045, 0.7978846
        %v7110 = vmul.f32 %v7046, 0.7978846
        %v7111 = vmul.f32 %v7047, 0.7978846
        %v7112 = vmul.f32 %v7048, 0.7978846
        %v7113 = vtanh.pop %v7049
        %v7114 = vtanh.pop %v7050
        %v7115 = vtanh.pop %v7051
        %v7116 = vtanh.pop %v7052
        %v7117 = vtanh.pop %v7053
        %v7118 = vtanh.pop %v7054
        %v7119 = vtanh.pop %v7055
        %v7120 = vtanh.pop %v7056
        %v7121 = vtanh.pop %v7057
        %v7122 = vtanh.pop %v7058
        %v7123 = vtanh.pop %v7059
        %v7124 = vtanh.pop %v7060
        %v7125 = vtanh.pop %v7061
        %v7126 = vtanh.pop %v7062
        %v7127 = vtanh.pop %v7063
        %v7128 = vtanh.pop %v7064
        %v7129 = vtanh.pop %v7065
        %v7130 = vtanh.pop %v7066
        %v7131 = vtanh.pop %v7067
        %v7132 = vtanh.pop %v7068
        %v7133 = vtanh.pop %v7069
        %v7134 = vtanh.pop %v7070
        %v7135 = vtanh.pop %v7071
        %v7136 = vtanh.pop %v7072
        %v7137 = vtanh.pop %v7073
        %v7138 = vtanh.pop %v7074
        %v7139 = vtanh.pop %v7075
        %v7140 = vtanh.pop %v7076
        %v7141 = vtanh.pop %v7077
        %v7142 = vtanh.pop %v7078
        %v7143 = vtanh.pop %v7079
        %v7144 = vtanh.pop %v7080
        %v7145 = vtanh.pop %v7081
        %v7146 = vtanh.pop %v7082
        %v7147 = vtanh.pop %v7083
        %v7148 = vtanh.pop %v7084
        %v7149 = vtanh.pop %v7085
        %v7150 = vtanh.pop %v7086
        %v7151 = vtanh.pop %v7087
        %v7152 = vtanh.pop %v7088
        %v7153 = vtanh.pop %v7089
        %v7154 = vtanh.pop %v7090
        %v7155 = vtanh.pop %v7091
        %v7156 = vtanh.pop %v7092
        %v7157 = vtanh.pop %v7093
        %v7158 = vtanh.pop %v7094
        %v7159 = vtanh.pop %v7095
        %v7160 = vtanh.pop %v7096
        %v7161 = vtanh.pop %v7097
        %v7162 = vtanh.pop %v7098
        %v7163 = vtanh.pop %v7099
        %v7164 = vtanh.pop %v7100
        %v7165 = vtanh.pop %v7101
        %v7166 = vtanh.pop %v7102
        %v7167 = vtanh.pop %v7103
        %v7168 = vtanh.pop %v7104
        %v7169 = vtanh.pop %v7105
        %v7170 = vtanh.pop %v7106
        %v7171 = vtanh.pop %v7107
        %v7172 = vtanh.pop %v7108
        %v7173 = vtanh.pop %v7109
        %v7174 = vtanh.pop %v7110
        %v7175 = vtanh.pop %v7111
        %v7176 = vtanh.pop %v7112
        %v7177 = vadd.f32 %v7113, 1.0
        %v7178 = vadd.f32 %v7114, 1.0
        %v7179 = vadd.f32 %v7115, 1.0
        %v7180 = vadd.f32 %v7116, 1.0
        %v7181 = vadd.f32 %v7117, 1.0
        %v7182 = vadd.f32 %v7118, 1.0
        %v7183 = vadd.f32 %v7119, 1.0
        %v7184 = vadd.f32 %v7120, 1.0
        %v7185 = vadd.f32 %v7121, 1.0
        %v7186 = vadd.f32 %v7122, 1.0
        %v7187 = vadd.f32 %v7123, 1.0
        %v7188 = vadd.f32 %v7124, 1.0
        %v7189 = vadd.f32 %v7125, 1.0
        %v7190 = vadd.f32 %v7126, 1.0
        %v7191 = vadd.f32 %v7127, 1.0
        %v7192 = vadd.f32 %v7128, 1.0
        %v7193 = vadd.f32 %v7129, 1.0
        %v7194 = vadd.f32 %v7130, 1.0
        %v7195 = vadd.f32 %v7131, 1.0
        %v7196 = vadd.f32 %v7132, 1.0
        %v7197 = vadd.f32 %v7133, 1.0
        %v7198 = vadd.f32 %v7134, 1.0
        %v7199 = vadd.f32 %v7135, 1.0
        %v7200 = vadd.f32 %v7136, 1.0
        %v7201 = vadd.f32 %v7137, 1.0
        %v7202 = vadd.f32 %v7138, 1.0
        %v7203 = vadd.f32 %v7139, 1.0
        %v7204 = vadd.f32 %v7140, 1.0
        %v7205 = vadd.f32 %v7141, 1.0
        %v7206 = vadd.f32 %v7142, 1.0
        %v7207 = vadd.f32 %v7143, 1.0
        %v7208 = vadd.f32 %v7144, 1.0
        %v7209 = vadd.f32 %v7145, 1.0
        %v7210 = vadd.f32 %v7146, 1.0
        %v7211 = vadd.f32 %v7147, 1.0
        %v7212 = vadd.f32 %v7148, 1.0
        %v7213 = vadd.f32 %v7149, 1.0
        %v7214 = vadd.f32 %v7150, 1.0
        %v7215 = vadd.f32 %v7151, 1.0
        %v7216 = vadd.f32 %v7152, 1.0
        %v7217 = vadd.f32 %v7153, 1.0
        %v7218 = vadd.f32 %v7154, 1.0
        %v7219 = vadd.f32 %v7155, 1.0
        %v7220 = vadd.f32 %v7156, 1.0
        %v7221 = vadd.f32 %v7157, 1.0
        %v7222 = vadd.f32 %v7158, 1.0
        %v7223 = vadd.f32 %v7159, 1.0
        %v7224 = vadd.f32 %v7160, 1.0
        %v7225 = vadd.f32 %v7161, 1.0
        %v7226 = vadd.f32 %v7162, 1.0
        %v7227 = vadd.f32 %v7163, 1.0
        %v7228 = vadd.f32 %v7164, 1.0
        %v7229 = vadd.f32 %v7165, 1.0
        %v7230 = vadd.f32 %v7166, 1.0
        %v7231 = vadd.f32 %v7167, 1.0
        %v7232 = vadd.f32 %v7168, 1.0
        %v7233 = vadd.f32 %v7169, 1.0
        %v7234 = vadd.f32 %v7170, 1.0
        %v7235 = vadd.f32 %v7171, 1.0
        %v7236 = vadd.f32 %v7172, 1.0
        %v7237 = vadd.f32 %v7173, 1.0
        %v7238 = vadd.f32 %v7174, 1.0
        %v7239 = vadd.f32 %v7175, 1.0
        %v7240 = vadd.f32 %v7176, 1.0
        %v7241 = vmul.f32 %v6729, %v7177
        %v7242 = vmul.f32 %v6730, %v7178
        %v7243 = vmul.f32 %v6731, %v7179
        %v7244 = vmul.f32 %v6732, %v7180
        %v7245 = vmul.f32 %v6733, %v7181
        %v7246 = vmul.f32 %v6734, %v7182
        %v7247 = vmul.f32 %v6735, %v7183
        %v7248 = vmul.f32 %v6736, %v7184
        %v7249 = vmul.f32 %v6737, %v7185
        %v7250 = vmul.f32 %v6738, %v7186
        %v7251 = vmul.f32 %v6739, %v7187
        %v7252 = vmul.f32 %v6740, %v7188
        %v7253 = vmul.f32 %v6741, %v7189
        %v7254 = vmul.f32 %v6742, %v7190
        %v7255 = vmul.f32 %v6743, %v7191
        %v7256 = vmul.f32 %v6744, %v7192
        %v7257 = vmul.f32 %v6745, %v7193
        %v7258 = vmul.f32 %v6746, %v7194
        %v7259 = vmul.f32 %v6747, %v7195
        %v7260 = vmul.f32 %v6748, %v7196
        %v7261 = vmul.f32 %v6749, %v7197
        %v7262 = vmul.f32 %v6750, %v7198
        %v7263 = vmul.f32 %v6751, %v7199
        %v7264 = vmul.f32 %v6752, %v7200
        %v7265 = vmul.f32 %v6753, %v7201
        %v7266 = vmul.f32 %v6754, %v7202
        %v7267 = vmul.f32 %v6755, %v7203
        %v7268 = vmul.f32 %v6756, %v7204
        %v7269 = vmul.f32 %v6757, %v7205
        %v7270 = vmul.f32 %v6758, %v7206
        %v7271 = vmul.f32 %v6759, %v7207
        %v7272 = vmul.f32 %v6760, %v7208
        %v7273 = vmul.f32 %v6761, %v7209
        %v7274 = vmul.f32 %v6762, %v7210
        %v7275 = vmul.f32 %v6763, %v7211
        %v7276 = vmul.f32 %v6764, %v7212
        %v7277 = vmul.f32 %v6765, %v7213
        %v7278 = vmul.f32 %v6766, %v7214
        %v7279 = vmul.f32 %v6767, %v7215
        %v7280 = vmul.f32 %v6768, %v7216
        %v7281 = vmul.f32 %v6769, %v7217
        %v7282 = vmul.f32 %v6770, %v7218
        %v7283 = vmul.f32 %v6771, %v7219
        %v7284 = vmul.f32 %v6772, %v7220
        %v7285 = vmul.f32 %v6773, %v7221
        %v7286 = vmul.f32 %v6774, %v7222
        %v7287 = vmul.f32 %v6775, %v7223
        %v7288 = vmul.f32 %v6776, %v7224
        %v7289 = vmul.f32 %v6777, %v7225
        %v7290 = vmul.f32 %v6778, %v7226
        %v7291 = vmul.f32 %v6779, %v7227
        %v7292 = vmul.f32 %v6780, %v7228
        %v7293 = vmul.f32 %v6781, %v7229
        %v7294 = vmul.f32 %v6782, %v7230
        %v7295 = vmul.f32 %v6783, %v7231
        %v7296 = vmul.f32 %v6784, %v7232
        %v7297 = vmul.f32 %v6785, %v7233
        %v7298 = vmul.f32 %v6786, %v7234
        %v7299 = vmul.f32 %v6787, %v7235
        %v7300 = vmul.f32 %v6788, %v7236
        %v7301 = vmul.f32 %v6789, %v7237
        %v7302 = vmul.f32 %v6790, %v7238
        %v7303 = vmul.f32 %v6791, %v7239
        %v7304 = vmul.f32 %v6792, %v7240
        %v7305 = vmul.f32 %v6561, %v7241
        %v7306 = vmul.f32 %v6650, %v7242
        %v7307 = vmul.f32 %v6563, %v7243
        %v7308 = vmul.f32 %v6652, %v7244
        %v7309 = vmul.f32 %v6566, %v7245
        %v7310 = vmul.f32 %v6655, %v7246
        %v7311 = vmul.f32 %v6568, %v7247
        %v7312 = vmul.f32 %v6657, %v7248
        %v7313 = vmul.f32 %v6571, %v7249
        %v7314 = vmul.f32 %v6660, %v7250
        %v7315 = vmul.f32 %v6573, %v7251
        %v7316 = vmul.f32 %v6662, %v7252
        %v7317 = vmul.f32 %v6576, %v7253
        %v7318 = vmul.f32 %v6665, %v7254
        %v7319 = vmul.f32 %v6578, %v7255
        %v7320 = vmul.f32 %v6667, %v7256
        %v7321 = vmul.f32 %v6581, %v7257
        %v7322 = vmul.f32 %v6670, %v7258
        %v7323 = vmul.f32 %v6583, %v7259
        %v7324 = vmul.f32 %v6672, %v7260
        %v7325 = vmul.f32 %v6586, %v7261
        %v7326 = vmul.f32 %v6675, %v7262
        %v7327 = vmul.f32 %v6588, %v7263
        %v7328 = vmul.f32 %v6677, %v7264
        %v7329 = vmul.f32 %v6591, %v7265
        %v7330 = vmul.f32 %v6680, %v7266
        %v7331 = vmul.f32 %v6593, %v7267
        %v7332 = vmul.f32 %v6682, %v7268
        %v7333 = vmul.f32 %v6596, %v7269
        %v7334 = vmul.f32 %v6685, %v7270
        %v7335 = vmul.f32 %v6598, %v7271
        %v7336 = vmul.f32 %v6687, %v7272
        %v7337 = vmul.f32 %v6601, %v7273
        %v7338 = vmul.f32 %v6690, %v7274
        %v7339 = vmul.f32 %v6603, %v7275
        %v7340 = vmul.f32 %v6692, %v7276
        %v7341 = vmul.f32 %v6606, %v7277
        %v7342 = vmul.f32 %v6695, %v7278
        %v7343 = vmul.f32 %v6608, %v7279
        %v7344 = vmul.f32 %v6697, %v7280
        %v7345 = vmul.f32 %v6611, %v7281
        %v7346 = vmul.f32 %v6700, %v7282
        %v7347 = vmul.f32 %v6613, %v7283
        %v7348 = vmul.f32 %v6702, %v7284
        %v7349 = vmul.f32 %v6616, %v7285
        %v7350 = vmul.f32 %v6705, %v7286
        %v7351 = vmul.f32 %v6618, %v7287
        %v7352 = vmul.f32 %v6707, %v7288
        %v7353 = vmul.f32 %v6621, %v7289
        %v7354 = vmul.f32 %v6710, %v7290
        %v7355 = vmul.f32 %v6623, %v7291
        %v7356 = vmul.f32 %v6712, %v7292
        %v7357 = vmul.f32 %v6626, %v7293
        %v7358 = vmul.f32 %v6715, %v7294
        %v7359 = vmul.f32 %v6628, %v7295
        %v7360 = vmul.f32 %v6717, %v7296
        %v7361 = vmul.f32 %v6631, %v7297
        %v7362 = vmul.f32 %v6720, %v7298
        %v7363 = vmul.f32 %v6633, %v7299
        %v7364 = vmul.f32 %v6722, %v7300
        %v7365 = vmul.f32 %v6636, %v7301
        %v7366 = vmul.f32 %v6725, %v7302
        %v7367 = vmul.f32 %v6638, %v7303
        %v7368 = vmul.f32 %v6727, %v7304
        %v7369 = vpack.c.bf16 %v7307, %v7305
        %v7370 = vpack.c.bf16 %v7308, %v7306
        %v7371 = vpack.c.bf16 %v7311, %v7309
        %v7372 = vpack.c.bf16 %v7312, %v7310
        %v7373 = vpack.c.bf16 %v7315, %v7313
        %v7374 = vpack.c.bf16 %v7316, %v7314
        %v7375 = vpack.c.bf16 %v7319, %v7317
        %v7376 = vpack.c.bf16 %v7320, %v7318
        %v7377 = vpack.c.bf16 %v7323, %v7321
        %v7378 = vpack.c.bf16 %v7324, %v7322
        %v7379 = vpack.c.bf16 %v7327, %v7325
        %v7380 = vpack.c.bf16 %v7328, %v7326
        %v7381 = vpack.c.bf16 %v7331, %v7329
        %v7382 = vpack.c.bf16 %v7332, %v7330
        %v7383 = vpack.c.bf16 %v7335, %v7333
        %v7384 = vpack.c.bf16 %v7336, %v7334
        %v7385 = vpack.c.bf16 %v7339, %v7337
        %v7386 = vpack.c.bf16 %v7340, %v7338
        %v7387 = vpack.c.bf16 %v7343, %v7341
        %v7388 = vpack.c.bf16 %v7344, %v7342
        %v7389 = vpack.c.bf16 %v7347, %v7345
        %v7390 = vpack.c.bf16 %v7348, %v7346
        %v7391 = vpack.c.bf16 %v7351, %v7349
        %v7392 = vpack.c.bf16 %v7352, %v7350
        %v7393 = vpack.c.bf16 %v7355, %v7353
        %v7394 = vpack.c.bf16 %v7356, %v7354
        %v7395 = vpack.c.bf16 %v7359, %v7357
        %v7396 = vpack.c.bf16 %v7360, %v7358
        %v7397 = vpack.c.bf16 %v7363, %v7361
        %v7398 = vpack.c.bf16 %v7364, %v7362
        %v7399 = vpack.c.bf16 %v7367, %v7365
        %v7400 = vpack.c.bf16 %v7368, %v7366
        %v7401 = vld [vmem:[%s494] sm:$0xf]
        %v7402 = vld [vmem:[%s494 + $0x4] sm:$0xf]
        %v7403 = vld [vmem:[%s494 + $0x8] sm:$0xf]
        %v7404 = vld [vmem:[%s494 + $0xc] sm:$0xf]
        %v7405 = vld [vmem:[%s494 + $0x10] sm:$0xf]
        %v7406 = vld [vmem:[%s494 + $0x14] sm:$0xf]
        %v7407 = vld [vmem:[%s494 + $0x18] sm:$0xf]
        %v7408 = vld [vmem:[%s494 + $0x1c] sm:$0xf]
        %v7409 = vld [vmem:[%s494 + $0x20] sm:$0xf]
        %v7410 = vld [vmem:[%s494 + $0x24] sm:$0xf]
        %v7411 = vld [vmem:[%s494 + $0x28] sm:$0xf]
        %v7412 = vld [vmem:[%s494 + $0x2c] sm:$0xf]
        %v7413 = vld [vmem:[%s494 + $0x30] sm:$0xf]
        %v7414 = vld [vmem:[%s494 + $0x34] sm:$0xf]
        %v7415 = vld [vmem:[%s494 + $0x38] sm:$0xf]
        %v7416 = vld [vmem:[%s494 + $0x3c] sm:$0xf]
        %v7417 = vld [vmem:[%s494 + $0x40] sm:$0xf]
        %v7418 = vld [vmem:[%s494 + $0x44] sm:$0xf]
        %v7419 = vld [vmem:[%s494 + $0x48] sm:$0xf]
        %v7420 = vld [vmem:[%s494 + $0x4c] sm:$0xf]
        %v7421 = vld [vmem:[%s494 + $0x50] sm:$0xf]
        %v7422 = vld [vmem:[%s494 + $0x54] sm:$0xf]
        %v7423 = vld [vmem:[%s494 + $0x58] sm:$0xf]
        %v7424 = vld [vmem:[%s494 + $0x5c] sm:$0xf]
        %v7425 = vld [vmem:[%s494 + $0x60] sm:$0xf]
        %v7426 = vld [vmem:[%s494 + $0x64] sm:$0xf]
        %v7427 = vld [vmem:[%s494 + $0x68] sm:$0xf]
        %v7428 = vld [vmem:[%s494 + $0x6c] sm:$0xf]
        %v7429 = vld [vmem:[%s494 + $0x70] sm:$0xf]
        %v7430 = vld [vmem:[%s494 + $0x74] sm:$0xf]
        %v7431 = vld [vmem:[%s494 + $0x78] sm:$0xf]
        %v7432 = vld [vmem:[%s494 + $0x7c] sm:$0xf]
        %v7465 = vunpack.c.l.b16 %v7401
        %v7466 = vunpack.c.l.b16 %v7402
        %v7467 = vunpack.c.l.b16 %v7403
        %v7468 = vunpack.c.l.b16 %v7404
        %v7469 = vunpack.c.l.b16 %v7405
        %v7470 = vunpack.c.l.b16 %v7406
        %v7471 = vunpack.c.l.b16 %v7407
        %v7472 = vunpack.c.l.b16 %v7408
        %v7473 = vunpack.c.l.b16 %v7409
        %v7474 = vunpack.c.l.b16 %v7410
        %v7475 = vunpack.c.l.b16 %v7411
        %v7476 = vunpack.c.l.b16 %v7412
        %v7477 = vunpack.c.l.b16 %v7413
        %v7478 = vunpack.c.l.b16 %v7414
        %v7479 = vunpack.c.l.b16 %v7415
        %v7480 = vunpack.c.l.b16 %v7416
        %v7481 = vunpack.c.l.b16 %v7417
        %v7482 = vunpack.c.l.b16 %v7418
        %v7483 = vunpack.c.l.b16 %v7419
        %v7484 = vunpack.c.l.b16 %v7420
        %v7485 = vunpack.c.l.b16 %v7421
        %v7486 = vunpack.c.l.b16 %v7422
        %v7487 = vunpack.c.l.b16 %v7423
        %v7488 = vunpack.c.l.b16 %v7424
        %v7489 = vunpack.c.l.b16 %v7425
        %v7490 = vunpack.c.l.b16 %v7426
        %v7491 = vunpack.c.l.b16 %v7427
        %v7492 = vunpack.c.l.b16 %v7428
        %v7493 = vunpack.c.l.b16 %v7429
        %v7494 = vunpack.c.l.b16 %v7430
        %v7495 = vunpack.c.l.b16 %v7431
        %v7496 = vunpack.c.l.b16 %v7432
        %v7497 = vpack.c.b16 %v7466, %v7465
        %v7498 = vpack.c.b16 %v7468, %v7467
        %v7499 = vpack.c.b16 %v7470, %v7469
        %v7500 = vpack.c.b16 %v7472, %v7471
        %v7501 = vpack.c.b16 %v7474, %v7473
        %v7502 = vpack.c.b16 %v7476, %v7475
        %v7503 = vpack.c.b16 %v7478, %v7477
        %v7504 = vpack.c.b16 %v7480, %v7479
        %v7505 = vpack.c.b16 %v7482, %v7481
        %v7506 = vpack.c.b16 %v7484, %v7483
        %v7507 = vpack.c.b16 %v7486, %v7485
        %v7508 = vpack.c.b16 %v7488, %v7487
        %v7509 = vpack.c.b16 %v7490, %v7489
        %v7510 = vpack.c.b16 %v7492, %v7491
        %v7511 = vpack.c.b16 %v7494, %v7493
        %v7512 = vpack.c.b16 %v7496, %v7495
        %7529 = vmatpush.bf16.msra.mxu0 %v7504
        %7530 = vmatpush.bf16.msra.mxu0 %v7503
        %7531 = vmatpush.bf16.msra.mxu0 %v7502
        %7532 = vmatpush.bf16.msra.mxu0 %v7501
        %7533 = vmatpush.bf16.msra.mxu0 %v7500
        %7534 = vmatpush.bf16.msra.mxu0 %v7499
        %7535 = vmatpush.bf16.msra.mxu0 %v7498
        %7536 = vmatpush.bf16.msra.mxu0 %v7497
        %7537 = vmatmul.bf16.gmra.mxu0 %v7369
        %v7538 = vpop.f32.mrf.mxu0
        %v7539 = vadd.f32 0.0, %v7538
        %v7540 = vpop.f32.mrf.mxu0
        %v7541 = vadd.f32 0.0, %v7540
        %7542 = vmatmul.bf16.gmra.mxu0 %v7371
        %v7543 = vpop.f32.mrf.mxu0
        %v7544 = vadd.f32 0.0, %v7543
        %v7545 = vpop.f32.mrf.mxu0
        %v7546 = vadd.f32 0.0, %v7545
        %7547 = vmatmul.bf16.gmra.mxu0 %v7373
        %v7548 = vpop.f32.mrf.mxu0
        %v7549 = vadd.f32 0.0, %v7548
        %v7550 = vpop.f32.mrf.mxu0
        %v7551 = vadd.f32 0.0, %v7550
        %7552 = vmatmul.bf16.gmra.mxu0 %v7375
        %v7553 = vpop.f32.mrf.mxu0
        %v7554 = vadd.f32 0.0, %v7553
        %v7555 = vpop.f32.mrf.mxu0
        %v7556 = vadd.f32 0.0, %v7555
        %7557 = vmatmul.bf16.gmra.mxu0 %v7377
        %v7558 = vpop.f32.mrf.mxu0
        %v7559 = vadd.f32 0.0, %v7558
        %v7560 = vpop.f32.mrf.mxu0
        %v7561 = vadd.f32 0.0, %v7560
        %7562 = vmatmul.bf16.gmra.mxu0 %v7379
        %v7563 = vpop.f32.mrf.mxu0
        %v7564 = vadd.f32 0.0, %v7563
        %v7565 = vpop.f32.mrf.mxu0
        %v7566 = vadd.f32 0.0, %v7565
        %7567 = vmatmul.bf16.gmra.mxu0 %v7381
        %v7568 = vpop.f32.mrf.mxu0
        %v7569 = vadd.f32 0.0, %v7568
        %v7570 = vpop.f32.mrf.mxu0
        %v7571 = vadd.f32 0.0, %v7570
        %7572 = vmatmul.bf16.gmra.mxu0 %v7383
        %v7573 = vpop.f32.mrf.mxu0
        %v7574 = vadd.f32 0.0, %v7573
        %v7575 = vpop.f32.mrf.mxu0
        %v7576 = vadd.f32 0.0, %v7575
        %7577 = vmatmul.bf16.gmra.mxu0 %v7385
        %v7578 = vpop.f32.mrf.mxu0
        %v7579 = vadd.f32 0.0, %v7578
        %v7580 = vpop.f32.mrf.mxu0
        %v7581 = vadd.f32 0.0, %v7580
        %7582 = vmatmul.bf16.gmra.mxu0 %v7387
        %v7583 = vpop.f32.mrf.mxu0
        %v7584 = vadd.f32 0.0, %v7583
        %v7585 = vpop.f32.mrf.mxu0
        %v7586 = vadd.f32 0.0, %v7585
        %7587 = vmatmul.bf16.gmra.mxu0 %v7389
        %v7588 = vpop.f32.mrf.mxu0
        %v7589 = vadd.f32 0.0, %v7588
        %v7590 = vpop.f32.mrf.mxu0
        %v7591 = vadd.f32 0.0, %v7590
        %7592 = vmatmul.bf16.gmra.mxu0 %v7391
        %v7593 = vpop.f32.mrf.mxu0
        %v7594 = vadd.f32 0.0, %v7593
        %v7595 = vpop.f32.mrf.mxu0
        %v7596 = vadd.f32 0.0, %v7595
        %7597 = vmatmul.bf16.gmra.mxu0 %v7393
        %v7598 = vpop.f32.mrf.mxu0
        %v7599 = vadd.f32 0.0, %v7598
        %v7600 = vpop.f32.mrf.mxu0
        %v7601 = vadd.f32 0.0, %v7600
        %7602 = vmatmul.bf16.gmra.mxu0 %v7395
        %v7603 = vpop.f32.mrf.mxu0
        %v7604 = vadd.f32 0.0, %v7603
        %v7605 = vpop.f32.mrf.mxu0
        %v7606 = vadd.f32 0.0, %v7605
        %7607 = vmatmul.bf16.gmra.mxu0 %v7397
        %v7608 = vpop.f32.mrf.mxu0
        %v7609 = vadd.f32 0.0, %v7608
        %v7610 = vpop.f32.mrf.mxu0
        %v7611 = vadd.f32 0.0, %v7610
        %7612 = vmatmul.bf16.gmra.mxu0 %v7399
        %v7613 = vpop.f32.mrf.mxu0
        %v7614 = vadd.f32 0.0, %v7613
        %v7615 = vpop.f32.mrf.mxu0
        %v7616 = vadd.f32 0.0, %v7615
        %7617 = vdwg.mxu0
        %7618 = vmatpush.bf16.msra.mxu0 %v7512
        %7619 = vmatpush.bf16.msra.mxu0 %v7511
        %7620 = vmatpush.bf16.msra.mxu0 %v7510
        %7621 = vmatpush.bf16.msra.mxu0 %v7509
        %7622 = vmatpush.bf16.msra.mxu0 %v7508
        %7623 = vmatpush.bf16.msra.mxu0 %v7507
        %7624 = vmatpush.bf16.msra.mxu0 %v7506
        %7625 = vmatpush.bf16.msra.mxu0 %v7505
        %7626 = vmatmul.bf16.gmra.mxu0 %v7370
        %v7627 = vpop.f32.mrf.mxu0
        %v7628 = vadd.f32 %v7539, %v7627
        %v7629 = vpop.f32.mrf.mxu0
        %v7630 = vadd.f32 %v7541, %v7629
        %7631 = vmatmul.bf16.gmra.mxu0 %v7372
        %v7632 = vpop.f32.mrf.mxu0
        %v7633 = vadd.f32 %v7544, %v7632
        %v7634 = vpop.f32.mrf.mxu0
        %v7635 = vadd.f32 %v7546, %v7634
        %7636 = vmatmul.bf16.gmra.mxu0 %v7374
        %v7637 = vpop.f32.mrf.mxu0
        %v7638 = vadd.f32 %v7549, %v7637
        %v7639 = vpop.f32.mrf.mxu0
        %v7640 = vadd.f32 %v7551, %v7639
        %7641 = vmatmul.bf16.gmra.mxu0 %v7376
        %v7642 = vpop.f32.mrf.mxu0
        %v7643 = vadd.f32 %v7554, %v7642
        %v7644 = vpop.f32.mrf.mxu0
        %v7645 = vadd.f32 %v7556, %v7644
        %7646 = vmatmul.bf16.gmra.mxu0 %v7378
        %v7647 = vpop.f32.mrf.mxu0
        %v7648 = vadd.f32 %v7559, %v7647
        %v7649 = vpop.f32.mrf.mxu0
        %v7650 = vadd.f32 %v7561, %v7649
        %7651 = vmatmul.bf16.gmra.mxu0 %v7380
        %v7652 = vpop.f32.mrf.mxu0
        %v7653 = vadd.f32 %v7564, %v7652
        %v7654 = vpop.f32.mrf.mxu0
        %v7655 = vadd.f32 %v7566, %v7654
        %7656 = vmatmul.bf16.gmra.mxu0 %v7382
        %v7657 = vpop.f32.mrf.mxu0
        %v7658 = vadd.f32 %v7569, %v7657
        %v7659 = vpop.f32.mrf.mxu0
        %v7660 = vadd.f32 %v7571, %v7659
        %7661 = vmatmul.bf16.gmra.mxu0 %v7384
        %v7662 = vpop.f32.mrf.mxu0
        %v7663 = vadd.f32 %v7574, %v7662
        %v7664 = vpop.f32.mrf.mxu0
        %v7665 = vadd.f32 %v7576, %v7664
        %7666 = vmatmul.bf16.gmra.mxu0 %v7386
        %v7667 = vpop.f32.mrf.mxu0
        %v7668 = vadd.f32 %v7579, %v7667
        %v7669 = vpop.f32.mrf.mxu0
        %v7670 = vadd.f32 %v7581, %v7669
        %7671 = vmatmul.bf16.gmra.mxu0 %v7388
        %v7672 = vpop.f32.mrf.mxu0
        %v7673 = vadd.f32 %v7584, %v7672
        %v7674 = vpop.f32.mrf.mxu0
        %v7675 = vadd.f32 %v7586, %v7674
        %7676 = vmatmul.bf16.gmra.mxu0 %v7390
        %v7677 = vpop.f32.mrf.mxu0
        %v7678 = vadd.f32 %v7589, %v7677
        %v7679 = vpop.f32.mrf.mxu0
        %v7680 = vadd.f32 %v7591, %v7679
        %7681 = vmatmul.bf16.gmra.mxu0 %v7392
        %v7682 = vpop.f32.mrf.mxu0
        %v7683 = vadd.f32 %v7594, %v7682
        %v7684 = vpop.f32.mrf.mxu0
        %v7685 = vadd.f32 %v7596, %v7684
        %7686 = vmatmul.bf16.gmra.mxu0 %v7394
        %v7687 = vpop.f32.mrf.mxu0
        %v7688 = vadd.f32 %v7599, %v7687
        %v7689 = vpop.f32.mrf.mxu0
        %v7690 = vadd.f32 %v7601, %v7689
        %7691 = vmatmul.bf16.gmra.mxu0 %v7396
        %v7692 = vpop.f32.mrf.mxu0
        %v7693 = vadd.f32 %v7604, %v7692
        %v7694 = vpop.f32.mrf.mxu0
        %v7695 = vadd.f32 %v7606, %v7694
        %7696 = vmatmul.bf16.gmra.mxu0 %v7398
        %v7697 = vpop.f32.mrf.mxu0
        %v7698 = vadd.f32 %v7609, %v7697
        %v7699 = vpop.f32.mrf.mxu0
        %v7700 = vadd.f32 %v7611, %v7699
        %7701 = vmatmul.bf16.gmra.mxu0 %v7400
        %v7702 = vpop.f32.mrf.mxu0
        %v7703 = vadd.f32 %v7614, %v7702
        %v7704 = vpop.f32.mrf.mxu0
        %v7705 = vadd.f32 %v7616, %v7704
        %7706 = vdwg.mxu0
        %v7707 = vadd.f32 %v5585, %v7628
        %v7708 = vadd.f32 %v5586, %v7630
        %v7709 = vadd.f32 %v5587, %v7633
        %v7710 = vadd.f32 %v5588, %v7635
        %v7711 = vadd.f32 %v5589, %v7638
        %v7712 = vadd.f32 %v5590, %v7640
        %v7713 = vadd.f32 %v5591, %v7643
        %v7714 = vadd.f32 %v5592, %v7645
        %v7715 = vadd.f32 %v5593, %v7648
        %v7716 = vadd.f32 %v5594, %v7650
        %v7717 = vadd.f32 %v5595, %v7653
        %v7718 = vadd.f32 %v5596, %v7655
        %v7719 = vadd.f32 %v5597, %v7658
        %v7720 = vadd.f32 %v5598, %v7660
        %v7721 = vadd.f32 %v5599, %v7663
        %v7722 = vadd.f32 %v5600, %v7665
        %v7723 = vadd.f32 %v5601, %v7668
        %v7724 = vadd.f32 %v5602, %v7670
        %v7725 = vadd.f32 %v5603, %v7673
        %v7726 = vadd.f32 %v5604, %v7675
        %v7727 = vadd.f32 %v5605, %v7678
        %v7728 = vadd.f32 %v5606, %v7680
        %v7729 = vadd.f32 %v5607, %v7683
        %v7730 = vadd.f32 %v5608, %v7685
        %v7731 = vadd.f32 %v5609, %v7688
        %v7732 = vadd.f32 %v5610, %v7690
        %v7733 = vadd.f32 %v5611, %v7693
        %v7734 = vadd.f32 %v5612, %v7695
        %v7735 = vadd.f32 %v5613, %v7698
        %v7736 = vadd.f32 %v5614, %v7700
        %v7737 = vadd.f32 %v5615, %v7703
        %v7738 = vadd.f32 %v5616, %v7705
        %7739 = vst [vmem:[#allocation2] sm:$0xff] %v7707
        %7740 = vst [vmem:[#allocation2 + $0x8] sm:$0xff] %v7708
        %7741 = vst [vmem:[#allocation2 + $0x10] sm:$0xff] %v7709
        %7742 = vst [vmem:[#allocation2 + $0x18] sm:$0xff] %v7710
        %7743 = vst [vmem:[#allocation2 + $0x20] sm:$0xff] %v7711
        %7744 = vst [vmem:[#allocation2 + $0x28] sm:$0xff] %v7712
        %7745 = vst [vmem:[#allocation2 + $0x30] sm:$0xff] %v7713
        %7746 = vst [vmem:[#allocation2 + $0x38] sm:$0xff] %v7714
        %7747 = vst [vmem:[#allocation2 + $0x40] sm:$0xff] %v7715
        %7748 = vst [vmem:[#allocation2 + $0x48] sm:$0xff] %v7716
        %7749 = vst [vmem:[#allocation2 + $0x50] sm:$0xff] %v7717
        %7750 = vst [vmem:[#allocation2 + $0x58] sm:$0xff] %v7718
        %7751 = vst [vmem:[#allocation2 + $0x60] sm:$0xff] %v7719
        %7752 = vst [vmem:[#allocation2 + $0x68] sm:$0xff] %v7720
        %7753 = vst [vmem:[#allocation2 + $0x70] sm:$0xff] %v7721
        %7754 = vst [vmem:[#allocation2 + $0x78] sm:$0xff] %v7722
        %7755 = vst [vmem:[#allocation2 + $0x80] sm:$0xff] %v7723
        %7756 = vst [vmem:[#allocation2 + $0x88] sm:$0xff] %v7724
        %7757 = vst [vmem:[#allocation2 + $0x90] sm:$0xff] %v7725
        %7758 = vst [vmem:[#allocation2 + $0x98] sm:$0xff] %v7726
        %7759 = vst [vmem:[#allocation2 + $0xa0] sm:$0xff] %v7727
        %7760 = vst [vmem:[#allocation2 + $0xa8] sm:$0xff] %v7728
        %7761 = vst [vmem:[#allocation2 + $0xb0] sm:$0xff] %v7729
        %7762 = vst [vmem:[#allocation2 + $0xb8] sm:$0xff] %v7730
        %7763 = vst [vmem:[#allocation2 + $0xc0] sm:$0xff] %v7731
        %7764 = vst [vmem:[#allocation2 + $0xc8] sm:$0xff] %v7732
        %7765 = vst [vmem:[#allocation2 + $0xd0] sm:$0xff] %v7733
        %7766 = vst [vmem:[#allocation2 + $0xd8] sm:$0xff] %v7734
        %7767 = vst [vmem:[#allocation2 + $0xe0] sm:$0xff] %v7735
        %7768 = vst [vmem:[#allocation2 + $0xe8] sm:$0xff] %v7736
        %7769 = vst [vmem:[#allocation2 + $0xf0] sm:$0xff] %v7737
        %7770 = vst [vmem:[#allocation2 + $0xf8] sm:$0xff] %v7738
        %p7771 = scmp.eq.s32.totalorder %s40, 1
        // Predicated region
        $region85: #{tpu_custom_call.1} parent=55 // pred_check
          %p7772 = pneg %p7771
        $region86: #{tpu_custom_call.1} parent=55 // pred_check_branch
          %7774 = sbr.rel (%p7772) target = $region88
        $region87: #{tpu_custom_call.1} parent=55 // pred_region
          %v7775 = vld [vmem:[%s9] sm:$0x1]
          %v7776 = vmul.f32 %v7707, %v7707
          %v7777 = vmul.f32 %v7708, %v7708
          %v7778 = vmul.f32 %v7709, %v7709
          %v7779 = vmul.f32 %v7710, %v7710
          %v7780 = vmul.f32 %v7711, %v7711
          %v7781 = vmul.f32 %v7712, %v7712
          %v7782 = vmul.f32 %v7713, %v7713
          %v7783 = vmul.f32 %v7714, %v7714
          %v7784 = vmul.f32 %v7715, %v7715
          %v7785 = vmul.f32 %v7716, %v7716
          %v7786 = vmul.f32 %v7717, %v7717
          %v7787 = vmul.f32 %v7718, %v7718
          %v7788 = vmul.f32 %v7719, %v7719
          %v7789 = vmul.f32 %v7720, %v7720
          %v7790 = vmul.f32 %v7721, %v7721
          %v7791 = vmul.f32 %v7722, %v7722
          %v7792 = vmul.f32 %v7723, %v7723
          %v7793 = vmul.f32 %v7724, %v7724
          %v7794 = vmul.f32 %v7725, %v7725
          %v7795 = vmul.f32 %v7726, %v7726
          %v7796 = vmul.f32 %v7727, %v7727
          %v7797 = vmul.f32 %v7728, %v7728
          %v7798 = vmul.f32 %v7729, %v7729
          %v7799 = vmul.f32 %v7730, %v7730
          %v7800 = vmul.f32 %v7731, %v7731
          %v7801 = vmul.f32 %v7732, %v7732
          %v7802 = vmul.f32 %v7733, %v7733
          %v7803 = vmul.f32 %v7734, %v7734
          %v7804 = vmul.f32 %v7735, %v7735
          %v7805 = vmul.f32 %v7736, %v7736
          %v7806 = vmul.f32 %v7737, %v7737
          %v7807 = vmul.f32 %v7738, %v7738
          %7808 = vadd.xlane.f32.xlu0 %v7776
          %v7809 = vpop.xlane.xlu0 %7808
          %7810 = vadd.xlane.f32.xlu0 %v7777
          %v7811 = vpop.xlane.xlu0 %7810
          %7812 = vadd.xlane.f32.xlu0 %v7778
          %v7813 = vpop.xlane.xlu0 %7812
          %7814 = vadd.xlane.f32.xlu0 %v7779
          %v7815 = vpop.xlane.xlu0 %7814
          %7816 = vadd.xlane.f32.xlu0 %v7780
          %v7817 = vpop.xlane.xlu0 %7816
          %7818 = vadd.xlane.f32.xlu0 %v7781
          %v7819 = vpop.xlane.xlu0 %7818
          %7820 = vadd.xlane.f32.xlu0 %v7782
          %v7821 = vpop.xlane.xlu0 %7820
          %7822 = vadd.xlane.f32.xlu0 %v7783
          %v7823 = vpop.xlane.xlu0 %7822
          %7824 = vadd.xlane.f32.xlu0 %v7784
          %v7825 = vpop.xlane.xlu0 %7824
          %7826 = vadd.xlane.f32.xlu0 %v7785
          %v7827 = vpop.xlane.xlu0 %7826
          %7828 = vadd.xlane.f32.xlu0 %v7786
          %v7829 = vpop.xlane.xlu0 %7828
          %7830 = vadd.xlane.f32.xlu0 %v7787
          %v7831 = vpop.xlane.xlu0 %7830
          %7832 = vadd.xlane.f32.xlu0 %v7788
          %v7833 = vpop.xlane.xlu0 %7832
          %7834 = vadd.xlane.f32.xlu0 %v7789
          %v7835 = vpop.xlane.xlu0 %7834
          %7836 = vadd.xlane.f32.xlu0 %v7790
          %v7837 = vpop.xlane.xlu0 %7836
          %7838 = vadd.xlane.f32.xlu0 %v7791
          %v7839 = vpop.xlane.xlu0 %7838
          %7840 = vadd.xlane.f32.xlu0 %v7792
          %v7841 = vpop.xlane.xlu0 %7840
          %7842 = vadd.xlane.f32.xlu0 %v7793
          %v7843 = vpop.xlane.xlu0 %7842
          %7844 = vadd.xlane.f32.xlu0 %v7794
          %v7845 = vpop.xlane.xlu0 %7844
          %7846 = vadd.xlane.f32.xlu0 %v7795
          %v7847 = vpop.xlane.xlu0 %7846
          %7848 = vadd.xlane.f32.xlu0 %v7796
          %v7849 = vpop.xlane.xlu0 %7848
          %7850 = vadd.xlane.f32.xlu0 %v7797
          %v7851 = vpop.xlane.xlu0 %7850
          %7852 = vadd.xlane.f32.xlu0 %v7798
          %v7853 = vpop.xlane.xlu0 %7852
          %7854 = vadd.xlane.f32.xlu0 %v7799
          %v7855 = vpop.xlane.xlu0 %7854
          %7856 = vadd.xlane.f32.xlu0 %v7800
          %v7857 = vpop.xlane.xlu0 %7856
          %7858 = vadd.xlane.f32.xlu0 %v7801
          %v7859 = vpop.xlane.xlu0 %7858
          %7860 = vadd.xlane.f32.xlu0 %v7802
          %v7861 = vpop.xlane.xlu0 %7860
          %7862 = vadd.xlane.f32.xlu0 %v7803
          %v7863 = vpop.xlane.xlu0 %7862
          %7864 = vadd.xlane.f32.xlu0 %v7804
          %v7865 = vpop.xlane.xlu0 %7864
          %7866 = vadd.xlane.f32.xlu0 %v7805
          %v7867 = vpop.xlane.xlu0 %7866
          %7868 = vadd.xlane.f32.xlu0 %v7806
          %v7869 = vpop.xlane.xlu0 %7868
          %7870 = vadd.xlane.f32.xlu0 %v7807
          %v7871 = vpop.xlane.xlu0 %7870
          %v7872 = vmul.f32 %v7809, %v771
          %v7873 = vmul.f32 %v7811, %v771
          %v7874 = vmul.f32 %v7813, %v771
          %v7875 = vmul.f32 %v7815, %v771
          %v7876 = vmul.f32 %v7817, %v771
          %v7877 = vmul.f32 %v7819, %v771
          %v7878 = vmul.f32 %v7821, %v771
          %v7879 = vmul.f32 %v7823, %v771
          %v7880 = vmul.f32 %v7825, %v771
          %v7881 = vmul.f32 %v7827, %v771
          %v7882 = vmul.f32 %v7829, %v771
          %v7883 = vmul.f32 %v7831, %v771
          %v7884 = vmul.f32 %v7833, %v771
          %v7885 = vmul.f32 %v7835, %v771
          %v7886 = vmul.f32 %v7837, %v771
          %v7887 = vmul.f32 %v7839, %v771
          %v7888 = vmul.f32 %v7841, %v771
          %v7889 = vmul.f32 %v7843, %v771
          %v7890 = vmul.f32 %v7845, %v771
          %v7891 = vmul.f32 %v7847, %v771
          %v7892 = vmul.f32 %v7849, %v771
          %v7893 = vmul.f32 %v7851, %v771
          %v7894 = vmul.f32 %v7853, %v771
          %v7895 = vmul.f32 %v7855, %v771
          %v7896 = vmul.f32 %v7857, %v771
          %v7897 = vmul.f32 %v7859, %v771
          %v7898 = vmul.f32 %v7861, %v771
          %v7899 = vmul.f32 %v7863, %v771
          %v7900 = vmul.f32 %v7865, %v771
          %v7901 = vmul.f32 %v7867, %v771
          %v7902 = vmul.f32 %v7869, %v771
          %v7903 = vmul.f32 %v7871, %v771
          %v7904 = vadd.f32 %v7872, 1e-06
          %v7905 = vadd.f32 %v7873, 1e-06
          %v7906 = vadd.f32 %v7874, 1e-06
          %v7907 = vadd.f32 %v7875, 1e-06
          %v7908 = vadd.f32 %v7876, 1e-06
          %v7909 = vadd.f32 %v7877, 1e-06
          %v7910 = vadd.f32 %v7878, 1e-06
          %v7911 = vadd.f32 %v7879, 1e-06
          %v7912 = vadd.f32 %v7880, 1e-06
          %v7913 = vadd.f32 %v7881, 1e-06
          %v7914 = vadd.f32 %v7882, 1e-06
          %v7915 = vadd.f32 %v7883, 1e-06
          %v7916 = vadd.f32 %v7884, 1e-06
          %v7917 = vadd.f32 %v7885, 1e-06
          %v7918 = vadd.f32 %v7886, 1e-06
          %v7919 = vadd.f32 %v7887, 1e-06
          %v7920 = vadd.f32 %v7888, 1e-06
          %v7921 = vadd.f32 %v7889, 1e-06
          %v7922 = vadd.f32 %v7890, 1e-06
          %v7923 = vadd.f32 %v7891, 1e-06
          %v7924 = vadd.f32 %v7892, 1e-06
          %v7925 = vadd.f32 %v7893, 1e-06
          %v7926 = vadd.f32 %v7894, 1e-06
          %v7927 = vadd.f32 %v7895, 1e-06
          %v7928 = vadd.f32 %v7896, 1e-06
          %v7929 = vadd.f32 %v7897, 1e-06
          %v7930 = vadd.f32 %v7898, 1e-06
          %v7931 = vadd.f32 %v7899, 1e-06
          %v7932 = vadd.f32 %v7900, 1e-06
          %v7933 = vadd.f32 %v7901, 1e-06
          %v7934 = vadd.f32 %v7902, 1e-06
          %v7935 = vadd.f32 %v7903, 1e-06
          %v7936 = vrsqrt.pop %v7904
          %v7937 = vmul.f32 %v7936, %v7904
          %v7938 = vmul.f32 %v7937, %v7936
          %v7939 = vmul.f32 0.5, %v7938
          %v7940 = vsub.f32 1.5, %v7939
          %v7941 = vmul.f32 %v7936, %v7940
          %vm7942 = vweird.f32 %v7904
          %vm7943 = vweird.f32 %v7936
          %vm7944 = vmor %vm7942, %vm7943
          %v7945 = vsel %vm7944, %v7936, %v7941
          %v7946 = vrsqrt.pop %v7905
          %v7947 = vmul.f32 %v7946, %v7905
          %v7948 = vmul.f32 %v7947, %v7946
          %v7949 = vmul.f32 0.5, %v7948
          %v7950 = vsub.f32 1.5, %v7949
          %v7951 = vmul.f32 %v7946, %v7950
          %vm7952 = vweird.f32 %v7905
          %vm7953 = vweird.f32 %v7946
          %vm7954 = vmor %vm7952, %vm7953
          %v7955 = vsel %vm7954, %v7946, %v7951
          %v7956 = vrsqrt.pop %v7906
          %v7957 = vmul.f32 %v7956, %v7906
          %v7958 = vmul.f32 %v7957, %v7956
          %v7959 = vmul.f32 0.5, %v7958
          %v7960 = vsub.f32 1.5, %v7959
          %v7961 = vmul.f32 %v7956, %v7960
          %vm7962 = vweird.f32 %v7906
          %vm7963 = vweird.f32 %v7956
          %vm7964 = vmor %vm7962, %vm7963
          %v7965 = vsel %vm7964, %v7956, %v7961
          %v7966 = vrsqrt.pop %v7907
          %v7967 = vmul.f32 %v7966, %v7907
          %v7968 = vmul.f32 %v7967, %v7966
          %v7969 = vmul.f32 0.5, %v7968
          %v7970 = vsub.f32 1.5, %v7969
          %v7971 = vmul.f32 %v7966, %v7970
          %vm7972 = vweird.f32 %v7907
          %vm7973 = vweird.f32 %v7966
          %vm7974 = vmor %vm7972, %vm7973
          %v7975 = vsel %vm7974, %v7966, %v7971
          %v7976 = vrsqrt.pop %v7908
          %v7977 = vmul.f32 %v7976, %v7908
          %v7978 = vmul.f32 %v7977, %v7976
          %v7979 = vmul.f32 0.5, %v7978
          %v7980 = vsub.f32 1.5, %v7979
          %v7981 = vmul.f32 %v7976, %v7980
          %vm7982 = vweird.f32 %v7908
          %vm7983 = vweird.f32 %v7976
          %vm7984 = vmor %vm7982, %vm7983
          %v7985 = vsel %vm7984, %v7976, %v7981
          %v7986 = vrsqrt.pop %v7909
          %v7987 = vmul.f32 %v7986, %v7909
          %v7988 = vmul.f32 %v7987, %v7986
          %v7989 = vmul.f32 0.5, %v7988
          %v7990 = vsub.f32 1.5, %v7989
          %v7991 = vmul.f32 %v7986, %v7990
          %vm7992 = vweird.f32 %v7909
          %vm7993 = vweird.f32 %v7986
          %vm7994 = vmor %vm7992, %vm7993
          %v7995 = vsel %vm7994, %v7986, %v7991
          %v7996 = vrsqrt.pop %v7910
          %v7997 = vmul.f32 %v7996, %v7910
          %v7998 = vmul.f32 %v7997, %v7996
          %v7999 = vmul.f32 0.5, %v7998
          %v8000 = vsub.f32 1.5, %v7999
          %v8001 = vmul.f32 %v7996, %v8000
          %vm8002 = vweird.f32 %v7910
          %vm8003 = vweird.f32 %v7996
          %vm8004 = vmor %vm8002, %vm8003
          %v8005 = vsel %vm8004, %v7996, %v8001
          %v8006 = vrsqrt.pop %v7911
          %v8007 = vmul.f32 %v8006, %v7911
          %v8008 = vmul.f32 %v8007, %v8006
          %v8009 = vmul.f32 0.5, %v8008
          %v8010 = vsub.f32 1.5, %v8009
          %v8011 = vmul.f32 %v8006, %v8010
          %vm8012 = vweird.f32 %v7911
          %vm8013 = vweird.f32 %v8006
          %vm8014 = vmor %vm8012, %vm8013
          %v8015 = vsel %vm8014, %v8006, %v8011
          %v8016 = vrsqrt.pop %v7912
          %v8017 = vmul.f32 %v8016, %v7912
          %v8018 = vmul.f32 %v8017, %v8016
          %v8019 = vmul.f32 0.5, %v8018
          %v8020 = vsub.f32 1.5, %v8019
          %v8021 = vmul.f32 %v8016, %v8020
          %vm8022 = vweird.f32 %v7912
          %vm8023 = vweird.f32 %v8016
          %vm8024 = vmor %vm8022, %vm8023
          %v8025 = vsel %vm8024, %v8016, %v8021
          %v8026 = vrsqrt.pop %v7913
          %v8027 = vmul.f32 %v8026, %v7913
          %v8028 = vmul.f32 %v8027, %v8026
          %v8029 = vmul.f32 0.5, %v8028
          %v8030 = vsub.f32 1.5, %v8029
          %v8031 = vmul.f32 %v8026, %v8030
          %vm8032 = vweird.f32 %v7913
          %vm8033 = vweird.f32 %v8026
          %vm8034 = vmor %vm8032, %vm8033
          %v8035 = vsel %vm8034, %v8026, %v8031
          %v8036 = vrsqrt.pop %v7914
          %v8037 = vmul.f32 %v8036, %v7914
          %v8038 = vmul.f32 %v8037, %v8036
          %v8039 = vmul.f32 0.5, %v8038
          %v8040 = vsub.f32 1.5, %v8039
          %v8041 = vmul.f32 %v8036, %v8040
          %vm8042 = vweird.f32 %v7914
          %vm8043 = vweird.f32 %v8036
          %vm8044 = vmor %vm8042, %vm8043
          %v8045 = vsel %vm8044, %v8036, %v8041
          %v8046 = vrsqrt.pop %v7915
          %v8047 = vmul.f32 %v8046, %v7915
          %v8048 = vmul.f32 %v8047, %v8046
          %v8049 = vmul.f32 0.5, %v8048
          %v8050 = vsub.f32 1.5, %v8049
          %v8051 = vmul.f32 %v8046, %v8050
          %vm8052 = vweird.f32 %v7915
          %vm8053 = vweird.f32 %v8046
          %vm8054 = vmor %vm8052, %vm8053
          %v8055 = vsel %vm8054, %v8046, %v8051
          %v8056 = vrsqrt.pop %v7916
          %v8057 = vmul.f32 %v8056, %v7916
          %v8058 = vmul.f32 %v8057, %v8056
          %v8059 = vmul.f32 0.5, %v8058
          %v8060 = vsub.f32 1.5, %v8059
          %v8061 = vmul.f32 %v8056, %v8060
          %vm8062 = vweird.f32 %v7916
          %vm8063 = vweird.f32 %v8056
          %vm8064 = vmor %vm8062, %vm8063
          %v8065 = vsel %vm8064, %v8056, %v8061
          %v8066 = vrsqrt.pop %v7917
          %v8067 = vmul.f32 %v8066, %v7917
          %v8068 = vmul.f32 %v8067, %v8066
          %v8069 = vmul.f32 0.5, %v8068
          %v8070 = vsub.f32 1.5, %v8069
          %v8071 = vmul.f32 %v8066, %v8070
          %vm8072 = vweird.f32 %v7917
          %vm8073 = vweird.f32 %v8066
          %vm8074 = vmor %vm8072, %vm8073
          %v8075 = vsel %vm8074, %v8066, %v8071
          %v8076 = vrsqrt.pop %v7918
          %v8077 = vmul.f32 %v8076, %v7918
          %v8078 = vmul.f32 %v8077, %v8076
          %v8079 = vmul.f32 0.5, %v8078
          %v8080 = vsub.f32 1.5, %v8079
          %v8081 = vmul.f32 %v8076, %v8080
          %vm8082 = vweird.f32 %v7918
          %vm8083 = vweird.f32 %v8076
          %vm8084 = vmor %vm8082, %vm8083
          %v8085 = vsel %vm8084, %v8076, %v8081
          %v8086 = vrsqrt.pop %v7919
          %v8087 = vmul.f32 %v8086, %v7919
          %v8088 = vmul.f32 %v8087, %v8086
          %v8089 = vmul.f32 0.5, %v8088
          %v8090 = vsub.f32 1.5, %v8089
          %v8091 = vmul.f32 %v8086, %v8090
          %vm8092 = vweird.f32 %v7919
          %vm8093 = vweird.f32 %v8086
          %vm8094 = vmor %vm8092, %vm8093
          %v8095 = vsel %vm8094, %v8086, %v8091
          %v8096 = vrsqrt.pop %v7920
          %v8097 = vmul.f32 %v8096, %v7920
          %v8098 = vmul.f32 %v8097, %v8096
          %v8099 = vmul.f32 0.5, %v8098
          %v8100 = vsub.f32 1.5, %v8099
          %v8101 = vmul.f32 %v8096, %v8100
          %vm8102 = vweird.f32 %v7920
          %vm8103 = vweird.f32 %v8096
          %vm8104 = vmor %vm8102, %vm8103
          %v8105 = vsel %vm8104, %v8096, %v8101
          %v8106 = vrsqrt.pop %v7921
          %v8107 = vmul.f32 %v8106, %v7921
          %v8108 = vmul.f32 %v8107, %v8106
          %v8109 = vmul.f32 0.5, %v8108
          %v8110 = vsub.f32 1.5, %v8109
          %v8111 = vmul.f32 %v8106, %v8110
          %vm8112 = vweird.f32 %v7921
          %vm8113 = vweird.f32 %v8106
          %vm8114 = vmor %vm8112, %vm8113
          %v8115 = vsel %vm8114, %v8106, %v8111
          %v8116 = vrsqrt.pop %v7922
          %v8117 = vmul.f32 %v8116, %v7922
          %v8118 = vmul.f32 %v8117, %v8116
          %v8119 = vmul.f32 0.5, %v8118
          %v8120 = vsub.f32 1.5, %v8119
          %v8121 = vmul.f32 %v8116, %v8120
          %vm8122 = vweird.f32 %v7922
          %vm8123 = vweird.f32 %v8116
          %vm8124 = vmor %vm8122, %vm8123
          %v8125 = vsel %vm8124, %v8116, %v8121
          %v8126 = vrsqrt.pop %v7923
          %v8127 = vmul.f32 %v8126, %v7923
          %v8128 = vmul.f32 %v8127, %v8126
          %v8129 = vmul.f32 0.5, %v8128
          %v8130 = vsub.f32 1.5, %v8129
          %v8131 = vmul.f32 %v8126, %v8130
          %vm8132 = vweird.f32 %v7923
          %vm8133 = vweird.f32 %v8126
          %vm8134 = vmor %vm8132, %vm8133
          %v8135 = vsel %vm8134, %v8126, %v8131
          %v8136 = vrsqrt.pop %v7924
          %v8137 = vmul.f32 %v8136, %v7924
          %v8138 = vmul.f32 %v8137, %v8136
          %v8139 = vmul.f32 0.5, %v8138
          %v8140 = vsub.f32 1.5, %v8139
          %v8141 = vmul.f32 %v8136, %v8140
          %vm8142 = vweird.f32 %v7924
          %vm8143 = vweird.f32 %v8136
          %vm8144 = vmor %vm8142, %vm8143
          %v8145 = vsel %vm8144, %v8136, %v8141
          %v8146 = vrsqrt.pop %v7925
          %v8147 = vmul.f32 %v8146, %v7925
          %v8148 = vmul.f32 %v8147, %v8146
          %v8149 = vmul.f32 0.5, %v8148
          %v8150 = vsub.f32 1.5, %v8149
          %v8151 = vmul.f32 %v8146, %v8150
          %vm8152 = vweird.f32 %v7925
          %vm8153 = vweird.f32 %v8146
          %vm8154 = vmor %vm8152, %vm8153
          %v8155 = vsel %vm8154, %v8146, %v8151
          %v8156 = vrsqrt.pop %v7926
          %v8157 = vmul.f32 %v8156, %v7926
          %v8158 = vmul.f32 %v8157, %v8156
          %v8159 = vmul.f32 0.5, %v8158
          %v8160 = vsub.f32 1.5, %v8159
          %v8161 = vmul.f32 %v8156, %v8160
          %vm8162 = vweird.f32 %v7926
          %vm8163 = vweird.f32 %v8156
          %vm8164 = vmor %vm8162, %vm8163
          %v8165 = vsel %vm8164, %v8156, %v8161
          %v8166 = vrsqrt.pop %v7927
          %v8167 = vmul.f32 %v8166, %v7927
          %v8168 = vmul.f32 %v8167, %v8166
          %v8169 = vmul.f32 0.5, %v8168
          %v8170 = vsub.f32 1.5, %v8169
          %v8171 = vmul.f32 %v8166, %v8170
          %vm8172 = vweird.f32 %v7927
          %vm8173 = vweird.f32 %v8166
          %vm8174 = vmor %vm8172, %vm8173
          %v8175 = vsel %vm8174, %v8166, %v8171
          %v8176 = vrsqrt.pop %v7928
          %v8177 = vmul.f32 %v8176, %v7928
          %v8178 = vmul.f32 %v8177, %v8176
          %v8179 = vmul.f32 0.5, %v8178
          %v8180 = vsub.f32 1.5, %v8179
          %v8181 = vmul.f32 %v8176, %v8180
          %vm8182 = vweird.f32 %v7928
          %vm8183 = vweird.f32 %v8176
          %vm8184 = vmor %vm8182, %vm8183
          %v8185 = vsel %vm8184, %v8176, %v8181
          %v8186 = vrsqrt.pop %v7929
          %v8187 = vmul.f32 %v8186, %v7929
          %v8188 = vmul.f32 %v8187, %v8186
          %v8189 = vmul.f32 0.5, %v8188
          %v8190 = vsub.f32 1.5, %v8189
          %v8191 = vmul.f32 %v8186, %v8190
          %vm8192 = vweird.f32 %v7929
          %vm8193 = vweird.f32 %v8186
          %vm8194 = vmor %vm8192, %vm8193
          %v8195 = vsel %vm8194, %v8186, %v8191
          %v8196 = vrsqrt.pop %v7930
          %v8197 = vmul.f32 %v8196, %v7930
          %v8198 = vmul.f32 %v8197, %v8196
          %v8199 = vmul.f32 0.5, %v8198
          %v8200 = vsub.f32 1.5, %v8199
          %v8201 = vmul.f32 %v8196, %v8200
          %vm8202 = vweird.f32 %v7930
          %vm8203 = vweird.f32 %v8196
          %vm8204 = vmor %vm8202, %vm8203
          %v8205 = vsel %vm8204, %v8196, %v8201
          %v8206 = vrsqrt.pop %v7931
          %v8207 = vmul.f32 %v8206, %v7931
          %v8208 = vmul.f32 %v8207, %v8206
          %v8209 = vmul.f32 0.5, %v8208
          %v8210 = vsub.f32 1.5, %v8209
          %v8211 = vmul.f32 %v8206, %v8210
          %vm8212 = vweird.f32 %v7931
          %vm8213 = vweird.f32 %v8206
          %vm8214 = vmor %vm8212, %vm8213
          %v8215 = vsel %vm8214, %v8206, %v8211
          %v8216 = vrsqrt.pop %v7932
          %v8217 = vmul.f32 %v8216, %v7932
          %v8218 = vmul.f32 %v8217, %v8216
          %v8219 = vmul.f32 0.5, %v8218
          %v8220 = vsub.f32 1.5, %v8219
          %v8221 = vmul.f32 %v8216, %v8220
          %vm8222 = vweird.f32 %v7932
          %vm8223 = vweird.f32 %v8216
          %vm8224 = vmor %vm8222, %vm8223
          %v8225 = vsel %vm8224, %v8216, %v8221
          %v8226 = vrsqrt.pop %v7933
          %v8227 = vmul.f32 %v8226, %v7933
          %v8228 = vmul.f32 %v8227, %v8226
          %v8229 = vmul.f32 0.5, %v8228
          %v8230 = vsub.f32 1.5, %v8229
          %v8231 = vmul.f32 %v8226, %v8230
          %vm8232 = vweird.f32 %v7933
          %vm8233 = vweird.f32 %v8226
          %vm8234 = vmor %vm8232, %vm8233
          %v8235 = vsel %vm8234, %v8226, %v8231
          %v8236 = vrsqrt.pop %v7934
          %v8237 = vmul.f32 %v8236, %v7934
          %v8238 = vmul.f32 %v8237, %v8236
          %v8239 = vmul.f32 0.5, %v8238
          %v8240 = vsub.f32 1.5, %v8239
          %v8241 = vmul.f32 %v8236, %v8240
          %vm8242 = vweird.f32 %v7934
          %vm8243 = vweird.f32 %v8236
          %vm8244 = vmor %vm8242, %vm8243
          %v8245 = vsel %vm8244, %v8236, %v8241
          %v8246 = vrsqrt.pop %v7935
          %v8247 = vmul.f32 %v8246, %v7935
          %v8248 = vmul.f32 %v8247, %v8246
          %v8249 = vmul.f32 0.5, %v8248
          %v8250 = vsub.f32 1.5, %v8249
          %v8251 = vmul.f32 %v8246, %v8250
          %vm8252 = vweird.f32 %v7935
          %vm8253 = vweird.f32 %v8246
          %vm8254 = vmor %vm8252, %vm8253
          %v8255 = vsel %vm8254, %v8246, %v8251
          %v8256 = vmul.f32 %v7707, %v7945
          %v8257 = vmul.f32 %v7708, %v7955
          %v8258 = vmul.f32 %v7709, %v7965
          %v8259 = vmul.f32 %v7710, %v7975
          %v8260 = vmul.f32 %v7711, %v7985
          %v8261 = vmul.f32 %v7712, %v7995
          %v8262 = vmul.f32 %v7713, %v8005
          %v8263 = vmul.f32 %v7714, %v8015
          %v8264 = vmul.f32 %v7715, %v8025
          %v8265 = vmul.f32 %v7716, %v8035
          %v8266 = vmul.f32 %v7717, %v8045
          %v8267 = vmul.f32 %v7718, %v8055
          %v8268 = vmul.f32 %v7719, %v8065
          %v8269 = vmul.f32 %v7720, %v8075
          %v8270 = vmul.f32 %v7721, %v8085
          %v8271 = vmul.f32 %v7722, %v8095
          %v8272 = vmul.f32 %v7723, %v8105
          %v8273 = vmul.f32 %v7724, %v8115
          %v8274 = vmul.f32 %v7725, %v8125
          %v8275 = vmul.f32 %v7726, %v8135
          %v8276 = vmul.f32 %v7727, %v8145
          %v8277 = vmul.f32 %v7728, %v8155
          %v8278 = vmul.f32 %v7729, %v8165
          %v8279 = vmul.f32 %v7730, %v8175
          %v8280 = vmul.f32 %v7731, %v8185
          %v8281 = vmul.f32 %v7732, %v8195
          %v8282 = vmul.f32 %v7733, %v8205
          %v8283 = vmul.f32 %v7734, %v8215
          %v8284 = vmul.f32 %v7735, %v8225
          %v8285 = vmul.f32 %v7736, %v8235
          %v8286 = vmul.f32 %v7737, %v8245
          %v8287 = vmul.f32 %v7738, %v8255
          %v8289 = vperm.slane %v7775, 0
          %v8291 = vmul.f32 %v8256, %v8289
          %v8292 = vmul.f32 %v8257, %v8289
          %v8293 = vmul.f32 %v8258, %v8289
          %v8294 = vmul.f32 %v8259, %v8289
          %v8295 = vmul.f32 %v8260, %v8289
          %v8296 = vmul.f32 %v8261, %v8289
          %v8297 = vmul.f32 %v8262, %v8289
          %v8298 = vmul.f32 %v8263, %v8289
          %v8299 = vmul.f32 %v8264, %v8289
          %v8300 = vmul.f32 %v8265, %v8289
          %v8301 = vmul.f32 %v8266, %v8289
          %v8302 = vmul.f32 %v8267, %v8289
          %v8303 = vmul.f32 %v8268, %v8289
          %v8304 = vmul.f32 %v8269, %v8289
          %v8305 = vmul.f32 %v8270, %v8289
          %v8306 = vmul.f32 %v8271, %v8289
          %v8307 = vmul.f32 %v8272, %v8289
          %v8308 = vmul.f32 %v8273, %v8289
          %v8309 = vmul.f32 %v8274, %v8289
          %v8310 = vmul.f32 %v8275, %v8289
          %v8311 = vmul.f32 %v8276, %v8289
          %v8312 = vmul.f32 %v8277, %v8289
          %v8313 = vmul.f32 %v8278, %v8289
          %v8314 = vmul.f32 %v8279, %v8289
          %v8315 = vmul.f32 %v8280, %v8289
          %v8316 = vmul.f32 %v8281, %v8289
          %v8317 = vmul.f32 %v8282, %v8289
          %v8318 = vmul.f32 %v8283, %v8289
          %v8319 = vmul.f32 %v8284, %v8289
          %v8320 = vmul.f32 %v8285, %v8289
          %v8321 = vmul.f32 %v8286, %v8289
          %v8322 = vmul.f32 %v8287, %v8289
          %v8323 = vlaneseq
          %v8324 = vshrl.u32 %v8323, 7
          %v8325 = vadd.s32 %v8324, 8
          %v8326 = vadd.s32 %v8324, 16
          %v8327 = vadd.s32 %v8324, 24
          %v8328 = vadd.s32 %v8324, 32
          %v8329 = vadd.s32 %v8324, 40
          %v8330 = vadd.s32 %v8324, 48
          %v8331 = vadd.s32 %v8324, 56
          %v8332 = vadd.s32 %v8324, 64
          %v8333 = vadd.s32 %v8324, 72
          %v8334 = vadd.s32 %v8324, 80
          %v8335 = vadd.s32 %v8324, 88
          %v8336 = vadd.s32 %v8324, 96
          %v8337 = vadd.s32 %v8324, 104
          %v8338 = vadd.s32 %v8324, 112
          %v8339 = vadd.s32 %v8324, 120
          %s8340 = sld [smem:[#allocation4]]
          %v8341 = vstv %s8340
          %vm8342 = vcmp.lt.s32.totalorder %v8324, %v8341
          %vm8343 = vcmp.lt.s32.totalorder %v8325, %v8341
          %vm8344 = vcmp.lt.s32.totalorder %v8326, %v8341
          %vm8345 = vcmp.lt.s32.totalorder %v8327, %v8341
          %vm8346 = vcmp.lt.s32.totalorder %v8328, %v8341
          %vm8347 = vcmp.lt.s32.totalorder %v8329, %v8341
          %vm8348 = vcmp.lt.s32.totalorder %v8330, %v8341
          %vm8349 = vcmp.lt.s32.totalorder %v8331, %v8341
          %vm8350 = vcmp.lt.s32.totalorder %v8332, %v8341
          %vm8351 = vcmp.lt.s32.totalorder %v8333, %v8341
          %vm8352 = vcmp.lt.s32.totalorder %v8334, %v8341
          %vm8353 = vcmp.lt.s32.totalorder %v8335, %v8341
          %vm8354 = vcmp.lt.s32.totalorder %v8336, %v8341
          %vm8355 = vcmp.lt.s32.totalorder %v8337, %v8341
          %vm8356 = vcmp.lt.s32.totalorder %v8338, %v8341
          %vm8357 = vcmp.lt.s32.totalorder %v8339, %v8341
          %v8358 = vsel %vm8342, %v8291, 0.0
          %v8359 = vsel %vm8343, %v8292, 0.0
          %v8360 = vsel %vm8344, %v8293, 0.0
          %v8361 = vsel %vm8345, %v8294, 0.0
          %v8362 = vsel %vm8346, %v8295, 0.0
          %v8363 = vsel %vm8347, %v8296, 0.0
          %v8364 = vsel %vm8348, %v8297, 0.0
          %v8365 = vsel %vm8349, %v8298, 0.0
          %v8366 = vsel %vm8350, %v8299, 0.0
          %v8367 = vsel %vm8351, %v8300, 0.0
          %v8368 = vsel %vm8352, %v8301, 0.0
          %v8369 = vsel %vm8353, %v8302, 0.0
          %v8370 = vsel %vm8354, %v8303, 0.0
          %v8371 = vsel %vm8355, %v8304, 0.0
          %v8372 = vsel %vm8356, %v8305, 0.0
          %v8373 = vsel %vm8357, %v8306, 0.0
          %8374 = vst [vmem:[#allocation16] sm:$0xff] %v8358
          %8375 = vst [vmem:[#allocation16 + $0x8] sm:$0xff] %v8359
          %8376 = vst [vmem:[#allocation16 + $0x10] sm:$0xff] %v8360
          %8377 = vst [vmem:[#allocation16 + $0x18] sm:$0xff] %v8361
          %8378 = vst [vmem:[#allocation16 + $0x20] sm:$0xff] %v8362
          %8379 = vst [vmem:[#allocation16 + $0x28] sm:$0xff] %v8363
          %8380 = vst [vmem:[#allocation16 + $0x30] sm:$0xff] %v8364
          %8381 = vst [vmem:[#allocation16 + $0x38] sm:$0xff] %v8365
          %8382 = vst [vmem:[#allocation16 + $0x40] sm:$0xff] %v8366
          %8383 = vst [vmem:[#allocation16 + $0x48] sm:$0xff] %v8367
          %8384 = vst [vmem:[#allocation16 + $0x50] sm:$0xff] %v8368
          %8385 = vst [vmem:[#allocation16 + $0x58] sm:$0xff] %v8369
          %8386 = vst [vmem:[#allocation16 + $0x60] sm:$0xff] %v8370
          %8387 = vst [vmem:[#allocation16 + $0x68] sm:$0xff] %v8371
          %8388 = vst [vmem:[#allocation16 + $0x70] sm:$0xff] %v8372
          %8389 = vst [vmem:[#allocation16 + $0x78] sm:$0xff] %v8373
          %s8390 = sld [smem:[#allocation4 + $0x1]]
          %v8391 = vstv %s8390
          %vm8392 = vcmp.lt.s32.totalorder %v8324, %v8391
          %vm8393 = vcmp.lt.s32.totalorder %v8325, %v8391
          %vm8394 = vcmp.lt.s32.totalorder %v8326, %v8391
          %vm8395 = vcmp.lt.s32.totalorder %v8327, %v8391
          %vm8396 = vcmp.lt.s32.totalorder %v8328, %v8391
          %vm8397 = vcmp.lt.s32.totalorder %v8329, %v8391
          %vm8398 = vcmp.lt.s32.totalorder %v8330, %v8391
          %vm8399 = vcmp.lt.s32.totalorder %v8331, %v8391
          %vm8400 = vcmp.lt.s32.totalorder %v8332, %v8391
          %vm8401 = vcmp.lt.s32.totalorder %v8333, %v8391
          %vm8402 = vcmp.lt.s32.totalorder %v8334, %v8391
          %vm8403 = vcmp.lt.s32.totalorder %v8335, %v8391
          %vm8404 = vcmp.lt.s32.totalorder %v8336, %v8391
          %vm8405 = vcmp.lt.s32.totalorder %v8337, %v8391
          %vm8406 = vcmp.lt.s32.totalorder %v8338, %v8391
          %vm8407 = vcmp.lt.s32.totalorder %v8339, %v8391
          %v8408 = vsel %vm8392, %v8307, 0.0
          %v8409 = vsel %vm8393, %v8308, 0.0
          %v8410 = vsel %vm8394, %v8309, 0.0
          %v8411 = vsel %vm8395, %v8310, 0.0
          %v8412 = vsel %vm8396, %v8311, 0.0
          %v8413 = vsel %vm8397, %v8312, 0.0
          %v8414 = vsel %vm8398, %v8313, 0.0
          %v8415 = vsel %vm8399, %v8314, 0.0
          %v8416 = vsel %vm8400, %v8315, 0.0
          %v8417 = vsel %vm8401, %v8316, 0.0
          %v8418 = vsel %vm8402, %v8317, 0.0
          %v8419 = vsel %vm8403, %v8318, 0.0
          %v8420 = vsel %vm8404, %v8319, 0.0
          %v8421 = vsel %vm8405, %v8320, 0.0
          %v8422 = vsel %vm8406, %v8321, 0.0
          %v8423 = vsel %vm8407, %v8322, 0.0
          %s8424 = scalar_lea.vmem [#allocation16], 128
          %8425 = vst [vmem:[%s8424] sm:$0xff] %v8408
          %8426 = vst [vmem:[%s8424 + $0x8] sm:$0xff] %v8409
          %8427 = vst [vmem:[%s8424 + $0x10] sm:$0xff] %v8410
          %8428 = vst [vmem:[%s8424 + $0x18] sm:$0xff] %v8411
          %8429 = vst [vmem:[%s8424 + $0x20] sm:$0xff] %v8412
          %8430 = vst [vmem:[%s8424 + $0x28] sm:$0xff] %v8413
          %8431 = vst [vmem:[%s8424 + $0x30] sm:$0xff] %v8414
          %8432 = vst [vmem:[%s8424 + $0x38] sm:$0xff] %v8415
          %8433 = vst [vmem:[%s8424 + $0x40] sm:$0xff] %v8416
          %8434 = vst [vmem:[%s8424 + $0x48] sm:$0xff] %v8417
          %8435 = vst [vmem:[%s8424 + $0x50] sm:$0xff] %v8418
          %8436 = vst [vmem:[%s8424 + $0x58] sm:$0xff] %v8419
          %8437 = vst [vmem:[%s8424 + $0x60] sm:$0xff] %v8420
          %8438 = vst [vmem:[%s8424 + $0x68] sm:$0xff] %v8421
          %8439 = vst [vmem:[%s8424 + $0x70] sm:$0xff] %v8422
          %8440 = vst [vmem:[%s8424 + $0x78] sm:$0xff] %v8423
        $region88: #{tpu_custom_call.1} parent=55 // pred_fallthru
          _
        // Predicated region
        $region89: #{tpu_custom_call.1} parent=55 // pred_check
          %p8441 = pneg %p277
        $region90: #{tpu_custom_call.1} parent=55 // pred_check_branch
          %8443 = sbr.rel (%p8441) target = $region92
        $region91: #{tpu_custom_call.1} parent=55 // pred_region
          %8445 = vsyncadd [#allocation7], 0
          %s8446 = sshll.u32 [#allocation16], 4
          %s8447 = int_to_ptr.vmem [resolvable:$true] %s8446
          %s8448 = sshll.u32 %s10, 4
          %s8449 = int_to_ptr.hbm [resolvable:$true] %s8448
          %8454 = dma.vmem_to_hbm [thread:$0]  %s8447, 4096, %s8449, [#allocation7], 128, 128, 8
        $region92: #{tpu_custom_call.1} parent=55 // pred_fallthru
          _
        // Predicated region
        $region93: #{tpu_custom_call.1} parent=55 // pred_check
          %p8455 = pneg %p277
        $region94: #{tpu_custom_call.1} parent=55 // pred_check_branch
          %8457 = sbr.rel (%p8455) target = $region96
        $region95: #{tpu_custom_call.1} parent=55 // pred_region
          %8459 = dma.done [#allocation7], 4096
        $region96: #{tpu_custom_call.1} parent=55 // pred_fallthru
          _
      $region56: #{tpu_custom_call.1} parent=5 // pred_fallthru
        _
      %p8460 = scmp.le.s32.totalorder 2, %s35
      // Predicated region
      $region97: #{tpu_custom_call.1} parent=5 // pred_check
        %p8461 = pneg %p8460
      $region98: #{tpu_custom_call.1} parent=5 // pred_check_branch
        %8463 = sbr.rel (%p8461) target = $region100
      $region99: #{tpu_custom_call.1} parent=5 // pred_region
        %s8464 = ssub.s32 %s35, 2
      $region100: #{tpu_custom_call.1} parent=5 // pred_fallthru
        _
    $region6: #{tpu_custom_call.1} parent=1 // loop_footer
      %s39 = sadd.s32 1, %s35
    $region7: #{tpu_custom_call.1} parent=1 // loop_footer_branch
      %34 = sbr.rel target = $region3
    $region8: #{tpu_custom_call.1} parent=1 // loop_exit
      _
    %8465 = vsyncpa [#allocation6], 1
    %s8466 = scalar_lea.sflag [#allocation6], 1
    %8467 = vsyncpa %s8466, 1
    %8468 = vsyncpa [#allocation9], 1
    %s8469 = scalar_lea.sflag [#allocation9], 1
    %8470 = vsyncpa %s8469, 1
    %8471 = vsyncpa [#allocation12], 1
    %s8472 = scalar_lea.sflag [#allocation12], 1
    %8473 = vsyncpa %s8472, 1
    %8474 = vsyncpa [#allocation15], 1
    %s8475 = scalar_lea.sflag [#allocation15], 1
    %8476 = vsyncpa %s8475, 1
    %8477 = vsyncpa [#allocation7], 1
    %s8478 = scalar_lea.sflag [#allocation7], 1
    %8479 = vsyncpa %s8478, 1

</llo_original>
